<compile_context>
chip_gen: v6e
topology: v6e:2x2x1
jax: 0.10.0
libtpu: 0.0.40
codegen_flags: <defaults>
</compile_context>

<pallas_src>
import jax
import jax.numpy as jnp
from jax import lax
from jax.experimental import pallas as pl
from jax.experimental.pallas import tpu as pltpu


_NEG_INF = float("-inf")
_TN_CAP = 512   # point-tile size: multiple of 256 (v6e/v7x MXU) and of 128 (v5e)


# ----------------------------------------------------------------------------
# Fused kernel: per-point MLP (conv1->conv2->conv3) -> running max over points
# -> (on the last point tile) ReLU + fc1 -> fc2 -> fc3 head.
# Grid: (batch, point_tiles); point_tiles axis is the reduction ('arbitrary').
# ----------------------------------------------------------------------------
def _make_tnet_kernel(n_valid, tn, n_tiles):
    need_mask = (tn * n_tiles) != n_valid

    def kernel(x_ref, w1_ref, b1_ref, w2_ref, b2_ref, w3_ref, b3_ref,
               f1w_ref, f1b_ref, f2w_ref, f2b_ref, f3w_ref, f3b_ref,
               out_ref, maxacc_ref):
        t = pl.program_id(1)

        @pl.when(t == 0)
        def _init():
            maxacc_ref[...] = jnp.full(maxacc_ref.shape, _NEG_INF,
                                       dtype=maxacc_ref.dtype)

        # Per-point MLP on this tile; bf16 MXU matmuls with f32 accumulation.
        x = x_ref[...].astype(jnp.bfloat16)                                # (3, TN)
        h1 = jnp.maximum(
            jnp.dot(w1_ref[...], x, preferred_element_type=jnp.float32)
            + b1_ref[...], 0.0)                                            # (64, TN)
        h2 = jnp.maximum(
            jnp.dot(w2_ref[...], h1.astype(jnp.bfloat16),
                    preferred_element_type=jnp.float32)
            + b2_ref[...], 0.0)                                            # (128, TN)
        # No ReLU here: it is applied once to the pooled feature instead.
        h3 = (jnp.dot(w3_ref[...], h2.astype(jnp.bfloat16),
                      preferred_element_type=jnp.float32)
              + b3_ref[...])                                               # (1024, TN)

        if need_mask:
            col = lax.broadcasted_iota(jnp.int32, (1, tn), 1) + t * tn
            h3 = jnp.where(col < n_valid, h3, _NEG_INF)

        maxacc_ref[...] = jnp.maximum(
            maxacc_ref[...], jnp.max(h3, axis=1, keepdims=True))           # (1024, 1)

        # FC head fused into the epilogue of the last point tile.
        @pl.when(t == n_tiles - 1)
        def _head():
            feat = jnp.maximum(maxacc_ref[...], 0.0).astype(jnp.bfloat16)  # (1024, 1)
            h4 = jnp.maximum(
                jnp.dot(f1w_ref[...], feat, preferred_element_type=jnp.float32)
                + f1b_ref[...], 0.0)                                       # (512, 1)
            h5 = jnp.maximum(
                jnp.dot(f2w_ref[...], h4.astype(jnp.bfloat16),
                        preferred_element_type=jnp.float32)
                + f2b_ref[...], 0.0)                                       # (256, 1)
            out_ref[...] = (
                jnp.dot(f3w_ref[...], h5.astype(jnp.bfloat16),
                        preferred_element_type=jnp.float32)
                + f3b_ref[...])                                            # (9, 1)

    return kernel


# ----------------------------------------------------------------------------
# Parameter construction / BN folding (glue).
# ----------------------------------------------------------------------------
def _fold_bn(w, b, gamma, beta, mean, var, eps=1e-5):
    """Fold inference-mode BatchNorm into a (C_out, C_in) linear layer."""
    scale = gamma / jnp.sqrt(var + eps)                 # (C_out,)
    return w * scale[:, None], (b - mean) * scale + beta


def _folded_weights(params):
    w1, b1 = _fold_bn(params["conv1_w"], params["conv1_b"], **params["bn1"])
    w2, b2 = _fold_bn(params["conv2_w"], params["conv2_b"], **params["bn2"])
    w3, b3 = _fold_bn(params["conv3_w"], params["conv3_b"], **params["bn3"])
    f1w, f1b = _fold_bn(params["fc1_w"], params["fc1_b"], **params["bn4"])
    f2w, f2b = _fold_bn(params["fc2_w"], params["fc2_b"], **params["bn5"])
    return (w1, b1), (w2, b2), (w3, b3), (f1w, f1b), (f2w, f2b), \
        (params["fc3_w"], params["fc3_b"])


def init_params(key):
    """Deterministic parameters matching TNet_3d shapes (weights as (C_out, C_in))."""
    ks = jax.random.split(key, 16)
    p = {}
    p["conv1_w"] = jax.random.normal(ks[0], (64, 3), jnp.float32) * 0.1
    p["conv1_b"] = jax.random.normal(ks[1], (64,), jnp.float32) * 0.05
    p["conv2_w"] = jax.random.normal(ks[2], (128, 64), jnp.float32) * 0.1
    p["conv2_b"] = jax.random.normal(ks[3], (128,), jnp.float32) * 0.05
    p["conv3_w"] = jax.random.normal(ks[4], (1024, 128), jnp.float32) * 0.1
    p["conv3_b"] = jax.random.normal(ks[5], (1024,), jnp.float32) * 0.05
    p["fc1_w"] = jax.random.normal(ks[6], (512, 1024), jnp.float32) * 0.05
    p["fc1_b"] = jax.random.normal(ks[7], (512,), jnp.float32) * 0.05
    p["fc2_w"] = jax.random.normal(ks[8], (256, 512), jnp.float32) * 0.05
    p["fc2_b"] = jax.random.normal(ks[9], (256,), jnp.float32) * 0.05
    p["fc3_w"] = jax.random.normal(ks[10], (9, 256), jnp.float32) * 0.05
    p["fc3_b"] = jax.random.normal(ks[11], (9,), jnp.float32) * 0.05

    def bn(k, c):
        k1, k2, k3, k4 = jax.random.split(k, 4)
        return dict(
            gamma=1.0 + 0.1 * jax.random.normal(k1, (c,), jnp.float32),
            beta=0.1 * jax.random.normal(k2, (c,), jnp.float32),
            mean=0.1 * jax.random.normal(k3, (c,), jnp.float32),
            var=1.0 + 0.1 * jax.nn.sigmoid(jax.random.normal(k4, (c,), jnp.float32)),
        )

    p["bn1"] = bn(ks[12], 64)
    p["bn2"] = bn(ks[13], 128)
    p["bn3"] = bn(ks[14], 1024)
    kk = jax.random.split(ks[15], 2)
    p["bn4"] = bn(kk[0], 512)
    p["bn5"] = bn(kk[1], 256)
    return p


# ----------------------------------------------------------------------------
# Forward wrapper.
# ----------------------------------------------------------------------------
@jax.jit
def tnet3d_forward(x_ncw, params):
    """x_ncw: (B, 3, N) float32 — same convention as the PyTorch module."""
    B, c_in, N = x_ncw.shape
    assert c_in == 3

    (w1, b1), (w2, b2), (w3, b3), (f1w, f1b), (f2w, f2b), (f3w, f3b) = (
        _folded_weights(params))

    # bf16 weights (native MXU dtype); f32 biases as (C, 1) columns for lane
    # broadcasting against (C, TN) activations.
    bf = jnp.bfloat16
    w1b, w2b, w3b = w1.astype(bf), w2.astype(bf), w3.astype(bf)
    f1wb, f2wb, f3wb = f1w.astype(bf), f2w.astype(bf), f3w.astype(bf)
    b1c, b2c, b3c = b1[:, None], b2[:, None], b3[:, None]
    f1bc, f2bc, f3bc = f1b[:, None], f2b[:, None], f3b[:, None]

    # Tile the point axis; zero-pad (padded columns are masked to -inf in-kernel).
    tn = N if N <= _TN_CAP else _TN_CAP
    n_tiles = -(-N // tn)
    n_pad = n_tiles * tn
    x = x_ncw.astype(jnp.float32)
    if n_pad != N:
        x = jnp.pad(x, ((0, 0), (0, 0), (0, n_pad - N)))

    kernel = _make_tnet_kernel(N, tn, n_tiles)
    const2 = lambda b, t: (0, 0)

    out = pl.pallas_call(
        kernel,
        out_shape=jax.ShapeDtypeStruct((B, 9, 1), jnp.float32),
        grid_spec=pltpu.PrefetchScalarGridSpec(
            num_scalar_prefetch=0,
            grid=(B, n_tiles),
            in_specs=[
                pl.BlockSpec((pl.Squeezed(), 3, tn), lambda b, t: (b, 0, t)),
                pl.BlockSpec((64, 3), const2),
                pl.BlockSpec((64, 1), const2),
                pl.BlockSpec((128, 64), const2),
                pl.BlockSpec((128, 1), const2),
                pl.BlockSpec((1024, 128), const2),
                pl.BlockSpec((1024, 1), const2),
                pl.BlockSpec((512, 1024), const2),
                pl.BlockSpec((512, 1), const2),
                pl.BlockSpec((256, 512), const2),
                pl.BlockSpec((256, 1), const2),
                pl.BlockSpec((9, 256), const2),
                pl.BlockSpec((9, 1), const2),
            ],
            out_specs=pl.BlockSpec((pl.Squeezed(), 9, 1), lambda b, t: (b, 0, 0)),
            scratch_shapes=[pltpu.VMEM((1024, 1), jnp.float32)],
        ),
        compiler_params=pltpu.CompilerParams(
            # TODO(synk): for B==1 on v7x, split point tiles across the two
            # TensorCores (leading grid axis of 2 + combine the partial maxes).
            dimension_semantics=("parallel", "arbitrary"),
            vmem_limit_bytes=32 * 1024 * 1024),
    )(x, w1b, b1c, w2b, b2c, w3b, b3c, f1wb, f1bc, f2wb, f2bc, f3wb, f3bc)

    logits = out[:, :, 0]                                    # (B, 9)
    iden = jnp.array([1, 0, 0, 0, 1, 0, 0, 0, 1], jnp.float32)[None, :]
    return (logits + iden).reshape(-1, 3, 3)


# ----------------------------------------------------------------------------
# Pure-JAX reference with identical bf16-input / f32-accumulate rounding.
# ----------------------------------------------------------------------------
def _reference_forward(x_ncw, params):
    (w1, b1), (w2, b2), (w3, b3), (f1w, f1b), (f2w, f2b), (f3w, f3b) = (
        _folded_weights(params))
    bf = jnp.bfloat16
    cdot = lambda w, h: jnp.einsum("oc,bcn->bon", w.astype(bf), h,
                                   preferred_element_type=jnp.float32)
    fdot = lambda w, h: jnp.einsum("oc,bc->bo", w.astype(bf), h,
                                   preferred_element_type=jnp.float32)
    x = x_ncw.astype(bf)
    h1 = jax.nn.relu(cdot(w1, x) + b1[None, :, None])
    h2 = jax.nn.relu(cdot(w2, h1.astype(bf)) + b2[None, :, None])
    h3 = cdot(w3, h2.astype(bf)) + b3[None, :, None]
    feat = jax.nn.relu(jnp.max(h3, axis=2))                  # (B, 1024)
    h4 = jax.nn.relu(fdot(f1w, feat.astype(bf)) + f1b[None, :])
    h5 = jax.nn.relu(fdot(f2w, h4.astype(bf)) + f2b[None, :])
    logits = fdot(f3w, h5.astype(bf)) + f3b[None, :]
    iden = jnp.array([1, 0, 0, 0, 1, 0, 0, 0, 1], jnp.float32)[None, :]
    return (logits + iden).reshape(-1, 3, 3)


if __name__ == "__main__":
    key = jax.random.PRNGKey(0)
    k_param, k_x1, k_x2 = jax.random.split(key, 3)
    params = init_params(k_param)

    # Small case: batch=2, 3 coords, 16 points (single point tile).
    B, N = 2, 16
    x_small = jax.random.normal(k_x1, (B, 3, N), jnp.float32)
    out_small = jax.block_until_ready(tnet3d_forward(x_small, params))
    ref_small = _reference_forward(x_small, params)
    assert out_small.shape == (B, 3, 3), out_small.shape
    err1 = float(jnp.max(jnp.abs(out_small - ref_small)))
    assert jnp.allclose(out_small, ref_small, atol=3e-2, rtol=3e-2), \
        f"small-case max abs err {err1}"

    # Larger case exercising point tiling + tail masking (N=1000 -> 2 tiles of 512).
    N2 = 1000
    x_big = jax.random.normal(k_x2, (B, 3, N2), jnp.float32)
    out_big = jax.block_until_ready(tnet3d_forward(x_big, params))
    ref_big = _reference_forward(x_big, params)
    err2 = float(jnp.max(jnp.abs(out_big - ref_big)))
    assert jnp.allclose(out_big, ref_big, atol=3e-2, rtol=3e-2), \
        f"tiled-case max abs err {err2}"

    print("KERNEL_OK")
</pallas_src>

<mosaic_0001>
module attributes {stable_mosaic.version = 11 : i64} {
  func.func @kernel(%arg0: i32, %arg1: i32, %arg2: memref<1x3x16xf32, #tpu.memory_space<vmem>>, %arg3: memref<64x3xbf16, #tpu.memory_space<vmem>>, %arg4: memref<64x1xf32, #tpu.memory_space<vmem>>, %arg5: memref<128x64xbf16, #tpu.memory_space<vmem>>, %arg6: memref<128x1xf32, #tpu.memory_space<vmem>>, %arg7: memref<1024x128xbf16, #tpu.memory_space<vmem>>, %arg8: memref<1024x1xf32, #tpu.memory_space<vmem>>, %arg9: memref<512x1024xbf16, #tpu.memory_space<vmem>>, %arg10: memref<512x1xf32, #tpu.memory_space<vmem>>, %arg11: memref<256x512xbf16, #tpu.memory_space<vmem>>, %arg12: memref<256x1xf32, #tpu.memory_space<vmem>>, %arg13: memref<9x256xbf16, #tpu.memory_space<vmem>>, %arg14: memref<9x1xf32, #tpu.memory_space<vmem>>, %arg15: memref<1x9x1xf32, #tpu.memory_space<vmem>>, %arg16: memref<1024x1xf32, #tpu.memory_space<vmem>>) attributes {dimension_semantics = [#tpu.dimension_semantics<parallel>, #tpu.dimension_semantics<arbitrary>], iteration_bounds = array<i64: 2, 1>, scalar_prefetch = 0 : i64, scratch_operands = 1 : i64, tpu.core_type = #tpu.core_type<tc>, window_params = [{transform_indices = @transform_0, window_bounds = array<i64: 1, 3, 16>}, {pipeline_mode = #tpu.pipeline_mode<synchronous>, transform_indices = @transform_1, window_bounds = array<i64: 64, 3>}, {pipeline_mode = #tpu.pipeline_mode<synchronous>, transform_indices = @transform_2, window_bounds = array<i64: 64, 1>}, {pipeline_mode = #tpu.pipeline_mode<synchronous>, transform_indices = @transform_3, window_bounds = array<i64: 128, 64>}, {pipeline_mode = #tpu.pipeline_mode<synchronous>, transform_indices = @transform_4, window_bounds = array<i64: 128, 1>}, {pipeline_mode = #tpu.pipeline_mode<synchronous>, transform_indices = @transform_5, window_bounds = array<i64: 1024, 128>}, {pipeline_mode = #tpu.pipeline_mode<synchronous>, transform_indices = @transform_6, window_bounds = array<i64: 1024, 1>}, {pipeline_mode = #tpu.pipeline_mode<synchronous>, transform_indices = @transform_7, window_bounds = array<i64: 512, 1024>}, {pipeline_mode = #tpu.pipeline_mode<synchronous>, transform_indices = @transform_8, window_bounds = array<i64: 512, 1>}, {pipeline_mode = #tpu.pipeline_mode<synchronous>, transform_indices = @transform_9, window_bounds = array<i64: 256, 512>}, {pipeline_mode = #tpu.pipeline_mode<synchronous>, transform_indices = @transform_10, window_bounds = array<i64: 256, 1>}, {pipeline_mode = #tpu.pipeline_mode<synchronous>, transform_indices = @transform_11, window_bounds = array<i64: 9, 256>}, {pipeline_mode = #tpu.pipeline_mode<synchronous>, transform_indices = @transform_12, window_bounds = array<i64: 9, 1>}, {transform_indices = @transform_13, window_bounds = array<i64: 1, 9, 1>}]} {
    %c0_i32 = arith.constant 0 : i32
    %0 = arith.cmpi eq, %arg1, %c0_i32 : i32
    %1 = arith.extui %0 : i1 to i32
    %c0_i32_0 = arith.constant 0 : i32
    %2 = arith.cmpi ne, %1, %c0_i32_0 : i32
    scf.if %2 {
      %cst_26 = arith.constant 0xFF800000 : f32
      %35 = vector.broadcast %cst_26 : f32 to vector<1024x1xf32>
      %c0_27 = arith.constant 0 : index
      %c0_28 = arith.constant 0 : index
      %36 = vector.load %arg16[%c0_27, %c0_28] : memref<1024x1xf32, #tpu.memory_space<vmem>>, vector<1024x1xf32>
      tpu.vector_store %arg16[%c0_27, %c0_28], %35 {strides = array<i32>} : memref<1024x1xf32, #tpu.memory_space<vmem>>, vector<1024x1xf32>,
    } else {
    }
    %c0 = arith.constant 0 : index
    %c0_1 = arith.constant 0 : index
    %c0_2 = arith.constant 0 : index
    %3 = vector.load %arg2[%c0, %c0_1, %c0_2] : memref<1x3x16xf32, #tpu.memory_space<vmem>>, vector<1x3x16xf32>
    %4 = vector.shape_cast %3 : vector<1x3x16xf32> to vector<3x16xf32>
    %5 = arith.truncf %4 : vector<3x16xf32> to vector<3x16xbf16>
    %c0_3 = arith.constant 0 : index
    %c0_4 = arith.constant 0 : index
    %6 = vector.load %arg3[%c0_3, %c0_4] : memref<64x3xbf16, #tpu.memory_space<vmem>>, vector<64x3xbf16>
    %cst = arith.constant dense<0.000000e+00> : vector<64x16xf32>
    %7 = tpu.matmul %6, %5, %cst {dimension_numbers = #tpu.dot_dimension_numbers<[1], [0], [0], [1], [0, 0, 1, 1], [], []>} : vector<64x3xbf16>, vector<3x16xbf16>, vector<64x16xf32> -> vector<64x16xf32>
    %c0_5 = arith.constant 0 : index
    %c0_6 = arith.constant 0 : index
    %8 = vector.load %arg4[%c0_5, %c0_6] : memref<64x1xf32, #tpu.memory_space<vmem>>, vector<64x1xf32>
    %9 = vector.broadcast %8 : vector<64x1xf32> to vector<64x16xf32>
    %10 = arith.addf %7, %9 : vector<64x16xf32>
    %cst_7 = arith.constant 0.000000e+00 : f32
    %11 = vector.broadcast %cst_7 : f32 to vector<64x16xf32>
    %12 = arith.maximumf %10, %11 : vector<64x16xf32>
    %c0_8 = arith.constant 0 : index
    %c0_9 = arith.constant 0 : index
    %13 = vector.load %arg5[%c0_8, %c0_9] : memref<128x64xbf16, #tpu.memory_space<vmem>>, vector<128x64xbf16>
    %14 = arith.truncf %12 : vector<64x16xf32> to vector<64x16xbf16>
    %cst_10 = arith.constant dense<0.000000e+00> : vector<128x16xf32>
    %15 = tpu.matmul %13, %14, %cst_10 {dimension_numbers = #tpu.dot_dimension_numbers<[1], [0], [0], [1], [0, 0, 1, 1], [], []>} : vector<128x64xbf16>, vector<64x16xbf16>, vector<128x16xf32> -> vector<128x16xf32>
    %c0_11 = arith.constant 0 : index
    %c0_12 = arith.constant 0 : index
    %16 = vector.load %arg6[%c0_11, %c0_12] : memref<128x1xf32, #tpu.memory_space<vmem>>, vector<128x1xf32>
    %17 = vector.broadcast %16 : vector<128x1xf32> to vector<128x16xf32>
    %18 = arith.addf %15, %17 : vector<128x16xf32>
    %cst_13 = arith.constant 0.000000e+00 : f32
    %19 = vector.broadcast %cst_13 : f32 to vector<128x16xf32>
    %20 = arith.maximumf %18, %19 : vector<128x16xf32>
    %c0_14 = arith.constant 0 : index
    %c0_15 = arith.constant 0 : index
    %21 = vector.load %arg7[%c0_14, %c0_15] : memref<1024x128xbf16, #tpu.memory_space<vmem>>, vector<1024x128xbf16>
    %22 = arith.truncf %20 : vector<128x16xf32> to vector<128x16xbf16>
    %cst_16 = arith.constant dense<0.000000e+00> : vector<1024x16xf32>
    %23 = tpu.matmul %21, %22, %cst_16 {dimension_numbers = #tpu.dot_dimension_numbers<[1], [0], [0], [1], [0, 0, 1, 1], [], []>} : vector<1024x128xbf16>, vector<128x16xbf16>, vector<1024x16xf32> -> vector<1024x16xf32>
    %c0_17 = arith.constant 0 : index
    %c0_18 = arith.constant 0 : index
    %24 = vector.load %arg8[%c0_17, %c0_18] : memref<1024x1xf32, #tpu.memory_space<vmem>>, vector<1024x1xf32>
    %25 = vector.broadcast %24 : vector<1024x1xf32> to vector<1024x16xf32>
    %26 = arith.addf %23, %25 : vector<1024x16xf32>
    %c0_19 = arith.constant 0 : index
    %c0_20 = arith.constant 0 : index
    %27 = vector.load %arg16[%c0_19, %c0_20] : memref<1024x1xf32, #tpu.memory_space<vmem>>, vector<1024x1xf32>
    %cst_21 = arith.constant dense<0xFF800000> : vector<1024xf32>
    %28 = vector.multi_reduction <maximumf>, %26, %cst_21 [1] : vector<1024x16xf32> to vector<1024xf32>
    %29 = vector.shape_cast %28 : vector<1024xf32> to vector<1024x1xf32>
    %30 = arith.maximumf %27, %29 : vector<1024x1xf32>
    %c0_22 = arith.constant 0 : index
    %c0_23 = arith.constant 0 : index
    %31 = vector.load %arg16[%c0_22, %c0_23] : memref<1024x1xf32, #tpu.memory_space<vmem>>, vector<1024x1xf32>
    tpu.vector_store %arg16[%c0_22, %c0_23], %30 {strides = array<i32>} : memref<1024x1xf32, #tpu.memory_space<vmem>>, vector<1024x1xf32>,
    %c0_i32_24 = arith.constant 0 : i32
    %32 = arith.cmpi eq, %arg1, %c0_i32_24 : i32
    %33 = arith.extui %32 : i1 to i32
    %c0_i32_25 = arith.constant 0 : i32
    %34 = arith.cmpi ne, %33, %c0_i32_25 : i32
    scf.if %34 {
      %c0_26 = arith.constant 0 : index
      %c0_27 = arith.constant 0 : index
      %35 = vector.load %arg16[%c0_26, %c0_27] : memref<1024x1xf32, #tpu.memory_space<vmem>>, vector<1024x1xf32>
      %cst_28 = arith.constant 0.000000e+00 : f32
      %36 = vector.broadcast %cst_28 : f32 to vector<1024x1xf32>
      %37 = arith.maximumf %35, %36 : vector<1024x1xf32>
      %38 = arith.truncf %37 : vector<1024x1xf32> to vector<1024x1xbf16>
      %c0_29 = arith.constant 0 : index
      %c0_30 = arith.constant 0 : index
      %39 = vector.load %arg9[%c0_29, %c0_30] : memref<512x1024xbf16, #tpu.memory_space<vmem>>, vector<512x1024xbf16>
      %cst_31 = arith.constant dense<0.000000e+00> : vector<512x1xf32>
      %40 = tpu.matmul %39, %38, %cst_31 {dimension_numbers = #tpu.dot_dimension_numbers<[1], [0], [0], [1], [0, 0, 1, 1], [], []>} : vector<512x1024xbf16>, vector<1024x1xbf16>, vector<512x1xf32> -> vector<512x1xf32>
      %c0_32 = arith.constant 0 : index
      %c0_33 = arith.constant 0 : index
      %41 = vector.load %arg10[%c0_32, %c0_33] : memref<512x1xf32, #tpu.memory_space<vmem>>, vector<512x1xf32>
      %42 = arith.addf %40, %41 : vector<512x1xf32>
      %cst_34 = arith.constant 0.000000e+00 : f32
      %43 = vector.broadcast %cst_34 : f32 to vector<512x1xf32>
      %44 = arith.maximumf %42, %43 : vector<512x1xf32>
      %c0_35 = arith.constant 0 : index
      %c0_36 = arith.constant 0 : index
      %45 = vector.load %arg11[%c0_35, %c0_36] : memref<256x512xbf16, #tpu.memory_space<vmem>>, vector<256x512xbf16>
      %46 = arith.truncf %44 : vector<512x1xf32> to vector<512x1xbf16>
      %cst_37 = arith.constant dense<0.000000e+00> : vector<256x1xf32>
      %47 = tpu.matmul %45, %46, %cst_37 {dimension_numbers = #tpu.dot_dimension_numbers<[1], [0], [0], [1], [0, 0, 1, 1], [], []>} : vector<256x512xbf16>, vector<512x1xbf16>, vector<256x1xf32> -> vector<256x1xf32>
      %c0_38 = arith.constant 0 : index
      %c0_39 = arith.constant 0 : index
      %48 = vector.load %arg12[%c0_38, %c0_39] : memref<256x1xf32, #tpu.memory_space<vmem>>, vector<256x1xf32>
      %49 = arith.addf %47, %48 : vector<256x1xf32>
      %cst_40 = arith.constant 0.000000e+00 : f32
      %50 = vector.broadcast %cst_40 : f32 to vector<256x1xf32>
      %51 = arith.maximumf %49, %50 : vector<256x1xf32>
      %c0_41 = arith.constant 0 : index
      %c0_42 = arith.constant 0 : index
      %52 = vector.load %arg13[%c0_41, %c0_42] : memref<9x256xbf16, #tpu.memory_space<vmem>>, vector<9x256xbf16>
      %53 = arith.truncf %51 : vector<256x1xf32> to vector<256x1xbf16>
      %cst_43 = arith.constant dense<0.000000e+00> : vector<9x1xf32>
      %54 = tpu.matmul %52, %53, %cst_43 {dimension_numbers = #tpu.dot_dimension_numbers<[1], [0], [0], [1], [0, 0, 1, 1], [], []>} : vector<9x256xbf16>, vector<256x1xbf16>, vector<9x1xf32> -> vector<9x1xf32>
      %c0_44 = arith.constant 0 : index
      %c0_45 = arith.constant 0 : index
      %55 = vector.load %arg14[%c0_44, %c0_45] : memref<9x1xf32, #tpu.memory_space<vmem>>, vector<9x1xf32>
      %56 = arith.addf %54, %55 : vector<9x1xf32>
      %c0_46 = arith.constant 0 : index
      %c0_47 = arith.constant 0 : index
      %c0_48 = arith.constant 0 : index
      %57 = vector.load %arg15[%c0_46, %c0_47, %c0_48] : memref<1x9x1xf32, #tpu.memory_space<vmem>>, vector<1x9x1xf32>
      %58 = vector.shape_cast %57 : vector<1x9x1xf32> to vector<9x1xf32>
      %59 = vector.shape_cast %56 : vector<9x1xf32> to vector<1x9x1xf32>
      tpu.vector_store %arg15[%c0_46, %c0_47, %c0_48], %59 {strides = array<i32>} : memref<1x9x1xf32, #tpu.memory_space<vmem>>, vector<1x9x1xf32>,
    } else {
    }
    return
  }
  func.func @transform_0(%arg0: i32, %arg1: i32) -> (i32, i32, i32) {
    %c0_i32 = arith.constant 0 : i32
    %c0_i32_0 = arith.constant 0 : i32
    return %arg0, %c0_i32, %arg1 : i32, i32, i32
  }
  func.func @transform_1(%arg0: i32, %arg1: i32) -> (i32, i32) {
    %c0_i32 = arith.constant 0 : i32
    %c0_i32_0 = arith.constant 0 : i32
    %c0_i32_1 = arith.constant 0 : i32
    return %c0_i32, %c0_i32_0 : i32, i32
  }
  func.func @transform_2(%arg0: i32, %arg1: i32) -> (i32, i32) {
    %c0_i32 = arith.constant 0 : i32
    %c0_i32_0 = arith.constant 0 : i32
    %c0_i32_1 = arith.constant 0 : i32
    return %c0_i32, %c0_i32_0 : i32, i32
  }
  func.func @transform_3(%arg0: i32, %arg1: i32) -> (i32, i32) {
    %c0_i32 = arith.constant 0 : i32
    %c0_i32_0 = arith.constant 0 : i32
    %c0_i32_1 = arith.constant 0 : i32
    return %c0_i32, %c0_i32_0 : i32, i32
  }
  func.func @transform_4(%arg0: i32, %arg1: i32) -> (i32, i32) {
    %c0_i32 = arith.constant 0 : i32
    %c0_i32_0 = arith.constant 0 : i32
    %c0_i32_1 = arith.constant 0 : i32
    return %c0_i32, %c0_i32_0 : i32, i32
  }
  func.func @transform_5(%arg0: i32, %arg1: i32) -> (i32, i32) {
    %c0_i32 = arith.constant 0 : i32
    %c0_i32_0 = arith.constant 0 : i32
    %c0_i32_1 = arith.constant 0 : i32
    return %c0_i32, %c0_i32_0 : i32, i32
  }
  func.func @transform_6(%arg0: i32, %arg1: i32) -> (i32, i32) {
    %c0_i32 = arith.constant 0 : i32
    %c0_i32_0 = arith.constant 0 : i32
    %c0_i32_1 = arith.constant 0 : i32
    return %c0_i32, %c0_i32_0 : i32, i32
  }
  func.func @transform_7(%arg0: i32, %arg1: i32) -> (i32, i32) {
    %c0_i32 = arith.constant 0 : i32
    %c0_i32_0 = arith.constant 0 : i32
    %c0_i32_1 = arith.constant 0 : i32
    return %c0_i32, %c0_i32_0 : i32, i32
  }
  func.func @transform_8(%arg0: i32, %arg1: i32) -> (i32, i32) {
    %c0_i32 = arith.constant 0 : i32
    %c0_i32_0 = arith.constant 0 : i32
    %c0_i32_1 = arith.constant 0 : i32
    return %c0_i32, %c0_i32_0 : i32, i32
  }
  func.func @transform_9(%arg0: i32, %arg1: i32) -> (i32, i32) {
    %c0_i32 = arith.constant 0 : i32
    %c0_i32_0 = arith.constant 0 : i32
    %c0_i32_1 = arith.constant 0 : i32
    return %c0_i32, %c0_i32_0 : i32, i32
  }
  func.func @transform_10(%arg0: i32, %arg1: i32) -> (i32, i32) {
    %c0_i32 = arith.constant 0 : i32
    %c0_i32_0 = arith.constant 0 : i32
    %c0_i32_1 = arith.constant 0 : i32
    return %c0_i32, %c0_i32_0 : i32, i32
  }
  func.func @transform_11(%arg0: i32, %arg1: i32) -> (i32, i32) {
    %c0_i32 = arith.constant 0 : i32
    %c0_i32_0 = arith.constant 0 : i32
    %c0_i32_1 = arith.constant 0 : i32
    return %c0_i32, %c0_i32_0 : i32, i32
  }
  func.func @transform_12(%arg0: i32, %arg1: i32) -> (i32, i32) {
    %c0_i32 = arith.constant 0 : i32
    %c0_i32_0 = arith.constant 0 : i32
    %c0_i32_1 = arith.constant 0 : i32
    return %c0_i32, %c0_i32_0 : i32, i32
  }
  func.func @transform_13(%arg0: i32, %arg1: i32) -> (i32, i32, i32) {
    %c0_i32 = arith.constant 0 : i32
    %c0_i32_0 = arith.constant 0 : i32
    %c0_i32_1 = arith.constant 0 : i32
    return %arg0, %c0_i32, %c0_i32_0 : i32, i32, i32
  }
}

</mosaic_0001>

<llo_original>
// kernel: tnet3d_forward.1
$region0: #{tnet3d_forward.1}
  #allocation0 [shape = 'u32[]', space=smem, size = 0x4, offset = 0x4, fixed_abs, tag = 'smem constant byte address 0x4 - core index']
  #allocation1 [shape = 'u32[144,128]{1,0:T(1,128)}', space=vmem, size = 0x12000, scoped, tag = 'internal scratch']
  #allocation2 [shape = 'f32[1024,1]{1,0:T(8,128)}', space=vmem, size = 0x80000, scoped, tag = 'scratch operand']
  %s0 = inlined_call_operand.vmem [shape: f32[2,3,16], index: 0, kind: input, shape index: {}]
  %s1 = inlined_call_operand.vmem [shape: bf16[64,3], index: 1, kind: input, shape index: {}]
  %s2 = inlined_call_operand.vmem [shape: f32[64,1], index: 2, kind: input, shape index: {}]
  %s3 = inlined_call_operand.vmem [shape: bf16[128,64], index: 3, kind: input, shape index: {}]
  %s4 = inlined_call_operand.vmem [shape: f32[128,1], index: 4, kind: input, shape index: {}]
  %s5 = inlined_call_operand.vmem [shape: bf16[1024,128], index: 5, kind: input, shape index: {}]
  %s6 = inlined_call_operand.vmem [shape: f32[1024,1], index: 6, kind: input, shape index: {}]
  %s7 = inlined_call_operand.vmem [shape: bf16[512,1024], index: 7, kind: input, shape index: {}]
  %s8 = inlined_call_operand.vmem [shape: f32[512,1], index: 8, kind: input, shape index: {}]
  %s9 = inlined_call_operand.vmem [shape: bf16[256,512], index: 9, kind: input, shape index: {}]
  %s10 = inlined_call_operand.vmem [shape: f32[256,1], index: 10, kind: input, shape index: {}]
  %s11 = inlined_call_operand.vmem [shape: bf16[9,256], index: 11, kind: input, shape index: {}]
  %s12 = inlined_call_operand.vmem [shape: f32[9,1], index: 12, kind: input, shape index: {}]
  %s13 = inlined_call_operand.vmem [shape: f32[2,9,1], index: 13, kind: output, shape index: {}]
  %s14 = sld [smem:[#allocation0]]
  $region93: #{tnet3d_forward.1} parent=0
    _
  %s16 = ssub.s32 1, %s14
  %s17 = scalar_select 0, %s16, %s14
  loop: start=0, step=1, limit=4
  $region2: #{tnet3d_forward.1} parent=0 // loop_pre_header
    _
  $region3: #{tnet3d_forward.1} parent=0 // loop_header
    %s19 = sphi 0, %s23
    %p20 = scmp.ge.s32.totalorder %s19, 4
    %s26 = sphi 0, %s38
    %s27 = sphi 0, %s34
    %s28 = sphi 0, %s26
    %s29 = sphi 0, %s27
    %s30 = sphi 0, %s28
    %s31 = sphi 0, %s29
    %s43 = sphi 0, %s45
    %s46 = sphi 0, %s43
    %s47 = sphi 0, %s46
    %s63 = sphi 0, %s47
    %s67 = sphi 0, %s67
    %s69 = sphi 0, %s67
    %s70 = sphi 0, %s69
    %s84 = sphi 0, %s70
    %s88 = sphi 0, %s88
    %s90 = sphi 0, %s88
    %s91 = sphi 0, %s90
    %s105 = sphi 0, %s91
    %s109 = sphi 0, %s109
    %s111 = sphi 0, %s109
    %s112 = sphi 0, %s111
    %s126 = sphi 0, %s112
    %s130 = sphi 0, %s130
    %s132 = sphi 0, %s130
    %s133 = sphi 0, %s132
    %s147 = sphi 0, %s133
    %s151 = sphi 0, %s151
    %s153 = sphi 0, %s151
    %s154 = sphi 0, %s153
    %s168 = sphi 0, %s154
    %s172 = sphi 0, %s172
    %s174 = sphi 0, %s172
    %s175 = sphi 0, %s174
    %s189 = sphi 0, %s175
    %s193 = sphi 0, %s193
    %s195 = sphi 0, %s193
    %s196 = sphi 0, %s195
    %s210 = sphi 0, %s196
    %s214 = sphi 0, %s214
    %s216 = sphi 0, %s214
    %s217 = sphi 0, %s216
    %s231 = sphi 0, %s217
    %s235 = sphi 0, %s235
    %s237 = sphi 0, %s235
    %s238 = sphi 0, %s237
    %s252 = sphi 0, %s238
    %s256 = sphi 0, %s256
    %s258 = sphi 0, %s256
    %s259 = sphi 0, %s258
    %s273 = sphi 0, %s259
    %s277 = sphi 0, %s277
    %s279 = sphi 0, %s277
    %s280 = sphi 0, %s279
    %s294 = sphi 0, %s280
    %s298 = sphi 0, %s298
    %s300 = sphi 0, %s298
    %s301 = sphi 0, %s300
    %s315 = sphi 0, %s301
    %s321 = sphi 0, %s323
    %s324 = sphi 0, %s321
    %s325 = sphi 0, %s324
    %s341 = sphi 0, %s325
  $region4: #{tnet3d_forward.1} parent=0 // loop_header_branch
    %22 = sbr.rel (%p20) target = $region8
  $region5: #{tnet3d_forward.1} parent=0 // loop_body
    %s24 = ssub.s32 %s19, 1
    %s25 = ssub.s32 %s19, 2
    %s32 = sadd.s32 1, %s27
    %p33 = scmp.ge.s32.totalorder %s32, 1
    %s34 = scalar_select %p33, 0, %s32
    %s35 = sadd.s32 1, %s26
    %s36 = scalar_select %p33, %s35, %s26
    %p37 = scmp.ge.s32.totalorder %s36, 2
    %s38 = scalar_select %p37, 0, %s36
    %s39 = ssub.s32 %s26, %s38
    %s40 = ssub.s32 %s27, %s34
    %s41 = sor.u32 %s39, %s40
    %p42 = scmp.eq.s32.totalorder %s41, 0
    %s44 = sadd.s32 %s43, 1
    %s45 = scalar_select %p42, %s43, %s44
    %p48 = pneg %p42
    %p49 = scmp.eq.s32.totalorder %s19, 1
    %p50 = por %p48, %p49
    %p51 = scmp.ne.s32.totalorder %s43, %s46
    %p52 = scmp.eq.s32.totalorder %s19, 0
    %p53 = por %p51, %p52
    %p54 = scmp.ne.s32.totalorder %s43, %s46
    %p55 = scmp.eq.s32.totalorder %s24, 1
    %p56 = por %p54, %p55
    %p57 = scmp.ne.s32.totalorder %s46, %s47
    %p58 = scmp.eq.s32.totalorder %s24, 0
    %p59 = por %p57, %p58
    %p60 = scmp.ne.s32.totalorder %s46, %s47
    %p61 = scmp.eq.s32.totalorder %s25, 1
    %p62 = por %p60, %p61
    %p64 = scmp.ne.s32.totalorder %s47, %s63
    %p65 = scmp.eq.s32.totalorder %s25, 0
    %p66 = por %p64, %p65
    %s68 = sadd.s32 %s67, 1
    %p71 = scmp.eq.s32.totalorder %s19, 1
    %p72 = scmp.ne.s32.totalorder %s67, %s69
    %p73 = scmp.eq.s32.totalorder %s19, 0
    %p74 = por %p72, %p73
    %p75 = scmp.ne.s32.totalorder %s67, %s69
    %p76 = scmp.eq.s32.totalorder %s24, 1
    %p77 = por %p75, %p76
    %p78 = scmp.ne.s32.totalorder %s69, %s70
    %p79 = scmp.eq.s32.totalorder %s24, 0
    %p80 = por %p78, %p79
    %p81 = scmp.ne.s32.totalorder %s69, %s70
    %p82 = scmp.eq.s32.totalorder %s25, 1
    %p83 = por %p81, %p82
    %p85 = scmp.ne.s32.totalorder %s70, %s84
    %p86 = scmp.eq.s32.totalorder %s25, 0
    %p87 = por %p85, %p86
    %s89 = sadd.s32 %s88, 1
    %p92 = scmp.eq.s32.totalorder %s19, 1
    %p93 = scmp.ne.s32.totalorder %s88, %s90
    %p94 = scmp.eq.s32.totalorder %s19, 0
    %p95 = por %p93, %p94
    %p96 = scmp.ne.s32.totalorder %s88, %s90
    %p97 = scmp.eq.s32.totalorder %s24, 1
    %p98 = por %p96, %p97
    %p99 = scmp.ne.s32.totalorder %s90, %s91
    %p100 = scmp.eq.s32.totalorder %s24, 0
    %p101 = por %p99, %p100
    %p102 = scmp.ne.s32.totalorder %s90, %s91
    %p103 = scmp.eq.s32.totalorder %s25, 1
    %p104 = por %p102, %p103
    %p106 = scmp.ne.s32.totalorder %s91, %s105
    %p107 = scmp.eq.s32.totalorder %s25, 0
    %p108 = por %p106, %p107
    %s110 = sadd.s32 %s109, 1
    %p113 = scmp.eq.s32.totalorder %s19, 1
    %p114 = scmp.ne.s32.totalorder %s109, %s111
    %p115 = scmp.eq.s32.totalorder %s19, 0
    %p116 = por %p114, %p115
    %p117 = scmp.ne.s32.totalorder %s109, %s111
    %p118 = scmp.eq.s32.totalorder %s24, 1
    %p119 = por %p117, %p118
    %p120 = scmp.ne.s32.totalorder %s111, %s112
    %p121 = scmp.eq.s32.totalorder %s24, 0
    %p122 = por %p120, %p121
    %p123 = scmp.ne.s32.totalorder %s111, %s112
    %p124 = scmp.eq.s32.totalorder %s25, 1
    %p125 = por %p123, %p124
    %p127 = scmp.ne.s32.totalorder %s112, %s126
    %p128 = scmp.eq.s32.totalorder %s25, 0
    %p129 = por %p127, %p128
    %s131 = sadd.s32 %s130, 1
    %p134 = scmp.eq.s32.totalorder %s19, 1
    %p135 = scmp.ne.s32.totalorder %s130, %s132
    %p136 = scmp.eq.s32.totalorder %s19, 0
    %p137 = por %p135, %p136
    %p138 = scmp.ne.s32.totalorder %s130, %s132
    %p139 = scmp.eq.s32.totalorder %s24, 1
    %p140 = por %p138, %p139
    %p141 = scmp.ne.s32.totalorder %s132, %s133
    %p142 = scmp.eq.s32.totalorder %s24, 0
    %p143 = por %p141, %p142
    %p144 = scmp.ne.s32.totalorder %s132, %s133
    %p145 = scmp.eq.s32.totalorder %s25, 1
    %p146 = por %p144, %p145
    %p148 = scmp.ne.s32.totalorder %s133, %s147
    %p149 = scmp.eq.s32.totalorder %s25, 0
    %p150 = por %p148, %p149
    %s152 = sadd.s32 %s151, 1
    %p155 = scmp.eq.s32.totalorder %s19, 1
    %p156 = scmp.ne.s32.totalorder %s151, %s153
    %p157 = scmp.eq.s32.totalorder %s19, 0
    %p158 = por %p156, %p157
    %p159 = scmp.ne.s32.totalorder %s151, %s153
    %p160 = scmp.eq.s32.totalorder %s24, 1
    %p161 = por %p159, %p160
    %p162 = scmp.ne.s32.totalorder %s153, %s154
    %p163 = scmp.eq.s32.totalorder %s24, 0
    %p164 = por %p162, %p163
    %p165 = scmp.ne.s32.totalorder %s153, %s154
    %p166 = scmp.eq.s32.totalorder %s25, 1
    %p167 = por %p165, %p166
    %p169 = scmp.ne.s32.totalorder %s154, %s168
    %p170 = scmp.eq.s32.totalorder %s25, 0
    %p171 = por %p169, %p170
    %s173 = sadd.s32 %s172, 1
    %p176 = scmp.eq.s32.totalorder %s19, 1
    %p177 = scmp.ne.s32.totalorder %s172, %s174
    %p178 = scmp.eq.s32.totalorder %s19, 0
    %p179 = por %p177, %p178
    %p180 = scmp.ne.s32.totalorder %s172, %s174
    %p181 = scmp.eq.s32.totalorder %s24, 1
    %p182 = por %p180, %p181
    %p183 = scmp.ne.s32.totalorder %s174, %s175
    %p184 = scmp.eq.s32.totalorder %s24, 0
    %p185 = por %p183, %p184
    %p186 = scmp.ne.s32.totalorder %s174, %s175
    %p187 = scmp.eq.s32.totalorder %s25, 1
    %p188 = por %p186, %p187
    %p190 = scmp.ne.s32.totalorder %s175, %s189
    %p191 = scmp.eq.s32.totalorder %s25, 0
    %p192 = por %p190, %p191
    %s194 = sadd.s32 %s193, 1
    %p197 = scmp.eq.s32.totalorder %s19, 1
    %p198 = scmp.ne.s32.totalorder %s193, %s195
    %p199 = scmp.eq.s32.totalorder %s19, 0
    %p200 = por %p198, %p199
    %p201 = scmp.ne.s32.totalorder %s193, %s195
    %p202 = scmp.eq.s32.totalorder %s24, 1
    %p203 = por %p201, %p202
    %p204 = scmp.ne.s32.totalorder %s195, %s196
    %p205 = scmp.eq.s32.totalorder %s24, 0
    %p206 = por %p204, %p205
    %p207 = scmp.ne.s32.totalorder %s195, %s196
    %p208 = scmp.eq.s32.totalorder %s25, 1
    %p209 = por %p207, %p208
    %p211 = scmp.ne.s32.totalorder %s196, %s210
    %p212 = scmp.eq.s32.totalorder %s25, 0
    %p213 = por %p211, %p212
    %s215 = sadd.s32 %s214, 1
    %p218 = scmp.eq.s32.totalorder %s19, 1
    %p219 = scmp.ne.s32.totalorder %s214, %s216
    %p220 = scmp.eq.s32.totalorder %s19, 0
    %p221 = por %p219, %p220
    %p222 = scmp.ne.s32.totalorder %s214, %s216
    %p223 = scmp.eq.s32.totalorder %s24, 1
    %p224 = por %p222, %p223
    %p225 = scmp.ne.s32.totalorder %s216, %s217
    %p226 = scmp.eq.s32.totalorder %s24, 0
    %p227 = por %p225, %p226
    %p228 = scmp.ne.s32.totalorder %s216, %s217
    %p229 = scmp.eq.s32.totalorder %s25, 1
    %p230 = por %p228, %p229
    %p232 = scmp.ne.s32.totalorder %s217, %s231
    %p233 = scmp.eq.s32.totalorder %s25, 0
    %p234 = por %p232, %p233
    %s236 = sadd.s32 %s235, 1
    %p239 = scmp.eq.s32.totalorder %s19, 1
    %p240 = scmp.ne.s32.totalorder %s235, %s237
    %p241 = scmp.eq.s32.totalorder %s19, 0
    %p242 = por %p240, %p241
    %p243 = scmp.ne.s32.totalorder %s235, %s237
    %p244 = scmp.eq.s32.totalorder %s24, 1
    %p245 = por %p243, %p244
    %p246 = scmp.ne.s32.totalorder %s237, %s238
    %p247 = scmp.eq.s32.totalorder %s24, 0
    %p248 = por %p246, %p247
    %p249 = scmp.ne.s32.totalorder %s237, %s238
    %p250 = scmp.eq.s32.totalorder %s25, 1
    %p251 = por %p249, %p250
    %p253 = scmp.ne.s32.totalorder %s238, %s252
    %p254 = scmp.eq.s32.totalorder %s25, 0
    %p255 = por %p253, %p254
    %s257 = sadd.s32 %s256, 1
    %p260 = scmp.eq.s32.totalorder %s19, 1
    %p261 = scmp.ne.s32.totalorder %s256, %s258
    %p262 = scmp.eq.s32.totalorder %s19, 0
    %p263 = por %p261, %p262
    %p264 = scmp.ne.s32.totalorder %s256, %s258
    %p265 = scmp.eq.s32.totalorder %s24, 1
    %p266 = por %p264, %p265
    %p267 = scmp.ne.s32.totalorder %s258, %s259
    %p268 = scmp.eq.s32.totalorder %s24, 0
    %p269 = por %p267, %p268
    %p270 = scmp.ne.s32.totalorder %s258, %s259
    %p271 = scmp.eq.s32.totalorder %s25, 1
    %p272 = por %p270, %p271
    %p274 = scmp.ne.s32.totalorder %s259, %s273
    %p275 = scmp.eq.s32.totalorder %s25, 0
    %p276 = por %p274, %p275
    %s278 = sadd.s32 %s277, 1
    %p281 = scmp.eq.s32.totalorder %s19, 1
    %p282 = scmp.ne.s32.totalorder %s277, %s279
    %p283 = scmp.eq.s32.totalorder %s19, 0
    %p284 = por %p282, %p283
    %p285 = scmp.ne.s32.totalorder %s277, %s279
    %p286 = scmp.eq.s32.totalorder %s24, 1
    %p287 = por %p285, %p286
    %p288 = scmp.ne.s32.totalorder %s279, %s280
    %p289 = scmp.eq.s32.totalorder %s24, 0
    %p290 = por %p288, %p289
    %p291 = scmp.ne.s32.totalorder %s279, %s280
    %p292 = scmp.eq.s32.totalorder %s25, 1
    %p293 = por %p291, %p292
    %p295 = scmp.ne.s32.totalorder %s280, %s294
    %p296 = scmp.eq.s32.totalorder %s25, 0
    %p297 = por %p295, %p296
    %s299 = sadd.s32 %s298, 1
    %p302 = scmp.eq.s32.totalorder %s19, 1
    %p303 = scmp.ne.s32.totalorder %s298, %s300
    %p304 = scmp.eq.s32.totalorder %s19, 0
    %p305 = por %p303, %p304
    %p306 = scmp.ne.s32.totalorder %s298, %s300
    %p307 = scmp.eq.s32.totalorder %s24, 1
    %p308 = por %p306, %p307
    %p309 = scmp.ne.s32.totalorder %s300, %s301
    %p310 = scmp.eq.s32.totalorder %s24, 0
    %p311 = por %p309, %p310
    %p312 = scmp.ne.s32.totalorder %s300, %s301
    %p313 = scmp.eq.s32.totalorder %s25, 1
    %p314 = por %p312, %p313
    %p316 = scmp.ne.s32.totalorder %s301, %s315
    %p317 = scmp.eq.s32.totalorder %s25, 0
    %p318 = por %p316, %p317
    %s319 = ssub.s32 %s26, %s38
    %p320 = scmp.eq.s32.totalorder %s319, 0
    %s322 = sadd.s32 %s321, 1
    %s323 = scalar_select %p320, %s321, %s322
    %p326 = pneg %p320
    %p327 = scmp.eq.s32.totalorder %s19, 1
    %p328 = por %p326, %p327
    %p329 = scmp.ne.s32.totalorder %s321, %s324
    %p330 = scmp.eq.s32.totalorder %s19, 0
    %p331 = por %p329, %p330
    %p332 = scmp.ne.s32.totalorder %s321, %s324
    %p333 = scmp.eq.s32.totalorder %s24, 1
    %p334 = por %p332, %p333
    %p335 = scmp.ne.s32.totalorder %s324, %s325
    %p336 = scmp.eq.s32.totalorder %s24, 0
    %p337 = por %p335, %p336
    %p338 = scmp.ne.s32.totalorder %s324, %s325
    %p339 = scmp.eq.s32.totalorder %s25, 1
    %p340 = por %p338, %p339
    %p342 = scmp.ne.s32.totalorder %s325, %s341
    %p343 = scmp.eq.s32.totalorder %s25, 0
    %p344 = por %p342, %p343
    %p345 = scmp.le.s32.totalorder 1, %s19
    %p346 = scmp.lt.s32.totalorder %s19, 3
    %p347 = pnand %p345, %p346
    %p348 = pneg %p347
    // Predicated region
    $region9: #{tnet3d_forward.1} parent=5 // pred_check
      _
    $region10: #{tnet3d_forward.1} parent=5 // pred_check_branch
      %350 = sbr.rel (%p347) target = $region12
    $region11: #{tnet3d_forward.1} parent=5 // pred_region
      %s351 = ssub.s32 %s19, 1
      // Predicated region
      $region13: #{tnet3d_forward.1} parent=11 // pred_check
        %p352 = pneg %p80
      $region14: #{tnet3d_forward.1} parent=11 // pred_check_branch
        %354 = sbr.rel (%p352) target = $region16
      $region15: #{tnet3d_forward.1} parent=11 // pred_region
        _
      $region16: #{tnet3d_forward.1} parent=11 // pred_fallthru
        _
      // Predicated region
      $region17: #{tnet3d_forward.1} parent=11 // pred_check
        %p355 = pneg %p101
      $region18: #{tnet3d_forward.1} parent=11 // pred_check_branch
        %357 = sbr.rel (%p355) target = $region20
      $region19: #{tnet3d_forward.1} parent=11 // pred_region
        _
      $region20: #{tnet3d_forward.1} parent=11 // pred_fallthru
        _
      // Predicated region
      $region21: #{tnet3d_forward.1} parent=11 // pred_check
        %p358 = pneg %p122
      $region22: #{tnet3d_forward.1} parent=11 // pred_check_branch
        %360 = sbr.rel (%p358) target = $region24
      $region23: #{tnet3d_forward.1} parent=11 // pred_region
        _
      $region24: #{tnet3d_forward.1} parent=11 // pred_fallthru
        _
      // Predicated region
      $region25: #{tnet3d_forward.1} parent=11 // pred_check
        %p361 = pneg %p143
      $region26: #{tnet3d_forward.1} parent=11 // pred_check_branch
        %363 = sbr.rel (%p361) target = $region28
      $region27: #{tnet3d_forward.1} parent=11 // pred_region
        _
      $region28: #{tnet3d_forward.1} parent=11 // pred_fallthru
        _
      // Predicated region
      $region29: #{tnet3d_forward.1} parent=11 // pred_check
        %p364 = pneg %p164
      $region30: #{tnet3d_forward.1} parent=11 // pred_check_branch
        %366 = sbr.rel (%p364) target = $region32
      $region31: #{tnet3d_forward.1} parent=11 // pred_region
        _
      $region32: #{tnet3d_forward.1} parent=11 // pred_fallthru
        _
      // Predicated region
      $region33: #{tnet3d_forward.1} parent=11 // pred_check
        %p367 = pneg %p185
      $region34: #{tnet3d_forward.1} parent=11 // pred_check_branch
        %369 = sbr.rel (%p367) target = $region36
      $region35: #{tnet3d_forward.1} parent=11 // pred_region
        _
      $region36: #{tnet3d_forward.1} parent=11 // pred_fallthru
        _
      // Predicated region
      $region37: #{tnet3d_forward.1} parent=11 // pred_check
        %p370 = pneg %p206
      $region38: #{tnet3d_forward.1} parent=11 // pred_check_branch
        %372 = sbr.rel (%p370) target = $region40
      $region39: #{tnet3d_forward.1} parent=11 // pred_region
        _
      $region40: #{tnet3d_forward.1} parent=11 // pred_fallthru
        _
      // Predicated region
      $region41: #{tnet3d_forward.1} parent=11 // pred_check
        %p373 = pneg %p227
      $region42: #{tnet3d_forward.1} parent=11 // pred_check_branch
        %375 = sbr.rel (%p373) target = $region44
      $region43: #{tnet3d_forward.1} parent=11 // pred_region
        _
      $region44: #{tnet3d_forward.1} parent=11 // pred_fallthru
        _
      // Predicated region
      $region45: #{tnet3d_forward.1} parent=11 // pred_check
        %p376 = pneg %p248
      $region46: #{tnet3d_forward.1} parent=11 // pred_check_branch
        %378 = sbr.rel (%p376) target = $region48
      $region47: #{tnet3d_forward.1} parent=11 // pred_region
        _
      $region48: #{tnet3d_forward.1} parent=11 // pred_fallthru
        _
      // Predicated region
      $region49: #{tnet3d_forward.1} parent=11 // pred_check
        %p379 = pneg %p269
      $region50: #{tnet3d_forward.1} parent=11 // pred_check_branch
        %381 = sbr.rel (%p379) target = $region52
      $region51: #{tnet3d_forward.1} parent=11 // pred_region
        _
      $region52: #{tnet3d_forward.1} parent=11 // pred_fallthru
        _
      // Predicated region
      $region53: #{tnet3d_forward.1} parent=11 // pred_check
        %p382 = pneg %p290
      $region54: #{tnet3d_forward.1} parent=11 // pred_check_branch
        %384 = sbr.rel (%p382) target = $region56
      $region55: #{tnet3d_forward.1} parent=11 // pred_region
        _
      $region56: #{tnet3d_forward.1} parent=11 // pred_fallthru
        _
      // Predicated region
      $region57: #{tnet3d_forward.1} parent=11 // pred_check
        %p385 = pneg %p311
      $region58: #{tnet3d_forward.1} parent=11 // pred_check_branch
        %387 = sbr.rel (%p385) target = $region60
      $region59: #{tnet3d_forward.1} parent=11 // pred_region
        _
      $region60: #{tnet3d_forward.1} parent=11 // pred_fallthru
        _
    $region12: #{tnet3d_forward.1} parent=5 // pred_fallthru
      _
    %p388 = scmp.lt.s32.totalorder %s19, 2
    // Predicated region
    $region61: #{tnet3d_forward.1} parent=5 // pred_check
      %p389 = pneg %p388
    $region62: #{tnet3d_forward.1} parent=5 // pred_check_branch
      %391 = sbr.rel (%p389) target = $region64
    $region63: #{tnet3d_forward.1} parent=5 // pred_region
      // Predicated region
      $region65: #{tnet3d_forward.1} parent=63 // pred_check
        %p392 = pneg %p53
      $region66: #{tnet3d_forward.1} parent=63 // pred_check_branch
        %394 = sbr.rel (%p392) target = $region68
      $region67: #{tnet3d_forward.1} parent=63 // pred_region
        %p395 = scmp.lt.s32.totalorder %s26, 1
        %s396 = scalar_select %p395, %s26, 1
        %p397 = scmp.lt.s32.totalorder %s27, 0
        %s398 = scalar_select %p397, %s27, 0
        %s399 = sadd.s32 %s398, %s396
        %s400 = smul.addr %s399, 4
        %s401 = scalar_lea.vmem %s0, %s400
      $region68: #{tnet3d_forward.1} parent=63 // pred_fallthru
        _
    $region64: #{tnet3d_forward.1} parent=5 // pred_fallthru
      _
    %p402 = scmp.le.s32.totalorder 1, %s19
    %p403 = scmp.lt.s32.totalorder %s19, 3
    %p404 = pnand %p402, %p403
    %p405 = pneg %p404
    // Predicated region
    $region69: #{tnet3d_forward.1} parent=5 // pred_check
      _
    $region70: #{tnet3d_forward.1} parent=5 // pred_check_branch
      %407 = sbr.rel (%p404) target = $region72
    $region71: #{tnet3d_forward.1} parent=5 // pred_region
      %s408 = ssub.s32 %s19, 1
      %p409 = scmp.lt.s32.totalorder %s28, 1
      %s410 = scalar_select %p409, %s28, 1
      %p411 = scmp.lt.s32.totalorder %s29, 0
      %s412 = scalar_select %p411, %s29, 0
      %s413 = sadd.s32 %s412, %s410
      %s414 = smul.addr %s413, 4
      %s415 = scalar_lea.vmem %s0, %s414
      %p416 = pneg %p59
      %p417 = pneg %p56
      %p418 = pneg %p80
      %p419 = pneg %p77
      %p420 = pneg %p101
      %p421 = pneg %p98
      %p422 = pneg %p122
      %p423 = pneg %p119
      %p424 = pneg %p143
      %p425 = pneg %p140
      %p426 = pneg %p164
      %p427 = pneg %p161
      %p428 = pneg %p185
      %p429 = pneg %p182
      %p430 = pneg %p206
      %p431 = pneg %p203
      %p432 = pneg %p227
      %p433 = pneg %p224
      %p434 = pneg %p248
      %p435 = pneg %p245
      %p436 = pneg %p269
      %p437 = pneg %p266
      %p438 = pneg %p290
      %p439 = pneg %p287
      %p440 = pneg %p311
      %p441 = pneg %p308
      %p442 = pneg %p337
      %p443 = pneg %p334
      %p444 = scmp.lt.s32.totalorder %s28, 1
      %s445 = scalar_select %p444, %s28, 1
      %s446 = smul.addr %s445, 2
      %s447 = smul.addr %s446, 8
      %s448 = scalar_lea.vmem %s13, %s447
      %p449 = scmp.lt.s32.totalorder %s28, 1
      %s450 = scalar_select %p449, %s28, 1
      %p451 = scmp.lt.s32.totalorder %s29, 0
      %s452 = scalar_select %p451, %s29, 0
      %s453 = sadd.s32 %s452, %s450
      %s454 = smul.addr %s453, 4
      %s455 = scalar_lea.vmem %s0, %s454
      %p456 = scmp.lt.s32.totalorder %s28, 1
      %s457 = scalar_select %p456, %s28, 1
      %s458 = smul.addr %s457, 2
      %s459 = smul.addr %s458, 8
      %s460 = scalar_lea.vmem %s13, %s459
      %p462 = scmp.eq.s32.totalorder %s29, 0
      // Predicated region
      $region73: #{tnet3d_forward.1} parent=71 // pred_check
        %p463 = pneg %p462
      $region74: #{tnet3d_forward.1} parent=71 // pred_check_branch
        %465 = sbr.rel (%p463) target = $region76
      $region75: #{tnet3d_forward.1} parent=71 // pred_region
        %vm466 = vcmask 7168
        %467 = vst.msk [vmem:[#allocation2] sm:$0xff] %vm466, -inf
        %468 = vst.msk [vmem:[#allocation2 + $0x8] sm:$0xff] %vm466, -inf
        %469 = vst.msk [vmem:[#allocation2 + $0x10] sm:$0xff] %vm466, -inf
        %470 = vst.msk [vmem:[#allocation2 + $0x18] sm:$0xff] %vm466, -inf
        %471 = vst.msk [vmem:[#allocation2 + $0x20] sm:$0xff] %vm466, -inf
        %472 = vst.msk [vmem:[#allocation2 + $0x28] sm:$0xff] %vm466, -inf
        %473 = vst.msk [vmem:[#allocation2 + $0x30] sm:$0xff] %vm466, -inf
        %474 = vst.msk [vmem:[#allocation2 + $0x38] sm:$0xff] %vm466, -inf
        %475 = vst.msk [vmem:[#allocation2 + $0x40] sm:$0xff] %vm466, -inf
        %476 = vst.msk [vmem:[#allocation2 + $0x48] sm:$0xff] %vm466, -inf
        %477 = vst.msk [vmem:[#allocation2 + $0x50] sm:$0xff] %vm466, -inf
        %478 = vst.msk [vmem:[#allocation2 + $0x58] sm:$0xff] %vm466, -inf
        %479 = vst.msk [vmem:[#allocation2 + $0x60] sm:$0xff] %vm466, -inf
        %480 = vst.msk [vmem:[#allocation2 + $0x68] sm:$0xff] %vm466, -inf
        %481 = vst.msk [vmem:[#allocation2 + $0x70] sm:$0xff] %vm466, -inf
        %482 = vst.msk [vmem:[#allocation2 + $0x78] sm:$0xff] %vm466, -inf
        %483 = vst.msk [vmem:[#allocation2 + $0x80] sm:$0xff] %vm466, -inf
        %484 = vst.msk [vmem:[#allocation2 + $0x88] sm:$0xff] %vm466, -inf
        %485 = vst.msk [vmem:[#allocation2 + $0x90] sm:$0xff] %vm466, -inf
        %486 = vst.msk [vmem:[#allocation2 + $0x98] sm:$0xff] %vm466, -inf
        %487 = vst.msk [vmem:[#allocation2 + $0xa0] sm:$0xff] %vm466, -inf
        %488 = vst.msk [vmem:[#allocation2 + $0xa8] sm:$0xff] %vm466, -inf
        %489 = vst.msk [vmem:[#allocation2 + $0xb0] sm:$0xff] %vm466, -inf
        %490 = vst.msk [vmem:[#allocation2 + $0xb8] sm:$0xff] %vm466, -inf
        %491 = vst.msk [vmem:[#allocation2 + $0xc0] sm:$0xff] %vm466, -inf
        %492 = vst.msk [vmem:[#allocation2 + $0xc8] sm:$0xff] %vm466, -inf
        %493 = vst.msk [vmem:[#allocation2 + $0xd0] sm:$0xff] %vm466, -inf
        %494 = vst.msk [vmem:[#allocation2 + $0xd8] sm:$0xff] %vm466, -inf
        %495 = vst.msk [vmem:[#allocation2 + $0xe0] sm:$0xff] %vm466, -inf
        %496 = vst.msk [vmem:[#allocation2 + $0xe8] sm:$0xff] %vm466, -inf
        %497 = vst.msk [vmem:[#allocation2 + $0xf0] sm:$0xff] %vm466, -inf
        %498 = vst.msk [vmem:[#allocation2 + $0xf8] sm:$0xff] %vm466, -inf
        %499 = vst.msk [vmem:[#allocation2 + $0x100] sm:$0xff] %vm466, -inf
        %500 = vst.msk [vmem:[#allocation2 + $0x108] sm:$0xff] %vm466, -inf
        %501 = vst.msk [vmem:[#allocation2 + $0x110] sm:$0xff] %vm466, -inf
        %502 = vst.msk [vmem:[#allocation2 + $0x118] sm:$0xff] %vm466, -inf
        %503 = vst.msk [vmem:[#allocation2 + $0x120] sm:$0xff] %vm466, -inf
        %504 = vst.msk [vmem:[#allocation2 + $0x128] sm:$0xff] %vm466, -inf
        %505 = vst.msk [vmem:[#allocation2 + $0x130] sm:$0xff] %vm466, -inf
        %506 = vst.msk [vmem:[#allocation2 + $0x138] sm:$0xff] %vm466, -inf
        %507 = vst.msk [vmem:[#allocation2 + $0x140] sm:$0xff] %vm466, -inf
        %508 = vst.msk [vmem:[#allocation2 + $0x148] sm:$0xff] %vm466, -inf
        %509 = vst.msk [vmem:[#allocation2 + $0x150] sm:$0xff] %vm466, -inf
        %510 = vst.msk [vmem:[#allocation2 + $0x158] sm:$0xff] %vm466, -inf
        %511 = vst.msk [vmem:[#allocation2 + $0x160] sm:$0xff] %vm466, -inf
        %512 = vst.msk [vmem:[#allocation2 + $0x168] sm:$0xff] %vm466, -inf
        %513 = vst.msk [vmem:[#allocation2 + $0x170] sm:$0xff] %vm466, -inf
        %514 = vst.msk [vmem:[#allocation2 + $0x178] sm:$0xff] %vm466, -inf
        %515 = vst.msk [vmem:[#allocation2 + $0x180] sm:$0xff] %vm466, -inf
        %516 = vst.msk [vmem:[#allocation2 + $0x188] sm:$0xff] %vm466, -inf
        %517 = vst.msk [vmem:[#allocation2 + $0x190] sm:$0xff] %vm466, -inf
        %518 = vst.msk [vmem:[#allocation2 + $0x198] sm:$0xff] %vm466, -inf
        %519 = vst.msk [vmem:[#allocation2 + $0x1a0] sm:$0xff] %vm466, -inf
        %520 = vst.msk [vmem:[#allocation2 + $0x1a8] sm:$0xff] %vm466, -inf
        %521 = vst.msk [vmem:[#allocation2 + $0x1b0] sm:$0xff] %vm466, -inf
        %522 = vst.msk [vmem:[#allocation2 + $0x1b8] sm:$0xff] %vm466, -inf
        %523 = vst.msk [vmem:[#allocation2 + $0x1c0] sm:$0xff] %vm466, -inf
        %524 = vst.msk [vmem:[#allocation2 + $0x1c8] sm:$0xff] %vm466, -inf
        %525 = vst.msk [vmem:[#allocation2 + $0x1d0] sm:$0xff] %vm466, -inf
        %526 = vst.msk [vmem:[#allocation2 + $0x1d8] sm:$0xff] %vm466, -inf
        %527 = vst.msk [vmem:[#allocation2 + $0x1e0] sm:$0xff] %vm466, -inf
        %528 = vst.msk [vmem:[#allocation2 + $0x1e8] sm:$0xff] %vm466, -inf
        %529 = vst.msk [vmem:[#allocation2 + $0x1f0] sm:$0xff] %vm466, -inf
        %530 = vst.msk [vmem:[#allocation2 + $0x1f8] sm:$0xff] %vm466, -inf
        %531 = vst.msk [vmem:[#allocation2 + $0x200] sm:$0xff] %vm466, -inf
        %532 = vst.msk [vmem:[#allocation2 + $0x208] sm:$0xff] %vm466, -inf
        %533 = vst.msk [vmem:[#allocation2 + $0x210] sm:$0xff] %vm466, -inf
        %534 = vst.msk [vmem:[#allocation2 + $0x218] sm:$0xff] %vm466, -inf
        %535 = vst.msk [vmem:[#allocation2 + $0x220] sm:$0xff] %vm466, -inf
        %536 = vst.msk [vmem:[#allocation2 + $0x228] sm:$0xff] %vm466, -inf
        %537 = vst.msk [vmem:[#allocation2 + $0x230] sm:$0xff] %vm466, -inf
        %538 = vst.msk [vmem:[#allocation2 + $0x238] sm:$0xff] %vm466, -inf
        %539 = vst.msk [vmem:[#allocation2 + $0x240] sm:$0xff] %vm466, -inf
        %540 = vst.msk [vmem:[#allocation2 + $0x248] sm:$0xff] %vm466, -inf
        %541 = vst.msk [vmem:[#allocation2 + $0x250] sm:$0xff] %vm466, -inf
        %542 = vst.msk [vmem:[#allocation2 + $0x258] sm:$0xff] %vm466, -inf
        %543 = vst.msk [vmem:[#allocation2 + $0x260] sm:$0xff] %vm466, -inf
        %544 = vst.msk [vmem:[#allocation2 + $0x268] sm:$0xff] %vm466, -inf
        %545 = vst.msk [vmem:[#allocation2 + $0x270] sm:$0xff] %vm466, -inf
        %546 = vst.msk [vmem:[#allocation2 + $0x278] sm:$0xff] %vm466, -inf
        %547 = vst.msk [vmem:[#allocation2 + $0x280] sm:$0xff] %vm466, -inf
        %548 = vst.msk [vmem:[#allocation2 + $0x288] sm:$0xff] %vm466, -inf
        %549 = vst.msk [vmem:[#allocation2 + $0x290] sm:$0xff] %vm466, -inf
        %550 = vst.msk [vmem:[#allocation2 + $0x298] sm:$0xff] %vm466, -inf
        %551 = vst.msk [vmem:[#allocation2 + $0x2a0] sm:$0xff] %vm466, -inf
        %552 = vst.msk [vmem:[#allocation2 + $0x2a8] sm:$0xff] %vm466, -inf
        %553 = vst.msk [vmem:[#allocation2 + $0x2b0] sm:$0xff] %vm466, -inf
        %554 = vst.msk [vmem:[#allocation2 + $0x2b8] sm:$0xff] %vm466, -inf
        %555 = vst.msk [vmem:[#allocation2 + $0x2c0] sm:$0xff] %vm466, -inf
        %556 = vst.msk [vmem:[#allocation2 + $0x2c8] sm:$0xff] %vm466, -inf
        %557 = vst.msk [vmem:[#allocation2 + $0x2d0] sm:$0xff] %vm466, -inf
        %558 = vst.msk [vmem:[#allocation2 + $0x2d8] sm:$0xff] %vm466, -inf
        %559 = vst.msk [vmem:[#allocation2 + $0x2e0] sm:$0xff] %vm466, -inf
        %560 = vst.msk [vmem:[#allocation2 + $0x2e8] sm:$0xff] %vm466, -inf
        %561 = vst.msk [vmem:[#allocation2 + $0x2f0] sm:$0xff] %vm466, -inf
        %562 = vst.msk [vmem:[#allocation2 + $0x2f8] sm:$0xff] %vm466, -inf
        %563 = vst.msk [vmem:[#allocation2 + $0x300] sm:$0xff] %vm466, -inf
        %564 = vst.msk [vmem:[#allocation2 + $0x308] sm:$0xff] %vm466, -inf
        %565 = vst.msk [vmem:[#allocation2 + $0x310] sm:$0xff] %vm466, -inf
        %566 = vst.msk [vmem:[#allocation2 + $0x318] sm:$0xff] %vm466, -inf
        %567 = vst.msk [vmem:[#allocation2 + $0x320] sm:$0xff] %vm466, -inf
        %568 = vst.msk [vmem:[#allocation2 + $0x328] sm:$0xff] %vm466, -inf
        %569 = vst.msk [vmem:[#allocation2 + $0x330] sm:$0xff] %vm466, -inf
        %570 = vst.msk [vmem:[#allocation2 + $0x338] sm:$0xff] %vm466, -inf
        %571 = vst.msk [vmem:[#allocation2 + $0x340] sm:$0xff] %vm466, -inf
        %572 = vst.msk [vmem:[#allocation2 + $0x348] sm:$0xff] %vm466, -inf
        %573 = vst.msk [vmem:[#allocation2 + $0x350] sm:$0xff] %vm466, -inf
        %574 = vst.msk [vmem:[#allocation2 + $0x358] sm:$0xff] %vm466, -inf
        %575 = vst.msk [vmem:[#allocation2 + $0x360] sm:$0xff] %vm466, -inf
        %576 = vst.msk [vmem:[#allocation2 + $0x368] sm:$0xff] %vm466, -inf
        %577 = vst.msk [vmem:[#allocation2 + $0x370] sm:$0xff] %vm466, -inf
        %578 = vst.msk [vmem:[#allocation2 + $0x378] sm:$0xff] %vm466, -inf
        %579 = vst.msk [vmem:[#allocation2 + $0x380] sm:$0xff] %vm466, -inf
        %580 = vst.msk [vmem:[#allocation2 + $0x388] sm:$0xff] %vm466, -inf
        %581 = vst.msk [vmem:[#allocation2 + $0x390] sm:$0xff] %vm466, -inf
        %582 = vst.msk [vmem:[#allocation2 + $0x398] sm:$0xff] %vm466, -inf
        %583 = vst.msk [vmem:[#allocation2 + $0x3a0] sm:$0xff] %vm466, -inf
        %584 = vst.msk [vmem:[#allocation2 + $0x3a8] sm:$0xff] %vm466, -inf
        %585 = vst.msk [vmem:[#allocation2 + $0x3b0] sm:$0xff] %vm466, -inf
        %586 = vst.msk [vmem:[#allocation2 + $0x3b8] sm:$0xff] %vm466, -inf
        %587 = vst.msk [vmem:[#allocation2 + $0x3c0] sm:$0xff] %vm466, -inf
        %588 = vst.msk [vmem:[#allocation2 + $0x3c8] sm:$0xff] %vm466, -inf
        %589 = vst.msk [vmem:[#allocation2 + $0x3d0] sm:$0xff] %vm466, -inf
        %590 = vst.msk [vmem:[#allocation2 + $0x3d8] sm:$0xff] %vm466, -inf
        %591 = vst.msk [vmem:[#allocation2 + $0x3e0] sm:$0xff] %vm466, -inf
        %592 = vst.msk [vmem:[#allocation2 + $0x3e8] sm:$0xff] %vm466, -inf
        %593 = vst.msk [vmem:[#allocation2 + $0x3f0] sm:$0xff] %vm466, -inf
        %594 = vst.msk [vmem:[#allocation2 + $0x3f8] sm:$0xff] %vm466, -inf
      $region76: #{tnet3d_forward.1} parent=71 // pred_fallthru
        _
      %v595 = vld [vmem:[%s455] sm:$0x7]
      %v596 = vpack.c.bf16 %v595, %v595
      %v597 = vld [vmem:[%s1] sm:$0xf]
      %v598 = vld [vmem:[%s1 + $0x4] sm:$0xf]
      %v599 = vld [vmem:[%s1 + $0x8] sm:$0xf]
      %v600 = vld [vmem:[%s1 + $0xc] sm:$0xf]
      %v601 = vld [vmem:[%s1 + $0x10] sm:$0xf]
      %v602 = vld [vmem:[%s1 + $0x14] sm:$0xf]
      %v603 = vld [vmem:[%s1 + $0x18] sm:$0xf]
      %v604 = vld [vmem:[%s1 + $0x1c] sm:$0xf]
      %v605 = vld [vmem:[%s2] sm:$0xff]
      %v606 = vld [vmem:[%s2 + $0x8] sm:$0xff]
      %v607 = vld [vmem:[%s2 + $0x10] sm:$0xff]
      %v608 = vld [vmem:[%s2 + $0x18] sm:$0xff]
      %v609 = vld [vmem:[%s2 + $0x20] sm:$0xff]
      %v610 = vld [vmem:[%s2 + $0x28] sm:$0xff]
      %v611 = vld [vmem:[%s2 + $0x30] sm:$0xff]
      %v612 = vld [vmem:[%s2 + $0x38] sm:$0xff]
      %614 = vset.pattern.permute.xlu0 0
      %615 = vperm.xlu0 %614, %v605
      %v616 = vpop.permute.xlu0 %615
      %619 = vset.pattern.permute.xlu0 0
      %620 = vperm.xlu0 %619, %v606
      %v621 = vpop.permute.xlu0 %620
      %624 = vset.pattern.permute.xlu0 0
      %625 = vperm.xlu0 %624, %v607
      %v626 = vpop.permute.xlu0 %625
      %629 = vset.pattern.permute.xlu0 0
      %630 = vperm.xlu0 %629, %v608
      %v631 = vpop.permute.xlu0 %630
      %634 = vset.pattern.permute.xlu0 0
      %635 = vperm.xlu0 %634, %v609
      %v636 = vpop.permute.xlu0 %635
      %639 = vset.pattern.permute.xlu0 0
      %640 = vperm.xlu0 %639, %v610
      %v641 = vpop.permute.xlu0 %640
      %644 = vset.pattern.permute.xlu0 0
      %645 = vperm.xlu0 %644, %v611
      %v646 = vpop.permute.xlu0 %645
      %649 = vset.pattern.permute.xlu0 0
      %650 = vperm.xlu0 %649, %v612
      %v651 = vpop.permute.xlu0 %650
      %v661 = vunpack.c.l.b16 %v597
      %v662 = vunpack.c.l.b16 %v598
      %v663 = vunpack.c.l.b16 %v599
      %v664 = vunpack.c.l.b16 %v600
      %v665 = vunpack.c.l.b16 %v601
      %v666 = vunpack.c.l.b16 %v602
      %v667 = vunpack.c.l.b16 %v603
      %v668 = vunpack.c.l.b16 %v604
      %v669 = vpack.c.b16 %v662, %v661
      %v670 = vpack.c.b16 %v664, %v663
      %v671 = vpack.c.b16 %v666, %v665
      %v672 = vpack.c.b16 %v668, %v667
      %vm673 = vcmask 23552
      %v675 = vsel %vm673, %v669, 0
      %v678 = vsel %vm673, %v670, 0
      %v681 = vsel %vm673, %v671, 0
      %v684 = vsel %vm673, %v672, 0
      %vm686 = vcmask 1040384
      %vm687 = vcmask 1041408
      %v688 = vsel %vm686, 4294967295, 65535
      %v689 = vsel %vm687, %v688, 0
      %v691 = vand.u32 %v596, %v689
      %693 = vmatprep.subr.bf16.mxu0 0
      %694 = vmatpush1.bf16.msra.mxu0 0
      %695 = vmatprep.subr.bf16.mxu0 0
      %696 = vmatpush1.bf16.msra.mxu0 0
      %697 = vmatprep.subr.bf16.mxu0 0
      %698 = vmatpush1.bf16.msra.mxu0 0
      %699 = vmatprep.subr.bf16.mxu0 0
      %700 = vmatpush1.bf16.msra.mxu0 0
      %701 = vmatprep.subr.bf16.mxu0 0
      %702 = vmatpush1.bf16.msra.mxu0 0
      %703 = vmatprep.subr.bf16.mxu0 0
      %704 = vmatpush1.bf16.msra.mxu0 0
      %705 = vmatprep.subr.bf16.mxu0 0
      %706 = vmatpush1.bf16.msra.mxu0 0
      %707 = vmatprep.subr.bf16.mxu0 0
      %708 = vmatpush1.bf16.msra.mxu0 %v691
      %709 = vmatprep.subr.bf16.mxu0 0
      %710 = vmatpush2.bf16.msra.mxu0 0
      %711 = vmatprep.subr.bf16.mxu0 0
      %712 = vmatpush2.bf16.msra.mxu0 0
      %713 = vmatprep.subr.bf16.mxu0 0
      %714 = vmatpush2.bf16.msra.mxu0 0
      %715 = vmatprep.subr.bf16.mxu0 0
      %716 = vmatpush2.bf16.msra.mxu0 0
      %717 = vmatprep.subr.bf16.mxu0 0
      %718 = vmatpush2.bf16.msra.mxu0 0
      %719 = vmatprep.subr.bf16.mxu0 0
      %720 = vmatpush2.bf16.msra.mxu0 0
      %721 = vmatprep.subr.bf16.mxu0 0
      %722 = vmatpush2.bf16.msra.mxu0 0
      %723 = vmatprep.subr.bf16.mxu0 0
      %724 = vmatpush2.bf16.msra.mxu0 0
      %725 = vmatprep.mubr.bf16.mxu0 0
      %726 = vmatmul.mubr.bf16.gmra.mxu0 %v675
      %v727 = vpop.f32.mrf.mxu0
      %v728 = vadd.f32 %v616, %v727
      %v729 = vpop.f32.mrf.mxu0
      %v730 = vpop.f32.mrf.mxu0
      %v731 = vadd.f32 %v621, %v730
      %v732 = vpop.f32.mrf.mxu0
      %733 = vmatprep.mubr.bf16.mxu0 0
      %734 = vmatmul.mubr.bf16.gmra.mxu0 %v678
      %v735 = vpop.f32.mrf.mxu0
      %v736 = vadd.f32 %v626, %v735
      %v737 = vpop.f32.mrf.mxu0
      %v738 = vpop.f32.mrf.mxu0
      %v739 = vadd.f32 %v631, %v738
      %v740 = vpop.f32.mrf.mxu0
      %741 = vmatprep.mubr.bf16.mxu0 0
      %742 = vmatmul.mubr.bf16.gmra.mxu0 %v681
      %v743 = vpop.f32.mrf.mxu0
      %v744 = vadd.f32 %v636, %v743
      %v745 = vpop.f32.mrf.mxu0
      %v746 = vpop.f32.mrf.mxu0
      %v747 = vadd.f32 %v641, %v746
      %v748 = vpop.f32.mrf.mxu0
      %749 = vmatprep.mubr.bf16.mxu0 0
      %750 = vmatmul.mubr.bf16.gmra.mxu0 %v684
      %v751 = vpop.f32.mrf.mxu0
      %v752 = vadd.f32 %v646, %v751
      %v753 = vpop.f32.mrf.mxu0
      %v754 = vpop.f32.mrf.mxu0
      %v755 = vadd.f32 %v651, %v754
      %v756 = vpop.f32.mrf.mxu0
      %757 = vdwg.mxu0
      %v758 = vmax.f32 %v728, 0.0
      %v759 = vmax.f32 %v731, 0.0
      %v760 = vmax.f32 %v736, 0.0
      %v761 = vmax.f32 %v739, 0.0
      %v762 = vmax.f32 %v744, 0.0
      %v763 = vmax.f32 %v747, 0.0
      %v764 = vmax.f32 %v752, 0.0
      %v765 = vmax.f32 %v755, 0.0
      %v766 = vld [vmem:[%s3] sm:$0xf]
      %v767 = vld [vmem:[%s3 + $0x4] sm:$0xf]
      %v768 = vld [vmem:[%s3 + $0x8] sm:$0xf]
      %v769 = vld [vmem:[%s3 + $0xc] sm:$0xf]
      %v770 = vld [vmem:[%s3 + $0x10] sm:$0xf]
      %v771 = vld [vmem:[%s3 + $0x14] sm:$0xf]
      %v772 = vld [vmem:[%s3 + $0x18] sm:$0xf]
      %v773 = vld [vmem:[%s3 + $0x1c] sm:$0xf]
      %v774 = vld [vmem:[%s3 + $0x20] sm:$0xf]
      %v775 = vld [vmem:[%s3 + $0x24] sm:$0xf]
      %v776 = vld [vmem:[%s3 + $0x28] sm:$0xf]
      %v777 = vld [vmem:[%s3 + $0x2c] sm:$0xf]
      %v778 = vld [vmem:[%s3 + $0x30] sm:$0xf]
      %v779 = vld [vmem:[%s3 + $0x34] sm:$0xf]
      %v780 = vld [vmem:[%s3 + $0x38] sm:$0xf]
      %v781 = vld [vmem:[%s3 + $0x3c] sm:$0xf]
      %v782 = vpack.c.bf16 %v759, %v758
      %v783 = vpack.c.bf16 %v761, %v760
      %v784 = vpack.c.bf16 %v763, %v762
      %v785 = vpack.c.bf16 %v765, %v764
      %v786 = vld [vmem:[%s4] sm:$0xff]
      %v787 = vld [vmem:[%s4 + $0x8] sm:$0xff]
      %v788 = vld [vmem:[%s4 + $0x10] sm:$0xff]
      %v789 = vld [vmem:[%s4 + $0x18] sm:$0xff]
      %v790 = vld [vmem:[%s4 + $0x20] sm:$0xff]
      %v791 = vld [vmem:[%s4 + $0x28] sm:$0xff]
      %v792 = vld [vmem:[%s4 + $0x30] sm:$0xff]
      %v793 = vld [vmem:[%s4 + $0x38] sm:$0xff]
      %v794 = vld [vmem:[%s4 + $0x40] sm:$0xff]
      %v795 = vld [vmem:[%s4 + $0x48] sm:$0xff]
      %v796 = vld [vmem:[%s4 + $0x50] sm:$0xff]
      %v797 = vld [vmem:[%s4 + $0x58] sm:$0xff]
      %v798 = vld [vmem:[%s4 + $0x60] sm:$0xff]
      %v799 = vld [vmem:[%s4 + $0x68] sm:$0xff]
      %v800 = vld [vmem:[%s4 + $0x70] sm:$0xff]
      %v801 = vld [vmem:[%s4 + $0x78] sm:$0xff]
      %803 = vset.pattern.permute.xlu0 0
      %804 = vperm.xlu0 %803, %v786
      %v805 = vpop.permute.xlu0 %804
      %808 = vset.pattern.permute.xlu0 0
      %809 = vperm.xlu0 %808, %v787
      %v810 = vpop.permute.xlu0 %809
      %813 = vset.pattern.permute.xlu0 0
      %814 = vperm.xlu0 %813, %v788
      %v815 = vpop.permute.xlu0 %814
      %818 = vset.pattern.permute.xlu0 0
      %819 = vperm.xlu0 %818, %v789
      %v820 = vpop.permute.xlu0 %819
      %823 = vset.pattern.permute.xlu0 0
      %824 = vperm.xlu0 %823, %v790
      %v825 = vpop.permute.xlu0 %824
      %828 = vset.pattern.permute.xlu0 0
      %829 = vperm.xlu0 %828, %v791
      %v830 = vpop.permute.xlu0 %829
      %833 = vset.pattern.permute.xlu0 0
      %834 = vperm.xlu0 %833, %v792
      %v835 = vpop.permute.xlu0 %834
      %838 = vset.pattern.permute.xlu0 0
      %839 = vperm.xlu0 %838, %v793
      %v840 = vpop.permute.xlu0 %839
      %843 = vset.pattern.permute.xlu0 0
      %844 = vperm.xlu0 %843, %v794
      %v845 = vpop.permute.xlu0 %844
      %848 = vset.pattern.permute.xlu0 0
      %849 = vperm.xlu0 %848, %v795
      %v850 = vpop.permute.xlu0 %849
      %853 = vset.pattern.permute.xlu0 0
      %854 = vperm.xlu0 %853, %v796
      %v855 = vpop.permute.xlu0 %854
      %858 = vset.pattern.permute.xlu0 0
      %859 = vperm.xlu0 %858, %v797
      %v860 = vpop.permute.xlu0 %859
      %863 = vset.pattern.permute.xlu0 0
      %864 = vperm.xlu0 %863, %v798
      %v865 = vpop.permute.xlu0 %864
      %868 = vset.pattern.permute.xlu0 0
      %869 = vperm.xlu0 %868, %v799
      %v870 = vpop.permute.xlu0 %869
      %873 = vset.pattern.permute.xlu0 0
      %874 = vperm.xlu0 %873, %v800
      %v875 = vpop.permute.xlu0 %874
      %878 = vset.pattern.permute.xlu0 0
      %879 = vperm.xlu0 %878, %v801
      %v880 = vpop.permute.xlu0 %879
      %v898 = vunpack.c.l.b16 %v766
      %v899 = vunpack.c.l.b16 %v767
      %v900 = vunpack.c.l.b16 %v768
      %v901 = vunpack.c.l.b16 %v769
      %v902 = vunpack.c.l.b16 %v770
      %v903 = vunpack.c.l.b16 %v771
      %v904 = vunpack.c.l.b16 %v772
      %v905 = vunpack.c.l.b16 %v773
      %v906 = vunpack.c.l.b16 %v774
      %v907 = vunpack.c.l.b16 %v775
      %v908 = vunpack.c.l.b16 %v776
      %v909 = vunpack.c.l.b16 %v777
      %v910 = vunpack.c.l.b16 %v778
      %v911 = vunpack.c.l.b16 %v779
      %v912 = vunpack.c.l.b16 %v780
      %v913 = vunpack.c.l.b16 %v781
      %v914 = vpack.c.b16 %v899, %v898
      %v915 = vpack.c.b16 %v901, %v900
      %v916 = vpack.c.b16 %v903, %v902
      %v917 = vpack.c.b16 %v905, %v904
      %v918 = vpack.c.b16 %v907, %v906
      %v919 = vpack.c.b16 %v909, %v908
      %v920 = vpack.c.b16 %v911, %v910
      %v921 = vpack.c.b16 %v913, %v912
      %vm922 = vcmask 523264
      %v924 = vsel %vm922, %v914, 0
      %v927 = vsel %vm922, %v915, 0
      %v930 = vsel %vm922, %v916, 0
      %v933 = vsel %vm922, %v917, 0
      %v936 = vsel %vm922, %v918, 0
      %v939 = vsel %vm922, %v919, 0
      %v942 = vsel %vm922, %v920, 0
      %v945 = vsel %vm922, %v921, 0
      %947 = vmatprep.subr.bf16.mxu0 0
      %948 = vmatpush1.bf16.msra.mxu0 0
      %949 = vmatprep.subr.bf16.mxu0 0
      %950 = vmatpush1.bf16.msra.mxu0 0
      %951 = vmatprep.subr.bf16.mxu0 0
      %952 = vmatpush1.bf16.msra.mxu0 0
      %953 = vmatprep.subr.bf16.mxu0 0
      %954 = vmatpush1.bf16.msra.mxu0 0
      %955 = vmatprep.subr.bf16.mxu0 0
      %956 = vmatpush1.bf16.msra.mxu0 %v785
      %957 = vmatprep.subr.bf16.mxu0 0
      %958 = vmatpush1.bf16.msra.mxu0 %v784
      %959 = vmatprep.subr.bf16.mxu0 0
      %960 = vmatpush1.bf16.msra.mxu0 %v783
      %961 = vmatprep.subr.bf16.mxu0 0
      %962 = vmatpush1.bf16.msra.mxu0 %v782
      %963 = vmatprep.subr.bf16.mxu0 0
      %964 = vmatpush2.bf16.msra.mxu0 0
      %965 = vmatprep.subr.bf16.mxu0 0
      %966 = vmatpush2.bf16.msra.mxu0 0
      %967 = vmatprep.subr.bf16.mxu0 0
      %968 = vmatpush2.bf16.msra.mxu0 0
      %969 = vmatprep.subr.bf16.mxu0 0
      %970 = vmatpush2.bf16.msra.mxu0 0
      %971 = vmatprep.subr.bf16.mxu0 0
      %972 = vmatpush2.bf16.msra.mxu0 0
      %973 = vmatprep.subr.bf16.mxu0 0
      %974 = vmatpush2.bf16.msra.mxu0 0
      %975 = vmatprep.subr.bf16.mxu0 0
      %976 = vmatpush2.bf16.msra.mxu0 0
      %977 = vmatprep.subr.bf16.mxu0 0
      %978 = vmatpush2.bf16.msra.mxu0 0
      %979 = vmatprep.mubr.bf16.mxu0 0
      %980 = vmatmul.mubr.bf16.gmra.mxu0 %v924
      %v981 = vpop.f32.mrf.mxu0
      %v982 = vadd.f32 %v805, %v981
      %v983 = vpop.f32.mrf.mxu0
      %v984 = vpop.f32.mrf.mxu0
      %v985 = vadd.f32 %v810, %v984
      %v986 = vpop.f32.mrf.mxu0
      %987 = vmatprep.mubr.bf16.mxu0 0
      %988 = vmatmul.mubr.bf16.gmra.mxu0 %v927
      %v989 = vpop.f32.mrf.mxu0
      %v990 = vadd.f32 %v815, %v989
      %v991 = vpop.f32.mrf.mxu0
      %v992 = vpop.f32.mrf.mxu0
      %v993 = vadd.f32 %v820, %v992
      %v994 = vpop.f32.mrf.mxu0
      %995 = vmatprep.mubr.bf16.mxu0 0
      %996 = vmatmul.mubr.bf16.gmra.mxu0 %v930
      %v997 = vpop.f32.mrf.mxu0
      %v998 = vadd.f32 %v825, %v997
      %v999 = vpop.f32.mrf.mxu0
      %v1000 = vpop.f32.mrf.mxu0
      %v1001 = vadd.f32 %v830, %v1000
      %v1002 = vpop.f32.mrf.mxu0
      %1003 = vmatprep.mubr.bf16.mxu0 0
      %1004 = vmatmul.mubr.bf16.gmra.mxu0 %v933
      %v1005 = vpop.f32.mrf.mxu0
      %v1006 = vadd.f32 %v835, %v1005
      %v1007 = vpop.f32.mrf.mxu0
      %v1008 = vpop.f32.mrf.mxu0
      %v1009 = vadd.f32 %v840, %v1008
      %v1010 = vpop.f32.mrf.mxu0
      %1011 = vmatprep.mubr.bf16.mxu0 0
      %1012 = vmatmul.mubr.bf16.gmra.mxu0 %v936
      %v1013 = vpop.f32.mrf.mxu0
      %v1014 = vadd.f32 %v845, %v1013
      %v1015 = vpop.f32.mrf.mxu0
      %v1016 = vpop.f32.mrf.mxu0
      %v1017 = vadd.f32 %v850, %v1016
      %v1018 = vpop.f32.mrf.mxu0
      %1019 = vmatprep.mubr.bf16.mxu0 0
      %1020 = vmatmul.mubr.bf16.gmra.mxu0 %v939
      %v1021 = vpop.f32.mrf.mxu0
      %v1022 = vadd.f32 %v855, %v1021
      %v1023 = vpop.f32.mrf.mxu0
      %v1024 = vpop.f32.mrf.mxu0
      %v1025 = vadd.f32 %v860, %v1024
      %v1026 = vpop.f32.mrf.mxu0
      %1027 = vmatprep.mubr.bf16.mxu0 0
      %1028 = vmatmul.mubr.bf16.gmra.mxu0 %v942
      %v1029 = vpop.f32.mrf.mxu0
      %v1030 = vadd.f32 %v865, %v1029
      %v1031 = vpop.f32.mrf.mxu0
      %v1032 = vpop.f32.mrf.mxu0
      %v1033 = vadd.f32 %v870, %v1032
      %v1034 = vpop.f32.mrf.mxu0
      %1035 = vmatprep.mubr.bf16.mxu0 0
      %1036 = vmatmul.mubr.bf16.gmra.mxu0 %v945
      %v1037 = vpop.f32.mrf.mxu0
      %v1038 = vadd.f32 %v875, %v1037
      %v1039 = vpop.f32.mrf.mxu0
      %v1040 = vpop.f32.mrf.mxu0
      %v1041 = vadd.f32 %v880, %v1040
      %v1042 = vpop.f32.mrf.mxu0
      %1043 = vdwg.mxu0
      %v1044 = vmax.f32 %v982, 0.0
      %v1045 = vmax.f32 %v985, 0.0
      %v1046 = vmax.f32 %v990, 0.0
      %v1047 = vmax.f32 %v993, 0.0
      %v1048 = vmax.f32 %v998, 0.0
      %v1049 = vmax.f32 %v1001, 0.0
      %v1050 = vmax.f32 %v1006, 0.0
      %v1051 = vmax.f32 %v1009, 0.0
      %v1052 = vmax.f32 %v1014, 0.0
      %v1053 = vmax.f32 %v1017, 0.0
      %v1054 = vmax.f32 %v1022, 0.0
      %v1055 = vmax.f32 %v1025, 0.0
      %v1056 = vmax.f32 %v1030, 0.0
      %v1057 = vmax.f32 %v1033, 0.0
      %v1058 = vmax.f32 %v1038, 0.0
      %v1059 = vmax.f32 %v1041, 0.0
      %v1060 = vld [vmem:[%s5] sm:$0xf]
      %v1061 = vld [vmem:[%s5 + $0x4] sm:$0xf]
      %v1062 = vld [vmem:[%s5 + $0x8] sm:$0xf]
      %v1063 = vld [vmem:[%s5 + $0xc] sm:$0xf]
      %v1064 = vld [vmem:[%s5 + $0x10] sm:$0xf]
      %v1065 = vld [vmem:[%s5 + $0x14] sm:$0xf]
      %v1066 = vld [vmem:[%s5 + $0x18] sm:$0xf]
      %v1067 = vld [vmem:[%s5 + $0x1c] sm:$0xf]
      %v1068 = vld [vmem:[%s5 + $0x20] sm:$0xf]
      %v1069 = vld [vmem:[%s5 + $0x24] sm:$0xf]
      %v1070 = vld [vmem:[%s5 + $0x28] sm:$0xf]
      %v1071 = vld [vmem:[%s5 + $0x2c] sm:$0xf]
      %v1072 = vld [vmem:[%s5 + $0x30] sm:$0xf]
      %v1073 = vld [vmem:[%s5 + $0x34] sm:$0xf]
      %v1074 = vld [vmem:[%s5 + $0x38] sm:$0xf]
      %v1075 = vld [vmem:[%s5 + $0x3c] sm:$0xf]
      %v1076 = vld [vmem:[%s5 + $0x40] sm:$0xf]
      %v1077 = vld [vmem:[%s5 + $0x44] sm:$0xf]
      %v1078 = vld [vmem:[%s5 + $0x48] sm:$0xf]
      %v1079 = vld [vmem:[%s5 + $0x4c] sm:$0xf]
      %v1080 = vld [vmem:[%s5 + $0x50] sm:$0xf]
      %v1081 = vld [vmem:[%s5 + $0x54] sm:$0xf]
      %v1082 = vld [vmem:[%s5 + $0x58] sm:$0xf]
      %v1083 = vld [vmem:[%s5 + $0x5c] sm:$0xf]
      %v1084 = vld [vmem:[%s5 + $0x60] sm:$0xf]
      %v1085 = vld [vmem:[%s5 + $0x64] sm:$0xf]
      %v1086 = vld [vmem:[%s5 + $0x68] sm:$0xf]
      %v1087 = vld [vmem:[%s5 + $0x6c] sm:$0xf]
      %v1088 = vld [vmem:[%s5 + $0x70] sm:$0xf]
      %v1089 = vld [vmem:[%s5 + $0x74] sm:$0xf]
      %v1090 = vld [vmem:[%s5 + $0x78] sm:$0xf]
      %v1091 = vld [vmem:[%s5 + $0x7c] sm:$0xf]
      %v1092 = vld [vmem:[%s5 + $0x80] sm:$0xf]
      %v1093 = vld [vmem:[%s5 + $0x84] sm:$0xf]
      %v1094 = vld [vmem:[%s5 + $0x88] sm:$0xf]
      %v1095 = vld [vmem:[%s5 + $0x8c] sm:$0xf]
      %v1096 = vld [vmem:[%s5 + $0x90] sm:$0xf]
      %v1097 = vld [vmem:[%s5 + $0x94] sm:$0xf]
      %v1098 = vld [vmem:[%s5 + $0x98] sm:$0xf]
      %v1099 = vld [vmem:[%s5 + $0x9c] sm:$0xf]
      %v1100 = vld [vmem:[%s5 + $0xa0] sm:$0xf]
      %v1101 = vld [vmem:[%s5 + $0xa4] sm:$0xf]
      %v1102 = vld [vmem:[%s5 + $0xa8] sm:$0xf]
      %v1103 = vld [vmem:[%s5 + $0xac] sm:$0xf]
      %v1104 = vld [vmem:[%s5 + $0xb0] sm:$0xf]
      %v1105 = vld [vmem:[%s5 + $0xb4] sm:$0xf]
      %v1106 = vld [vmem:[%s5 + $0xb8] sm:$0xf]
      %v1107 = vld [vmem:[%s5 + $0xbc] sm:$0xf]
      %v1108 = vld [vmem:[%s5 + $0xc0] sm:$0xf]
      %v1109 = vld [vmem:[%s5 + $0xc4] sm:$0xf]
      %v1110 = vld [vmem:[%s5 + $0xc8] sm:$0xf]
      %v1111 = vld [vmem:[%s5 + $0xcc] sm:$0xf]
      %v1112 = vld [vmem:[%s5 + $0xd0] sm:$0xf]
      %v1113 = vld [vmem:[%s5 + $0xd4] sm:$0xf]
      %v1114 = vld [vmem:[%s5 + $0xd8] sm:$0xf]
      %v1115 = vld [vmem:[%s5 + $0xdc] sm:$0xf]
      %v1116 = vld [vmem:[%s5 + $0xe0] sm:$0xf]
      %v1117 = vld [vmem:[%s5 + $0xe4] sm:$0xf]
      %v1118 = vld [vmem:[%s5 + $0xe8] sm:$0xf]
      %v1119 = vld [vmem:[%s5 + $0xec] sm:$0xf]
      %v1120 = vld [vmem:[%s5 + $0xf0] sm:$0xf]
      %v1121 = vld [vmem:[%s5 + $0xf4] sm:$0xf]
      %v1122 = vld [vmem:[%s5 + $0xf8] sm:$0xf]
      %v1123 = vld [vmem:[%s5 + $0xfc] sm:$0xf]
      %v1124 = vld [vmem:[%s5 + $0x100] sm:$0xf]
      %v1125 = vld [vmem:[%s5 + $0x104] sm:$0xf]
      %v1126 = vld [vmem:[%s5 + $0x108] sm:$0xf]
      %v1127 = vld [vmem:[%s5 + $0x10c] sm:$0xf]
      %v1128 = vld [vmem:[%s5 + $0x110] sm:$0xf]
      %v1129 = vld [vmem:[%s5 + $0x114] sm:$0xf]
      %v1130 = vld [vmem:[%s5 + $0x118] sm:$0xf]
      %v1131 = vld [vmem:[%s5 + $0x11c] sm:$0xf]
      %v1132 = vld [vmem:[%s5 + $0x120] sm:$0xf]
      %v1133 = vld [vmem:[%s5 + $0x124] sm:$0xf]
      %v1134 = vld [vmem:[%s5 + $0x128] sm:$0xf]
      %v1135 = vld [vmem:[%s5 + $0x12c] sm:$0xf]
      %v1136 = vld [vmem:[%s5 + $0x130] sm:$0xf]
      %v1137 = vld [vmem:[%s5 + $0x134] sm:$0xf]
      %v1138 = vld [vmem:[%s5 + $0x138] sm:$0xf]
      %v1139 = vld [vmem:[%s5 + $0x13c] sm:$0xf]
      %v1140 = vld [vmem:[%s5 + $0x140] sm:$0xf]
      %v1141 = vld [vmem:[%s5 + $0x144] sm:$0xf]
      %v1142 = vld [vmem:[%s5 + $0x148] sm:$0xf]
      %v1143 = vld [vmem:[%s5 + $0x14c] sm:$0xf]
      %v1144 = vld [vmem:[%s5 + $0x150] sm:$0xf]
      %v1145 = vld [vmem:[%s5 + $0x154] sm:$0xf]
      %v1146 = vld [vmem:[%s5 + $0x158] sm:$0xf]
      %v1147 = vld [vmem:[%s5 + $0x15c] sm:$0xf]
      %v1148 = vld [vmem:[%s5 + $0x160] sm:$0xf]
      %v1149 = vld [vmem:[%s5 + $0x164] sm:$0xf]
      %v1150 = vld [vmem:[%s5 + $0x168] sm:$0xf]
      %v1151 = vld [vmem:[%s5 + $0x16c] sm:$0xf]
      %v1152 = vld [vmem:[%s5 + $0x170] sm:$0xf]
      %v1153 = vld [vmem:[%s5 + $0x174] sm:$0xf]
      %v1154 = vld [vmem:[%s5 + $0x178] sm:$0xf]
      %v1155 = vld [vmem:[%s5 + $0x17c] sm:$0xf]
      %v1156 = vld [vmem:[%s5 + $0x180] sm:$0xf]
      %v1157 = vld [vmem:[%s5 + $0x184] sm:$0xf]
      %v1158 = vld [vmem:[%s5 + $0x188] sm:$0xf]
      %v1159 = vld [vmem:[%s5 + $0x18c] sm:$0xf]
      %v1160 = vld [vmem:[%s5 + $0x190] sm:$0xf]
      %v1161 = vld [vmem:[%s5 + $0x194] sm:$0xf]
      %v1162 = vld [vmem:[%s5 + $0x198] sm:$0xf]
      %v1163 = vld [vmem:[%s5 + $0x19c] sm:$0xf]
      %v1164 = vld [vmem:[%s5 + $0x1a0] sm:$0xf]
      %v1165 = vld [vmem:[%s5 + $0x1a4] sm:$0xf]
      %v1166 = vld [vmem:[%s5 + $0x1a8] sm:$0xf]
      %v1167 = vld [vmem:[%s5 + $0x1ac] sm:$0xf]
      %v1168 = vld [vmem:[%s5 + $0x1b0] sm:$0xf]
      %v1169 = vld [vmem:[%s5 + $0x1b4] sm:$0xf]
      %v1170 = vld [vmem:[%s5 + $0x1b8] sm:$0xf]
      %v1171 = vld [vmem:[%s5 + $0x1bc] sm:$0xf]
      %v1172 = vld [vmem:[%s5 + $0x1c0] sm:$0xf]
      %v1173 = vld [vmem:[%s5 + $0x1c4] sm:$0xf]
      %v1174 = vld [vmem:[%s5 + $0x1c8] sm:$0xf]
      %v1175 = vld [vmem:[%s5 + $0x1cc] sm:$0xf]
      %v1176 = vld [vmem:[%s5 + $0x1d0] sm:$0xf]
      %v1177 = vld [vmem:[%s5 + $0x1d4] sm:$0xf]
      %v1178 = vld [vmem:[%s5 + $0x1d8] sm:$0xf]
      %v1179 = vld [vmem:[%s5 + $0x1dc] sm:$0xf]
      %v1180 = vld [vmem:[%s5 + $0x1e0] sm:$0xf]
      %v1181 = vld [vmem:[%s5 + $0x1e4] sm:$0xf]
      %v1182 = vld [vmem:[%s5 + $0x1e8] sm:$0xf]
      %v1183 = vld [vmem:[%s5 + $0x1ec] sm:$0xf]
      %v1184 = vld [vmem:[%s5 + $0x1f0] sm:$0xf]
      %v1185 = vld [vmem:[%s5 + $0x1f4] sm:$0xf]
      %v1186 = vld [vmem:[%s5 + $0x1f8] sm:$0xf]
      %v1187 = vld [vmem:[%s5 + $0x1fc] sm:$0xf]
      %v1188 = vpack.c.bf16 %v1045, %v1044
      %v1189 = vpack.c.bf16 %v1047, %v1046
      %v1190 = vpack.c.bf16 %v1049, %v1048
      %v1191 = vpack.c.bf16 %v1051, %v1050
      %v1192 = vpack.c.bf16 %v1053, %v1052
      %v1193 = vpack.c.bf16 %v1055, %v1054
      %v1194 = vpack.c.bf16 %v1057, %v1056
      %v1195 = vpack.c.bf16 %v1059, %v1058
      %v1196 = vld [vmem:[%s6] sm:$0xff]
      %v1197 = vld [vmem:[%s6 + $0x8] sm:$0xff]
      %v1198 = vld [vmem:[%s6 + $0x10] sm:$0xff]
      %v1199 = vld [vmem:[%s6 + $0x18] sm:$0xff]
      %v1200 = vld [vmem:[%s6 + $0x20] sm:$0xff]
      %v1201 = vld [vmem:[%s6 + $0x28] sm:$0xff]
      %v1202 = vld [vmem:[%s6 + $0x30] sm:$0xff]
      %v1203 = vld [vmem:[%s6 + $0x38] sm:$0xff]
      %v1204 = vld [vmem:[%s6 + $0x40] sm:$0xff]
      %v1205 = vld [vmem:[%s6 + $0x48] sm:$0xff]
      %v1206 = vld [vmem:[%s6 + $0x50] sm:$0xff]
      %v1207 = vld [vmem:[%s6 + $0x58] sm:$0xff]
      %v1208 = vld [vmem:[%s6 + $0x60] sm:$0xff]
      %v1209 = vld [vmem:[%s6 + $0x68] sm:$0xff]
      %v1210 = vld [vmem:[%s6 + $0x70] sm:$0xff]
      %v1211 = vld [vmem:[%s6 + $0x78] sm:$0xff]
      %v1212 = vld [vmem:[%s6 + $0x80] sm:$0xff]
      %v1213 = vld [vmem:[%s6 + $0x88] sm:$0xff]
      %v1214 = vld [vmem:[%s6 + $0x90] sm:$0xff]
      %v1215 = vld [vmem:[%s6 + $0x98] sm:$0xff]
      %v1216 = vld [vmem:[%s6 + $0xa0] sm:$0xff]
      %v1217 = vld [vmem:[%s6 + $0xa8] sm:$0xff]
      %v1218 = vld [vmem:[%s6 + $0xb0] sm:$0xff]
      %v1219 = vld [vmem:[%s6 + $0xb8] sm:$0xff]
      %v1220 = vld [vmem:[%s6 + $0xc0] sm:$0xff]
      %v1221 = vld [vmem:[%s6 + $0xc8] sm:$0xff]
      %v1222 = vld [vmem:[%s6 + $0xd0] sm:$0xff]
      %v1223 = vld [vmem:[%s6 + $0xd8] sm:$0xff]
      %v1224 = vld [vmem:[%s6 + $0xe0] sm:$0xff]
      %v1225 = vld [vmem:[%s6 + $0xe8] sm:$0xff]
      %v1226 = vld [vmem:[%s6 + $0xf0] sm:$0xff]
      %v1227 = vld [vmem:[%s6 + $0xf8] sm:$0xff]
      %v1228 = vld [vmem:[%s6 + $0x100] sm:$0xff]
      %v1229 = vld [vmem:[%s6 + $0x108] sm:$0xff]
      %v1230 = vld [vmem:[%s6 + $0x110] sm:$0xff]
      %v1231 = vld [vmem:[%s6 + $0x118] sm:$0xff]
      %v1232 = vld [vmem:[%s6 + $0x120] sm:$0xff]
      %v1233 = vld [vmem:[%s6 + $0x128] sm:$0xff]
      %v1234 = vld [vmem:[%s6 + $0x130] sm:$0xff]
      %v1235 = vld [vmem:[%s6 + $0x138] sm:$0xff]
      %v1236 = vld [vmem:[%s6 + $0x140] sm:$0xff]
      %v1237 = vld [vmem:[%s6 + $0x148] sm:$0xff]
      %v1238 = vld [vmem:[%s6 + $0x150] sm:$0xff]
      %v1239 = vld [vmem:[%s6 + $0x158] sm:$0xff]
      %v1240 = vld [vmem:[%s6 + $0x160] sm:$0xff]
      %v1241 = vld [vmem:[%s6 + $0x168] sm:$0xff]
      %v1242 = vld [vmem:[%s6 + $0x170] sm:$0xff]
      %v1243 = vld [vmem:[%s6 + $0x178] sm:$0xff]
      %v1244 = vld [vmem:[%s6 + $0x180] sm:$0xff]
      %v1245 = vld [vmem:[%s6 + $0x188] sm:$0xff]
      %v1246 = vld [vmem:[%s6 + $0x190] sm:$0xff]
      %v1247 = vld [vmem:[%s6 + $0x198] sm:$0xff]
      %v1248 = vld [vmem:[%s6 + $0x1a0] sm:$0xff]
      %v1249 = vld [vmem:[%s6 + $0x1a8] sm:$0xff]
      %v1250 = vld [vmem:[%s6 + $0x1b0] sm:$0xff]
      %v1251 = vld [vmem:[%s6 + $0x1b8] sm:$0xff]
      %v1252 = vld [vmem:[%s6 + $0x1c0] sm:$0xff]
      %v1253 = vld [vmem:[%s6 + $0x1c8] sm:$0xff]
      %v1254 = vld [vmem:[%s6 + $0x1d0] sm:$0xff]
      %v1255 = vld [vmem:[%s6 + $0x1d8] sm:$0xff]
      %v1256 = vld [vmem:[%s6 + $0x1e0] sm:$0xff]
      %v1257 = vld [vmem:[%s6 + $0x1e8] sm:$0xff]
      %v1258 = vld [vmem:[%s6 + $0x1f0] sm:$0xff]
      %v1259 = vld [vmem:[%s6 + $0x1f8] sm:$0xff]
      %v1260 = vld [vmem:[%s6 + $0x200] sm:$0xff]
      %v1261 = vld [vmem:[%s6 + $0x208] sm:$0xff]
      %v1262 = vld [vmem:[%s6 + $0x210] sm:$0xff]
      %v1263 = vld [vmem:[%s6 + $0x218] sm:$0xff]
      %v1264 = vld [vmem:[%s6 + $0x220] sm:$0xff]
      %v1265 = vld [vmem:[%s6 + $0x228] sm:$0xff]
      %v1266 = vld [vmem:[%s6 + $0x230] sm:$0xff]
      %v1267 = vld [vmem:[%s6 + $0x238] sm:$0xff]
      %v1268 = vld [vmem:[%s6 + $0x240] sm:$0xff]
      %v1269 = vld [vmem:[%s6 + $0x248] sm:$0xff]
      %v1270 = vld [vmem:[%s6 + $0x250] sm:$0xff]
      %v1271 = vld [vmem:[%s6 + $0x258] sm:$0xff]
      %v1272 = vld [vmem:[%s6 + $0x260] sm:$0xff]
      %v1273 = vld [vmem:[%s6 + $0x268] sm:$0xff]
      %v1274 = vld [vmem:[%s6 + $0x270] sm:$0xff]
      %v1275 = vld [vmem:[%s6 + $0x278] sm:$0xff]
      %v1276 = vld [vmem:[%s6 + $0x280] sm:$0xff]
      %v1277 = vld [vmem:[%s6 + $0x288] sm:$0xff]
      %v1278 = vld [vmem:[%s6 + $0x290] sm:$0xff]
      %v1279 = vld [vmem:[%s6 + $0x298] sm:$0xff]
      %v1280 = vld [vmem:[%s6 + $0x2a0] sm:$0xff]
      %v1281 = vld [vmem:[%s6 + $0x2a8] sm:$0xff]
      %v1282 = vld [vmem:[%s6 + $0x2b0] sm:$0xff]
      %v1283 = vld [vmem:[%s6 + $0x2b8] sm:$0xff]
      %v1284 = vld [vmem:[%s6 + $0x2c0] sm:$0xff]
      %v1285 = vld [vmem:[%s6 + $0x2c8] sm:$0xff]
      %v1286 = vld [vmem:[%s6 + $0x2d0] sm:$0xff]
      %v1287 = vld [vmem:[%s6 + $0x2d8] sm:$0xff]
      %v1288 = vld [vmem:[%s6 + $0x2e0] sm:$0xff]
      %v1289 = vld [vmem:[%s6 + $0x2e8] sm:$0xff]
      %v1290 = vld [vmem:[%s6 + $0x2f0] sm:$0xff]
      %v1291 = vld [vmem:[%s6 + $0x2f8] sm:$0xff]
      %v1292 = vld [vmem:[%s6 + $0x300] sm:$0xff]
      %v1293 = vld [vmem:[%s6 + $0x308] sm:$0xff]
      %v1294 = vld [vmem:[%s6 + $0x310] sm:$0xff]
      %v1295 = vld [vmem:[%s6 + $0x318] sm:$0xff]
      %v1296 = vld [vmem:[%s6 + $0x320] sm:$0xff]
      %v1297 = vld [vmem:[%s6 + $0x328] sm:$0xff]
      %v1298 = vld [vmem:[%s6 + $0x330] sm:$0xff]
      %v1299 = vld [vmem:[%s6 + $0x338] sm:$0xff]
      %v1300 = vld [vmem:[%s6 + $0x340] sm:$0xff]
      %v1301 = vld [vmem:[%s6 + $0x348] sm:$0xff]
      %v1302 = vld [vmem:[%s6 + $0x350] sm:$0xff]
      %v1303 = vld [vmem:[%s6 + $0x358] sm:$0xff]
      %v1304 = vld [vmem:[%s6 + $0x360] sm:$0xff]
      %v1305 = vld [vmem:[%s6 + $0x368] sm:$0xff]
      %v1306 = vld [vmem:[%s6 + $0x370] sm:$0xff]
      %v1307 = vld [vmem:[%s6 + $0x378] sm:$0xff]
      %v1308 = vld [vmem:[%s6 + $0x380] sm:$0xff]
      %v1309 = vld [vmem:[%s6 + $0x388] sm:$0xff]
      %v1310 = vld [vmem:[%s6 + $0x390] sm:$0xff]
      %v1311 = vld [vmem:[%s6 + $0x398] sm:$0xff]
      %v1312 = vld [vmem:[%s6 + $0x3a0] sm:$0xff]
      %v1313 = vld [vmem:[%s6 + $0x3a8] sm:$0xff]
      %v1314 = vld [vmem:[%s6 + $0x3b0] sm:$0xff]
      %v1315 = vld [vmem:[%s6 + $0x3b8] sm:$0xff]
      %v1316 = vld [vmem:[%s6 + $0x3c0] sm:$0xff]
      %v1317 = vld [vmem:[%s6 + $0x3c8] sm:$0xff]
      %v1318 = vld [vmem:[%s6 + $0x3d0] sm:$0xff]
      %v1319 = vld [vmem:[%s6 + $0x3d8] sm:$0xff]
      %v1320 = vld [vmem:[%s6 + $0x3e0] sm:$0xff]
      %v1321 = vld [vmem:[%s6 + $0x3e8] sm:$0xff]
      %v1322 = vld [vmem:[%s6 + $0x3f0] sm:$0xff]
      %v1323 = vld [vmem:[%s6 + $0x3f8] sm:$0xff]
      %1325 = vset.pattern.permute.xlu0 0
      %1326 = vperm.xlu0 %1325, %v1196
      %v1327 = vpop.permute.xlu0 %1326
      %1330 = vset.pattern.permute.xlu0 0
      %1331 = vperm.xlu0 %1330, %v1197
      %v1332 = vpop.permute.xlu0 %1331
      %1335 = vset.pattern.permute.xlu0 0
      %1336 = vperm.xlu0 %1335, %v1198
      %v1337 = vpop.permute.xlu0 %1336
      %1340 = vset.pattern.permute.xlu0 0
      %1341 = vperm.xlu0 %1340, %v1199
      %v1342 = vpop.permute.xlu0 %1341
      %1345 = vset.pattern.permute.xlu0 0
      %1346 = vperm.xlu0 %1345, %v1200
      %v1347 = vpop.permute.xlu0 %1346
      %1350 = vset.pattern.permute.xlu0 0
      %1351 = vperm.xlu0 %1350, %v1201
      %v1352 = vpop.permute.xlu0 %1351
      %1355 = vset.pattern.permute.xlu0 0
      %1356 = vperm.xlu0 %1355, %v1202
      %v1357 = vpop.permute.xlu0 %1356
      %1360 = vset.pattern.permute.xlu0 0
      %1361 = vperm.xlu0 %1360, %v1203
      %v1362 = vpop.permute.xlu0 %1361
      %1365 = vset.pattern.permute.xlu0 0
      %1366 = vperm.xlu0 %1365, %v1204
      %v1367 = vpop.permute.xlu0 %1366
      %1370 = vset.pattern.permute.xlu0 0
      %1371 = vperm.xlu0 %1370, %v1205
      %v1372 = vpop.permute.xlu0 %1371
      %1375 = vset.pattern.permute.xlu0 0
      %1376 = vperm.xlu0 %1375, %v1206
      %v1377 = vpop.permute.xlu0 %1376
      %1380 = vset.pattern.permute.xlu0 0
      %1381 = vperm.xlu0 %1380, %v1207
      %v1382 = vpop.permute.xlu0 %1381
      %1385 = vset.pattern.permute.xlu0 0
      %1386 = vperm.xlu0 %1385, %v1208
      %v1387 = vpop.permute.xlu0 %1386
      %1390 = vset.pattern.permute.xlu0 0
      %1391 = vperm.xlu0 %1390, %v1209
      %v1392 = vpop.permute.xlu0 %1391
      %1395 = vset.pattern.permute.xlu0 0
      %1396 = vperm.xlu0 %1395, %v1210
      %v1397 = vpop.permute.xlu0 %1396
      %1400 = vset.pattern.permute.xlu0 0
      %1401 = vperm.xlu0 %1400, %v1211
      %v1402 = vpop.permute.xlu0 %1401
      %1405 = vset.pattern.permute.xlu0 0
      %1406 = vperm.xlu0 %1405, %v1212
      %v1407 = vpop.permute.xlu0 %1406
      %1410 = vset.pattern.permute.xlu0 0
      %1411 = vperm.xlu0 %1410, %v1213
      %v1412 = vpop.permute.xlu0 %1411
      %1415 = vset.pattern.permute.xlu0 0
      %1416 = vperm.xlu0 %1415, %v1214
      %v1417 = vpop.permute.xlu0 %1416
      %1420 = vset.pattern.permute.xlu0 0
      %1421 = vperm.xlu0 %1420, %v1215
      %v1422 = vpop.permute.xlu0 %1421
      %1425 = vset.pattern.permute.xlu0 0
      %1426 = vperm.xlu0 %1425, %v1216
      %v1427 = vpop.permute.xlu0 %1426
      %1430 = vset.pattern.permute.xlu0 0
      %1431 = vperm.xlu0 %1430, %v1217
      %v1432 = vpop.permute.xlu0 %1431
      %1435 = vset.pattern.permute.xlu0 0
      %1436 = vperm.xlu0 %1435, %v1218
      %v1437 = vpop.permute.xlu0 %1436
      %1440 = vset.pattern.permute.xlu0 0
      %1441 = vperm.xlu0 %1440, %v1219
      %v1442 = vpop.permute.xlu0 %1441
      %1445 = vset.pattern.permute.xlu0 0
      %1446 = vperm.xlu0 %1445, %v1220
      %v1447 = vpop.permute.xlu0 %1446
      %1450 = vset.pattern.permute.xlu0 0
      %1451 = vperm.xlu0 %1450, %v1221
      %v1452 = vpop.permute.xlu0 %1451
      %1455 = vset.pattern.permute.xlu0 0
      %1456 = vperm.xlu0 %1455, %v1222
      %v1457 = vpop.permute.xlu0 %1456
      %1460 = vset.pattern.permute.xlu0 0
      %1461 = vperm.xlu0 %1460, %v1223
      %v1462 = vpop.permute.xlu0 %1461
      %1465 = vset.pattern.permute.xlu0 0
      %1466 = vperm.xlu0 %1465, %v1224
      %v1467 = vpop.permute.xlu0 %1466
      %1470 = vset.pattern.permute.xlu0 0
      %1471 = vperm.xlu0 %1470, %v1225
      %v1472 = vpop.permute.xlu0 %1471
      %1475 = vset.pattern.permute.xlu0 0
      %1476 = vperm.xlu0 %1475, %v1226
      %v1477 = vpop.permute.xlu0 %1476
      %1480 = vset.pattern.permute.xlu0 0
      %1481 = vperm.xlu0 %1480, %v1227
      %v1482 = vpop.permute.xlu0 %1481
      %1485 = vset.pattern.permute.xlu0 0
      %1486 = vperm.xlu0 %1485, %v1228
      %v1487 = vpop.permute.xlu0 %1486
      %1490 = vset.pattern.permute.xlu0 0
      %1491 = vperm.xlu0 %1490, %v1229
      %v1492 = vpop.permute.xlu0 %1491
      %1495 = vset.pattern.permute.xlu0 0
      %1496 = vperm.xlu0 %1495, %v1230
      %v1497 = vpop.permute.xlu0 %1496
      %1500 = vset.pattern.permute.xlu0 0
      %1501 = vperm.xlu0 %1500, %v1231
      %v1502 = vpop.permute.xlu0 %1501
      %1505 = vset.pattern.permute.xlu0 0
      %1506 = vperm.xlu0 %1505, %v1232
      %v1507 = vpop.permute.xlu0 %1506
      %1510 = vset.pattern.permute.xlu0 0
      %1511 = vperm.xlu0 %1510, %v1233
      %v1512 = vpop.permute.xlu0 %1511
      %1515 = vset.pattern.permute.xlu0 0
      %1516 = vperm.xlu0 %1515, %v1234
      %v1517 = vpop.permute.xlu0 %1516
      %1520 = vset.pattern.permute.xlu0 0
      %1521 = vperm.xlu0 %1520, %v1235
      %v1522 = vpop.permute.xlu0 %1521
      %1525 = vset.pattern.permute.xlu0 0
      %1526 = vperm.xlu0 %1525, %v1236
      %v1527 = vpop.permute.xlu0 %1526
      %1530 = vset.pattern.permute.xlu0 0
      %1531 = vperm.xlu0 %1530, %v1237
      %v1532 = vpop.permute.xlu0 %1531
      %1535 = vset.pattern.permute.xlu0 0
      %1536 = vperm.xlu0 %1535, %v1238
      %v1537 = vpop.permute.xlu0 %1536
      %1540 = vset.pattern.permute.xlu0 0
      %1541 = vperm.xlu0 %1540, %v1239
      %v1542 = vpop.permute.xlu0 %1541
      %1545 = vset.pattern.permute.xlu0 0
      %1546 = vperm.xlu0 %1545, %v1240
      %v1547 = vpop.permute.xlu0 %1546
      %1550 = vset.pattern.permute.xlu0 0
      %1551 = vperm.xlu0 %1550, %v1241
      %v1552 = vpop.permute.xlu0 %1551
      %1555 = vset.pattern.permute.xlu0 0
      %1556 = vperm.xlu0 %1555, %v1242
      %v1557 = vpop.permute.xlu0 %1556
      %1560 = vset.pattern.permute.xlu0 0
      %1561 = vperm.xlu0 %1560, %v1243
      %v1562 = vpop.permute.xlu0 %1561
      %1565 = vset.pattern.permute.xlu0 0
      %1566 = vperm.xlu0 %1565, %v1244
      %v1567 = vpop.permute.xlu0 %1566
      %1570 = vset.pattern.permute.xlu0 0
      %1571 = vperm.xlu0 %1570, %v1245
      %v1572 = vpop.permute.xlu0 %1571
      %1575 = vset.pattern.permute.xlu0 0
      %1576 = vperm.xlu0 %1575, %v1246
      %v1577 = vpop.permute.xlu0 %1576
      %1580 = vset.pattern.permute.xlu0 0
      %1581 = vperm.xlu0 %1580, %v1247
      %v1582 = vpop.permute.xlu0 %1581
      %1585 = vset.pattern.permute.xlu0 0
      %1586 = vperm.xlu0 %1585, %v1248
      %v1587 = vpop.permute.xlu0 %1586
      %1590 = vset.pattern.permute.xlu0 0
      %1591 = vperm.xlu0 %1590, %v1249
      %v1592 = vpop.permute.xlu0 %1591
      %1595 = vset.pattern.permute.xlu0 0
      %1596 = vperm.xlu0 %1595, %v1250
      %v1597 = vpop.permute.xlu0 %1596
      %1600 = vset.pattern.permute.xlu0 0
      %1601 = vperm.xlu0 %1600, %v1251
      %v1602 = vpop.permute.xlu0 %1601
      %1605 = vset.pattern.permute.xlu0 0
      %1606 = vperm.xlu0 %1605, %v1252
      %v1607 = vpop.permute.xlu0 %1606
      %1610 = vset.pattern.permute.xlu0 0
      %1611 = vperm.xlu0 %1610, %v1253
      %v1612 = vpop.permute.xlu0 %1611
      %1615 = vset.pattern.permute.xlu0 0
      %1616 = vperm.xlu0 %1615, %v1254
      %v1617 = vpop.permute.xlu0 %1616
      %1620 = vset.pattern.permute.xlu0 0
      %1621 = vperm.xlu0 %1620, %v1255
      %v1622 = vpop.permute.xlu0 %1621
      %1625 = vset.pattern.permute.xlu0 0
      %1626 = vperm.xlu0 %1625, %v1256
      %v1627 = vpop.permute.xlu0 %1626
      %1630 = vset.pattern.permute.xlu0 0
      %1631 = vperm.xlu0 %1630, %v1257
      %v1632 = vpop.permute.xlu0 %1631
      %1635 = vset.pattern.permute.xlu0 0
      %1636 = vperm.xlu0 %1635, %v1258
      %v1637 = vpop.permute.xlu0 %1636
      %1640 = vset.pattern.permute.xlu0 0
      %1641 = vperm.xlu0 %1640, %v1259
      %v1642 = vpop.permute.xlu0 %1641
      %1645 = vset.pattern.permute.xlu0 0
      %1646 = vperm.xlu0 %1645, %v1260
      %v1647 = vpop.permute.xlu0 %1646
      %1650 = vset.pattern.permute.xlu0 0
      %1651 = vperm.xlu0 %1650, %v1261
      %v1652 = vpop.permute.xlu0 %1651
      %1655 = vset.pattern.permute.xlu0 0
      %1656 = vperm.xlu0 %1655, %v1262
      %v1657 = vpop.permute.xlu0 %1656
      %1660 = vset.pattern.permute.xlu0 0
      %1661 = vperm.xlu0 %1660, %v1263
      %v1662 = vpop.permute.xlu0 %1661
      %1665 = vset.pattern.permute.xlu0 0
      %1666 = vperm.xlu0 %1665, %v1264
      %v1667 = vpop.permute.xlu0 %1666
      %1670 = vset.pattern.permute.xlu0 0
      %1671 = vperm.xlu0 %1670, %v1265
      %v1672 = vpop.permute.xlu0 %1671
      %1675 = vset.pattern.permute.xlu0 0
      %1676 = vperm.xlu0 %1675, %v1266
      %v1677 = vpop.permute.xlu0 %1676
      %1680 = vset.pattern.permute.xlu0 0
      %1681 = vperm.xlu0 %1680, %v1267
      %v1682 = vpop.permute.xlu0 %1681
      %1685 = vset.pattern.permute.xlu0 0
      %1686 = vperm.xlu0 %1685, %v1268
      %v1687 = vpop.permute.xlu0 %1686
      %1690 = vset.pattern.permute.xlu0 0
      %1691 = vperm.xlu0 %1690, %v1269
      %v1692 = vpop.permute.xlu0 %1691
      %1695 = vset.pattern.permute.xlu0 0
      %1696 = vperm.xlu0 %1695, %v1270
      %v1697 = vpop.permute.xlu0 %1696
      %1700 = vset.pattern.permute.xlu0 0
      %1701 = vperm.xlu0 %1700, %v1271
      %v1702 = vpop.permute.xlu0 %1701
      %1705 = vset.pattern.permute.xlu0 0
      %1706 = vperm.xlu0 %1705, %v1272
      %v1707 = vpop.permute.xlu0 %1706
      %1710 = vset.pattern.permute.xlu0 0
      %1711 = vperm.xlu0 %1710, %v1273
      %v1712 = vpop.permute.xlu0 %1711
      %1715 = vset.pattern.permute.xlu0 0
      %1716 = vperm.xlu0 %1715, %v1274
      %v1717 = vpop.permute.xlu0 %1716
      %1720 = vset.pattern.permute.xlu0 0
      %1721 = vperm.xlu0 %1720, %v1275
      %v1722 = vpop.permute.xlu0 %1721
      %1725 = vset.pattern.permute.xlu0 0
      %1726 = vperm.xlu0 %1725, %v1276
      %v1727 = vpop.permute.xlu0 %1726
      %1730 = vset.pattern.permute.xlu0 0
      %1731 = vperm.xlu0 %1730, %v1277
      %v1732 = vpop.permute.xlu0 %1731
      %1735 = vset.pattern.permute.xlu0 0
      %1736 = vperm.xlu0 %1735, %v1278
      %v1737 = vpop.permute.xlu0 %1736
      %1740 = vset.pattern.permute.xlu0 0
      %1741 = vperm.xlu0 %1740, %v1279
      %v1742 = vpop.permute.xlu0 %1741
      %1745 = vset.pattern.permute.xlu0 0
      %1746 = vperm.xlu0 %1745, %v1280
      %v1747 = vpop.permute.xlu0 %1746
      %1750 = vset.pattern.permute.xlu0 0
      %1751 = vperm.xlu0 %1750, %v1281
      %v1752 = vpop.permute.xlu0 %1751
      %1755 = vset.pattern.permute.xlu0 0
      %1756 = vperm.xlu0 %1755, %v1282
      %v1757 = vpop.permute.xlu0 %1756
      %1760 = vset.pattern.permute.xlu0 0
      %1761 = vperm.xlu0 %1760, %v1283
      %v1762 = vpop.permute.xlu0 %1761
      %1765 = vset.pattern.permute.xlu0 0
      %1766 = vperm.xlu0 %1765, %v1284
      %v1767 = vpop.permute.xlu0 %1766
      %1770 = vset.pattern.permute.xlu0 0
      %1771 = vperm.xlu0 %1770, %v1285
      %v1772 = vpop.permute.xlu0 %1771
      %1775 = vset.pattern.permute.xlu0 0
      %1776 = vperm.xlu0 %1775, %v1286
      %v1777 = vpop.permute.xlu0 %1776
      %1780 = vset.pattern.permute.xlu0 0
      %1781 = vperm.xlu0 %1780, %v1287
      %v1782 = vpop.permute.xlu0 %1781
      %1785 = vset.pattern.permute.xlu0 0
      %1786 = vperm.xlu0 %1785, %v1288
      %v1787 = vpop.permute.xlu0 %1786
      %1790 = vset.pattern.permute.xlu0 0
      %1791 = vperm.xlu0 %1790, %v1289
      %v1792 = vpop.permute.xlu0 %1791
      %1795 = vset.pattern.permute.xlu0 0
      %1796 = vperm.xlu0 %1795, %v1290
      %v1797 = vpop.permute.xlu0 %1796
      %1800 = vset.pattern.permute.xlu0 0
      %1801 = vperm.xlu0 %1800, %v1291
      %v1802 = vpop.permute.xlu0 %1801
      %1805 = vset.pattern.permute.xlu0 0
      %1806 = vperm.xlu0 %1805, %v1292
      %v1807 = vpop.permute.xlu0 %1806
      %1810 = vset.pattern.permute.xlu0 0
      %1811 = vperm.xlu0 %1810, %v1293
      %v1812 = vpop.permute.xlu0 %1811
      %1815 = vset.pattern.permute.xlu0 0
      %1816 = vperm.xlu0 %1815, %v1294
      %v1817 = vpop.permute.xlu0 %1816
      %1820 = vset.pattern.permute.xlu0 0
      %1821 = vperm.xlu0 %1820, %v1295
      %v1822 = vpop.permute.xlu0 %1821
      %1825 = vset.pattern.permute.xlu0 0
      %1826 = vperm.xlu0 %1825, %v1296
      %v1827 = vpop.permute.xlu0 %1826
      %1830 = vset.pattern.permute.xlu0 0
      %1831 = vperm.xlu0 %1830, %v1297
      %v1832 = vpop.permute.xlu0 %1831
      %1835 = vset.pattern.permute.xlu0 0
      %1836 = vperm.xlu0 %1835, %v1298
      %v1837 = vpop.permute.xlu0 %1836
      %1840 = vset.pattern.permute.xlu0 0
      %1841 = vperm.xlu0 %1840, %v1299
      %v1842 = vpop.permute.xlu0 %1841
      %1845 = vset.pattern.permute.xlu0 0
      %1846 = vperm.xlu0 %1845, %v1300
      %v1847 = vpop.permute.xlu0 %1846
      %1850 = vset.pattern.permute.xlu0 0
      %1851 = vperm.xlu0 %1850, %v1301
      %v1852 = vpop.permute.xlu0 %1851
      %1855 = vset.pattern.permute.xlu0 0
      %1856 = vperm.xlu0 %1855, %v1302
      %v1857 = vpop.permute.xlu0 %1856
      %1860 = vset.pattern.permute.xlu0 0
      %1861 = vperm.xlu0 %1860, %v1303
      %v1862 = vpop.permute.xlu0 %1861
      %1865 = vset.pattern.permute.xlu0 0
      %1866 = vperm.xlu0 %1865, %v1304
      %v1867 = vpop.permute.xlu0 %1866
      %1870 = vset.pattern.permute.xlu0 0
      %1871 = vperm.xlu0 %1870, %v1305
      %v1872 = vpop.permute.xlu0 %1871
      %1875 = vset.pattern.permute.xlu0 0
      %1876 = vperm.xlu0 %1875, %v1306
      %v1877 = vpop.permute.xlu0 %1876
      %1880 = vset.pattern.permute.xlu0 0
      %1881 = vperm.xlu0 %1880, %v1307
      %v1882 = vpop.permute.xlu0 %1881
      %1885 = vset.pattern.permute.xlu0 0
      %1886 = vperm.xlu0 %1885, %v1308
      %v1887 = vpop.permute.xlu0 %1886
      %1890 = vset.pattern.permute.xlu0 0
      %1891 = vperm.xlu0 %1890, %v1309
      %v1892 = vpop.permute.xlu0 %1891
      %1895 = vset.pattern.permute.xlu0 0
      %1896 = vperm.xlu0 %1895, %v1310
      %v1897 = vpop.permute.xlu0 %1896
      %1900 = vset.pattern.permute.xlu0 0
      %1901 = vperm.xlu0 %1900, %v1311
      %v1902 = vpop.permute.xlu0 %1901
      %1905 = vset.pattern.permute.xlu0 0
      %1906 = vperm.xlu0 %1905, %v1312
      %v1907 = vpop.permute.xlu0 %1906
      %1910 = vset.pattern.permute.xlu0 0
      %1911 = vperm.xlu0 %1910, %v1313
      %v1912 = vpop.permute.xlu0 %1911
      %1915 = vset.pattern.permute.xlu0 0
      %1916 = vperm.xlu0 %1915, %v1314
      %v1917 = vpop.permute.xlu0 %1916
      %1920 = vset.pattern.permute.xlu0 0
      %1921 = vperm.xlu0 %1920, %v1315
      %v1922 = vpop.permute.xlu0 %1921
      %1925 = vset.pattern.permute.xlu0 0
      %1926 = vperm.xlu0 %1925, %v1316
      %v1927 = vpop.permute.xlu0 %1926
      %1930 = vset.pattern.permute.xlu0 0
      %1931 = vperm.xlu0 %1930, %v1317
      %v1932 = vpop.permute.xlu0 %1931
      %1935 = vset.pattern.permute.xlu0 0
      %1936 = vperm.xlu0 %1935, %v1318
      %v1937 = vpop.permute.xlu0 %1936
      %1940 = vset.pattern.permute.xlu0 0
      %1941 = vperm.xlu0 %1940, %v1319
      %v1942 = vpop.permute.xlu0 %1941
      %1945 = vset.pattern.permute.xlu0 0
      %1946 = vperm.xlu0 %1945, %v1320
      %v1947 = vpop.permute.xlu0 %1946
      %1950 = vset.pattern.permute.xlu0 0
      %1951 = vperm.xlu0 %1950, %v1321
      %v1952 = vpop.permute.xlu0 %1951
      %1955 = vset.pattern.permute.xlu0 0
      %1956 = vperm.xlu0 %1955, %v1322
      %v1957 = vpop.permute.xlu0 %1956
      %1960 = vset.pattern.permute.xlu0 0
      %1961 = vperm.xlu0 %1960, %v1323
      %v1962 = vpop.permute.xlu0 %1961
      %v2092 = vunpack.c.l.b16 %v1060
      %v2093 = vunpack.c.l.b16 %v1061
      %v2094 = vunpack.c.l.b16 %v1062
      %v2095 = vunpack.c.l.b16 %v1063
      %v2096 = vunpack.c.l.b16 %v1064
      %v2097 = vunpack.c.l.b16 %v1065
      %v2098 = vunpack.c.l.b16 %v1066
      %v2099 = vunpack.c.l.b16 %v1067
      %v2100 = vunpack.c.l.b16 %v1068
      %v2101 = vunpack.c.l.b16 %v1069
      %v2102 = vunpack.c.l.b16 %v1070
      %v2103 = vunpack.c.l.b16 %v1071
      %v2104 = vunpack.c.l.b16 %v1072
      %v2105 = vunpack.c.l.b16 %v1073
      %v2106 = vunpack.c.l.b16 %v1074
      %v2107 = vunpack.c.l.b16 %v1075
      %v2108 = vunpack.c.l.b16 %v1076
      %v2109 = vunpack.c.l.b16 %v1077
      %v2110 = vunpack.c.l.b16 %v1078
      %v2111 = vunpack.c.l.b16 %v1079
      %v2112 = vunpack.c.l.b16 %v1080
      %v2113 = vunpack.c.l.b16 %v1081
      %v2114 = vunpack.c.l.b16 %v1082
      %v2115 = vunpack.c.l.b16 %v1083
      %v2116 = vunpack.c.l.b16 %v1084
      %v2117 = vunpack.c.l.b16 %v1085
      %v2118 = vunpack.c.l.b16 %v1086
      %v2119 = vunpack.c.l.b16 %v1087
      %v2120 = vunpack.c.l.b16 %v1088
      %v2121 = vunpack.c.l.b16 %v1089
      %v2122 = vunpack.c.l.b16 %v1090
      %v2123 = vunpack.c.l.b16 %v1091
      %v2124 = vunpack.c.l.b16 %v1092
      %v2125 = vunpack.c.l.b16 %v1093
      %v2126 = vunpack.c.l.b16 %v1094
      %v2127 = vunpack.c.l.b16 %v1095
      %v2128 = vunpack.c.l.b16 %v1096
      %v2129 = vunpack.c.l.b16 %v1097
      %v2130 = vunpack.c.l.b16 %v1098
      %v2131 = vunpack.c.l.b16 %v1099
      %v2132 = vunpack.c.l.b16 %v1100
      %v2133 = vunpack.c.l.b16 %v1101
      %v2134 = vunpack.c.l.b16 %v1102
      %v2135 = vunpack.c.l.b16 %v1103
      %v2136 = vunpack.c.l.b16 %v1104
      %v2137 = vunpack.c.l.b16 %v1105
      %v2138 = vunpack.c.l.b16 %v1106
      %v2139 = vunpack.c.l.b16 %v1107
      %v2140 = vunpack.c.l.b16 %v1108
      %v2141 = vunpack.c.l.b16 %v1109
      %v2142 = vunpack.c.l.b16 %v1110
      %v2143 = vunpack.c.l.b16 %v1111
      %v2144 = vunpack.c.l.b16 %v1112
      %v2145 = vunpack.c.l.b16 %v1113
      %v2146 = vunpack.c.l.b16 %v1114
      %v2147 = vunpack.c.l.b16 %v1115
      %v2148 = vunpack.c.l.b16 %v1116
      %v2149 = vunpack.c.l.b16 %v1117
      %v2150 = vunpack.c.l.b16 %v1118
      %v2151 = vunpack.c.l.b16 %v1119
      %v2152 = vunpack.c.l.b16 %v1120
      %v2153 = vunpack.c.l.b16 %v1121
      %v2154 = vunpack.c.l.b16 %v1122
      %v2155 = vunpack.c.l.b16 %v1123
      %v2156 = vunpack.c.l.b16 %v1124
      %v2157 = vunpack.c.l.b16 %v1125
      %v2158 = vunpack.c.l.b16 %v1126
      %v2159 = vunpack.c.l.b16 %v1127
      %v2160 = vunpack.c.l.b16 %v1128
      %v2161 = vunpack.c.l.b16 %v1129
      %v2162 = vunpack.c.l.b16 %v1130
      %v2163 = vunpack.c.l.b16 %v1131
      %v2164 = vunpack.c.l.b16 %v1132
      %v2165 = vunpack.c.l.b16 %v1133
      %v2166 = vunpack.c.l.b16 %v1134
      %v2167 = vunpack.c.l.b16 %v1135
      %v2168 = vunpack.c.l.b16 %v1136
      %v2169 = vunpack.c.l.b16 %v1137
      %v2170 = vunpack.c.l.b16 %v1138
      %v2171 = vunpack.c.l.b16 %v1139
      %v2172 = vunpack.c.l.b16 %v1140
      %v2173 = vunpack.c.l.b16 %v1141
      %v2174 = vunpack.c.l.b16 %v1142
      %v2175 = vunpack.c.l.b16 %v1143
      %v2176 = vunpack.c.l.b16 %v1144
      %v2177 = vunpack.c.l.b16 %v1145
      %v2178 = vunpack.c.l.b16 %v1146
      %v2179 = vunpack.c.l.b16 %v1147
      %v2180 = vunpack.c.l.b16 %v1148
      %v2181 = vunpack.c.l.b16 %v1149
      %v2182 = vunpack.c.l.b16 %v1150
      %v2183 = vunpack.c.l.b16 %v1151
      %v2184 = vunpack.c.l.b16 %v1152
      %v2185 = vunpack.c.l.b16 %v1153
      %v2186 = vunpack.c.l.b16 %v1154
      %v2187 = vunpack.c.l.b16 %v1155
      %v2188 = vunpack.c.l.b16 %v1156
      %v2189 = vunpack.c.l.b16 %v1157
      %v2190 = vunpack.c.l.b16 %v1158
      %v2191 = vunpack.c.l.b16 %v1159
      %v2192 = vunpack.c.l.b16 %v1160
      %v2193 = vunpack.c.l.b16 %v1161
      %v2194 = vunpack.c.l.b16 %v1162
      %v2195 = vunpack.c.l.b16 %v1163
      %v2196 = vunpack.c.l.b16 %v1164
      %v2197 = vunpack.c.l.b16 %v1165
      %v2198 = vunpack.c.l.b16 %v1166
      %v2199 = vunpack.c.l.b16 %v1167
      %v2200 = vunpack.c.l.b16 %v1168
      %v2201 = vunpack.c.l.b16 %v1169
      %v2202 = vunpack.c.l.b16 %v1170
      %v2203 = vunpack.c.l.b16 %v1171
      %v2204 = vunpack.c.l.b16 %v1172
      %v2205 = vunpack.c.l.b16 %v1173
      %v2206 = vunpack.c.l.b16 %v1174
      %v2207 = vunpack.c.l.b16 %v1175
      %v2208 = vunpack.c.l.b16 %v1176
      %v2209 = vunpack.c.l.b16 %v1177
      %v2210 = vunpack.c.l.b16 %v1178
      %v2211 = vunpack.c.l.b16 %v1179
      %v2212 = vunpack.c.l.b16 %v1180
      %v2213 = vunpack.c.l.b16 %v1181
      %v2214 = vunpack.c.l.b16 %v1182
      %v2215 = vunpack.c.l.b16 %v1183
      %v2216 = vunpack.c.l.b16 %v1184
      %v2217 = vunpack.c.l.b16 %v1185
      %v2218 = vunpack.c.l.b16 %v1186
      %v2219 = vunpack.c.l.b16 %v1187
      %v2220 = vpack.c.b16 %v2093, %v2092
      %v2221 = vpack.c.b16 %v2095, %v2094
      %v2222 = vpack.c.b16 %v2097, %v2096
      %v2223 = vpack.c.b16 %v2099, %v2098
      %v2224 = vpack.c.b16 %v2101, %v2100
      %v2225 = vpack.c.b16 %v2103, %v2102
      %v2226 = vpack.c.b16 %v2105, %v2104
      %v2227 = vpack.c.b16 %v2107, %v2106
      %v2228 = vpack.c.b16 %v2109, %v2108
      %v2229 = vpack.c.b16 %v2111, %v2110
      %v2230 = vpack.c.b16 %v2113, %v2112
      %v2231 = vpack.c.b16 %v2115, %v2114
      %v2232 = vpack.c.b16 %v2117, %v2116
      %v2233 = vpack.c.b16 %v2119, %v2118
      %v2234 = vpack.c.b16 %v2121, %v2120
      %v2235 = vpack.c.b16 %v2123, %v2122
      %v2236 = vpack.c.b16 %v2125, %v2124
      %v2237 = vpack.c.b16 %v2127, %v2126
      %v2238 = vpack.c.b16 %v2129, %v2128
      %v2239 = vpack.c.b16 %v2131, %v2130
      %v2240 = vpack.c.b16 %v2133, %v2132
      %v2241 = vpack.c.b16 %v2135, %v2134
      %v2242 = vpack.c.b16 %v2137, %v2136
      %v2243 = vpack.c.b16 %v2139, %v2138
      %v2244 = vpack.c.b16 %v2141, %v2140
      %v2245 = vpack.c.b16 %v2143, %v2142
      %v2246 = vpack.c.b16 %v2145, %v2144
      %v2247 = vpack.c.b16 %v2147, %v2146
      %v2248 = vpack.c.b16 %v2149, %v2148
      %v2249 = vpack.c.b16 %v2151, %v2150
      %v2250 = vpack.c.b16 %v2153, %v2152
      %v2251 = vpack.c.b16 %v2155, %v2154
      %v2252 = vpack.c.b16 %v2157, %v2156
      %v2253 = vpack.c.b16 %v2159, %v2158
      %v2254 = vpack.c.b16 %v2161, %v2160
      %v2255 = vpack.c.b16 %v2163, %v2162
      %v2256 = vpack.c.b16 %v2165, %v2164
      %v2257 = vpack.c.b16 %v2167, %v2166
      %v2258 = vpack.c.b16 %v2169, %v2168
      %v2259 = vpack.c.b16 %v2171, %v2170
      %v2260 = vpack.c.b16 %v2173, %v2172
      %v2261 = vpack.c.b16 %v2175, %v2174
      %v2262 = vpack.c.b16 %v2177, %v2176
      %v2263 = vpack.c.b16 %v2179, %v2178
      %v2264 = vpack.c.b16 %v2181, %v2180
      %v2265 = vpack.c.b16 %v2183, %v2182
      %v2266 = vpack.c.b16 %v2185, %v2184
      %v2267 = vpack.c.b16 %v2187, %v2186
      %v2268 = vpack.c.b16 %v2189, %v2188
      %v2269 = vpack.c.b16 %v2191, %v2190
      %v2270 = vpack.c.b16 %v2193, %v2192
      %v2271 = vpack.c.b16 %v2195, %v2194
      %v2272 = vpack.c.b16 %v2197, %v2196
      %v2273 = vpack.c.b16 %v2199, %v2198
      %v2274 = vpack.c.b16 %v2201, %v2200
      %v2275 = vpack.c.b16 %v2203, %v2202
      %v2276 = vpack.c.b16 %v2205, %v2204
      %v2277 = vpack.c.b16 %v2207, %v2206
      %v2278 = vpack.c.b16 %v2209, %v2208
      %v2279 = vpack.c.b16 %v2211, %v2210
      %v2280 = vpack.c.b16 %v2213, %v2212
      %v2281 = vpack.c.b16 %v2215, %v2214
      %v2282 = vpack.c.b16 %v2217, %v2216
      %v2283 = vpack.c.b16 %v2219, %v2218
      %2348 = vmatprep.subr.bf16.mxu0 0
      %2349 = vmatpush1.bf16.msra.mxu0 %v1195
      %2350 = vmatprep.subr.bf16.mxu0 0
      %2351 = vmatpush1.bf16.msra.mxu0 %v1194
      %2352 = vmatprep.subr.bf16.mxu0 0
      %2353 = vmatpush1.bf16.msra.mxu0 %v1193
      %2354 = vmatprep.subr.bf16.mxu0 0
      %2355 = vmatpush1.bf16.msra.mxu0 %v1192
      %2356 = vmatprep.subr.bf16.mxu0 0
      %2357 = vmatpush1.bf16.msra.mxu0 %v1191
      %2358 = vmatprep.subr.bf16.mxu0 0
      %2359 = vmatpush1.bf16.msra.mxu0 %v1190
      %2360 = vmatprep.subr.bf16.mxu0 0
      %2361 = vmatpush1.bf16.msra.mxu0 %v1189
      %2362 = vmatprep.subr.bf16.mxu0 0
      %2363 = vmatpush1.bf16.msra.mxu0 %v1188
      %2364 = vmatprep.subr.bf16.mxu0 0
      %2365 = vmatpush2.bf16.msra.mxu0 0
      %2366 = vmatprep.subr.bf16.mxu0 0
      %2367 = vmatpush2.bf16.msra.mxu0 0
      %2368 = vmatprep.subr.bf16.mxu0 0
      %2369 = vmatpush2.bf16.msra.mxu0 0
      %2370 = vmatprep.subr.bf16.mxu0 0
      %2371 = vmatpush2.bf16.msra.mxu0 0
      %2372 = vmatprep.subr.bf16.mxu0 0
      %2373 = vmatpush2.bf16.msra.mxu0 0
      %2374 = vmatprep.subr.bf16.mxu0 0
      %2375 = vmatpush2.bf16.msra.mxu0 0
      %2376 = vmatprep.subr.bf16.mxu0 0
      %2377 = vmatpush2.bf16.msra.mxu0 0
      %2378 = vmatprep.subr.bf16.mxu0 0
      %2379 = vmatpush2.bf16.msra.mxu0 0
      %2380 = vmatprep.mubr.bf16.mxu0 0
      %2381 = vmatmul.mubr.bf16.gmra.mxu0 %v2220
      %v2382 = vpop.f32.mrf.mxu0
      %v2383 = vadd.f32 %v1327, %v2382
      %v2384 = vpop.f32.mrf.mxu0
      %v2385 = vpop.f32.mrf.mxu0
      %v2386 = vadd.f32 %v1332, %v2385
      %v2387 = vpop.f32.mrf.mxu0
      %2388 = vmatprep.mubr.bf16.mxu0 0
      %2389 = vmatmul.mubr.bf16.gmra.mxu0 %v2221
      %v2390 = vpop.f32.mrf.mxu0
      %v2391 = vadd.f32 %v1337, %v2390
      %v2392 = vpop.f32.mrf.mxu0
      %v2393 = vpop.f32.mrf.mxu0
      %v2394 = vadd.f32 %v1342, %v2393
      %v2395 = vpop.f32.mrf.mxu0
      %2396 = vmatprep.mubr.bf16.mxu0 0
      %2397 = vmatmul.mubr.bf16.gmra.mxu0 %v2222
      %v2398 = vpop.f32.mrf.mxu0
      %v2399 = vadd.f32 %v1347, %v2398
      %v2400 = vpop.f32.mrf.mxu0
      %v2401 = vpop.f32.mrf.mxu0
      %v2402 = vadd.f32 %v1352, %v2401
      %v2403 = vpop.f32.mrf.mxu0
      %2404 = vmatprep.mubr.bf16.mxu0 0
      %2405 = vmatmul.mubr.bf16.gmra.mxu0 %v2223
      %v2406 = vpop.f32.mrf.mxu0
      %v2407 = vadd.f32 %v1357, %v2406
      %v2408 = vpop.f32.mrf.mxu0
      %v2409 = vpop.f32.mrf.mxu0
      %v2410 = vadd.f32 %v1362, %v2409
      %v2411 = vpop.f32.mrf.mxu0
      %2412 = vmatprep.mubr.bf16.mxu0 0
      %2413 = vmatmul.mubr.bf16.gmra.mxu0 %v2224
      %v2414 = vpop.f32.mrf.mxu0
      %v2415 = vadd.f32 %v1367, %v2414
      %v2416 = vpop.f32.mrf.mxu0
      %v2417 = vpop.f32.mrf.mxu0
      %v2418 = vadd.f32 %v1372, %v2417
      %v2419 = vpop.f32.mrf.mxu0
      %2420 = vmatprep.mubr.bf16.mxu0 0
      %2421 = vmatmul.mubr.bf16.gmra.mxu0 %v2225
      %v2422 = vpop.f32.mrf.mxu0
      %v2423 = vadd.f32 %v1377, %v2422
      %v2424 = vpop.f32.mrf.mxu0
      %v2425 = vpop.f32.mrf.mxu0
      %v2426 = vadd.f32 %v1382, %v2425
      %v2427 = vpop.f32.mrf.mxu0
      %2428 = vmatprep.mubr.bf16.mxu0 0
      %2429 = vmatmul.mubr.bf16.gmra.mxu0 %v2226
      %v2430 = vpop.f32.mrf.mxu0
      %v2431 = vadd.f32 %v1387, %v2430
      %v2432 = vpop.f32.mrf.mxu0
      %v2433 = vpop.f32.mrf.mxu0
      %v2434 = vadd.f32 %v1392, %v2433
      %v2435 = vpop.f32.mrf.mxu0
      %2436 = vmatprep.mubr.bf16.mxu0 0
      %2437 = vmatmul.mubr.bf16.gmra.mxu0 %v2227
      %v2438 = vpop.f32.mrf.mxu0
      %v2439 = vadd.f32 %v1397, %v2438
      %v2440 = vpop.f32.mrf.mxu0
      %v2441 = vpop.f32.mrf.mxu0
      %v2442 = vadd.f32 %v1402, %v2441
      %v2443 = vpop.f32.mrf.mxu0
      %2444 = vmatprep.mubr.bf16.mxu0 0
      %2445 = vmatmul.mubr.bf16.gmra.mxu0 %v2228
      %v2446 = vpop.f32.mrf.mxu0
      %v2447 = vadd.f32 %v1407, %v2446
      %v2448 = vpop.f32.mrf.mxu0
      %v2449 = vpop.f32.mrf.mxu0
      %v2450 = vadd.f32 %v1412, %v2449
      %v2451 = vpop.f32.mrf.mxu0
      %2452 = vmatprep.mubr.bf16.mxu0 0
      %2453 = vmatmul.mubr.bf16.gmra.mxu0 %v2229
      %v2454 = vpop.f32.mrf.mxu0
      %v2455 = vadd.f32 %v1417, %v2454
      %v2456 = vpop.f32.mrf.mxu0
      %v2457 = vpop.f32.mrf.mxu0
      %v2458 = vadd.f32 %v1422, %v2457
      %v2459 = vpop.f32.mrf.mxu0
      %2460 = vmatprep.mubr.bf16.mxu0 0
      %2461 = vmatmul.mubr.bf16.gmra.mxu0 %v2230
      %v2462 = vpop.f32.mrf.mxu0
      %v2463 = vadd.f32 %v1427, %v2462
      %v2464 = vpop.f32.mrf.mxu0
      %v2465 = vpop.f32.mrf.mxu0
      %v2466 = vadd.f32 %v1432, %v2465
      %v2467 = vpop.f32.mrf.mxu0
      %2468 = vmatprep.mubr.bf16.mxu0 0
      %2469 = vmatmul.mubr.bf16.gmra.mxu0 %v2231
      %v2470 = vpop.f32.mrf.mxu0
      %v2471 = vadd.f32 %v1437, %v2470
      %v2472 = vpop.f32.mrf.mxu0
      %v2473 = vpop.f32.mrf.mxu0
      %v2474 = vadd.f32 %v1442, %v2473
      %v2475 = vpop.f32.mrf.mxu0
      %2476 = vmatprep.mubr.bf16.mxu0 0
      %2477 = vmatmul.mubr.bf16.gmra.mxu0 %v2232
      %v2478 = vpop.f32.mrf.mxu0
      %v2479 = vadd.f32 %v1447, %v2478
      %v2480 = vpop.f32.mrf.mxu0
      %v2481 = vpop.f32.mrf.mxu0
      %v2482 = vadd.f32 %v1452, %v2481
      %v2483 = vpop.f32.mrf.mxu0
      %2484 = vmatprep.mubr.bf16.mxu0 0
      %2485 = vmatmul.mubr.bf16.gmra.mxu0 %v2233
      %v2486 = vpop.f32.mrf.mxu0
      %v2487 = vadd.f32 %v1457, %v2486
      %v2488 = vpop.f32.mrf.mxu0
      %v2489 = vpop.f32.mrf.mxu0
      %v2490 = vadd.f32 %v1462, %v2489
      %v2491 = vpop.f32.mrf.mxu0
      %2492 = vmatprep.mubr.bf16.mxu0 0
      %2493 = vmatmul.mubr.bf16.gmra.mxu0 %v2234
      %v2494 = vpop.f32.mrf.mxu0
      %v2495 = vadd.f32 %v1467, %v2494
      %v2496 = vpop.f32.mrf.mxu0
      %v2497 = vpop.f32.mrf.mxu0
      %v2498 = vadd.f32 %v1472, %v2497
      %v2499 = vpop.f32.mrf.mxu0
      %2500 = vmatprep.mubr.bf16.mxu0 0
      %2501 = vmatmul.mubr.bf16.gmra.mxu0 %v2235
      %v2502 = vpop.f32.mrf.mxu0
      %v2503 = vadd.f32 %v1477, %v2502
      %v2504 = vpop.f32.mrf.mxu0
      %v2505 = vpop.f32.mrf.mxu0
      %v2506 = vadd.f32 %v1482, %v2505
      %v2507 = vpop.f32.mrf.mxu0
      %2508 = vmatprep.mubr.bf16.mxu0 0
      %2509 = vmatmul.mubr.bf16.gmra.mxu0 %v2236
      %v2510 = vpop.f32.mrf.mxu0
      %v2511 = vadd.f32 %v1487, %v2510
      %v2512 = vpop.f32.mrf.mxu0
      %v2513 = vpop.f32.mrf.mxu0
      %v2514 = vadd.f32 %v1492, %v2513
      %v2515 = vpop.f32.mrf.mxu0
      %2516 = vmatprep.mubr.bf16.mxu0 0
      %2517 = vmatmul.mubr.bf16.gmra.mxu0 %v2237
      %v2518 = vpop.f32.mrf.mxu0
      %v2519 = vadd.f32 %v1497, %v2518
      %v2520 = vpop.f32.mrf.mxu0
      %v2521 = vpop.f32.mrf.mxu0
      %v2522 = vadd.f32 %v1502, %v2521
      %v2523 = vpop.f32.mrf.mxu0
      %2524 = vmatprep.mubr.bf16.mxu0 0
      %2525 = vmatmul.mubr.bf16.gmra.mxu0 %v2238
      %v2526 = vpop.f32.mrf.mxu0
      %v2527 = vadd.f32 %v1507, %v2526
      %v2528 = vpop.f32.mrf.mxu0
      %v2529 = vpop.f32.mrf.mxu0
      %v2530 = vadd.f32 %v1512, %v2529
      %v2531 = vpop.f32.mrf.mxu0
      %2532 = vmatprep.mubr.bf16.mxu0 0
      %2533 = vmatmul.mubr.bf16.gmra.mxu0 %v2239
      %v2534 = vpop.f32.mrf.mxu0
      %v2535 = vadd.f32 %v1517, %v2534
      %v2536 = vpop.f32.mrf.mxu0
      %v2537 = vpop.f32.mrf.mxu0
      %v2538 = vadd.f32 %v1522, %v2537
      %v2539 = vpop.f32.mrf.mxu0
      %2540 = vmatprep.mubr.bf16.mxu0 0
      %2541 = vmatmul.mubr.bf16.gmra.mxu0 %v2240
      %v2542 = vpop.f32.mrf.mxu0
      %v2543 = vadd.f32 %v1527, %v2542
      %v2544 = vpop.f32.mrf.mxu0
      %v2545 = vpop.f32.mrf.mxu0
      %v2546 = vadd.f32 %v1532, %v2545
      %v2547 = vpop.f32.mrf.mxu0
      %2548 = vmatprep.mubr.bf16.mxu0 0
      %2549 = vmatmul.mubr.bf16.gmra.mxu0 %v2241
      %v2550 = vpop.f32.mrf.mxu0
      %v2551 = vadd.f32 %v1537, %v2550
      %v2552 = vpop.f32.mrf.mxu0
      %v2553 = vpop.f32.mrf.mxu0
      %v2554 = vadd.f32 %v1542, %v2553
      %v2555 = vpop.f32.mrf.mxu0
      %2556 = vmatprep.mubr.bf16.mxu0 0
      %2557 = vmatmul.mubr.bf16.gmra.mxu0 %v2242
      %v2558 = vpop.f32.mrf.mxu0
      %v2559 = vadd.f32 %v1547, %v2558
      %v2560 = vpop.f32.mrf.mxu0
      %v2561 = vpop.f32.mrf.mxu0
      %v2562 = vadd.f32 %v1552, %v2561
      %v2563 = vpop.f32.mrf.mxu0
      %2564 = vmatprep.mubr.bf16.mxu0 0
      %2565 = vmatmul.mubr.bf16.gmra.mxu0 %v2243
      %v2566 = vpop.f32.mrf.mxu0
      %v2567 = vadd.f32 %v1557, %v2566
      %v2568 = vpop.f32.mrf.mxu0
      %v2569 = vpop.f32.mrf.mxu0
      %v2570 = vadd.f32 %v1562, %v2569
      %v2571 = vpop.f32.mrf.mxu0
      %2572 = vmatprep.mubr.bf16.mxu0 0
      %2573 = vmatmul.mubr.bf16.gmra.mxu0 %v2244
      %v2574 = vpop.f32.mrf.mxu0
      %v2575 = vadd.f32 %v1567, %v2574
      %v2576 = vpop.f32.mrf.mxu0
      %v2577 = vpop.f32.mrf.mxu0
      %v2578 = vadd.f32 %v1572, %v2577
      %v2579 = vpop.f32.mrf.mxu0
      %2580 = vmatprep.mubr.bf16.mxu0 0
      %2581 = vmatmul.mubr.bf16.gmra.mxu0 %v2245
      %v2582 = vpop.f32.mrf.mxu0
      %v2583 = vadd.f32 %v1577, %v2582
      %v2584 = vpop.f32.mrf.mxu0
      %v2585 = vpop.f32.mrf.mxu0
      %v2586 = vadd.f32 %v1582, %v2585
      %v2587 = vpop.f32.mrf.mxu0
      %2588 = vmatprep.mubr.bf16.mxu0 0
      %2589 = vmatmul.mubr.bf16.gmra.mxu0 %v2246
      %v2590 = vpop.f32.mrf.mxu0
      %v2591 = vadd.f32 %v1587, %v2590
      %v2592 = vpop.f32.mrf.mxu0
      %v2593 = vpop.f32.mrf.mxu0
      %v2594 = vadd.f32 %v1592, %v2593
      %v2595 = vpop.f32.mrf.mxu0
      %2596 = vmatprep.mubr.bf16.mxu0 0
      %2597 = vmatmul.mubr.bf16.gmra.mxu0 %v2247
      %v2598 = vpop.f32.mrf.mxu0
      %v2599 = vadd.f32 %v1597, %v2598
      %v2600 = vpop.f32.mrf.mxu0
      %v2601 = vpop.f32.mrf.mxu0
      %v2602 = vadd.f32 %v1602, %v2601
      %v2603 = vpop.f32.mrf.mxu0
      %2604 = vmatprep.mubr.bf16.mxu0 0
      %2605 = vmatmul.mubr.bf16.gmra.mxu0 %v2248
      %v2606 = vpop.f32.mrf.mxu0
      %v2607 = vadd.f32 %v1607, %v2606
      %v2608 = vpop.f32.mrf.mxu0
      %v2609 = vpop.f32.mrf.mxu0
      %v2610 = vadd.f32 %v1612, %v2609
      %v2611 = vpop.f32.mrf.mxu0
      %2612 = vmatprep.mubr.bf16.mxu0 0
      %2613 = vmatmul.mubr.bf16.gmra.mxu0 %v2249
      %v2614 = vpop.f32.mrf.mxu0
      %v2615 = vadd.f32 %v1617, %v2614
      %v2616 = vpop.f32.mrf.mxu0
      %v2617 = vpop.f32.mrf.mxu0
      %v2618 = vadd.f32 %v1622, %v2617
      %v2619 = vpop.f32.mrf.mxu0
      %2620 = vmatprep.mubr.bf16.mxu0 0
      %2621 = vmatmul.mubr.bf16.gmra.mxu0 %v2250
      %v2622 = vpop.f32.mrf.mxu0
      %v2623 = vadd.f32 %v1627, %v2622
      %v2624 = vpop.f32.mrf.mxu0
      %v2625 = vpop.f32.mrf.mxu0
      %v2626 = vadd.f32 %v1632, %v2625
      %v2627 = vpop.f32.mrf.mxu0
      %2628 = vmatprep.mubr.bf16.mxu0 0
      %2629 = vmatmul.mubr.bf16.gmra.mxu0 %v2251
      %v2630 = vpop.f32.mrf.mxu0
      %v2631 = vadd.f32 %v1637, %v2630
      %v2632 = vpop.f32.mrf.mxu0
      %v2633 = vpop.f32.mrf.mxu0
      %v2634 = vadd.f32 %v1642, %v2633
      %v2635 = vpop.f32.mrf.mxu0
      %2636 = vmatprep.mubr.bf16.mxu0 0
      %2637 = vmatmul.mubr.bf16.gmra.mxu0 %v2252
      %v2638 = vpop.f32.mrf.mxu0
      %v2639 = vadd.f32 %v1647, %v2638
      %v2640 = vpop.f32.mrf.mxu0
      %v2641 = vpop.f32.mrf.mxu0
      %v2642 = vadd.f32 %v1652, %v2641
      %v2643 = vpop.f32.mrf.mxu0
      %2644 = vmatprep.mubr.bf16.mxu0 0
      %2645 = vmatmul.mubr.bf16.gmra.mxu0 %v2253
      %v2646 = vpop.f32.mrf.mxu0
      %v2647 = vadd.f32 %v1657, %v2646
      %v2648 = vpop.f32.mrf.mxu0
      %v2649 = vpop.f32.mrf.mxu0
      %v2650 = vadd.f32 %v1662, %v2649
      %v2651 = vpop.f32.mrf.mxu0
      %2652 = vmatprep.mubr.bf16.mxu0 0
      %2653 = vmatmul.mubr.bf16.gmra.mxu0 %v2254
      %v2654 = vpop.f32.mrf.mxu0
      %v2655 = vadd.f32 %v1667, %v2654
      %v2656 = vpop.f32.mrf.mxu0
      %v2657 = vpop.f32.mrf.mxu0
      %v2658 = vadd.f32 %v1672, %v2657
      %v2659 = vpop.f32.mrf.mxu0
      %2660 = vmatprep.mubr.bf16.mxu0 0
      %2661 = vmatmul.mubr.bf16.gmra.mxu0 %v2255
      %v2662 = vpop.f32.mrf.mxu0
      %v2663 = vadd.f32 %v1677, %v2662
      %v2664 = vpop.f32.mrf.mxu0
      %v2665 = vpop.f32.mrf.mxu0
      %v2666 = vadd.f32 %v1682, %v2665
      %v2667 = vpop.f32.mrf.mxu0
      %2668 = vmatprep.mubr.bf16.mxu0 0
      %2669 = vmatmul.mubr.bf16.gmra.mxu0 %v2256
      %v2670 = vpop.f32.mrf.mxu0
      %v2671 = vadd.f32 %v1687, %v2670
      %v2672 = vpop.f32.mrf.mxu0
      %v2673 = vpop.f32.mrf.mxu0
      %v2674 = vadd.f32 %v1692, %v2673
      %v2675 = vpop.f32.mrf.mxu0
      %2676 = vmatprep.mubr.bf16.mxu0 0
      %2677 = vmatmul.mubr.bf16.gmra.mxu0 %v2257
      %v2678 = vpop.f32.mrf.mxu0
      %v2679 = vadd.f32 %v1697, %v2678
      %v2680 = vpop.f32.mrf.mxu0
      %v2681 = vpop.f32.mrf.mxu0
      %v2682 = vadd.f32 %v1702, %v2681
      %v2683 = vpop.f32.mrf.mxu0
      %2684 = vmatprep.mubr.bf16.mxu0 0
      %2685 = vmatmul.mubr.bf16.gmra.mxu0 %v2258
      %v2686 = vpop.f32.mrf.mxu0
      %v2687 = vadd.f32 %v1707, %v2686
      %v2688 = vpop.f32.mrf.mxu0
      %v2689 = vpop.f32.mrf.mxu0
      %v2690 = vadd.f32 %v1712, %v2689
      %v2691 = vpop.f32.mrf.mxu0
      %2692 = vmatprep.mubr.bf16.mxu0 0
      %2693 = vmatmul.mubr.bf16.gmra.mxu0 %v2259
      %v2694 = vpop.f32.mrf.mxu0
      %v2695 = vadd.f32 %v1717, %v2694
      %v2696 = vpop.f32.mrf.mxu0
      %v2697 = vpop.f32.mrf.mxu0
      %v2698 = vadd.f32 %v1722, %v2697
      %v2699 = vpop.f32.mrf.mxu0
      %2700 = vmatprep.mubr.bf16.mxu0 0
      %2701 = vmatmul.mubr.bf16.gmra.mxu0 %v2260
      %v2702 = vpop.f32.mrf.mxu0
      %v2703 = vadd.f32 %v1727, %v2702
      %v2704 = vpop.f32.mrf.mxu0
      %v2705 = vpop.f32.mrf.mxu0
      %v2706 = vadd.f32 %v1732, %v2705
      %v2707 = vpop.f32.mrf.mxu0
      %2708 = vmatprep.mubr.bf16.mxu0 0
      %2709 = vmatmul.mubr.bf16.gmra.mxu0 %v2261
      %v2710 = vpop.f32.mrf.mxu0
      %v2711 = vadd.f32 %v1737, %v2710
      %v2712 = vpop.f32.mrf.mxu0
      %v2713 = vpop.f32.mrf.mxu0
      %v2714 = vadd.f32 %v1742, %v2713
      %v2715 = vpop.f32.mrf.mxu0
      %2716 = vmatprep.mubr.bf16.mxu0 0
      %2717 = vmatmul.mubr.bf16.gmra.mxu0 %v2262
      %v2718 = vpop.f32.mrf.mxu0
      %v2719 = vadd.f32 %v1747, %v2718
      %v2720 = vpop.f32.mrf.mxu0
      %v2721 = vpop.f32.mrf.mxu0
      %v2722 = vadd.f32 %v1752, %v2721
      %v2723 = vpop.f32.mrf.mxu0
      %2724 = vmatprep.mubr.bf16.mxu0 0
      %2725 = vmatmul.mubr.bf16.gmra.mxu0 %v2263
      %v2726 = vpop.f32.mrf.mxu0
      %v2727 = vadd.f32 %v1757, %v2726
      %v2728 = vpop.f32.mrf.mxu0
      %v2729 = vpop.f32.mrf.mxu0
      %v2730 = vadd.f32 %v1762, %v2729
      %v2731 = vpop.f32.mrf.mxu0
      %2732 = vmatprep.mubr.bf16.mxu0 0
      %2733 = vmatmul.mubr.bf16.gmra.mxu0 %v2264
      %v2734 = vpop.f32.mrf.mxu0
      %v2735 = vadd.f32 %v1767, %v2734
      %v2736 = vpop.f32.mrf.mxu0
      %v2737 = vpop.f32.mrf.mxu0
      %v2738 = vadd.f32 %v1772, %v2737
      %v2739 = vpop.f32.mrf.mxu0
      %2740 = vmatprep.mubr.bf16.mxu0 0
      %2741 = vmatmul.mubr.bf16.gmra.mxu0 %v2265
      %v2742 = vpop.f32.mrf.mxu0
      %v2743 = vadd.f32 %v1777, %v2742
      %v2744 = vpop.f32.mrf.mxu0
      %v2745 = vpop.f32.mrf.mxu0
      %v2746 = vadd.f32 %v1782, %v2745
      %v2747 = vpop.f32.mrf.mxu0
      %2748 = vmatprep.mubr.bf16.mxu0 0
      %2749 = vmatmul.mubr.bf16.gmra.mxu0 %v2266
      %v2750 = vpop.f32.mrf.mxu0
      %v2751 = vadd.f32 %v1787, %v2750
      %v2752 = vpop.f32.mrf.mxu0
      %v2753 = vpop.f32.mrf.mxu0
      %v2754 = vadd.f32 %v1792, %v2753
      %v2755 = vpop.f32.mrf.mxu0
      %2756 = vmatprep.mubr.bf16.mxu0 0
      %2757 = vmatmul.mubr.bf16.gmra.mxu0 %v2267
      %v2758 = vpop.f32.mrf.mxu0
      %v2759 = vadd.f32 %v1797, %v2758
      %v2760 = vpop.f32.mrf.mxu0
      %v2761 = vpop.f32.mrf.mxu0
      %v2762 = vadd.f32 %v1802, %v2761
      %v2763 = vpop.f32.mrf.mxu0
      %2764 = vmatprep.mubr.bf16.mxu0 0
      %2765 = vmatmul.mubr.bf16.gmra.mxu0 %v2268
      %v2766 = vpop.f32.mrf.mxu0
      %v2767 = vadd.f32 %v1807, %v2766
      %v2768 = vpop.f32.mrf.mxu0
      %v2769 = vpop.f32.mrf.mxu0
      %v2770 = vadd.f32 %v1812, %v2769
      %v2771 = vpop.f32.mrf.mxu0
      %2772 = vmatprep.mubr.bf16.mxu0 0
      %2773 = vmatmul.mubr.bf16.gmra.mxu0 %v2269
      %v2774 = vpop.f32.mrf.mxu0
      %v2775 = vadd.f32 %v1817, %v2774
      %v2776 = vpop.f32.mrf.mxu0
      %v2777 = vpop.f32.mrf.mxu0
      %v2778 = vadd.f32 %v1822, %v2777
      %v2779 = vpop.f32.mrf.mxu0
      %2780 = vmatprep.mubr.bf16.mxu0 0
      %2781 = vmatmul.mubr.bf16.gmra.mxu0 %v2270
      %v2782 = vpop.f32.mrf.mxu0
      %v2783 = vadd.f32 %v1827, %v2782
      %v2784 = vpop.f32.mrf.mxu0
      %v2785 = vpop.f32.mrf.mxu0
      %v2786 = vadd.f32 %v1832, %v2785
      %v2787 = vpop.f32.mrf.mxu0
      %2788 = vmatprep.mubr.bf16.mxu0 0
      %2789 = vmatmul.mubr.bf16.gmra.mxu0 %v2271
      %v2790 = vpop.f32.mrf.mxu0
      %v2791 = vadd.f32 %v1837, %v2790
      %v2792 = vpop.f32.mrf.mxu0
      %v2793 = vpop.f32.mrf.mxu0
      %v2794 = vadd.f32 %v1842, %v2793
      %v2795 = vpop.f32.mrf.mxu0
      %2796 = vmatprep.mubr.bf16.mxu0 0
      %2797 = vmatmul.mubr.bf16.gmra.mxu0 %v2272
      %v2798 = vpop.f32.mrf.mxu0
      %v2799 = vadd.f32 %v1847, %v2798
      %v2800 = vpop.f32.mrf.mxu0
      %v2801 = vpop.f32.mrf.mxu0
      %v2802 = vadd.f32 %v1852, %v2801
      %v2803 = vpop.f32.mrf.mxu0
      %2804 = vmatprep.mubr.bf16.mxu0 0
      %2805 = vmatmul.mubr.bf16.gmra.mxu0 %v2273
      %v2806 = vpop.f32.mrf.mxu0
      %v2807 = vadd.f32 %v1857, %v2806
      %v2808 = vpop.f32.mrf.mxu0
      %v2809 = vpop.f32.mrf.mxu0
      %v2810 = vadd.f32 %v1862, %v2809
      %v2811 = vpop.f32.mrf.mxu0
      %2812 = vmatprep.mubr.bf16.mxu0 0
      %2813 = vmatmul.mubr.bf16.gmra.mxu0 %v2274
      %v2814 = vpop.f32.mrf.mxu0
      %v2815 = vadd.f32 %v1867, %v2814
      %v2816 = vpop.f32.mrf.mxu0
      %v2817 = vpop.f32.mrf.mxu0
      %v2818 = vadd.f32 %v1872, %v2817
      %v2819 = vpop.f32.mrf.mxu0
      %2820 = vmatprep.mubr.bf16.mxu0 0
      %2821 = vmatmul.mubr.bf16.gmra.mxu0 %v2275
      %v2822 = vpop.f32.mrf.mxu0
      %v2823 = vadd.f32 %v1877, %v2822
      %v2824 = vpop.f32.mrf.mxu0
      %v2825 = vpop.f32.mrf.mxu0
      %v2826 = vadd.f32 %v1882, %v2825
      %v2827 = vpop.f32.mrf.mxu0
      %2828 = vmatprep.mubr.bf16.mxu0 0
      %2829 = vmatmul.mubr.bf16.gmra.mxu0 %v2276
      %v2830 = vpop.f32.mrf.mxu0
      %v2831 = vadd.f32 %v1887, %v2830
      %v2832 = vpop.f32.mrf.mxu0
      %v2833 = vpop.f32.mrf.mxu0
      %v2834 = vadd.f32 %v1892, %v2833
      %v2835 = vpop.f32.mrf.mxu0
      %2836 = vmatprep.mubr.bf16.mxu0 0
      %2837 = vmatmul.mubr.bf16.gmra.mxu0 %v2277
      %v2838 = vpop.f32.mrf.mxu0
      %v2839 = vadd.f32 %v1897, %v2838
      %v2840 = vpop.f32.mrf.mxu0
      %v2841 = vpop.f32.mrf.mxu0
      %v2842 = vadd.f32 %v1902, %v2841
      %v2843 = vpop.f32.mrf.mxu0
      %2844 = vmatprep.mubr.bf16.mxu0 0
      %2845 = vmatmul.mubr.bf16.gmra.mxu0 %v2278
      %v2846 = vpop.f32.mrf.mxu0
      %v2847 = vadd.f32 %v1907, %v2846
      %v2848 = vpop.f32.mrf.mxu0
      %v2849 = vpop.f32.mrf.mxu0
      %v2850 = vadd.f32 %v1912, %v2849
      %v2851 = vpop.f32.mrf.mxu0
      %2852 = vmatprep.mubr.bf16.mxu0 0
      %2853 = vmatmul.mubr.bf16.gmra.mxu0 %v2279
      %v2854 = vpop.f32.mrf.mxu0
      %v2855 = vadd.f32 %v1917, %v2854
      %v2856 = vpop.f32.mrf.mxu0
      %v2857 = vpop.f32.mrf.mxu0
      %v2858 = vadd.f32 %v1922, %v2857
      %v2859 = vpop.f32.mrf.mxu0
      %2860 = vmatprep.mubr.bf16.mxu0 0
      %2861 = vmatmul.mubr.bf16.gmra.mxu0 %v2280
      %v2862 = vpop.f32.mrf.mxu0
      %v2863 = vadd.f32 %v1927, %v2862
      %v2864 = vpop.f32.mrf.mxu0
      %v2865 = vpop.f32.mrf.mxu0
      %v2866 = vadd.f32 %v1932, %v2865
      %v2867 = vpop.f32.mrf.mxu0
      %2868 = vmatprep.mubr.bf16.mxu0 0
      %2869 = vmatmul.mubr.bf16.gmra.mxu0 %v2281
      %v2870 = vpop.f32.mrf.mxu0
      %v2871 = vadd.f32 %v1937, %v2870
      %v2872 = vpop.f32.mrf.mxu0
      %v2873 = vpop.f32.mrf.mxu0
      %v2874 = vadd.f32 %v1942, %v2873
      %v2875 = vpop.f32.mrf.mxu0
      %2876 = vmatprep.mubr.bf16.mxu0 0
      %2877 = vmatmul.mubr.bf16.gmra.mxu0 %v2282
      %v2878 = vpop.f32.mrf.mxu0
      %v2879 = vadd.f32 %v1947, %v2878
      %v2880 = vpop.f32.mrf.mxu0
      %v2881 = vpop.f32.mrf.mxu0
      %v2882 = vadd.f32 %v1952, %v2881
      %v2883 = vpop.f32.mrf.mxu0
      %2884 = vmatprep.mubr.bf16.mxu0 0
      %2885 = vmatmul.mubr.bf16.gmra.mxu0 %v2283
      %v2886 = vpop.f32.mrf.mxu0
      %v2887 = vadd.f32 %v1957, %v2886
      %v2888 = vpop.f32.mrf.mxu0
      %v2889 = vpop.f32.mrf.mxu0
      %v2890 = vadd.f32 %v1962, %v2889
      %v2891 = vpop.f32.mrf.mxu0
      %2892 = vdwg.mxu0
      %v2893 = vld [vmem:[#allocation2] sm:$0xff]
      %v2894 = vld [vmem:[#allocation2 + $0x8] sm:$0xff]
      %v2895 = vld [vmem:[#allocation2 + $0x10] sm:$0xff]
      %v2896 = vld [vmem:[#allocation2 + $0x18] sm:$0xff]
      %v2897 = vld [vmem:[#allocation2 + $0x20] sm:$0xff]
      %v2898 = vld [vmem:[#allocation2 + $0x28] sm:$0xff]
      %v2899 = vld [vmem:[#allocation2 + $0x30] sm:$0xff]
      %v2900 = vld [vmem:[#allocation2 + $0x38] sm:$0xff]
      %v2901 = vld [vmem:[#allocation2 + $0x40] sm:$0xff]
      %v2902 = vld [vmem:[#allocation2 + $0x48] sm:$0xff]
      %v2903 = vld [vmem:[#allocation2 + $0x50] sm:$0xff]
      %v2904 = vld [vmem:[#allocation2 + $0x58] sm:$0xff]
      %v2905 = vld [vmem:[#allocation2 + $0x60] sm:$0xff]
      %v2906 = vld [vmem:[#allocation2 + $0x68] sm:$0xff]
      %v2907 = vld [vmem:[#allocation2 + $0x70] sm:$0xff]
      %v2908 = vld [vmem:[#allocation2 + $0x78] sm:$0xff]
      %v2909 = vld [vmem:[#allocation2 + $0x80] sm:$0xff]
      %v2910 = vld [vmem:[#allocation2 + $0x88] sm:$0xff]
      %v2911 = vld [vmem:[#allocation2 + $0x90] sm:$0xff]
      %v2912 = vld [vmem:[#allocation2 + $0x98] sm:$0xff]
      %v2913 = vld [vmem:[#allocation2 + $0xa0] sm:$0xff]
      %v2914 = vld [vmem:[#allocation2 + $0xa8] sm:$0xff]
      %v2915 = vld [vmem:[#allocation2 + $0xb0] sm:$0xff]
      %v2916 = vld [vmem:[#allocation2 + $0xb8] sm:$0xff]
      %v2917 = vld [vmem:[#allocation2 + $0xc0] sm:$0xff]
      %v2918 = vld [vmem:[#allocation2 + $0xc8] sm:$0xff]
      %v2919 = vld [vmem:[#allocation2 + $0xd0] sm:$0xff]
      %v2920 = vld [vmem:[#allocation2 + $0xd8] sm:$0xff]
      %v2921 = vld [vmem:[#allocation2 + $0xe0] sm:$0xff]
      %v2922 = vld [vmem:[#allocation2 + $0xe8] sm:$0xff]
      %v2923 = vld [vmem:[#allocation2 + $0xf0] sm:$0xff]
      %v2924 = vld [vmem:[#allocation2 + $0xf8] sm:$0xff]
      %v2925 = vld [vmem:[#allocation2 + $0x100] sm:$0xff]
      %v2926 = vld [vmem:[#allocation2 + $0x108] sm:$0xff]
      %v2927 = vld [vmem:[#allocation2 + $0x110] sm:$0xff]
      %v2928 = vld [vmem:[#allocation2 + $0x118] sm:$0xff]
      %v2929 = vld [vmem:[#allocation2 + $0x120] sm:$0xff]
      %v2930 = vld [vmem:[#allocation2 + $0x128] sm:$0xff]
      %v2931 = vld [vmem:[#allocation2 + $0x130] sm:$0xff]
      %v2932 = vld [vmem:[#allocation2 + $0x138] sm:$0xff]
      %v2933 = vld [vmem:[#allocation2 + $0x140] sm:$0xff]
      %v2934 = vld [vmem:[#allocation2 + $0x148] sm:$0xff]
      %v2935 = vld [vmem:[#allocation2 + $0x150] sm:$0xff]
      %v2936 = vld [vmem:[#allocation2 + $0x158] sm:$0xff]
      %v2937 = vld [vmem:[#allocation2 + $0x160] sm:$0xff]
      %v2938 = vld [vmem:[#allocation2 + $0x168] sm:$0xff]
      %v2939 = vld [vmem:[#allocation2 + $0x170] sm:$0xff]
      %v2940 = vld [vmem:[#allocation2 + $0x178] sm:$0xff]
      %v2941 = vld [vmem:[#allocation2 + $0x180] sm:$0xff]
      %v2942 = vld [vmem:[#allocation2 + $0x188] sm:$0xff]
      %v2943 = vld [vmem:[#allocation2 + $0x190] sm:$0xff]
      %v2944 = vld [vmem:[#allocation2 + $0x198] sm:$0xff]
      %v2945 = vld [vmem:[#allocation2 + $0x1a0] sm:$0xff]
      %v2946 = vld [vmem:[#allocation2 + $0x1a8] sm:$0xff]
      %v2947 = vld [vmem:[#allocation2 + $0x1b0] sm:$0xff]
      %v2948 = vld [vmem:[#allocation2 + $0x1b8] sm:$0xff]
      %v2949 = vld [vmem:[#allocation2 + $0x1c0] sm:$0xff]
      %v2950 = vld [vmem:[#allocation2 + $0x1c8] sm:$0xff]
      %v2951 = vld [vmem:[#allocation2 + $0x1d0] sm:$0xff]
      %v2952 = vld [vmem:[#allocation2 + $0x1d8] sm:$0xff]
      %v2953 = vld [vmem:[#allocation2 + $0x1e0] sm:$0xff]
      %v2954 = vld [vmem:[#allocation2 + $0x1e8] sm:$0xff]
      %v2955 = vld [vmem:[#allocation2 + $0x1f0] sm:$0xff]
      %v2956 = vld [vmem:[#allocation2 + $0x1f8] sm:$0xff]
      %v2957 = vld [vmem:[#allocation2 + $0x200] sm:$0xff]
      %v2958 = vld [vmem:[#allocation2 + $0x208] sm:$0xff]
      %v2959 = vld [vmem:[#allocation2 + $0x210] sm:$0xff]
      %v2960 = vld [vmem:[#allocation2 + $0x218] sm:$0xff]
      %v2961 = vld [vmem:[#allocation2 + $0x220] sm:$0xff]
      %v2962 = vld [vmem:[#allocation2 + $0x228] sm:$0xff]
      %v2963 = vld [vmem:[#allocation2 + $0x230] sm:$0xff]
      %v2964 = vld [vmem:[#allocation2 + $0x238] sm:$0xff]
      %v2965 = vld [vmem:[#allocation2 + $0x240] sm:$0xff]
      %v2966 = vld [vmem:[#allocation2 + $0x248] sm:$0xff]
      %v2967 = vld [vmem:[#allocation2 + $0x250] sm:$0xff]
      %v2968 = vld [vmem:[#allocation2 + $0x258] sm:$0xff]
      %v2969 = vld [vmem:[#allocation2 + $0x260] sm:$0xff]
      %v2970 = vld [vmem:[#allocation2 + $0x268] sm:$0xff]
      %v2971 = vld [vmem:[#allocation2 + $0x270] sm:$0xff]
      %v2972 = vld [vmem:[#allocation2 + $0x278] sm:$0xff]
      %v2973 = vld [vmem:[#allocation2 + $0x280] sm:$0xff]
      %v2974 = vld [vmem:[#allocation2 + $0x288] sm:$0xff]
      %v2975 = vld [vmem:[#allocation2 + $0x290] sm:$0xff]
      %v2976 = vld [vmem:[#allocation2 + $0x298] sm:$0xff]
      %v2977 = vld [vmem:[#allocation2 + $0x2a0] sm:$0xff]
      %v2978 = vld [vmem:[#allocation2 + $0x2a8] sm:$0xff]
      %v2979 = vld [vmem:[#allocation2 + $0x2b0] sm:$0xff]
      %v2980 = vld [vmem:[#allocation2 + $0x2b8] sm:$0xff]
      %v2981 = vld [vmem:[#allocation2 + $0x2c0] sm:$0xff]
      %v2982 = vld [vmem:[#allocation2 + $0x2c8] sm:$0xff]
      %v2983 = vld [vmem:[#allocation2 + $0x2d0] sm:$0xff]
      %v2984 = vld [vmem:[#allocation2 + $0x2d8] sm:$0xff]
      %v2985 = vld [vmem:[#allocation2 + $0x2e0] sm:$0xff]
      %v2986 = vld [vmem:[#allocation2 + $0x2e8] sm:$0xff]
      %v2987 = vld [vmem:[#allocation2 + $0x2f0] sm:$0xff]
      %v2988 = vld [vmem:[#allocation2 + $0x2f8] sm:$0xff]
      %v2989 = vld [vmem:[#allocation2 + $0x300] sm:$0xff]
      %v2990 = vld [vmem:[#allocation2 + $0x308] sm:$0xff]
      %v2991 = vld [vmem:[#allocation2 + $0x310] sm:$0xff]
      %v2992 = vld [vmem:[#allocation2 + $0x318] sm:$0xff]
      %v2993 = vld [vmem:[#allocation2 + $0x320] sm:$0xff]
      %v2994 = vld [vmem:[#allocation2 + $0x328] sm:$0xff]
      %v2995 = vld [vmem:[#allocation2 + $0x330] sm:$0xff]
      %v2996 = vld [vmem:[#allocation2 + $0x338] sm:$0xff]
      %v2997 = vld [vmem:[#allocation2 + $0x340] sm:$0xff]
      %v2998 = vld [vmem:[#allocation2 + $0x348] sm:$0xff]
      %v2999 = vld [vmem:[#allocation2 + $0x350] sm:$0xff]
      %v3000 = vld [vmem:[#allocation2 + $0x358] sm:$0xff]
      %v3001 = vld [vmem:[#allocation2 + $0x360] sm:$0xff]
      %v3002 = vld [vmem:[#allocation2 + $0x368] sm:$0xff]
      %v3003 = vld [vmem:[#allocation2 + $0x370] sm:$0xff]
      %v3004 = vld [vmem:[#allocation2 + $0x378] sm:$0xff]
      %v3005 = vld [vmem:[#allocation2 + $0x380] sm:$0xff]
      %v3006 = vld [vmem:[#allocation2 + $0x388] sm:$0xff]
      %v3007 = vld [vmem:[#allocation2 + $0x390] sm:$0xff]
      %v3008 = vld [vmem:[#allocation2 + $0x398] sm:$0xff]
      %v3009 = vld [vmem:[#allocation2 + $0x3a0] sm:$0xff]
      %v3010 = vld [vmem:[#allocation2 + $0x3a8] sm:$0xff]
      %v3011 = vld [vmem:[#allocation2 + $0x3b0] sm:$0xff]
      %v3012 = vld [vmem:[#allocation2 + $0x3b8] sm:$0xff]
      %v3013 = vld [vmem:[#allocation2 + $0x3c0] sm:$0xff]
      %v3014 = vld [vmem:[#allocation2 + $0x3c8] sm:$0xff]
      %v3015 = vld [vmem:[#allocation2 + $0x3d0] sm:$0xff]
      %v3016 = vld [vmem:[#allocation2 + $0x3d8] sm:$0xff]
      %v3017 = vld [vmem:[#allocation2 + $0x3e0] sm:$0xff]
      %v3018 = vld [vmem:[#allocation2 + $0x3e8] sm:$0xff]
      %v3019 = vld [vmem:[#allocation2 + $0x3f0] sm:$0xff]
      %v3020 = vld [vmem:[#allocation2 + $0x3f8] sm:$0xff]
      %vm3021 = vcmask 130048
      %v3022 = vsel %vm3021, %v2383, -inf
      %3023 = vmax.xlane.f32.xlu0 %v3022
      %v3024 = vpop.xlane.xlu0 %3023
      %v3025 = vsel %vm3021, %v2386, -inf
      %3026 = vmax.xlane.f32.xlu0 %v3025
      %v3027 = vpop.xlane.xlu0 %3026
      %v3028 = vsel %vm3021, %v2391, -inf
      %3029 = vmax.xlane.f32.xlu0 %v3028
      %v3030 = vpop.xlane.xlu0 %3029
      %v3031 = vsel %vm3021, %v2394, -inf
      %3032 = vmax.xlane.f32.xlu0 %v3031
      %v3033 = vpop.xlane.xlu0 %3032
      %v3034 = vsel %vm3021, %v2399, -inf
      %3035 = vmax.xlane.f32.xlu0 %v3034
      %v3036 = vpop.xlane.xlu0 %3035
      %v3037 = vsel %vm3021, %v2402, -inf
      %3038 = vmax.xlane.f32.xlu0 %v3037
      %v3039 = vpop.xlane.xlu0 %3038
      %v3040 = vsel %vm3021, %v2407, -inf
      %3041 = vmax.xlane.f32.xlu0 %v3040
      %v3042 = vpop.xlane.xlu0 %3041
      %v3043 = vsel %vm3021, %v2410, -inf
      %3044 = vmax.xlane.f32.xlu0 %v3043
      %v3045 = vpop.xlane.xlu0 %3044
      %v3046 = vsel %vm3021, %v2415, -inf
      %3047 = vmax.xlane.f32.xlu0 %v3046
      %v3048 = vpop.xlane.xlu0 %3047
      %v3049 = vsel %vm3021, %v2418, -inf
      %3050 = vmax.xlane.f32.xlu0 %v3049
      %v3051 = vpop.xlane.xlu0 %3050
      %v3052 = vsel %vm3021, %v2423, -inf
      %3053 = vmax.xlane.f32.xlu0 %v3052
      %v3054 = vpop.xlane.xlu0 %3053
      %v3055 = vsel %vm3021, %v2426, -inf
      %3056 = vmax.xlane.f32.xlu0 %v3055
      %v3057 = vpop.xlane.xlu0 %3056
      %v3058 = vsel %vm3021, %v2431, -inf
      %3059 = vmax.xlane.f32.xlu0 %v3058
      %v3060 = vpop.xlane.xlu0 %3059
      %v3061 = vsel %vm3021, %v2434, -inf
      %3062 = vmax.xlane.f32.xlu0 %v3061
      %v3063 = vpop.xlane.xlu0 %3062
      %v3064 = vsel %vm3021, %v2439, -inf
      %3065 = vmax.xlane.f32.xlu0 %v3064
      %v3066 = vpop.xlane.xlu0 %3065
      %v3067 = vsel %vm3021, %v2442, -inf
      %3068 = vmax.xlane.f32.xlu0 %v3067
      %v3069 = vpop.xlane.xlu0 %3068
      %v3070 = vsel %vm3021, %v2447, -inf
      %3071 = vmax.xlane.f32.xlu0 %v3070
      %v3072 = vpop.xlane.xlu0 %3071
      %v3073 = vsel %vm3021, %v2450, -inf
      %3074 = vmax.xlane.f32.xlu0 %v3073
      %v3075 = vpop.xlane.xlu0 %3074
      %v3076 = vsel %vm3021, %v2455, -inf
      %3077 = vmax.xlane.f32.xlu0 %v3076
      %v3078 = vpop.xlane.xlu0 %3077
      %v3079 = vsel %vm3021, %v2458, -inf
      %3080 = vmax.xlane.f32.xlu0 %v3079
      %v3081 = vpop.xlane.xlu0 %3080
      %v3082 = vsel %vm3021, %v2463, -inf
      %3083 = vmax.xlane.f32.xlu0 %v3082
      %v3084 = vpop.xlane.xlu0 %3083
      %v3085 = vsel %vm3021, %v2466, -inf
      %3086 = vmax.xlane.f32.xlu0 %v3085
      %v3087 = vpop.xlane.xlu0 %3086
      %v3088 = vsel %vm3021, %v2471, -inf
      %3089 = vmax.xlane.f32.xlu0 %v3088
      %v3090 = vpop.xlane.xlu0 %3089
      %v3091 = vsel %vm3021, %v2474, -inf
      %3092 = vmax.xlane.f32.xlu0 %v3091
      %v3093 = vpop.xlane.xlu0 %3092
      %v3094 = vsel %vm3021, %v2479, -inf
      %3095 = vmax.xlane.f32.xlu0 %v3094
      %v3096 = vpop.xlane.xlu0 %3095
      %v3097 = vsel %vm3021, %v2482, -inf
      %3098 = vmax.xlane.f32.xlu0 %v3097
      %v3099 = vpop.xlane.xlu0 %3098
      %v3100 = vsel %vm3021, %v2487, -inf
      %3101 = vmax.xlane.f32.xlu0 %v3100
      %v3102 = vpop.xlane.xlu0 %3101
      %v3103 = vsel %vm3021, %v2490, -inf
      %3104 = vmax.xlane.f32.xlu0 %v3103
      %v3105 = vpop.xlane.xlu0 %3104
      %v3106 = vsel %vm3021, %v2495, -inf
      %3107 = vmax.xlane.f32.xlu0 %v3106
      %v3108 = vpop.xlane.xlu0 %3107
      %v3109 = vsel %vm3021, %v2498, -inf
      %3110 = vmax.xlane.f32.xlu0 %v3109
      %v3111 = vpop.xlane.xlu0 %3110
      %v3112 = vsel %vm3021, %v2503, -inf
      %3113 = vmax.xlane.f32.xlu0 %v3112
      %v3114 = vpop.xlane.xlu0 %3113
      %v3115 = vsel %vm3021, %v2506, -inf
      %3116 = vmax.xlane.f32.xlu0 %v3115
      %v3117 = vpop.xlane.xlu0 %3116
      %v3118 = vsel %vm3021, %v2511, -inf
      %3119 = vmax.xlane.f32.xlu0 %v3118
      %v3120 = vpop.xlane.xlu0 %3119
      %v3121 = vsel %vm3021, %v2514, -inf
      %3122 = vmax.xlane.f32.xlu0 %v3121
      %v3123 = vpop.xlane.xlu0 %3122
      %v3124 = vsel %vm3021, %v2519, -inf
      %3125 = vmax.xlane.f32.xlu0 %v3124
      %v3126 = vpop.xlane.xlu0 %3125
      %v3127 = vsel %vm3021, %v2522, -inf
      %3128 = vmax.xlane.f32.xlu0 %v3127
      %v3129 = vpop.xlane.xlu0 %3128
      %v3130 = vsel %vm3021, %v2527, -inf
      %3131 = vmax.xlane.f32.xlu0 %v3130
      %v3132 = vpop.xlane.xlu0 %3131
      %v3133 = vsel %vm3021, %v2530, -inf
      %3134 = vmax.xlane.f32.xlu0 %v3133
      %v3135 = vpop.xlane.xlu0 %3134
      %v3136 = vsel %vm3021, %v2535, -inf
      %3137 = vmax.xlane.f32.xlu0 %v3136
      %v3138 = vpop.xlane.xlu0 %3137
      %v3139 = vsel %vm3021, %v2538, -inf
      %3140 = vmax.xlane.f32.xlu0 %v3139
      %v3141 = vpop.xlane.xlu0 %3140
      %v3142 = vsel %vm3021, %v2543, -inf
      %3143 = vmax.xlane.f32.xlu0 %v3142
      %v3144 = vpop.xlane.xlu0 %3143
      %v3145 = vsel %vm3021, %v2546, -inf
      %3146 = vmax.xlane.f32.xlu0 %v3145
      %v3147 = vpop.xlane.xlu0 %3146
      %v3148 = vsel %vm3021, %v2551, -inf
      %3149 = vmax.xlane.f32.xlu0 %v3148
      %v3150 = vpop.xlane.xlu0 %3149
      %v3151 = vsel %vm3021, %v2554, -inf
      %3152 = vmax.xlane.f32.xlu0 %v3151
      %v3153 = vpop.xlane.xlu0 %3152
      %v3154 = vsel %vm3021, %v2559, -inf
      %3155 = vmax.xlane.f32.xlu0 %v3154
      %v3156 = vpop.xlane.xlu0 %3155
      %v3157 = vsel %vm3021, %v2562, -inf
      %3158 = vmax.xlane.f32.xlu0 %v3157
      %v3159 = vpop.xlane.xlu0 %3158
      %v3160 = vsel %vm3021, %v2567, -inf
      %3161 = vmax.xlane.f32.xlu0 %v3160
      %v3162 = vpop.xlane.xlu0 %3161
      %v3163 = vsel %vm3021, %v2570, -inf
      %3164 = vmax.xlane.f32.xlu0 %v3163
      %v3165 = vpop.xlane.xlu0 %3164
      %v3166 = vsel %vm3021, %v2575, -inf
      %3167 = vmax.xlane.f32.xlu0 %v3166
      %v3168 = vpop.xlane.xlu0 %3167
      %v3169 = vsel %vm3021, %v2578, -inf
      %3170 = vmax.xlane.f32.xlu0 %v3169
      %v3171 = vpop.xlane.xlu0 %3170
      %v3172 = vsel %vm3021, %v2583, -inf
      %3173 = vmax.xlane.f32.xlu0 %v3172
      %v3174 = vpop.xlane.xlu0 %3173
      %v3175 = vsel %vm3021, %v2586, -inf
      %3176 = vmax.xlane.f32.xlu0 %v3175
      %v3177 = vpop.xlane.xlu0 %3176
      %v3178 = vsel %vm3021, %v2591, -inf
      %3179 = vmax.xlane.f32.xlu0 %v3178
      %v3180 = vpop.xlane.xlu0 %3179
      %v3181 = vsel %vm3021, %v2594, -inf
      %3182 = vmax.xlane.f32.xlu0 %v3181
      %v3183 = vpop.xlane.xlu0 %3182
      %v3184 = vsel %vm3021, %v2599, -inf
      %3185 = vmax.xlane.f32.xlu0 %v3184
      %v3186 = vpop.xlane.xlu0 %3185
      %v3187 = vsel %vm3021, %v2602, -inf
      %3188 = vmax.xlane.f32.xlu0 %v3187
      %v3189 = vpop.xlane.xlu0 %3188
      %v3190 = vsel %vm3021, %v2607, -inf
      %3191 = vmax.xlane.f32.xlu0 %v3190
      %v3192 = vpop.xlane.xlu0 %3191
      %v3193 = vsel %vm3021, %v2610, -inf
      %3194 = vmax.xlane.f32.xlu0 %v3193
      %v3195 = vpop.xlane.xlu0 %3194
      %v3196 = vsel %vm3021, %v2615, -inf
      %3197 = vmax.xlane.f32.xlu0 %v3196
      %v3198 = vpop.xlane.xlu0 %3197
      %v3199 = vsel %vm3021, %v2618, -inf
      %3200 = vmax.xlane.f32.xlu0 %v3199
      %v3201 = vpop.xlane.xlu0 %3200
      %v3202 = vsel %vm3021, %v2623, -inf
      %3203 = vmax.xlane.f32.xlu0 %v3202
      %v3204 = vpop.xlane.xlu0 %3203
      %v3205 = vsel %vm3021, %v2626, -inf
      %3206 = vmax.xlane.f32.xlu0 %v3205
      %v3207 = vpop.xlane.xlu0 %3206
      %v3208 = vsel %vm3021, %v2631, -inf
      %3209 = vmax.xlane.f32.xlu0 %v3208
      %v3210 = vpop.xlane.xlu0 %3209
      %v3211 = vsel %vm3021, %v2634, -inf
      %3212 = vmax.xlane.f32.xlu0 %v3211
      %v3213 = vpop.xlane.xlu0 %3212
      %v3214 = vsel %vm3021, %v2639, -inf
      %3215 = vmax.xlane.f32.xlu0 %v3214
      %v3216 = vpop.xlane.xlu0 %3215
      %v3217 = vsel %vm3021, %v2642, -inf
      %3218 = vmax.xlane.f32.xlu0 %v3217
      %v3219 = vpop.xlane.xlu0 %3218
      %v3220 = vsel %vm3021, %v2647, -inf
      %3221 = vmax.xlane.f32.xlu0 %v3220
      %v3222 = vpop.xlane.xlu0 %3221
      %v3223 = vsel %vm3021, %v2650, -inf
      %3224 = vmax.xlane.f32.xlu0 %v3223
      %v3225 = vpop.xlane.xlu0 %3224
      %v3226 = vsel %vm3021, %v2655, -inf
      %3227 = vmax.xlane.f32.xlu0 %v3226
      %v3228 = vpop.xlane.xlu0 %3227
      %v3229 = vsel %vm3021, %v2658, -inf
      %3230 = vmax.xlane.f32.xlu0 %v3229
      %v3231 = vpop.xlane.xlu0 %3230
      %v3232 = vsel %vm3021, %v2663, -inf
      %3233 = vmax.xlane.f32.xlu0 %v3232
      %v3234 = vpop.xlane.xlu0 %3233
      %v3235 = vsel %vm3021, %v2666, -inf
      %3236 = vmax.xlane.f32.xlu0 %v3235
      %v3237 = vpop.xlane.xlu0 %3236
      %v3238 = vsel %vm3021, %v2671, -inf
      %3239 = vmax.xlane.f32.xlu0 %v3238
      %v3240 = vpop.xlane.xlu0 %3239
      %v3241 = vsel %vm3021, %v2674, -inf
      %3242 = vmax.xlane.f32.xlu0 %v3241
      %v3243 = vpop.xlane.xlu0 %3242
      %v3244 = vsel %vm3021, %v2679, -inf
      %3245 = vmax.xlane.f32.xlu0 %v3244
      %v3246 = vpop.xlane.xlu0 %3245
      %v3247 = vsel %vm3021, %v2682, -inf
      %3248 = vmax.xlane.f32.xlu0 %v3247
      %v3249 = vpop.xlane.xlu0 %3248
      %v3250 = vsel %vm3021, %v2687, -inf
      %3251 = vmax.xlane.f32.xlu0 %v3250
      %v3252 = vpop.xlane.xlu0 %3251
      %v3253 = vsel %vm3021, %v2690, -inf
      %3254 = vmax.xlane.f32.xlu0 %v3253
      %v3255 = vpop.xlane.xlu0 %3254
      %v3256 = vsel %vm3021, %v2695, -inf
      %3257 = vmax.xlane.f32.xlu0 %v3256
      %v3258 = vpop.xlane.xlu0 %3257
      %v3259 = vsel %vm3021, %v2698, -inf
      %3260 = vmax.xlane.f32.xlu0 %v3259
      %v3261 = vpop.xlane.xlu0 %3260
      %v3262 = vsel %vm3021, %v2703, -inf
      %3263 = vmax.xlane.f32.xlu0 %v3262
      %v3264 = vpop.xlane.xlu0 %3263
      %v3265 = vsel %vm3021, %v2706, -inf
      %3266 = vmax.xlane.f32.xlu0 %v3265
      %v3267 = vpop.xlane.xlu0 %3266
      %v3268 = vsel %vm3021, %v2711, -inf
      %3269 = vmax.xlane.f32.xlu0 %v3268
      %v3270 = vpop.xlane.xlu0 %3269
      %v3271 = vsel %vm3021, %v2714, -inf
      %3272 = vmax.xlane.f32.xlu0 %v3271
      %v3273 = vpop.xlane.xlu0 %3272
      %v3274 = vsel %vm3021, %v2719, -inf
      %3275 = vmax.xlane.f32.xlu0 %v3274
      %v3276 = vpop.xlane.xlu0 %3275
      %v3277 = vsel %vm3021, %v2722, -inf
      %3278 = vmax.xlane.f32.xlu0 %v3277
      %v3279 = vpop.xlane.xlu0 %3278
      %v3280 = vsel %vm3021, %v2727, -inf
      %3281 = vmax.xlane.f32.xlu0 %v3280
      %v3282 = vpop.xlane.xlu0 %3281
      %v3283 = vsel %vm3021, %v2730, -inf
      %3284 = vmax.xlane.f32.xlu0 %v3283
      %v3285 = vpop.xlane.xlu0 %3284
      %v3286 = vsel %vm3021, %v2735, -inf
      %3287 = vmax.xlane.f32.xlu0 %v3286
      %v3288 = vpop.xlane.xlu0 %3287
      %v3289 = vsel %vm3021, %v2738, -inf
      %3290 = vmax.xlane.f32.xlu0 %v3289
      %v3291 = vpop.xlane.xlu0 %3290
      %v3292 = vsel %vm3021, %v2743, -inf
      %3293 = vmax.xlane.f32.xlu0 %v3292
      %v3294 = vpop.xlane.xlu0 %3293
      %v3295 = vsel %vm3021, %v2746, -inf
      %3296 = vmax.xlane.f32.xlu0 %v3295
      %v3297 = vpop.xlane.xlu0 %3296
      %v3298 = vsel %vm3021, %v2751, -inf
      %3299 = vmax.xlane.f32.xlu0 %v3298
      %v3300 = vpop.xlane.xlu0 %3299
      %v3301 = vsel %vm3021, %v2754, -inf
      %3302 = vmax.xlane.f32.xlu0 %v3301
      %v3303 = vpop.xlane.xlu0 %3302
      %v3304 = vsel %vm3021, %v2759, -inf
      %3305 = vmax.xlane.f32.xlu0 %v3304
      %v3306 = vpop.xlane.xlu0 %3305
      %v3307 = vsel %vm3021, %v2762, -inf
      %3308 = vmax.xlane.f32.xlu0 %v3307
      %v3309 = vpop.xlane.xlu0 %3308
      %v3310 = vsel %vm3021, %v2767, -inf
      %3311 = vmax.xlane.f32.xlu0 %v3310
      %v3312 = vpop.xlane.xlu0 %3311
      %v3313 = vsel %vm3021, %v2770, -inf
      %3314 = vmax.xlane.f32.xlu0 %v3313
      %v3315 = vpop.xlane.xlu0 %3314
      %v3316 = vsel %vm3021, %v2775, -inf
      %3317 = vmax.xlane.f32.xlu0 %v3316
      %v3318 = vpop.xlane.xlu0 %3317
      %v3319 = vsel %vm3021, %v2778, -inf
      %3320 = vmax.xlane.f32.xlu0 %v3319
      %v3321 = vpop.xlane.xlu0 %3320
      %v3322 = vsel %vm3021, %v2783, -inf
      %3323 = vmax.xlane.f32.xlu0 %v3322
      %v3324 = vpop.xlane.xlu0 %3323
      %v3325 = vsel %vm3021, %v2786, -inf
      %3326 = vmax.xlane.f32.xlu0 %v3325
      %v3327 = vpop.xlane.xlu0 %3326
      %v3328 = vsel %vm3021, %v2791, -inf
      %3329 = vmax.xlane.f32.xlu0 %v3328
      %v3330 = vpop.xlane.xlu0 %3329
      %v3331 = vsel %vm3021, %v2794, -inf
      %3332 = vmax.xlane.f32.xlu0 %v3331
      %v3333 = vpop.xlane.xlu0 %3332
      %v3334 = vsel %vm3021, %v2799, -inf
      %3335 = vmax.xlane.f32.xlu0 %v3334
      %v3336 = vpop.xlane.xlu0 %3335
      %v3337 = vsel %vm3021, %v2802, -inf
      %3338 = vmax.xlane.f32.xlu0 %v3337
      %v3339 = vpop.xlane.xlu0 %3338
      %v3340 = vsel %vm3021, %v2807, -inf
      %3341 = vmax.xlane.f32.xlu0 %v3340
      %v3342 = vpop.xlane.xlu0 %3341
      %v3343 = vsel %vm3021, %v2810, -inf
      %3344 = vmax.xlane.f32.xlu0 %v3343
      %v3345 = vpop.xlane.xlu0 %3344
      %v3346 = vsel %vm3021, %v2815, -inf
      %3347 = vmax.xlane.f32.xlu0 %v3346
      %v3348 = vpop.xlane.xlu0 %3347
      %v3349 = vsel %vm3021, %v2818, -inf
      %3350 = vmax.xlane.f32.xlu0 %v3349
      %v3351 = vpop.xlane.xlu0 %3350
      %v3352 = vsel %vm3021, %v2823, -inf
      %3353 = vmax.xlane.f32.xlu0 %v3352
      %v3354 = vpop.xlane.xlu0 %3353
      %v3355 = vsel %vm3021, %v2826, -inf
      %3356 = vmax.xlane.f32.xlu0 %v3355
      %v3357 = vpop.xlane.xlu0 %3356
      %v3358 = vsel %vm3021, %v2831, -inf
      %3359 = vmax.xlane.f32.xlu0 %v3358
      %v3360 = vpop.xlane.xlu0 %3359
      %v3361 = vsel %vm3021, %v2834, -inf
      %3362 = vmax.xlane.f32.xlu0 %v3361
      %v3363 = vpop.xlane.xlu0 %3362
      %v3364 = vsel %vm3021, %v2839, -inf
      %3365 = vmax.xlane.f32.xlu0 %v3364
      %v3366 = vpop.xlane.xlu0 %3365
      %v3367 = vsel %vm3021, %v2842, -inf
      %3368 = vmax.xlane.f32.xlu0 %v3367
      %v3369 = vpop.xlane.xlu0 %3368
      %v3370 = vsel %vm3021, %v2847, -inf
      %3371 = vmax.xlane.f32.xlu0 %v3370
      %v3372 = vpop.xlane.xlu0 %3371
      %v3373 = vsel %vm3021, %v2850, -inf
      %3374 = vmax.xlane.f32.xlu0 %v3373
      %v3375 = vpop.xlane.xlu0 %3374
      %v3376 = vsel %vm3021, %v2855, -inf
      %3377 = vmax.xlane.f32.xlu0 %v3376
      %v3378 = vpop.xlane.xlu0 %3377
      %v3379 = vsel %vm3021, %v2858, -inf
      %3380 = vmax.xlane.f32.xlu0 %v3379
      %v3381 = vpop.xlane.xlu0 %3380
      %v3382 = vsel %vm3021, %v2863, -inf
      %3383 = vmax.xlane.f32.xlu0 %v3382
      %v3384 = vpop.xlane.xlu0 %3383
      %v3385 = vsel %vm3021, %v2866, -inf
      %3386 = vmax.xlane.f32.xlu0 %v3385
      %v3387 = vpop.xlane.xlu0 %3386
      %v3388 = vsel %vm3021, %v2871, -inf
      %3389 = vmax.xlane.f32.xlu0 %v3388
      %v3390 = vpop.xlane.xlu0 %3389
      %v3391 = vsel %vm3021, %v2874, -inf
      %3392 = vmax.xlane.f32.xlu0 %v3391
      %v3393 = vpop.xlane.xlu0 %3392
      %v3394 = vsel %vm3021, %v2879, -inf
      %3395 = vmax.xlane.f32.xlu0 %v3394
      %v3396 = vpop.xlane.xlu0 %3395
      %v3397 = vsel %vm3021, %v2882, -inf
      %3398 = vmax.xlane.f32.xlu0 %v3397
      %v3399 = vpop.xlane.xlu0 %3398
      %v3400 = vsel %vm3021, %v2887, -inf
      %3401 = vmax.xlane.f32.xlu0 %v3400
      %v3402 = vpop.xlane.xlu0 %3401
      %v3403 = vsel %vm3021, %v2890, -inf
      %3404 = vmax.xlane.f32.xlu0 %v3403
      %v3405 = vpop.xlane.xlu0 %3404
      %v3406 = vmax.f32 %v2893, %v3024
      %v3407 = vmax.f32 %v2894, %v3027
      %v3408 = vmax.f32 %v2895, %v3030
      %v3409 = vmax.f32 %v2896, %v3033
      %v3410 = vmax.f32 %v2897, %v3036
      %v3411 = vmax.f32 %v2898, %v3039
      %v3412 = vmax.f32 %v2899, %v3042
      %v3413 = vmax.f32 %v2900, %v3045
      %v3414 = vmax.f32 %v2901, %v3048
      %v3415 = vmax.f32 %v2902, %v3051
      %v3416 = vmax.f32 %v2903, %v3054
      %v3417 = vmax.f32 %v2904, %v3057
      %v3418 = vmax.f32 %v2905, %v3060
      %v3419 = vmax.f32 %v2906, %v3063
      %v3420 = vmax.f32 %v2907, %v3066
      %v3421 = vmax.f32 %v2908, %v3069
      %v3422 = vmax.f32 %v2909, %v3072
      %v3423 = vmax.f32 %v2910, %v3075
      %v3424 = vmax.f32 %v2911, %v3078
      %v3425 = vmax.f32 %v2912, %v3081
      %v3426 = vmax.f32 %v2913, %v3084
      %v3427 = vmax.f32 %v2914, %v3087
      %v3428 = vmax.f32 %v2915, %v3090
      %v3429 = vmax.f32 %v2916, %v3093
      %v3430 = vmax.f32 %v2917, %v3096
      %v3431 = vmax.f32 %v2918, %v3099
      %v3432 = vmax.f32 %v2919, %v3102
      %v3433 = vmax.f32 %v2920, %v3105
      %v3434 = vmax.f32 %v2921, %v3108
      %v3435 = vmax.f32 %v2922, %v3111
      %v3436 = vmax.f32 %v2923, %v3114
      %v3437 = vmax.f32 %v2924, %v3117
      %v3438 = vmax.f32 %v2925, %v3120
      %v3439 = vmax.f32 %v2926, %v3123
      %v3440 = vmax.f32 %v2927, %v3126
      %v3441 = vmax.f32 %v2928, %v3129
      %v3442 = vmax.f32 %v2929, %v3132
      %v3443 = vmax.f32 %v2930, %v3135
      %v3444 = vmax.f32 %v2931, %v3138
      %v3445 = vmax.f32 %v2932, %v3141
      %v3446 = vmax.f32 %v2933, %v3144
      %v3447 = vmax.f32 %v2934, %v3147
      %v3448 = vmax.f32 %v2935, %v3150
      %v3449 = vmax.f32 %v2936, %v3153
      %v3450 = vmax.f32 %v2937, %v3156
      %v3451 = vmax.f32 %v2938, %v3159
      %v3452 = vmax.f32 %v2939, %v3162
      %v3453 = vmax.f32 %v2940, %v3165
      %v3454 = vmax.f32 %v2941, %v3168
      %v3455 = vmax.f32 %v2942, %v3171
      %v3456 = vmax.f32 %v2943, %v3174
      %v3457 = vmax.f32 %v2944, %v3177
      %v3458 = vmax.f32 %v2945, %v3180
      %v3459 = vmax.f32 %v2946, %v3183
      %v3460 = vmax.f32 %v2947, %v3186
      %v3461 = vmax.f32 %v2948, %v3189
      %v3462 = vmax.f32 %v2949, %v3192
      %v3463 = vmax.f32 %v2950, %v3195
      %v3464 = vmax.f32 %v2951, %v3198
      %v3465 = vmax.f32 %v2952, %v3201
      %v3466 = vmax.f32 %v2953, %v3204
      %v3467 = vmax.f32 %v2954, %v3207
      %v3468 = vmax.f32 %v2955, %v3210
      %v3469 = vmax.f32 %v2956, %v3213
      %v3470 = vmax.f32 %v2957, %v3216
      %v3471 = vmax.f32 %v2958, %v3219
      %v3472 = vmax.f32 %v2959, %v3222
      %v3473 = vmax.f32 %v2960, %v3225
      %v3474 = vmax.f32 %v2961, %v3228
      %v3475 = vmax.f32 %v2962, %v3231
      %v3476 = vmax.f32 %v2963, %v3234
      %v3477 = vmax.f32 %v2964, %v3237
      %v3478 = vmax.f32 %v2965, %v3240
      %v3479 = vmax.f32 %v2966, %v3243
      %v3480 = vmax.f32 %v2967, %v3246
      %v3481 = vmax.f32 %v2968, %v3249
      %v3482 = vmax.f32 %v2969, %v3252
      %v3483 = vmax.f32 %v2970, %v3255
      %v3484 = vmax.f32 %v2971, %v3258
      %v3485 = vmax.f32 %v2972, %v3261
      %v3486 = vmax.f32 %v2973, %v3264
      %v3487 = vmax.f32 %v2974, %v3267
      %v3488 = vmax.f32 %v2975, %v3270
      %v3489 = vmax.f32 %v2976, %v3273
      %v3490 = vmax.f32 %v2977, %v3276
      %v3491 = vmax.f32 %v2978, %v3279
      %v3492 = vmax.f32 %v2979, %v3282
      %v3493 = vmax.f32 %v2980, %v3285
      %v3494 = vmax.f32 %v2981, %v3288
      %v3495 = vmax.f32 %v2982, %v3291
      %v3496 = vmax.f32 %v2983, %v3294
      %v3497 = vmax.f32 %v2984, %v3297
      %v3498 = vmax.f32 %v2985, %v3300
      %v3499 = vmax.f32 %v2986, %v3303
      %v3500 = vmax.f32 %v2987, %v3306
      %v3501 = vmax.f32 %v2988, %v3309
      %v3502 = vmax.f32 %v2989, %v3312
      %v3503 = vmax.f32 %v2990, %v3315
      %v3504 = vmax.f32 %v2991, %v3318
      %v3505 = vmax.f32 %v2992, %v3321
      %v3506 = vmax.f32 %v2993, %v3324
      %v3507 = vmax.f32 %v2994, %v3327
      %v3508 = vmax.f32 %v2995, %v3330
      %v3509 = vmax.f32 %v2996, %v3333
      %v3510 = vmax.f32 %v2997, %v3336
      %v3511 = vmax.f32 %v2998, %v3339
      %v3512 = vmax.f32 %v2999, %v3342
      %v3513 = vmax.f32 %v3000, %v3345
      %v3514 = vmax.f32 %v3001, %v3348
      %v3515 = vmax.f32 %v3002, %v3351
      %v3516 = vmax.f32 %v3003, %v3354
      %v3517 = vmax.f32 %v3004, %v3357
      %v3518 = vmax.f32 %v3005, %v3360
      %v3519 = vmax.f32 %v3006, %v3363
      %v3520 = vmax.f32 %v3007, %v3366
      %v3521 = vmax.f32 %v3008, %v3369
      %v3522 = vmax.f32 %v3009, %v3372
      %v3523 = vmax.f32 %v3010, %v3375
      %v3524 = vmax.f32 %v3011, %v3378
      %v3525 = vmax.f32 %v3012, %v3381
      %v3526 = vmax.f32 %v3013, %v3384
      %v3527 = vmax.f32 %v3014, %v3387
      %v3528 = vmax.f32 %v3015, %v3390
      %v3529 = vmax.f32 %v3016, %v3393
      %v3530 = vmax.f32 %v3017, %v3396
      %v3531 = vmax.f32 %v3018, %v3399
      %v3532 = vmax.f32 %v3019, %v3402
      %v3533 = vmax.f32 %v3020, %v3405
      %vm3534 = vcmask 7168
      %3535 = vst.msk [vmem:[#allocation2] sm:$0xff] %vm3534, %v3406
      %3536 = vst.msk [vmem:[#allocation2 + $0x8] sm:$0xff] %vm3534, %v3407
      %3537 = vst.msk [vmem:[#allocation2 + $0x10] sm:$0xff] %vm3534, %v3408
      %3538 = vst.msk [vmem:[#allocation2 + $0x18] sm:$0xff] %vm3534, %v3409
      %3539 = vst.msk [vmem:[#allocation2 + $0x20] sm:$0xff] %vm3534, %v3410
      %3540 = vst.msk [vmem:[#allocation2 + $0x28] sm:$0xff] %vm3534, %v3411
      %3541 = vst.msk [vmem:[#allocation2 + $0x30] sm:$0xff] %vm3534, %v3412
      %3542 = vst.msk [vmem:[#allocation2 + $0x38] sm:$0xff] %vm3534, %v3413
      %3543 = vst.msk [vmem:[#allocation2 + $0x40] sm:$0xff] %vm3534, %v3414
      %3544 = vst.msk [vmem:[#allocation2 + $0x48] sm:$0xff] %vm3534, %v3415
      %3545 = vst.msk [vmem:[#allocation2 + $0x50] sm:$0xff] %vm3534, %v3416
      %3546 = vst.msk [vmem:[#allocation2 + $0x58] sm:$0xff] %vm3534, %v3417
      %3547 = vst.msk [vmem:[#allocation2 + $0x60] sm:$0xff] %vm3534, %v3418
      %3548 = vst.msk [vmem:[#allocation2 + $0x68] sm:$0xff] %vm3534, %v3419
      %3549 = vst.msk [vmem:[#allocation2 + $0x70] sm:$0xff] %vm3534, %v3420
      %3550 = vst.msk [vmem:[#allocation2 + $0x78] sm:$0xff] %vm3534, %v3421
      %3551 = vst.msk [vmem:[#allocation2 + $0x80] sm:$0xff] %vm3534, %v3422
      %3552 = vst.msk [vmem:[#allocation2 + $0x88] sm:$0xff] %vm3534, %v3423
      %3553 = vst.msk [vmem:[#allocation2 + $0x90] sm:$0xff] %vm3534, %v3424
      %3554 = vst.msk [vmem:[#allocation2 + $0x98] sm:$0xff] %vm3534, %v3425
      %3555 = vst.msk [vmem:[#allocation2 + $0xa0] sm:$0xff] %vm3534, %v3426
      %3556 = vst.msk [vmem:[#allocation2 + $0xa8] sm:$0xff] %vm3534, %v3427
      %3557 = vst.msk [vmem:[#allocation2 + $0xb0] sm:$0xff] %vm3534, %v3428
      %3558 = vst.msk [vmem:[#allocation2 + $0xb8] sm:$0xff] %vm3534, %v3429
      %3559 = vst.msk [vmem:[#allocation2 + $0xc0] sm:$0xff] %vm3534, %v3430
      %3560 = vst.msk [vmem:[#allocation2 + $0xc8] sm:$0xff] %vm3534, %v3431
      %3561 = vst.msk [vmem:[#allocation2 + $0xd0] sm:$0xff] %vm3534, %v3432
      %3562 = vst.msk [vmem:[#allocation2 + $0xd8] sm:$0xff] %vm3534, %v3433
      %3563 = vst.msk [vmem:[#allocation2 + $0xe0] sm:$0xff] %vm3534, %v3434
      %3564 = vst.msk [vmem:[#allocation2 + $0xe8] sm:$0xff] %vm3534, %v3435
      %3565 = vst.msk [vmem:[#allocation2 + $0xf0] sm:$0xff] %vm3534, %v3436
      %3566 = vst.msk [vmem:[#allocation2 + $0xf8] sm:$0xff] %vm3534, %v3437
      %3567 = vst.msk [vmem:[#allocation2 + $0x100] sm:$0xff] %vm3534, %v3438
      %3568 = vst.msk [vmem:[#allocation2 + $0x108] sm:$0xff] %vm3534, %v3439
      %3569 = vst.msk [vmem:[#allocation2 + $0x110] sm:$0xff] %vm3534, %v3440
      %3570 = vst.msk [vmem:[#allocation2 + $0x118] sm:$0xff] %vm3534, %v3441
      %3571 = vst.msk [vmem:[#allocation2 + $0x120] sm:$0xff] %vm3534, %v3442
      %3572 = vst.msk [vmem:[#allocation2 + $0x128] sm:$0xff] %vm3534, %v3443
      %3573 = vst.msk [vmem:[#allocation2 + $0x130] sm:$0xff] %vm3534, %v3444
      %3574 = vst.msk [vmem:[#allocation2 + $0x138] sm:$0xff] %vm3534, %v3445
      %3575 = vst.msk [vmem:[#allocation2 + $0x140] sm:$0xff] %vm3534, %v3446
      %3576 = vst.msk [vmem:[#allocation2 + $0x148] sm:$0xff] %vm3534, %v3447
      %3577 = vst.msk [vmem:[#allocation2 + $0x150] sm:$0xff] %vm3534, %v3448
      %3578 = vst.msk [vmem:[#allocation2 + $0x158] sm:$0xff] %vm3534, %v3449
      %3579 = vst.msk [vmem:[#allocation2 + $0x160] sm:$0xff] %vm3534, %v3450
      %3580 = vst.msk [vmem:[#allocation2 + $0x168] sm:$0xff] %vm3534, %v3451
      %3581 = vst.msk [vmem:[#allocation2 + $0x170] sm:$0xff] %vm3534, %v3452
      %3582 = vst.msk [vmem:[#allocation2 + $0x178] sm:$0xff] %vm3534, %v3453
      %3583 = vst.msk [vmem:[#allocation2 + $0x180] sm:$0xff] %vm3534, %v3454
      %3584 = vst.msk [vmem:[#allocation2 + $0x188] sm:$0xff] %vm3534, %v3455
      %3585 = vst.msk [vmem:[#allocation2 + $0x190] sm:$0xff] %vm3534, %v3456
      %3586 = vst.msk [vmem:[#allocation2 + $0x198] sm:$0xff] %vm3534, %v3457
      %3587 = vst.msk [vmem:[#allocation2 + $0x1a0] sm:$0xff] %vm3534, %v3458
      %3588 = vst.msk [vmem:[#allocation2 + $0x1a8] sm:$0xff] %vm3534, %v3459
      %3589 = vst.msk [vmem:[#allocation2 + $0x1b0] sm:$0xff] %vm3534, %v3460
      %3590 = vst.msk [vmem:[#allocation2 + $0x1b8] sm:$0xff] %vm3534, %v3461
      %3591 = vst.msk [vmem:[#allocation2 + $0x1c0] sm:$0xff] %vm3534, %v3462
      %3592 = vst.msk [vmem:[#allocation2 + $0x1c8] sm:$0xff] %vm3534, %v3463
      %3593 = vst.msk [vmem:[#allocation2 + $0x1d0] sm:$0xff] %vm3534, %v3464
      %3594 = vst.msk [vmem:[#allocation2 + $0x1d8] sm:$0xff] %vm3534, %v3465
      %3595 = vst.msk [vmem:[#allocation2 + $0x1e0] sm:$0xff] %vm3534, %v3466
      %3596 = vst.msk [vmem:[#allocation2 + $0x1e8] sm:$0xff] %vm3534, %v3467
      %3597 = vst.msk [vmem:[#allocation2 + $0x1f0] sm:$0xff] %vm3534, %v3468
      %3598 = vst.msk [vmem:[#allocation2 + $0x1f8] sm:$0xff] %vm3534, %v3469
      %3599 = vst.msk [vmem:[#allocation2 + $0x200] sm:$0xff] %vm3534, %v3470
      %3600 = vst.msk [vmem:[#allocation2 + $0x208] sm:$0xff] %vm3534, %v3471
      %3601 = vst.msk [vmem:[#allocation2 + $0x210] sm:$0xff] %vm3534, %v3472
      %3602 = vst.msk [vmem:[#allocation2 + $0x218] sm:$0xff] %vm3534, %v3473
      %3603 = vst.msk [vmem:[#allocation2 + $0x220] sm:$0xff] %vm3534, %v3474
      %3604 = vst.msk [vmem:[#allocation2 + $0x228] sm:$0xff] %vm3534, %v3475
      %3605 = vst.msk [vmem:[#allocation2 + $0x230] sm:$0xff] %vm3534, %v3476
      %3606 = vst.msk [vmem:[#allocation2 + $0x238] sm:$0xff] %vm3534, %v3477
      %3607 = vst.msk [vmem:[#allocation2 + $0x240] sm:$0xff] %vm3534, %v3478
      %3608 = vst.msk [vmem:[#allocation2 + $0x248] sm:$0xff] %vm3534, %v3479
      %3609 = vst.msk [vmem:[#allocation2 + $0x250] sm:$0xff] %vm3534, %v3480
      %3610 = vst.msk [vmem:[#allocation2 + $0x258] sm:$0xff] %vm3534, %v3481
      %3611 = vst.msk [vmem:[#allocation2 + $0x260] sm:$0xff] %vm3534, %v3482
      %3612 = vst.msk [vmem:[#allocation2 + $0x268] sm:$0xff] %vm3534, %v3483
      %3613 = vst.msk [vmem:[#allocation2 + $0x270] sm:$0xff] %vm3534, %v3484
      %3614 = vst.msk [vmem:[#allocation2 + $0x278] sm:$0xff] %vm3534, %v3485
      %3615 = vst.msk [vmem:[#allocation2 + $0x280] sm:$0xff] %vm3534, %v3486
      %3616 = vst.msk [vmem:[#allocation2 + $0x288] sm:$0xff] %vm3534, %v3487
      %3617 = vst.msk [vmem:[#allocation2 + $0x290] sm:$0xff] %vm3534, %v3488
      %3618 = vst.msk [vmem:[#allocation2 + $0x298] sm:$0xff] %vm3534, %v3489
      %3619 = vst.msk [vmem:[#allocation2 + $0x2a0] sm:$0xff] %vm3534, %v3490
      %3620 = vst.msk [vmem:[#allocation2 + $0x2a8] sm:$0xff] %vm3534, %v3491
      %3621 = vst.msk [vmem:[#allocation2 + $0x2b0] sm:$0xff] %vm3534, %v3492
      %3622 = vst.msk [vmem:[#allocation2 + $0x2b8] sm:$0xff] %vm3534, %v3493
      %3623 = vst.msk [vmem:[#allocation2 + $0x2c0] sm:$0xff] %vm3534, %v3494
      %3624 = vst.msk [vmem:[#allocation2 + $0x2c8] sm:$0xff] %vm3534, %v3495
      %3625 = vst.msk [vmem:[#allocation2 + $0x2d0] sm:$0xff] %vm3534, %v3496
      %3626 = vst.msk [vmem:[#allocation2 + $0x2d8] sm:$0xff] %vm3534, %v3497
      %3627 = vst.msk [vmem:[#allocation2 + $0x2e0] sm:$0xff] %vm3534, %v3498
      %3628 = vst.msk [vmem:[#allocation2 + $0x2e8] sm:$0xff] %vm3534, %v3499
      %3629 = vst.msk [vmem:[#allocation2 + $0x2f0] sm:$0xff] %vm3534, %v3500
      %3630 = vst.msk [vmem:[#allocation2 + $0x2f8] sm:$0xff] %vm3534, %v3501
      %3631 = vst.msk [vmem:[#allocation2 + $0x300] sm:$0xff] %vm3534, %v3502
      %3632 = vst.msk [vmem:[#allocation2 + $0x308] sm:$0xff] %vm3534, %v3503
      %3633 = vst.msk [vmem:[#allocation2 + $0x310] sm:$0xff] %vm3534, %v3504
      %3634 = vst.msk [vmem:[#allocation2 + $0x318] sm:$0xff] %vm3534, %v3505
      %3635 = vst.msk [vmem:[#allocation2 + $0x320] sm:$0xff] %vm3534, %v3506
      %3636 = vst.msk [vmem:[#allocation2 + $0x328] sm:$0xff] %vm3534, %v3507
      %3637 = vst.msk [vmem:[#allocation2 + $0x330] sm:$0xff] %vm3534, %v3508
      %3638 = vst.msk [vmem:[#allocation2 + $0x338] sm:$0xff] %vm3534, %v3509
      %3639 = vst.msk [vmem:[#allocation2 + $0x340] sm:$0xff] %vm3534, %v3510
      %3640 = vst.msk [vmem:[#allocation2 + $0x348] sm:$0xff] %vm3534, %v3511
      %3641 = vst.msk [vmem:[#allocation2 + $0x350] sm:$0xff] %vm3534, %v3512
      %3642 = vst.msk [vmem:[#allocation2 + $0x358] sm:$0xff] %vm3534, %v3513
      %3643 = vst.msk [vmem:[#allocation2 + $0x360] sm:$0xff] %vm3534, %v3514
      %3644 = vst.msk [vmem:[#allocation2 + $0x368] sm:$0xff] %vm3534, %v3515
      %3645 = vst.msk [vmem:[#allocation2 + $0x370] sm:$0xff] %vm3534, %v3516
      %3646 = vst.msk [vmem:[#allocation2 + $0x378] sm:$0xff] %vm3534, %v3517
      %3647 = vst.msk [vmem:[#allocation2 + $0x380] sm:$0xff] %vm3534, %v3518
      %3648 = vst.msk [vmem:[#allocation2 + $0x388] sm:$0xff] %vm3534, %v3519
      %3649 = vst.msk [vmem:[#allocation2 + $0x390] sm:$0xff] %vm3534, %v3520
      %3650 = vst.msk [vmem:[#allocation2 + $0x398] sm:$0xff] %vm3534, %v3521
      %3651 = vst.msk [vmem:[#allocation2 + $0x3a0] sm:$0xff] %vm3534, %v3522
      %3652 = vst.msk [vmem:[#allocation2 + $0x3a8] sm:$0xff] %vm3534, %v3523
      %3653 = vst.msk [vmem:[#allocation2 + $0x3b0] sm:$0xff] %vm3534, %v3524
      %3654 = vst.msk [vmem:[#allocation2 + $0x3b8] sm:$0xff] %vm3534, %v3525
      %3655 = vst.msk [vmem:[#allocation2 + $0x3c0] sm:$0xff] %vm3534, %v3526
      %3656 = vst.msk [vmem:[#allocation2 + $0x3c8] sm:$0xff] %vm3534, %v3527
      %3657 = vst.msk [vmem:[#allocation2 + $0x3d0] sm:$0xff] %vm3534, %v3528
      %3658 = vst.msk [vmem:[#allocation2 + $0x3d8] sm:$0xff] %vm3534, %v3529
      %3659 = vst.msk [vmem:[#allocation2 + $0x3e0] sm:$0xff] %vm3534, %v3530
      %3660 = vst.msk [vmem:[#allocation2 + $0x3e8] sm:$0xff] %vm3534, %v3531
      %3661 = vst.msk [vmem:[#allocation2 + $0x3f0] sm:$0xff] %vm3534, %v3532
      %3662 = vst.msk [vmem:[#allocation2 + $0x3f8] sm:$0xff] %vm3534, %v3533
      // Predicated region
      $region77: #{tnet3d_forward.1} parent=71 // pred_check
        %p3663 = pneg %p462
      $region78: #{tnet3d_forward.1} parent=71 // pred_check_branch
        %3665 = sbr.rel (%p3663) target = $region80
      $region79: #{tnet3d_forward.1} parent=71 // pred_region
        %v3666 = vld [vmem:[#allocation2] sm:$0xff]
        %v3667 = vld [vmem:[#allocation2 + $0x8] sm:$0xff]
        %v3668 = vld [vmem:[#allocation2 + $0x10] sm:$0xff]
        %v3669 = vld [vmem:[#allocation2 + $0x18] sm:$0xff]
        %v3670 = vld [vmem:[#allocation2 + $0x20] sm:$0xff]
        %v3671 = vld [vmem:[#allocation2 + $0x28] sm:$0xff]
        %v3672 = vld [vmem:[#allocation2 + $0x30] sm:$0xff]
        %v3673 = vld [vmem:[#allocation2 + $0x38] sm:$0xff]
        %v3674 = vld [vmem:[#allocation2 + $0x40] sm:$0xff]
        %v3675 = vld [vmem:[#allocation2 + $0x48] sm:$0xff]
        %v3676 = vld [vmem:[#allocation2 + $0x50] sm:$0xff]
        %v3677 = vld [vmem:[#allocation2 + $0x58] sm:$0xff]
        %v3678 = vld [vmem:[#allocation2 + $0x60] sm:$0xff]
        %v3679 = vld [vmem:[#allocation2 + $0x68] sm:$0xff]
        %v3680 = vld [vmem:[#allocation2 + $0x70] sm:$0xff]
        %v3681 = vld [vmem:[#allocation2 + $0x78] sm:$0xff]
        %v3682 = vld [vmem:[#allocation2 + $0x80] sm:$0xff]
        %v3683 = vld [vmem:[#allocation2 + $0x88] sm:$0xff]
        %v3684 = vld [vmem:[#allocation2 + $0x90] sm:$0xff]
        %v3685 = vld [vmem:[#allocation2 + $0x98] sm:$0xff]
        %v3686 = vld [vmem:[#allocation2 + $0xa0] sm:$0xff]
        %v3687 = vld [vmem:[#allocation2 + $0xa8] sm:$0xff]
        %v3688 = vld [vmem:[#allocation2 + $0xb0] sm:$0xff]
        %v3689 = vld [vmem:[#allocation2 + $0xb8] sm:$0xff]
        %v3690 = vld [vmem:[#allocation2 + $0xc0] sm:$0xff]
        %v3691 = vld [vmem:[#allocation2 + $0xc8] sm:$0xff]
        %v3692 = vld [vmem:[#allocation2 + $0xd0] sm:$0xff]
        %v3693 = vld [vmem:[#allocation2 + $0xd8] sm:$0xff]
        %v3694 = vld [vmem:[#allocation2 + $0xe0] sm:$0xff]
        %v3695 = vld [vmem:[#allocation2 + $0xe8] sm:$0xff]
        %v3696 = vld [vmem:[#allocation2 + $0xf0] sm:$0xff]
        %v3697 = vld [vmem:[#allocation2 + $0xf8] sm:$0xff]
        %v3698 = vld [vmem:[#allocation2 + $0x100] sm:$0xff]
        %v3699 = vld [vmem:[#allocation2 + $0x108] sm:$0xff]
        %v3700 = vld [vmem:[#allocation2 + $0x110] sm:$0xff]
        %v3701 = vld [vmem:[#allocation2 + $0x118] sm:$0xff]
        %v3702 = vld [vmem:[#allocation2 + $0x120] sm:$0xff]
        %v3703 = vld [vmem:[#allocation2 + $0x128] sm:$0xff]
        %v3704 = vld [vmem:[#allocation2 + $0x130] sm:$0xff]
        %v3705 = vld [vmem:[#allocation2 + $0x138] sm:$0xff]
        %v3706 = vld [vmem:[#allocation2 + $0x140] sm:$0xff]
        %v3707 = vld [vmem:[#allocation2 + $0x148] sm:$0xff]
        %v3708 = vld [vmem:[#allocation2 + $0x150] sm:$0xff]
        %v3709 = vld [vmem:[#allocation2 + $0x158] sm:$0xff]
        %v3710 = vld [vmem:[#allocation2 + $0x160] sm:$0xff]
        %v3711 = vld [vmem:[#allocation2 + $0x168] sm:$0xff]
        %v3712 = vld [vmem:[#allocation2 + $0x170] sm:$0xff]
        %v3713 = vld [vmem:[#allocation2 + $0x178] sm:$0xff]
        %v3714 = vld [vmem:[#allocation2 + $0x180] sm:$0xff]
        %v3715 = vld [vmem:[#allocation2 + $0x188] sm:$0xff]
        %v3716 = vld [vmem:[#allocation2 + $0x190] sm:$0xff]
        %v3717 = vld [vmem:[#allocation2 + $0x198] sm:$0xff]
        %v3718 = vld [vmem:[#allocation2 + $0x1a0] sm:$0xff]
        %v3719 = vld [vmem:[#allocation2 + $0x1a8] sm:$0xff]
        %v3720 = vld [vmem:[#allocation2 + $0x1b0] sm:$0xff]
        %v3721 = vld [vmem:[#allocation2 + $0x1b8] sm:$0xff]
        %v3722 = vld [vmem:[#allocation2 + $0x1c0] sm:$0xff]
        %v3723 = vld [vmem:[#allocation2 + $0x1c8] sm:$0xff]
        %v3724 = vld [vmem:[#allocation2 + $0x1d0] sm:$0xff]
        %v3725 = vld [vmem:[#allocation2 + $0x1d8] sm:$0xff]
        %v3726 = vld [vmem:[#allocation2 + $0x1e0] sm:$0xff]
        %v3727 = vld [vmem:[#allocation2 + $0x1e8] sm:$0xff]
        %v3728 = vld [vmem:[#allocation2 + $0x1f0] sm:$0xff]
        %v3729 = vld [vmem:[#allocation2 + $0x1f8] sm:$0xff]
        %v3730 = vld [vmem:[#allocation2 + $0x200] sm:$0xff]
        %v3731 = vld [vmem:[#allocation2 + $0x208] sm:$0xff]
        %v3732 = vld [vmem:[#allocation2 + $0x210] sm:$0xff]
        %v3733 = vld [vmem:[#allocation2 + $0x218] sm:$0xff]
        %v3734 = vld [vmem:[#allocation2 + $0x220] sm:$0xff]
        %v3735 = vld [vmem:[#allocation2 + $0x228] sm:$0xff]
        %v3736 = vld [vmem:[#allocation2 + $0x230] sm:$0xff]
        %v3737 = vld [vmem:[#allocation2 + $0x238] sm:$0xff]
        %v3738 = vld [vmem:[#allocation2 + $0x240] sm:$0xff]
        %v3739 = vld [vmem:[#allocation2 + $0x248] sm:$0xff]
        %v3740 = vld [vmem:[#allocation2 + $0x250] sm:$0xff]
        %v3741 = vld [vmem:[#allocation2 + $0x258] sm:$0xff]
        %v3742 = vld [vmem:[#allocation2 + $0x260] sm:$0xff]
        %v3743 = vld [vmem:[#allocation2 + $0x268] sm:$0xff]
        %v3744 = vld [vmem:[#allocation2 + $0x270] sm:$0xff]
        %v3745 = vld [vmem:[#allocation2 + $0x278] sm:$0xff]
        %v3746 = vld [vmem:[#allocation2 + $0x280] sm:$0xff]
        %v3747 = vld [vmem:[#allocation2 + $0x288] sm:$0xff]
        %v3748 = vld [vmem:[#allocation2 + $0x290] sm:$0xff]
        %v3749 = vld [vmem:[#allocation2 + $0x298] sm:$0xff]
        %v3750 = vld [vmem:[#allocation2 + $0x2a0] sm:$0xff]
        %v3751 = vld [vmem:[#allocation2 + $0x2a8] sm:$0xff]
        %v3752 = vld [vmem:[#allocation2 + $0x2b0] sm:$0xff]
        %v3753 = vld [vmem:[#allocation2 + $0x2b8] sm:$0xff]
        %v3754 = vld [vmem:[#allocation2 + $0x2c0] sm:$0xff]
        %v3755 = vld [vmem:[#allocation2 + $0x2c8] sm:$0xff]
        %v3756 = vld [vmem:[#allocation2 + $0x2d0] sm:$0xff]
        %v3757 = vld [vmem:[#allocation2 + $0x2d8] sm:$0xff]
        %v3758 = vld [vmem:[#allocation2 + $0x2e0] sm:$0xff]
        %v3759 = vld [vmem:[#allocation2 + $0x2e8] sm:$0xff]
        %v3760 = vld [vmem:[#allocation2 + $0x2f0] sm:$0xff]
        %v3761 = vld [vmem:[#allocation2 + $0x2f8] sm:$0xff]
        %v3762 = vld [vmem:[#allocation2 + $0x300] sm:$0xff]
        %v3763 = vld [vmem:[#allocation2 + $0x308] sm:$0xff]
        %v3764 = vld [vmem:[#allocation2 + $0x310] sm:$0xff]
        %v3765 = vld [vmem:[#allocation2 + $0x318] sm:$0xff]
        %v3766 = vld [vmem:[#allocation2 + $0x320] sm:$0xff]
        %v3767 = vld [vmem:[#allocation2 + $0x328] sm:$0xff]
        %v3768 = vld [vmem:[#allocation2 + $0x330] sm:$0xff]
        %v3769 = vld [vmem:[#allocation2 + $0x338] sm:$0xff]
        %v3770 = vld [vmem:[#allocation2 + $0x340] sm:$0xff]
        %v3771 = vld [vmem:[#allocation2 + $0x348] sm:$0xff]
        %v3772 = vld [vmem:[#allocation2 + $0x350] sm:$0xff]
        %v3773 = vld [vmem:[#allocation2 + $0x358] sm:$0xff]
        %v3774 = vld [vmem:[#allocation2 + $0x360] sm:$0xff]
        %v3775 = vld [vmem:[#allocation2 + $0x368] sm:$0xff]
        %v3776 = vld [vmem:[#allocation2 + $0x370] sm:$0xff]
        %v3777 = vld [vmem:[#allocation2 + $0x378] sm:$0xff]
        %v3778 = vld [vmem:[#allocation2 + $0x380] sm:$0xff]
        %v3779 = vld [vmem:[#allocation2 + $0x388] sm:$0xff]
        %v3780 = vld [vmem:[#allocation2 + $0x390] sm:$0xff]
        %v3781 = vld [vmem:[#allocation2 + $0x398] sm:$0xff]
        %v3782 = vld [vmem:[#allocation2 + $0x3a0] sm:$0xff]
        %v3783 = vld [vmem:[#allocation2 + $0x3a8] sm:$0xff]
        %v3784 = vld [vmem:[#allocation2 + $0x3b0] sm:$0xff]
        %v3785 = vld [vmem:[#allocation2 + $0x3b8] sm:$0xff]
        %v3786 = vld [vmem:[#allocation2 + $0x3c0] sm:$0xff]
        %v3787 = vld [vmem:[#allocation2 + $0x3c8] sm:$0xff]
        %v3788 = vld [vmem:[#allocation2 + $0x3d0] sm:$0xff]
        %v3789 = vld [vmem:[#allocation2 + $0x3d8] sm:$0xff]
        %v3790 = vld [vmem:[#allocation2 + $0x3e0] sm:$0xff]
        %v3791 = vld [vmem:[#allocation2 + $0x3e8] sm:$0xff]
        %v3792 = vld [vmem:[#allocation2 + $0x3f0] sm:$0xff]
        %v3793 = vld [vmem:[#allocation2 + $0x3f8] sm:$0xff]
        %v3794 = vmax.f32 %v3666, 0.0
        %v3795 = vmax.f32 %v3667, 0.0
        %v3796 = vmax.f32 %v3668, 0.0
        %v3797 = vmax.f32 %v3669, 0.0
        %v3798 = vmax.f32 %v3670, 0.0
        %v3799 = vmax.f32 %v3671, 0.0
        %v3800 = vmax.f32 %v3672, 0.0
        %v3801 = vmax.f32 %v3673, 0.0
        %v3802 = vmax.f32 %v3674, 0.0
        %v3803 = vmax.f32 %v3675, 0.0
        %v3804 = vmax.f32 %v3676, 0.0
        %v3805 = vmax.f32 %v3677, 0.0
        %v3806 = vmax.f32 %v3678, 0.0
        %v3807 = vmax.f32 %v3679, 0.0
        %v3808 = vmax.f32 %v3680, 0.0
        %v3809 = vmax.f32 %v3681, 0.0
        %v3810 = vmax.f32 %v3682, 0.0
        %v3811 = vmax.f32 %v3683, 0.0
        %v3812 = vmax.f32 %v3684, 0.0
        %v3813 = vmax.f32 %v3685, 0.0
        %v3814 = vmax.f32 %v3686, 0.0
        %v3815 = vmax.f32 %v3687, 0.0
        %v3816 = vmax.f32 %v3688, 0.0
        %v3817 = vmax.f32 %v3689, 0.0
        %v3818 = vmax.f32 %v3690, 0.0
        %v3819 = vmax.f32 %v3691, 0.0
        %v3820 = vmax.f32 %v3692, 0.0
        %v3821 = vmax.f32 %v3693, 0.0
        %v3822 = vmax.f32 %v3694, 0.0
        %v3823 = vmax.f32 %v3695, 0.0
        %v3824 = vmax.f32 %v3696, 0.0
        %v3825 = vmax.f32 %v3697, 0.0
        %v3826 = vmax.f32 %v3698, 0.0
        %v3827 = vmax.f32 %v3699, 0.0
        %v3828 = vmax.f32 %v3700, 0.0
        %v3829 = vmax.f32 %v3701, 0.0
        %v3830 = vmax.f32 %v3702, 0.0
        %v3831 = vmax.f32 %v3703, 0.0
        %v3832 = vmax.f32 %v3704, 0.0
        %v3833 = vmax.f32 %v3705, 0.0
        %v3834 = vmax.f32 %v3706, 0.0
        %v3835 = vmax.f32 %v3707, 0.0
        %v3836 = vmax.f32 %v3708, 0.0
        %v3837 = vmax.f32 %v3709, 0.0
        %v3838 = vmax.f32 %v3710, 0.0
        %v3839 = vmax.f32 %v3711, 0.0
        %v3840 = vmax.f32 %v3712, 0.0
        %v3841 = vmax.f32 %v3713, 0.0
        %v3842 = vmax.f32 %v3714, 0.0
        %v3843 = vmax.f32 %v3715, 0.0
        %v3844 = vmax.f32 %v3716, 0.0
        %v3845 = vmax.f32 %v3717, 0.0
        %v3846 = vmax.f32 %v3718, 0.0
        %v3847 = vmax.f32 %v3719, 0.0
        %v3848 = vmax.f32 %v3720, 0.0
        %v3849 = vmax.f32 %v3721, 0.0
        %v3850 = vmax.f32 %v3722, 0.0
        %v3851 = vmax.f32 %v3723, 0.0
        %v3852 = vmax.f32 %v3724, 0.0
        %v3853 = vmax.f32 %v3725, 0.0
        %v3854 = vmax.f32 %v3726, 0.0
        %v3855 = vmax.f32 %v3727, 0.0
        %v3856 = vmax.f32 %v3728, 0.0
        %v3857 = vmax.f32 %v3729, 0.0
        %v3858 = vmax.f32 %v3730, 0.0
        %v3859 = vmax.f32 %v3731, 0.0
        %v3860 = vmax.f32 %v3732, 0.0
        %v3861 = vmax.f32 %v3733, 0.0
        %v3862 = vmax.f32 %v3734, 0.0
        %v3863 = vmax.f32 %v3735, 0.0
        %v3864 = vmax.f32 %v3736, 0.0
        %v3865 = vmax.f32 %v3737, 0.0
        %v3866 = vmax.f32 %v3738, 0.0
        %v3867 = vmax.f32 %v3739, 0.0
        %v3868 = vmax.f32 %v3740, 0.0
        %v3869 = vmax.f32 %v3741, 0.0
        %v3870 = vmax.f32 %v3742, 0.0
        %v3871 = vmax.f32 %v3743, 0.0
        %v3872 = vmax.f32 %v3744, 0.0
        %v3873 = vmax.f32 %v3745, 0.0
        %v3874 = vmax.f32 %v3746, 0.0
        %v3875 = vmax.f32 %v3747, 0.0
        %v3876 = vmax.f32 %v3748, 0.0
        %v3877 = vmax.f32 %v3749, 0.0
        %v3878 = vmax.f32 %v3750, 0.0
        %v3879 = vmax.f32 %v3751, 0.0
        %v3880 = vmax.f32 %v3752, 0.0
        %v3881 = vmax.f32 %v3753, 0.0
        %v3882 = vmax.f32 %v3754, 0.0
        %v3883 = vmax.f32 %v3755, 0.0
        %v3884 = vmax.f32 %v3756, 0.0
        %v3885 = vmax.f32 %v3757, 0.0
        %v3886 = vmax.f32 %v3758, 0.0
        %v3887 = vmax.f32 %v3759, 0.0
        %v3888 = vmax.f32 %v3760, 0.0
        %v3889 = vmax.f32 %v3761, 0.0
        %v3890 = vmax.f32 %v3762, 0.0
        %v3891 = vmax.f32 %v3763, 0.0
        %v3892 = vmax.f32 %v3764, 0.0
        %v3893 = vmax.f32 %v3765, 0.0
        %v3894 = vmax.f32 %v3766, 0.0
        %v3895 = vmax.f32 %v3767, 0.0
        %v3896 = vmax.f32 %v3768, 0.0
        %v3897 = vmax.f32 %v3769, 0.0
        %v3898 = vmax.f32 %v3770, 0.0
        %v3899 = vmax.f32 %v3771, 0.0
        %v3900 = vmax.f32 %v3772, 0.0
        %v3901 = vmax.f32 %v3773, 0.0
        %v3902 = vmax.f32 %v3774, 0.0
        %v3903 = vmax.f32 %v3775, 0.0
        %v3904 = vmax.f32 %v3776, 0.0
        %v3905 = vmax.f32 %v3777, 0.0
        %v3906 = vmax.f32 %v3778, 0.0
        %v3907 = vmax.f32 %v3779, 0.0
        %v3908 = vmax.f32 %v3780, 0.0
        %v3909 = vmax.f32 %v3781, 0.0
        %v3910 = vmax.f32 %v3782, 0.0
        %v3911 = vmax.f32 %v3783, 0.0
        %v3912 = vmax.f32 %v3784, 0.0
        %v3913 = vmax.f32 %v3785, 0.0
        %v3914 = vmax.f32 %v3786, 0.0
        %v3915 = vmax.f32 %v3787, 0.0
        %v3916 = vmax.f32 %v3788, 0.0
        %v3917 = vmax.f32 %v3789, 0.0
        %v3918 = vmax.f32 %v3790, 0.0
        %v3919 = vmax.f32 %v3791, 0.0
        %v3920 = vmax.f32 %v3792, 0.0
        %v3921 = vmax.f32 %v3793, 0.0
        %v3922 = vpack.c.bf16 %v3795, %v3794
        %v3923 = vpack.c.bf16 %v3797, %v3796
        %v3924 = vpack.c.bf16 %v3799, %v3798
        %v3925 = vpack.c.bf16 %v3801, %v3800
        %v3926 = vpack.c.bf16 %v3803, %v3802
        %v3927 = vpack.c.bf16 %v3805, %v3804
        %v3928 = vpack.c.bf16 %v3807, %v3806
        %v3929 = vpack.c.bf16 %v3809, %v3808
        %v3930 = vpack.c.bf16 %v3811, %v3810
        %v3931 = vpack.c.bf16 %v3813, %v3812
        %v3932 = vpack.c.bf16 %v3815, %v3814
        %v3933 = vpack.c.bf16 %v3817, %v3816
        %v3934 = vpack.c.bf16 %v3819, %v3818
        %v3935 = vpack.c.bf16 %v3821, %v3820
        %v3936 = vpack.c.bf16 %v3823, %v3822
        %v3937 = vpack.c.bf16 %v3825, %v3824
        %v3938 = vpack.c.bf16 %v3827, %v3826
        %v3939 = vpack.c.bf16 %v3829, %v3828
        %v3940 = vpack.c.bf16 %v3831, %v3830
        %v3941 = vpack.c.bf16 %v3833, %v3832
        %v3942 = vpack.c.bf16 %v3835, %v3834
        %v3943 = vpack.c.bf16 %v3837, %v3836
        %v3944 = vpack.c.bf16 %v3839, %v3838
        %v3945 = vpack.c.bf16 %v3841, %v3840
        %v3946 = vpack.c.bf16 %v3843, %v3842
        %v3947 = vpack.c.bf16 %v3845, %v3844
        %v3948 = vpack.c.bf16 %v3847, %v3846
        %v3949 = vpack.c.bf16 %v3849, %v3848
        %v3950 = vpack.c.bf16 %v3851, %v3850
        %v3951 = vpack.c.bf16 %v3853, %v3852
        %v3952 = vpack.c.bf16 %v3855, %v3854
        %v3953 = vpack.c.bf16 %v3857, %v3856
        %v3954 = vpack.c.bf16 %v3859, %v3858
        %v3955 = vpack.c.bf16 %v3861, %v3860
        %v3956 = vpack.c.bf16 %v3863, %v3862
        %v3957 = vpack.c.bf16 %v3865, %v3864
        %v3958 = vpack.c.bf16 %v3867, %v3866
        %v3959 = vpack.c.bf16 %v3869, %v3868
        %v3960 = vpack.c.bf16 %v3871, %v3870
        %v3961 = vpack.c.bf16 %v3873, %v3872
        %v3962 = vpack.c.bf16 %v3875, %v3874
        %v3963 = vpack.c.bf16 %v3877, %v3876
        %v3964 = vpack.c.bf16 %v3879, %v3878
        %v3965 = vpack.c.bf16 %v3881, %v3880
        %v3966 = vpack.c.bf16 %v3883, %v3882
        %v3967 = vpack.c.bf16 %v3885, %v3884
        %v3968 = vpack.c.bf16 %v3887, %v3886
        %v3969 = vpack.c.bf16 %v3889, %v3888
        %v3970 = vpack.c.bf16 %v3891, %v3890
        %v3971 = vpack.c.bf16 %v3893, %v3892
        %v3972 = vpack.c.bf16 %v3895, %v3894
        %v3973 = vpack.c.bf16 %v3897, %v3896
        %v3974 = vpack.c.bf16 %v3899, %v3898
        %v3975 = vpack.c.bf16 %v3901, %v3900
        %v3976 = vpack.c.bf16 %v3903, %v3902
        %v3977 = vpack.c.bf16 %v3905, %v3904
        %v3978 = vpack.c.bf16 %v3907, %v3906
        %v3979 = vpack.c.bf16 %v3909, %v3908
        %v3980 = vpack.c.bf16 %v3911, %v3910
        %v3981 = vpack.c.bf16 %v3913, %v3912
        %v3982 = vpack.c.bf16 %v3915, %v3914
        %v3983 = vpack.c.bf16 %v3917, %v3916
        %v3984 = vpack.c.bf16 %v3919, %v3918
        %v3985 = vpack.c.bf16 %v3921, %v3920
        %v3986 = vld [vmem:[%s7] sm:$0xff]
        %v3987 = vld [vmem:[%s7 + $0x8] sm:$0xff]
        %v3988 = vld [vmem:[%s7 + $0x10] sm:$0xff]
        %v3989 = vld [vmem:[%s7 + $0x18] sm:$0xff]
        %v3990 = vld [vmem:[%s7 + $0x20] sm:$0xff]
        %v3991 = vld [vmem:[%s7 + $0x28] sm:$0xff]
        %v3992 = vld [vmem:[%s7 + $0x30] sm:$0xff]
        %v3993 = vld [vmem:[%s7 + $0x38] sm:$0xff]
        %v3994 = vld [vmem:[%s7 + $0x40] sm:$0xff]
        %v3995 = vld [vmem:[%s7 + $0x48] sm:$0xff]
        %v3996 = vld [vmem:[%s7 + $0x50] sm:$0xff]
        %v3997 = vld [vmem:[%s7 + $0x58] sm:$0xff]
        %v3998 = vld [vmem:[%s7 + $0x60] sm:$0xff]
        %v3999 = vld [vmem:[%s7 + $0x68] sm:$0xff]
        %v4000 = vld [vmem:[%s7 + $0x70] sm:$0xff]
        %v4001 = vld [vmem:[%s7 + $0x78] sm:$0xff]
        %v4002 = vld [vmem:[%s7 + $0x80] sm:$0xff]
        %v4003 = vld [vmem:[%s7 + $0x88] sm:$0xff]
        %v4004 = vld [vmem:[%s7 + $0x90] sm:$0xff]
        %v4005 = vld [vmem:[%s7 + $0x98] sm:$0xff]
        %v4006 = vld [vmem:[%s7 + $0xa0] sm:$0xff]
        %v4007 = vld [vmem:[%s7 + $0xa8] sm:$0xff]
        %v4008 = vld [vmem:[%s7 + $0xb0] sm:$0xff]
        %v4009 = vld [vmem:[%s7 + $0xb8] sm:$0xff]
        %v4010 = vld [vmem:[%s7 + $0xc0] sm:$0xff]
        %v4011 = vld [vmem:[%s7 + $0xc8] sm:$0xff]
        %v4012 = vld [vmem:[%s7 + $0xd0] sm:$0xff]
        %v4013 = vld [vmem:[%s7 + $0xd8] sm:$0xff]
        %v4014 = vld [vmem:[%s7 + $0xe0] sm:$0xff]
        %v4015 = vld [vmem:[%s7 + $0xe8] sm:$0xff]
        %v4016 = vld [vmem:[%s7 + $0xf0] sm:$0xff]
        %v4017 = vld [vmem:[%s7 + $0xf8] sm:$0xff]
        %v4018 = vld [vmem:[%s7 + $0x100] sm:$0xff]
        %v4019 = vld [vmem:[%s7 + $0x108] sm:$0xff]
        %v4020 = vld [vmem:[%s7 + $0x110] sm:$0xff]
        %v4021 = vld [vmem:[%s7 + $0x118] sm:$0xff]
        %v4022 = vld [vmem:[%s7 + $0x120] sm:$0xff]
        %v4023 = vld [vmem:[%s7 + $0x128] sm:$0xff]
        %v4024 = vld [vmem:[%s7 + $0x130] sm:$0xff]
        %v4025 = vld [vmem:[%s7 + $0x138] sm:$0xff]
        %v4026 = vld [vmem:[%s7 + $0x140] sm:$0xff]
        %v4027 = vld [vmem:[%s7 + $0x148] sm:$0xff]
        %v4028 = vld [vmem:[%s7 + $0x150] sm:$0xff]
        %v4029 = vld [vmem:[%s7 + $0x158] sm:$0xff]
        %v4030 = vld [vmem:[%s7 + $0x160] sm:$0xff]
        %v4031 = vld [vmem:[%s7 + $0x168] sm:$0xff]
        %v4032 = vld [vmem:[%s7 + $0x170] sm:$0xff]
        %v4033 = vld [vmem:[%s7 + $0x178] sm:$0xff]
        %v4034 = vld [vmem:[%s7 + $0x180] sm:$0xff]
        %v4035 = vld [vmem:[%s7 + $0x188] sm:$0xff]
        %v4036 = vld [vmem:[%s7 + $0x190] sm:$0xff]
        %v4037 = vld [vmem:[%s7 + $0x198] sm:$0xff]
        %v4038 = vld [vmem:[%s7 + $0x1a0] sm:$0xff]
        %v4039 = vld [vmem:[%s7 + $0x1a8] sm:$0xff]
        %v4040 = vld [vmem:[%s7 + $0x1b0] sm:$0xff]
        %v4041 = vld [vmem:[%s7 + $0x1b8] sm:$0xff]
        %v4042 = vld [vmem:[%s7 + $0x1c0] sm:$0xff]
        %v4043 = vld [vmem:[%s7 + $0x1c8] sm:$0xff]
        %v4044 = vld [vmem:[%s7 + $0x1d0] sm:$0xff]
        %v4045 = vld [vmem:[%s7 + $0x1d8] sm:$0xff]
        %v4046 = vld [vmem:[%s7 + $0x1e0] sm:$0xff]
        %v4047 = vld [vmem:[%s7 + $0x1e8] sm:$0xff]
        %v4048 = vld [vmem:[%s7 + $0x1f0] sm:$0xff]
        %v4049 = vld [vmem:[%s7 + $0x1f8] sm:$0xff]
        %v4050 = vld [vmem:[%s7 + $0x200] sm:$0xff]
        %v4051 = vld [vmem:[%s7 + $0x208] sm:$0xff]
        %v4052 = vld [vmem:[%s7 + $0x210] sm:$0xff]
        %v4053 = vld [vmem:[%s7 + $0x218] sm:$0xff]
        %v4054 = vld [vmem:[%s7 + $0x220] sm:$0xff]
        %v4055 = vld [vmem:[%s7 + $0x228] sm:$0xff]
        %v4056 = vld [vmem:[%s7 + $0x230] sm:$0xff]
        %v4057 = vld [vmem:[%s7 + $0x238] sm:$0xff]
        %v4058 = vld [vmem:[%s7 + $0x240] sm:$0xff]
        %v4059 = vld [vmem:[%s7 + $0x248] sm:$0xff]
        %v4060 = vld [vmem:[%s7 + $0x250] sm:$0xff]
        %v4061 = vld [vmem:[%s7 + $0x258] sm:$0xff]
        %v4062 = vld [vmem:[%s7 + $0x260] sm:$0xff]
        %v4063 = vld [vmem:[%s7 + $0x268] sm:$0xff]
        %v4064 = vld [vmem:[%s7 + $0x270] sm:$0xff]
        %v4065 = vld [vmem:[%s7 + $0x278] sm:$0xff]
        %v4066 = vld [vmem:[%s7 + $0x280] sm:$0xff]
        %v4067 = vld [vmem:[%s7 + $0x288] sm:$0xff]
        %v4068 = vld [vmem:[%s7 + $0x290] sm:$0xff]
        %v4069 = vld [vmem:[%s7 + $0x298] sm:$0xff]
        %v4070 = vld [vmem:[%s7 + $0x2a0] sm:$0xff]
        %v4071 = vld [vmem:[%s7 + $0x2a8] sm:$0xff]
        %v4072 = vld [vmem:[%s7 + $0x2b0] sm:$0xff]
        %v4073 = vld [vmem:[%s7 + $0x2b8] sm:$0xff]
        %v4074 = vld [vmem:[%s7 + $0x2c0] sm:$0xff]
        %v4075 = vld [vmem:[%s7 + $0x2c8] sm:$0xff]
        %v4076 = vld [vmem:[%s7 + $0x2d0] sm:$0xff]
        %v4077 = vld [vmem:[%s7 + $0x2d8] sm:$0xff]
        %v4078 = vld [vmem:[%s7 + $0x2e0] sm:$0xff]
        %v4079 = vld [vmem:[%s7 + $0x2e8] sm:$0xff]
        %v4080 = vld [vmem:[%s7 + $0x2f0] sm:$0xff]
        %v4081 = vld [vmem:[%s7 + $0x2f8] sm:$0xff]
        %v4082 = vld [vmem:[%s7 + $0x300] sm:$0xff]
        %v4083 = vld [vmem:[%s7 + $0x308] sm:$0xff]
        %v4084 = vld [vmem:[%s7 + $0x310] sm:$0xff]
        %v4085 = vld [vmem:[%s7 + $0x318] sm:$0xff]
        %v4086 = vld [vmem:[%s7 + $0x320] sm:$0xff]
        %v4087 = vld [vmem:[%s7 + $0x328] sm:$0xff]
        %v4088 = vld [vmem:[%s7 + $0x330] sm:$0xff]
        %v4089 = vld [vmem:[%s7 + $0x338] sm:$0xff]
        %v4090 = vld [vmem:[%s7 + $0x340] sm:$0xff]
        %v4091 = vld [vmem:[%s7 + $0x348] sm:$0xff]
        %v4092 = vld [vmem:[%s7 + $0x350] sm:$0xff]
        %v4093 = vld [vmem:[%s7 + $0x358] sm:$0xff]
        %v4094 = vld [vmem:[%s7 + $0x360] sm:$0xff]
        %v4095 = vld [vmem:[%s7 + $0x368] sm:$0xff]
        %v4096 = vld [vmem:[%s7 + $0x370] sm:$0xff]
        %v4097 = vld [vmem:[%s7 + $0x378] sm:$0xff]
        %v4098 = vld [vmem:[%s7 + $0x380] sm:$0xff]
        %v4099 = vld [vmem:[%s7 + $0x388] sm:$0xff]
        %v4100 = vld [vmem:[%s7 + $0x390] sm:$0xff]
        %v4101 = vld [vmem:[%s7 + $0x398] sm:$0xff]
        %v4102 = vld [vmem:[%s7 + $0x3a0] sm:$0xff]
        %v4103 = vld [vmem:[%s7 + $0x3a8] sm:$0xff]
        %v4104 = vld [vmem:[%s7 + $0x3b0] sm:$0xff]
        %v4105 = vld [vmem:[%s7 + $0x3b8] sm:$0xff]
        %v4106 = vld [vmem:[%s7 + $0x3c0] sm:$0xff]
        %v4107 = vld [vmem:[%s7 + $0x3c8] sm:$0xff]
        %v4108 = vld [vmem:[%s7 + $0x3d0] sm:$0xff]
        %v4109 = vld [vmem:[%s7 + $0x3d8] sm:$0xff]
        %v4110 = vld [vmem:[%s7 + $0x3e0] sm:$0xff]
        %v4111 = vld [vmem:[%s7 + $0x3e8] sm:$0xff]
        %v4112 = vld [vmem:[%s7 + $0x3f0] sm:$0xff]
        %v4113 = vld [vmem:[%s7 + $0x3f8] sm:$0xff]
        %v4114 = vld [vmem:[%s7 + $0x400] sm:$0xff]
        %v4115 = vld [vmem:[%s7 + $0x408] sm:$0xff]
        %v4116 = vld [vmem:[%s7 + $0x410] sm:$0xff]
        %v4117 = vld [vmem:[%s7 + $0x418] sm:$0xff]
        %v4118 = vld [vmem:[%s7 + $0x420] sm:$0xff]
        %v4119 = vld [vmem:[%s7 + $0x428] sm:$0xff]
        %v4120 = vld [vmem:[%s7 + $0x430] sm:$0xff]
        %v4121 = vld [vmem:[%s7 + $0x438] sm:$0xff]
        %v4122 = vld [vmem:[%s7 + $0x440] sm:$0xff]
        %v4123 = vld [vmem:[%s7 + $0x448] sm:$0xff]
        %v4124 = vld [vmem:[%s7 + $0x450] sm:$0xff]
        %v4125 = vld [vmem:[%s7 + $0x458] sm:$0xff]
        %v4126 = vld [vmem:[%s7 + $0x460] sm:$0xff]
        %v4127 = vld [vmem:[%s7 + $0x468] sm:$0xff]
        %v4128 = vld [vmem:[%s7 + $0x470] sm:$0xff]
        %v4129 = vld [vmem:[%s7 + $0x478] sm:$0xff]
        %v4130 = vld [vmem:[%s7 + $0x480] sm:$0xff]
        %v4131 = vld [vmem:[%s7 + $0x488] sm:$0xff]
        %v4132 = vld [vmem:[%s7 + $0x490] sm:$0xff]
        %v4133 = vld [vmem:[%s7 + $0x498] sm:$0xff]
        %v4134 = vld [vmem:[%s7 + $0x4a0] sm:$0xff]
        %v4135 = vld [vmem:[%s7 + $0x4a8] sm:$0xff]
        %v4136 = vld [vmem:[%s7 + $0x4b0] sm:$0xff]
        %v4137 = vld [vmem:[%s7 + $0x4b8] sm:$0xff]
        %v4138 = vld [vmem:[%s7 + $0x4c0] sm:$0xff]
        %v4139 = vld [vmem:[%s7 + $0x4c8] sm:$0xff]
        %v4140 = vld [vmem:[%s7 + $0x4d0] sm:$0xff]
        %v4141 = vld [vmem:[%s7 + $0x4d8] sm:$0xff]
        %v4142 = vld [vmem:[%s7 + $0x4e0] sm:$0xff]
        %v4143 = vld [vmem:[%s7 + $0x4e8] sm:$0xff]
        %v4144 = vld [vmem:[%s7 + $0x4f0] sm:$0xff]
        %v4145 = vld [vmem:[%s7 + $0x4f8] sm:$0xff]
        %v4146 = vld [vmem:[%s7 + $0x500] sm:$0xff]
        %v4147 = vld [vmem:[%s7 + $0x508] sm:$0xff]
        %v4148 = vld [vmem:[%s7 + $0x510] sm:$0xff]
        %v4149 = vld [vmem:[%s7 + $0x518] sm:$0xff]
        %v4150 = vld [vmem:[%s7 + $0x520] sm:$0xff]
        %v4151 = vld [vmem:[%s7 + $0x528] sm:$0xff]
        %v4152 = vld [vmem:[%s7 + $0x530] sm:$0xff]
        %v4153 = vld [vmem:[%s7 + $0x538] sm:$0xff]
        %v4154 = vld [vmem:[%s7 + $0x540] sm:$0xff]
        %v4155 = vld [vmem:[%s7 + $0x548] sm:$0xff]
        %v4156 = vld [vmem:[%s7 + $0x550] sm:$0xff]
        %v4157 = vld [vmem:[%s7 + $0x558] sm:$0xff]
        %v4158 = vld [vmem:[%s7 + $0x560] sm:$0xff]
        %v4159 = vld [vmem:[%s7 + $0x568] sm:$0xff]
        %v4160 = vld [vmem:[%s7 + $0x570] sm:$0xff]
        %v4161 = vld [vmem:[%s7 + $0x578] sm:$0xff]
        %v4162 = vld [vmem:[%s7 + $0x580] sm:$0xff]
        %v4163 = vld [vmem:[%s7 + $0x588] sm:$0xff]
        %v4164 = vld [vmem:[%s7 + $0x590] sm:$0xff]
        %v4165 = vld [vmem:[%s7 + $0x598] sm:$0xff]
        %v4166 = vld [vmem:[%s7 + $0x5a0] sm:$0xff]
        %v4167 = vld [vmem:[%s7 + $0x5a8] sm:$0xff]
        %v4168 = vld [vmem:[%s7 + $0x5b0] sm:$0xff]
        %v4169 = vld [vmem:[%s7 + $0x5b8] sm:$0xff]
        %v4170 = vld [vmem:[%s7 + $0x5c0] sm:$0xff]
        %v4171 = vld [vmem:[%s7 + $0x5c8] sm:$0xff]
        %v4172 = vld [vmem:[%s7 + $0x5d0] sm:$0xff]
        %v4173 = vld [vmem:[%s7 + $0x5d8] sm:$0xff]
        %v4174 = vld [vmem:[%s7 + $0x5e0] sm:$0xff]
        %v4175 = vld [vmem:[%s7 + $0x5e8] sm:$0xff]
        %v4176 = vld [vmem:[%s7 + $0x5f0] sm:$0xff]
        %v4177 = vld [vmem:[%s7 + $0x5f8] sm:$0xff]
        %v4178 = vld [vmem:[%s7 + $0x600] sm:$0xff]
        %v4179 = vld [vmem:[%s7 + $0x608] sm:$0xff]
        %v4180 = vld [vmem:[%s7 + $0x610] sm:$0xff]
        %v4181 = vld [vmem:[%s7 + $0x618] sm:$0xff]
        %v4182 = vld [vmem:[%s7 + $0x620] sm:$0xff]
        %v4183 = vld [vmem:[%s7 + $0x628] sm:$0xff]
        %v4184 = vld [vmem:[%s7 + $0x630] sm:$0xff]
        %v4185 = vld [vmem:[%s7 + $0x638] sm:$0xff]
        %v4186 = vld [vmem:[%s7 + $0x640] sm:$0xff]
        %v4187 = vld [vmem:[%s7 + $0x648] sm:$0xff]
        %v4188 = vld [vmem:[%s7 + $0x650] sm:$0xff]
        %v4189 = vld [vmem:[%s7 + $0x658] sm:$0xff]
        %v4190 = vld [vmem:[%s7 + $0x660] sm:$0xff]
        %v4191 = vld [vmem:[%s7 + $0x668] sm:$0xff]
        %v4192 = vld [vmem:[%s7 + $0x670] sm:$0xff]
        %v4193 = vld [vmem:[%s7 + $0x678] sm:$0xff]
        %v4194 = vld [vmem:[%s7 + $0x680] sm:$0xff]
        %v4195 = vld [vmem:[%s7 + $0x688] sm:$0xff]
        %v4196 = vld [vmem:[%s7 + $0x690] sm:$0xff]
        %v4197 = vld [vmem:[%s7 + $0x698] sm:$0xff]
        %v4198 = vld [vmem:[%s7 + $0x6a0] sm:$0xff]
        %v4199 = vld [vmem:[%s7 + $0x6a8] sm:$0xff]
        %v4200 = vld [vmem:[%s7 + $0x6b0] sm:$0xff]
        %v4201 = vld [vmem:[%s7 + $0x6b8] sm:$0xff]
        %v4202 = vld [vmem:[%s7 + $0x6c0] sm:$0xff]
        %v4203 = vld [vmem:[%s7 + $0x6c8] sm:$0xff]
        %v4204 = vld [vmem:[%s7 + $0x6d0] sm:$0xff]
        %v4205 = vld [vmem:[%s7 + $0x6d8] sm:$0xff]
        %v4206 = vld [vmem:[%s7 + $0x6e0] sm:$0xff]
        %v4207 = vld [vmem:[%s7 + $0x6e8] sm:$0xff]
        %v4208 = vld [vmem:[%s7 + $0x6f0] sm:$0xff]
        %v4209 = vld [vmem:[%s7 + $0x6f8] sm:$0xff]
        %v4210 = vld [vmem:[%s7 + $0x700] sm:$0xff]
        %v4211 = vld [vmem:[%s7 + $0x708] sm:$0xff]
        %v4212 = vld [vmem:[%s7 + $0x710] sm:$0xff]
        %v4213 = vld [vmem:[%s7 + $0x718] sm:$0xff]
        %v4214 = vld [vmem:[%s7 + $0x720] sm:$0xff]
        %v4215 = vld [vmem:[%s7 + $0x728] sm:$0xff]
        %v4216 = vld [vmem:[%s7 + $0x730] sm:$0xff]
        %v4217 = vld [vmem:[%s7 + $0x738] sm:$0xff]
        %v4218 = vld [vmem:[%s7 + $0x740] sm:$0xff]
        %v4219 = vld [vmem:[%s7 + $0x748] sm:$0xff]
        %v4220 = vld [vmem:[%s7 + $0x750] sm:$0xff]
        %v4221 = vld [vmem:[%s7 + $0x758] sm:$0xff]
        %v4222 = vld [vmem:[%s7 + $0x760] sm:$0xff]
        %v4223 = vld [vmem:[%s7 + $0x768] sm:$0xff]
        %v4224 = vld [vmem:[%s7 + $0x770] sm:$0xff]
        %v4225 = vld [vmem:[%s7 + $0x778] sm:$0xff]
        %v4226 = vld [vmem:[%s7 + $0x780] sm:$0xff]
        %v4227 = vld [vmem:[%s7 + $0x788] sm:$0xff]
        %v4228 = vld [vmem:[%s7 + $0x790] sm:$0xff]
        %v4229 = vld [vmem:[%s7 + $0x798] sm:$0xff]
        %v4230 = vld [vmem:[%s7 + $0x7a0] sm:$0xff]
        %v4231 = vld [vmem:[%s7 + $0x7a8] sm:$0xff]
        %v4232 = vld [vmem:[%s7 + $0x7b0] sm:$0xff]
        %v4233 = vld [vmem:[%s7 + $0x7b8] sm:$0xff]
        %v4234 = vld [vmem:[%s7 + $0x7c0] sm:$0xff]
        %v4235 = vld [vmem:[%s7 + $0x7c8] sm:$0xff]
        %v4236 = vld [vmem:[%s7 + $0x7d0] sm:$0xff]
        %v4237 = vld [vmem:[%s7 + $0x7d8] sm:$0xff]
        %v4238 = vld [vmem:[%s7 + $0x7e0] sm:$0xff]
        %v4239 = vld [vmem:[%s7 + $0x7e8] sm:$0xff]
        %v4240 = vld [vmem:[%s7 + $0x7f0] sm:$0xff]
        %v4241 = vld [vmem:[%s7 + $0x7f8] sm:$0xff]
        %v4242 = vld [vmem:[%s8] sm:$0xff]
        %v4243 = vld [vmem:[%s8 + $0x8] sm:$0xff]
        %v4244 = vld [vmem:[%s8 + $0x10] sm:$0xff]
        %v4245 = vld [vmem:[%s8 + $0x18] sm:$0xff]
        %v4246 = vld [vmem:[%s8 + $0x20] sm:$0xff]
        %v4247 = vld [vmem:[%s8 + $0x28] sm:$0xff]
        %v4248 = vld [vmem:[%s8 + $0x30] sm:$0xff]
        %v4249 = vld [vmem:[%s8 + $0x38] sm:$0xff]
        %v4250 = vld [vmem:[%s8 + $0x40] sm:$0xff]
        %v4251 = vld [vmem:[%s8 + $0x48] sm:$0xff]
        %v4252 = vld [vmem:[%s8 + $0x50] sm:$0xff]
        %v4253 = vld [vmem:[%s8 + $0x58] sm:$0xff]
        %v4254 = vld [vmem:[%s8 + $0x60] sm:$0xff]
        %v4255 = vld [vmem:[%s8 + $0x68] sm:$0xff]
        %v4256 = vld [vmem:[%s8 + $0x70] sm:$0xff]
        %v4257 = vld [vmem:[%s8 + $0x78] sm:$0xff]
        %v4258 = vld [vmem:[%s8 + $0x80] sm:$0xff]
        %v4259 = vld [vmem:[%s8 + $0x88] sm:$0xff]
        %v4260 = vld [vmem:[%s8 + $0x90] sm:$0xff]
        %v4261 = vld [vmem:[%s8 + $0x98] sm:$0xff]
        %v4262 = vld [vmem:[%s8 + $0xa0] sm:$0xff]
        %v4263 = vld [vmem:[%s8 + $0xa8] sm:$0xff]
        %v4264 = vld [vmem:[%s8 + $0xb0] sm:$0xff]
        %v4265 = vld [vmem:[%s8 + $0xb8] sm:$0xff]
        %v4266 = vld [vmem:[%s8 + $0xc0] sm:$0xff]
        %v4267 = vld [vmem:[%s8 + $0xc8] sm:$0xff]
        %v4268 = vld [vmem:[%s8 + $0xd0] sm:$0xff]
        %v4269 = vld [vmem:[%s8 + $0xd8] sm:$0xff]
        %v4270 = vld [vmem:[%s8 + $0xe0] sm:$0xff]
        %v4271 = vld [vmem:[%s8 + $0xe8] sm:$0xff]
        %v4272 = vld [vmem:[%s8 + $0xf0] sm:$0xff]
        %v4273 = vld [vmem:[%s8 + $0xf8] sm:$0xff]
        %v4274 = vld [vmem:[%s8 + $0x100] sm:$0xff]
        %v4275 = vld [vmem:[%s8 + $0x108] sm:$0xff]
        %v4276 = vld [vmem:[%s8 + $0x110] sm:$0xff]
        %v4277 = vld [vmem:[%s8 + $0x118] sm:$0xff]
        %v4278 = vld [vmem:[%s8 + $0x120] sm:$0xff]
        %v4279 = vld [vmem:[%s8 + $0x128] sm:$0xff]
        %v4280 = vld [vmem:[%s8 + $0x130] sm:$0xff]
        %v4281 = vld [vmem:[%s8 + $0x138] sm:$0xff]
        %v4282 = vld [vmem:[%s8 + $0x140] sm:$0xff]
        %v4283 = vld [vmem:[%s8 + $0x148] sm:$0xff]
        %v4284 = vld [vmem:[%s8 + $0x150] sm:$0xff]
        %v4285 = vld [vmem:[%s8 + $0x158] sm:$0xff]
        %v4286 = vld [vmem:[%s8 + $0x160] sm:$0xff]
        %v4287 = vld [vmem:[%s8 + $0x168] sm:$0xff]
        %v4288 = vld [vmem:[%s8 + $0x170] sm:$0xff]
        %v4289 = vld [vmem:[%s8 + $0x178] sm:$0xff]
        %v4290 = vld [vmem:[%s8 + $0x180] sm:$0xff]
        %v4291 = vld [vmem:[%s8 + $0x188] sm:$0xff]
        %v4292 = vld [vmem:[%s8 + $0x190] sm:$0xff]
        %v4293 = vld [vmem:[%s8 + $0x198] sm:$0xff]
        %v4294 = vld [vmem:[%s8 + $0x1a0] sm:$0xff]
        %v4295 = vld [vmem:[%s8 + $0x1a8] sm:$0xff]
        %v4296 = vld [vmem:[%s8 + $0x1b0] sm:$0xff]
        %v4297 = vld [vmem:[%s8 + $0x1b8] sm:$0xff]
        %v4298 = vld [vmem:[%s8 + $0x1c0] sm:$0xff]
        %v4299 = vld [vmem:[%s8 + $0x1c8] sm:$0xff]
        %v4300 = vld [vmem:[%s8 + $0x1d0] sm:$0xff]
        %v4301 = vld [vmem:[%s8 + $0x1d8] sm:$0xff]
        %v4302 = vld [vmem:[%s8 + $0x1e0] sm:$0xff]
        %v4303 = vld [vmem:[%s8 + $0x1e8] sm:$0xff]
        %v4304 = vld [vmem:[%s8 + $0x1f0] sm:$0xff]
        %v4305 = vld [vmem:[%s8 + $0x1f8] sm:$0xff]
        %v4562 = vunpack.c.l.b16 %v3986
        %v4563 = vunpack.c.h.b16 %v3986
        %v4564 = vunpack.c.l.b16 %v3987
        %v4565 = vunpack.c.h.b16 %v3987
        %v4566 = vunpack.c.l.b16 %v3988
        %v4567 = vunpack.c.h.b16 %v3988
        %v4568 = vunpack.c.l.b16 %v3989
        %v4569 = vunpack.c.h.b16 %v3989
        %v4570 = vunpack.c.l.b16 %v3990
        %v4571 = vunpack.c.h.b16 %v3990
        %v4572 = vunpack.c.l.b16 %v3991
        %v4573 = vunpack.c.h.b16 %v3991
        %v4574 = vunpack.c.l.b16 %v3992
        %v4575 = vunpack.c.h.b16 %v3992
        %v4576 = vunpack.c.l.b16 %v3993
        %v4577 = vunpack.c.h.b16 %v3993
        %v4578 = vunpack.c.l.b16 %v3994
        %v4579 = vunpack.c.h.b16 %v3994
        %v4580 = vunpack.c.l.b16 %v3995
        %v4581 = vunpack.c.h.b16 %v3995
        %v4582 = vunpack.c.l.b16 %v3996
        %v4583 = vunpack.c.h.b16 %v3996
        %v4584 = vunpack.c.l.b16 %v3997
        %v4585 = vunpack.c.h.b16 %v3997
        %v4586 = vunpack.c.l.b16 %v3998
        %v4587 = vunpack.c.h.b16 %v3998
        %v4588 = vunpack.c.l.b16 %v3999
        %v4589 = vunpack.c.h.b16 %v3999
        %v4590 = vunpack.c.l.b16 %v4000
        %v4591 = vunpack.c.h.b16 %v4000
        %v4592 = vunpack.c.l.b16 %v4001
        %v4593 = vunpack.c.h.b16 %v4001
        %v4594 = vunpack.c.l.b16 %v4002
        %v4595 = vunpack.c.h.b16 %v4002
        %v4596 = vunpack.c.l.b16 %v4003
        %v4597 = vunpack.c.h.b16 %v4003
        %v4598 = vunpack.c.l.b16 %v4004
        %v4599 = vunpack.c.h.b16 %v4004
        %v4600 = vunpack.c.l.b16 %v4005
        %v4601 = vunpack.c.h.b16 %v4005
        %v4602 = vunpack.c.l.b16 %v4006
        %v4603 = vunpack.c.h.b16 %v4006
        %v4604 = vunpack.c.l.b16 %v4007
        %v4605 = vunpack.c.h.b16 %v4007
        %v4606 = vunpack.c.l.b16 %v4008
        %v4607 = vunpack.c.h.b16 %v4008
        %v4608 = vunpack.c.l.b16 %v4009
        %v4609 = vunpack.c.h.b16 %v4009
        %v4610 = vunpack.c.l.b16 %v4010
        %v4611 = vunpack.c.h.b16 %v4010
        %v4612 = vunpack.c.l.b16 %v4011
        %v4613 = vunpack.c.h.b16 %v4011
        %v4614 = vunpack.c.l.b16 %v4012
        %v4615 = vunpack.c.h.b16 %v4012
        %v4616 = vunpack.c.l.b16 %v4013
        %v4617 = vunpack.c.h.b16 %v4013
        %v4618 = vunpack.c.l.b16 %v4014
        %v4619 = vunpack.c.h.b16 %v4014
        %v4620 = vunpack.c.l.b16 %v4015
        %v4621 = vunpack.c.h.b16 %v4015
        %v4622 = vunpack.c.l.b16 %v4016
        %v4623 = vunpack.c.h.b16 %v4016
        %v4624 = vunpack.c.l.b16 %v4017
        %v4625 = vunpack.c.h.b16 %v4017
        %v4626 = vunpack.c.l.b16 %v4018
        %v4627 = vunpack.c.h.b16 %v4018
        %v4628 = vunpack.c.l.b16 %v4019
        %v4629 = vunpack.c.h.b16 %v4019
        %v4630 = vunpack.c.l.b16 %v4020
        %v4631 = vunpack.c.h.b16 %v4020
        %v4632 = vunpack.c.l.b16 %v4021
        %v4633 = vunpack.c.h.b16 %v4021
        %v4634 = vunpack.c.l.b16 %v4022
        %v4635 = vunpack.c.h.b16 %v4022
        %v4636 = vunpack.c.l.b16 %v4023
        %v4637 = vunpack.c.h.b16 %v4023
        %v4638 = vunpack.c.l.b16 %v4024
        %v4639 = vunpack.c.h.b16 %v4024
        %v4640 = vunpack.c.l.b16 %v4025
        %v4641 = vunpack.c.h.b16 %v4025
        %v4642 = vunpack.c.l.b16 %v4026
        %v4643 = vunpack.c.h.b16 %v4026
        %v4644 = vunpack.c.l.b16 %v4027
        %v4645 = vunpack.c.h.b16 %v4027
        %v4646 = vunpack.c.l.b16 %v4028
        %v4647 = vunpack.c.h.b16 %v4028
        %v4648 = vunpack.c.l.b16 %v4029
        %v4649 = vunpack.c.h.b16 %v4029
        %v4650 = vunpack.c.l.b16 %v4030
        %v4651 = vunpack.c.h.b16 %v4030
        %v4652 = vunpack.c.l.b16 %v4031
        %v4653 = vunpack.c.h.b16 %v4031
        %v4654 = vunpack.c.l.b16 %v4032
        %v4655 = vunpack.c.h.b16 %v4032
        %v4656 = vunpack.c.l.b16 %v4033
        %v4657 = vunpack.c.h.b16 %v4033
        %v4658 = vunpack.c.l.b16 %v4034
        %v4659 = vunpack.c.h.b16 %v4034
        %v4660 = vunpack.c.l.b16 %v4035
        %v4661 = vunpack.c.h.b16 %v4035
        %v4662 = vunpack.c.l.b16 %v4036
        %v4663 = vunpack.c.h.b16 %v4036
        %v4664 = vunpack.c.l.b16 %v4037
        %v4665 = vunpack.c.h.b16 %v4037
        %v4666 = vunpack.c.l.b16 %v4038
        %v4667 = vunpack.c.h.b16 %v4038
        %v4668 = vunpack.c.l.b16 %v4039
        %v4669 = vunpack.c.h.b16 %v4039
        %v4670 = vunpack.c.l.b16 %v4040
        %v4671 = vunpack.c.h.b16 %v4040
        %v4672 = vunpack.c.l.b16 %v4041
        %v4673 = vunpack.c.h.b16 %v4041
        %v4674 = vunpack.c.l.b16 %v4042
        %v4675 = vunpack.c.h.b16 %v4042
        %v4676 = vunpack.c.l.b16 %v4043
        %v4677 = vunpack.c.h.b16 %v4043
        %v4678 = vunpack.c.l.b16 %v4044
        %v4679 = vunpack.c.h.b16 %v4044
        %v4680 = vunpack.c.l.b16 %v4045
        %v4681 = vunpack.c.h.b16 %v4045
        %v4682 = vunpack.c.l.b16 %v4046
        %v4683 = vunpack.c.h.b16 %v4046
        %v4684 = vunpack.c.l.b16 %v4047
        %v4685 = vunpack.c.h.b16 %v4047
        %v4686 = vunpack.c.l.b16 %v4048
        %v4687 = vunpack.c.h.b16 %v4048
        %v4688 = vunpack.c.l.b16 %v4049
        %v4689 = vunpack.c.h.b16 %v4049
        %v4690 = vunpack.c.l.b16 %v4050
        %v4691 = vunpack.c.h.b16 %v4050
        %v4692 = vunpack.c.l.b16 %v4051
        %v4693 = vunpack.c.h.b16 %v4051
        %v4694 = vunpack.c.l.b16 %v4052
        %v4695 = vunpack.c.h.b16 %v4052
        %v4696 = vunpack.c.l.b16 %v4053
        %v4697 = vunpack.c.h.b16 %v4053
        %v4698 = vunpack.c.l.b16 %v4054
        %v4699 = vunpack.c.h.b16 %v4054
        %v4700 = vunpack.c.l.b16 %v4055
        %v4701 = vunpack.c.h.b16 %v4055
        %v4702 = vunpack.c.l.b16 %v4056
        %v4703 = vunpack.c.h.b16 %v4056
        %v4704 = vunpack.c.l.b16 %v4057
        %v4705 = vunpack.c.h.b16 %v4057
        %v4706 = vunpack.c.l.b16 %v4058
        %v4707 = vunpack.c.h.b16 %v4058
        %v4708 = vunpack.c.l.b16 %v4059
        %v4709 = vunpack.c.h.b16 %v4059
        %v4710 = vunpack.c.l.b16 %v4060
        %v4711 = vunpack.c.h.b16 %v4060
        %v4712 = vunpack.c.l.b16 %v4061
        %v4713 = vunpack.c.h.b16 %v4061
        %v4714 = vunpack.c.l.b16 %v4062
        %v4715 = vunpack.c.h.b16 %v4062
        %v4716 = vunpack.c.l.b16 %v4063
        %v4717 = vunpack.c.h.b16 %v4063
        %v4718 = vunpack.c.l.b16 %v4064
        %v4719 = vunpack.c.h.b16 %v4064
        %v4720 = vunpack.c.l.b16 %v4065
        %v4721 = vunpack.c.h.b16 %v4065
        %v4722 = vunpack.c.l.b16 %v4066
        %v4723 = vunpack.c.h.b16 %v4066
        %v4724 = vunpack.c.l.b16 %v4067
        %v4725 = vunpack.c.h.b16 %v4067
        %v4726 = vunpack.c.l.b16 %v4068
        %v4727 = vunpack.c.h.b16 %v4068
        %v4728 = vunpack.c.l.b16 %v4069
        %v4729 = vunpack.c.h.b16 %v4069
        %v4730 = vunpack.c.l.b16 %v4070
        %v4731 = vunpack.c.h.b16 %v4070
        %v4732 = vunpack.c.l.b16 %v4071
        %v4733 = vunpack.c.h.b16 %v4071
        %v4734 = vunpack.c.l.b16 %v4072
        %v4735 = vunpack.c.h.b16 %v4072
        %v4736 = vunpack.c.l.b16 %v4073
        %v4737 = vunpack.c.h.b16 %v4073
        %v4738 = vunpack.c.l.b16 %v4074
        %v4739 = vunpack.c.h.b16 %v4074
        %v4740 = vunpack.c.l.b16 %v4075
        %v4741 = vunpack.c.h.b16 %v4075
        %v4742 = vunpack.c.l.b16 %v4076
        %v4743 = vunpack.c.h.b16 %v4076
        %v4744 = vunpack.c.l.b16 %v4077
        %v4745 = vunpack.c.h.b16 %v4077
        %v4746 = vunpack.c.l.b16 %v4078
        %v4747 = vunpack.c.h.b16 %v4078
        %v4748 = vunpack.c.l.b16 %v4079
        %v4749 = vunpack.c.h.b16 %v4079
        %v4750 = vunpack.c.l.b16 %v4080
        %v4751 = vunpack.c.h.b16 %v4080
        %v4752 = vunpack.c.l.b16 %v4081
        %v4753 = vunpack.c.h.b16 %v4081
        %v4754 = vunpack.c.l.b16 %v4082
        %v4755 = vunpack.c.h.b16 %v4082
        %v4756 = vunpack.c.l.b16 %v4083
        %v4757 = vunpack.c.h.b16 %v4083
        %v4758 = vunpack.c.l.b16 %v4084
        %v4759 = vunpack.c.h.b16 %v4084
        %v4760 = vunpack.c.l.b16 %v4085
        %v4761 = vunpack.c.h.b16 %v4085
        %v4762 = vunpack.c.l.b16 %v4086
        %v4763 = vunpack.c.h.b16 %v4086
        %v4764 = vunpack.c.l.b16 %v4087
        %v4765 = vunpack.c.h.b16 %v4087
        %v4766 = vunpack.c.l.b16 %v4088
        %v4767 = vunpack.c.h.b16 %v4088
        %v4768 = vunpack.c.l.b16 %v4089
        %v4769 = vunpack.c.h.b16 %v4089
        %v4770 = vunpack.c.l.b16 %v4090
        %v4771 = vunpack.c.h.b16 %v4090
        %v4772 = vunpack.c.l.b16 %v4091
        %v4773 = vunpack.c.h.b16 %v4091
        %v4774 = vunpack.c.l.b16 %v4092
        %v4775 = vunpack.c.h.b16 %v4092
        %v4776 = vunpack.c.l.b16 %v4093
        %v4777 = vunpack.c.h.b16 %v4093
        %v4778 = vunpack.c.l.b16 %v4094
        %v4779 = vunpack.c.h.b16 %v4094
        %v4780 = vunpack.c.l.b16 %v4095
        %v4781 = vunpack.c.h.b16 %v4095
        %v4782 = vunpack.c.l.b16 %v4096
        %v4783 = vunpack.c.h.b16 %v4096
        %v4784 = vunpack.c.l.b16 %v4097
        %v4785 = vunpack.c.h.b16 %v4097
        %v4786 = vunpack.c.l.b16 %v4098
        %v4787 = vunpack.c.h.b16 %v4098
        %v4788 = vunpack.c.l.b16 %v4099
        %v4789 = vunpack.c.h.b16 %v4099
        %v4790 = vunpack.c.l.b16 %v4100
        %v4791 = vunpack.c.h.b16 %v4100
        %v4792 = vunpack.c.l.b16 %v4101
        %v4793 = vunpack.c.h.b16 %v4101
        %v4794 = vunpack.c.l.b16 %v4102
        %v4795 = vunpack.c.h.b16 %v4102
        %v4796 = vunpack.c.l.b16 %v4103
        %v4797 = vunpack.c.h.b16 %v4103
        %v4798 = vunpack.c.l.b16 %v4104
        %v4799 = vunpack.c.h.b16 %v4104
        %v4800 = vunpack.c.l.b16 %v4105
        %v4801 = vunpack.c.h.b16 %v4105
        %v4802 = vunpack.c.l.b16 %v4106
        %v4803 = vunpack.c.h.b16 %v4106
        %v4804 = vunpack.c.l.b16 %v4107
        %v4805 = vunpack.c.h.b16 %v4107
        %v4806 = vunpack.c.l.b16 %v4108
        %v4807 = vunpack.c.h.b16 %v4108
        %v4808 = vunpack.c.l.b16 %v4109
        %v4809 = vunpack.c.h.b16 %v4109
        %v4810 = vunpack.c.l.b16 %v4110
        %v4811 = vunpack.c.h.b16 %v4110
        %v4812 = vunpack.c.l.b16 %v4111
        %v4813 = vunpack.c.h.b16 %v4111
        %v4814 = vunpack.c.l.b16 %v4112
        %v4815 = vunpack.c.h.b16 %v4112
        %v4816 = vunpack.c.l.b16 %v4113
        %v4817 = vunpack.c.h.b16 %v4113
        %v4818 = vunpack.c.l.b16 %v4114
        %v4819 = vunpack.c.h.b16 %v4114
        %v4820 = vunpack.c.l.b16 %v4115
        %v4821 = vunpack.c.h.b16 %v4115
        %v4822 = vunpack.c.l.b16 %v4116
        %v4823 = vunpack.c.h.b16 %v4116
        %v4824 = vunpack.c.l.b16 %v4117
        %v4825 = vunpack.c.h.b16 %v4117
        %v4826 = vunpack.c.l.b16 %v4118
        %v4827 = vunpack.c.h.b16 %v4118
        %v4828 = vunpack.c.l.b16 %v4119
        %v4829 = vunpack.c.h.b16 %v4119
        %v4830 = vunpack.c.l.b16 %v4120
        %v4831 = vunpack.c.h.b16 %v4120
        %v4832 = vunpack.c.l.b16 %v4121
        %v4833 = vunpack.c.h.b16 %v4121
        %v4834 = vunpack.c.l.b16 %v4122
        %v4835 = vunpack.c.h.b16 %v4122
        %v4836 = vunpack.c.l.b16 %v4123
        %v4837 = vunpack.c.h.b16 %v4123
        %v4838 = vunpack.c.l.b16 %v4124
        %v4839 = vunpack.c.h.b16 %v4124
        %v4840 = vunpack.c.l.b16 %v4125
        %v4841 = vunpack.c.h.b16 %v4125
        %v4842 = vunpack.c.l.b16 %v4126
        %v4843 = vunpack.c.h.b16 %v4126
        %v4844 = vunpack.c.l.b16 %v4127
        %v4845 = vunpack.c.h.b16 %v4127
        %v4846 = vunpack.c.l.b16 %v4128
        %v4847 = vunpack.c.h.b16 %v4128
        %v4848 = vunpack.c.l.b16 %v4129
        %v4849 = vunpack.c.h.b16 %v4129
        %v4850 = vunpack.c.l.b16 %v4130
        %v4851 = vunpack.c.h.b16 %v4130
        %v4852 = vunpack.c.l.b16 %v4131
        %v4853 = vunpack.c.h.b16 %v4131
        %v4854 = vunpack.c.l.b16 %v4132
        %v4855 = vunpack.c.h.b16 %v4132
        %v4856 = vunpack.c.l.b16 %v4133
        %v4857 = vunpack.c.h.b16 %v4133
        %v4858 = vunpack.c.l.b16 %v4134
        %v4859 = vunpack.c.h.b16 %v4134
        %v4860 = vunpack.c.l.b16 %v4135
        %v4861 = vunpack.c.h.b16 %v4135
        %v4862 = vunpack.c.l.b16 %v4136
        %v4863 = vunpack.c.h.b16 %v4136
        %v4864 = vunpack.c.l.b16 %v4137
        %v4865 = vunpack.c.h.b16 %v4137
        %v4866 = vunpack.c.l.b16 %v4138
        %v4867 = vunpack.c.h.b16 %v4138
        %v4868 = vunpack.c.l.b16 %v4139
        %v4869 = vunpack.c.h.b16 %v4139
        %v4870 = vunpack.c.l.b16 %v4140
        %v4871 = vunpack.c.h.b16 %v4140
        %v4872 = vunpack.c.l.b16 %v4141
        %v4873 = vunpack.c.h.b16 %v4141
        %v4874 = vunpack.c.l.b16 %v4142
        %v4875 = vunpack.c.h.b16 %v4142
        %v4876 = vunpack.c.l.b16 %v4143
        %v4877 = vunpack.c.h.b16 %v4143
        %v4878 = vunpack.c.l.b16 %v4144
        %v4879 = vunpack.c.h.b16 %v4144
        %v4880 = vunpack.c.l.b16 %v4145
        %v4881 = vunpack.c.h.b16 %v4145
        %v4882 = vunpack.c.l.b16 %v4146
        %v4883 = vunpack.c.h.b16 %v4146
        %v4884 = vunpack.c.l.b16 %v4147
        %v4885 = vunpack.c.h.b16 %v4147
        %v4886 = vunpack.c.l.b16 %v4148
        %v4887 = vunpack.c.h.b16 %v4148
        %v4888 = vunpack.c.l.b16 %v4149
        %v4889 = vunpack.c.h.b16 %v4149
        %v4890 = vunpack.c.l.b16 %v4150
        %v4891 = vunpack.c.h.b16 %v4150
        %v4892 = vunpack.c.l.b16 %v4151
        %v4893 = vunpack.c.h.b16 %v4151
        %v4894 = vunpack.c.l.b16 %v4152
        %v4895 = vunpack.c.h.b16 %v4152
        %v4896 = vunpack.c.l.b16 %v4153
        %v4897 = vunpack.c.h.b16 %v4153
        %v4898 = vunpack.c.l.b16 %v4154
        %v4899 = vunpack.c.h.b16 %v4154
        %v4900 = vunpack.c.l.b16 %v4155
        %v4901 = vunpack.c.h.b16 %v4155
        %v4902 = vunpack.c.l.b16 %v4156
        %v4903 = vunpack.c.h.b16 %v4156
        %v4904 = vunpack.c.l.b16 %v4157
        %v4905 = vunpack.c.h.b16 %v4157
        %v4906 = vunpack.c.l.b16 %v4158
        %v4907 = vunpack.c.h.b16 %v4158
        %v4908 = vunpack.c.l.b16 %v4159
        %v4909 = vunpack.c.h.b16 %v4159
        %v4910 = vunpack.c.l.b16 %v4160
        %v4911 = vunpack.c.h.b16 %v4160
        %v4912 = vunpack.c.l.b16 %v4161
        %v4913 = vunpack.c.h.b16 %v4161
        %v4914 = vunpack.c.l.b16 %v4162
        %v4915 = vunpack.c.h.b16 %v4162
        %v4916 = vunpack.c.l.b16 %v4163
        %v4917 = vunpack.c.h.b16 %v4163
        %v4918 = vunpack.c.l.b16 %v4164
        %v4919 = vunpack.c.h.b16 %v4164
        %v4920 = vunpack.c.l.b16 %v4165
        %v4921 = vunpack.c.h.b16 %v4165
        %v4922 = vunpack.c.l.b16 %v4166
        %v4923 = vunpack.c.h.b16 %v4166
        %v4924 = vunpack.c.l.b16 %v4167
        %v4925 = vunpack.c.h.b16 %v4167
        %v4926 = vunpack.c.l.b16 %v4168
        %v4927 = vunpack.c.h.b16 %v4168
        %v4928 = vunpack.c.l.b16 %v4169
        %v4929 = vunpack.c.h.b16 %v4169
        %v4930 = vunpack.c.l.b16 %v4170
        %v4931 = vunpack.c.h.b16 %v4170
        %v4932 = vunpack.c.l.b16 %v4171
        %v4933 = vunpack.c.h.b16 %v4171
        %v4934 = vunpack.c.l.b16 %v4172
        %v4935 = vunpack.c.h.b16 %v4172
        %v4936 = vunpack.c.l.b16 %v4173
        %v4937 = vunpack.c.h.b16 %v4173
        %v4938 = vunpack.c.l.b16 %v4174
        %v4939 = vunpack.c.h.b16 %v4174
        %v4940 = vunpack.c.l.b16 %v4175
        %v4941 = vunpack.c.h.b16 %v4175
        %v4942 = vunpack.c.l.b16 %v4176
        %v4943 = vunpack.c.h.b16 %v4176
        %v4944 = vunpack.c.l.b16 %v4177
        %v4945 = vunpack.c.h.b16 %v4177
        %v4946 = vunpack.c.l.b16 %v4178
        %v4947 = vunpack.c.h.b16 %v4178
        %v4948 = vunpack.c.l.b16 %v4179
        %v4949 = vunpack.c.h.b16 %v4179
        %v4950 = vunpack.c.l.b16 %v4180
        %v4951 = vunpack.c.h.b16 %v4180
        %v4952 = vunpack.c.l.b16 %v4181
        %v4953 = vunpack.c.h.b16 %v4181
        %v4954 = vunpack.c.l.b16 %v4182
        %v4955 = vunpack.c.h.b16 %v4182
        %v4956 = vunpack.c.l.b16 %v4183
        %v4957 = vunpack.c.h.b16 %v4183
        %v4958 = vunpack.c.l.b16 %v4184
        %v4959 = vunpack.c.h.b16 %v4184
        %v4960 = vunpack.c.l.b16 %v4185
        %v4961 = vunpack.c.h.b16 %v4185
        %v4962 = vunpack.c.l.b16 %v4186
        %v4963 = vunpack.c.h.b16 %v4186
        %v4964 = vunpack.c.l.b16 %v4187
        %v4965 = vunpack.c.h.b16 %v4187
        %v4966 = vunpack.c.l.b16 %v4188
        %v4967 = vunpack.c.h.b16 %v4188
        %v4968 = vunpack.c.l.b16 %v4189
        %v4969 = vunpack.c.h.b16 %v4189
        %v4970 = vunpack.c.l.b16 %v4190
        %v4971 = vunpack.c.h.b16 %v4190
        %v4972 = vunpack.c.l.b16 %v4191
        %v4973 = vunpack.c.h.b16 %v4191
        %v4974 = vunpack.c.l.b16 %v4192
        %v4975 = vunpack.c.h.b16 %v4192
        %v4976 = vunpack.c.l.b16 %v4193
        %v4977 = vunpack.c.h.b16 %v4193
        %v4978 = vunpack.c.l.b16 %v4194
        %v4979 = vunpack.c.h.b16 %v4194
        %v4980 = vunpack.c.l.b16 %v4195
        %v4981 = vunpack.c.h.b16 %v4195
        %v4982 = vunpack.c.l.b16 %v4196
        %v4983 = vunpack.c.h.b16 %v4196
        %v4984 = vunpack.c.l.b16 %v4197
        %v4985 = vunpack.c.h.b16 %v4197
        %v4986 = vunpack.c.l.b16 %v4198
        %v4987 = vunpack.c.h.b16 %v4198
        %v4988 = vunpack.c.l.b16 %v4199
        %v4989 = vunpack.c.h.b16 %v4199
        %v4990 = vunpack.c.l.b16 %v4200
        %v4991 = vunpack.c.h.b16 %v4200
        %v4992 = vunpack.c.l.b16 %v4201
        %v4993 = vunpack.c.h.b16 %v4201
        %v4994 = vunpack.c.l.b16 %v4202
        %v4995 = vunpack.c.h.b16 %v4202
        %v4996 = vunpack.c.l.b16 %v4203
        %v4997 = vunpack.c.h.b16 %v4203
        %v4998 = vunpack.c.l.b16 %v4204
        %v4999 = vunpack.c.h.b16 %v4204
        %v5000 = vunpack.c.l.b16 %v4205
        %v5001 = vunpack.c.h.b16 %v4205
        %v5002 = vunpack.c.l.b16 %v4206
        %v5003 = vunpack.c.h.b16 %v4206
        %v5004 = vunpack.c.l.b16 %v4207
        %v5005 = vunpack.c.h.b16 %v4207
        %v5006 = vunpack.c.l.b16 %v4208
        %v5007 = vunpack.c.h.b16 %v4208
        %v5008 = vunpack.c.l.b16 %v4209
        %v5009 = vunpack.c.h.b16 %v4209
        %v5010 = vunpack.c.l.b16 %v4210
        %v5011 = vunpack.c.h.b16 %v4210
        %v5012 = vunpack.c.l.b16 %v4211
        %v5013 = vunpack.c.h.b16 %v4211
        %v5014 = vunpack.c.l.b16 %v4212
        %v5015 = vunpack.c.h.b16 %v4212
        %v5016 = vunpack.c.l.b16 %v4213
        %v5017 = vunpack.c.h.b16 %v4213
        %v5018 = vunpack.c.l.b16 %v4214
        %v5019 = vunpack.c.h.b16 %v4214
        %v5020 = vunpack.c.l.b16 %v4215
        %v5021 = vunpack.c.h.b16 %v4215
        %v5022 = vunpack.c.l.b16 %v4216
        %v5023 = vunpack.c.h.b16 %v4216
        %v5024 = vunpack.c.l.b16 %v4217
        %v5025 = vunpack.c.h.b16 %v4217
        %v5026 = vunpack.c.l.b16 %v4218
        %v5027 = vunpack.c.h.b16 %v4218
        %v5028 = vunpack.c.l.b16 %v4219
        %v5029 = vunpack.c.h.b16 %v4219
        %v5030 = vunpack.c.l.b16 %v4220
        %v5031 = vunpack.c.h.b16 %v4220
        %v5032 = vunpack.c.l.b16 %v4221
        %v5033 = vunpack.c.h.b16 %v4221
        %v5034 = vunpack.c.l.b16 %v4222
        %v5035 = vunpack.c.h.b16 %v4222
        %v5036 = vunpack.c.l.b16 %v4223
        %v5037 = vunpack.c.h.b16 %v4223
        %v5038 = vunpack.c.l.b16 %v4224
        %v5039 = vunpack.c.h.b16 %v4224
        %v5040 = vunpack.c.l.b16 %v4225
        %v5041 = vunpack.c.h.b16 %v4225
        %v5042 = vunpack.c.l.b16 %v4226
        %v5043 = vunpack.c.h.b16 %v4226
        %v5044 = vunpack.c.l.b16 %v4227
        %v5045 = vunpack.c.h.b16 %v4227
        %v5046 = vunpack.c.l.b16 %v4228
        %v5047 = vunpack.c.h.b16 %v4228
        %v5048 = vunpack.c.l.b16 %v4229
        %v5049 = vunpack.c.h.b16 %v4229
        %v5050 = vunpack.c.l.b16 %v4230
        %v5051 = vunpack.c.h.b16 %v4230
        %v5052 = vunpack.c.l.b16 %v4231
        %v5053 = vunpack.c.h.b16 %v4231
        %v5054 = vunpack.c.l.b16 %v4232
        %v5055 = vunpack.c.h.b16 %v4232
        %v5056 = vunpack.c.l.b16 %v4233
        %v5057 = vunpack.c.h.b16 %v4233
        %v5058 = vunpack.c.l.b16 %v4234
        %v5059 = vunpack.c.h.b16 %v4234
        %v5060 = vunpack.c.l.b16 %v4235
        %v5061 = vunpack.c.h.b16 %v4235
        %v5062 = vunpack.c.l.b16 %v4236
        %v5063 = vunpack.c.h.b16 %v4236
        %v5064 = vunpack.c.l.b16 %v4237
        %v5065 = vunpack.c.h.b16 %v4237
        %v5066 = vunpack.c.l.b16 %v4238
        %v5067 = vunpack.c.h.b16 %v4238
        %v5068 = vunpack.c.l.b16 %v4239
        %v5069 = vunpack.c.h.b16 %v4239
        %v5070 = vunpack.c.l.b16 %v4240
        %v5071 = vunpack.c.h.b16 %v4240
        %v5072 = vunpack.c.l.b16 %v4241
        %v5073 = vunpack.c.h.b16 %v4241
        %v5074 = vpack.c.b16 %v4570, %v4562
        %v5075 = vpack.c.b16 %v4571, %v4563
        %v5076 = vpack.c.b16 %v4572, %v4564
        %v5077 = vpack.c.b16 %v4573, %v4565
        %v5078 = vpack.c.b16 %v4574, %v4566
        %v5079 = vpack.c.b16 %v4575, %v4567
        %v5080 = vpack.c.b16 %v4576, %v4568
        %v5081 = vpack.c.b16 %v4577, %v4569
        %v5082 = vpack.c.b16 %v4586, %v4578
        %v5083 = vpack.c.b16 %v4587, %v4579
        %v5084 = vpack.c.b16 %v4588, %v4580
        %v5085 = vpack.c.b16 %v4589, %v4581
        %v5086 = vpack.c.b16 %v4590, %v4582
        %v5087 = vpack.c.b16 %v4591, %v4583
        %v5088 = vpack.c.b16 %v4592, %v4584
        %v5089 = vpack.c.b16 %v4593, %v4585
        %v5090 = vpack.c.b16 %v4602, %v4594
        %v5091 = vpack.c.b16 %v4603, %v4595
        %v5092 = vpack.c.b16 %v4604, %v4596
        %v5093 = vpack.c.b16 %v4605, %v4597
        %v5094 = vpack.c.b16 %v4606, %v4598
        %v5095 = vpack.c.b16 %v4607, %v4599
        %v5096 = vpack.c.b16 %v4608, %v4600
        %v5097 = vpack.c.b16 %v4609, %v4601
        %v5098 = vpack.c.b16 %v4618, %v4610
        %v5099 = vpack.c.b16 %v4619, %v4611
        %v5100 = vpack.c.b16 %v4620, %v4612
        %v5101 = vpack.c.b16 %v4621, %v4613
        %v5102 = vpack.c.b16 %v4622, %v4614
        %v5103 = vpack.c.b16 %v4623, %v4615
        %v5104 = vpack.c.b16 %v4624, %v4616
        %v5105 = vpack.c.b16 %v4625, %v4617
        %v5106 = vpack.c.b16 %v4634, %v4626
        %v5107 = vpack.c.b16 %v4635, %v4627
        %v5108 = vpack.c.b16 %v4636, %v4628
        %v5109 = vpack.c.b16 %v4637, %v4629
        %v5110 = vpack.c.b16 %v4638, %v4630
        %v5111 = vpack.c.b16 %v4639, %v4631
        %v5112 = vpack.c.b16 %v4640, %v4632
        %v5113 = vpack.c.b16 %v4641, %v4633
        %v5114 = vpack.c.b16 %v4650, %v4642
        %v5115 = vpack.c.b16 %v4651, %v4643
        %v5116 = vpack.c.b16 %v4652, %v4644
        %v5117 = vpack.c.b16 %v4653, %v4645
        %v5118 = vpack.c.b16 %v4654, %v4646
        %v5119 = vpack.c.b16 %v4655, %v4647
        %v5120 = vpack.c.b16 %v4656, %v4648
        %v5121 = vpack.c.b16 %v4657, %v4649
        %v5122 = vpack.c.b16 %v4666, %v4658
        %v5123 = vpack.c.b16 %v4667, %v4659
        %v5124 = vpack.c.b16 %v4668, %v4660
        %v5125 = vpack.c.b16 %v4669, %v4661
        %v5126 = vpack.c.b16 %v4670, %v4662
        %v5127 = vpack.c.b16 %v4671, %v4663
        %v5128 = vpack.c.b16 %v4672, %v4664
        %v5129 = vpack.c.b16 %v4673, %v4665
        %v5130 = vpack.c.b16 %v4682, %v4674
        %v5131 = vpack.c.b16 %v4683, %v4675
        %v5132 = vpack.c.b16 %v4684, %v4676
        %v5133 = vpack.c.b16 %v4685, %v4677
        %v5134 = vpack.c.b16 %v4686, %v4678
        %v5135 = vpack.c.b16 %v4687, %v4679
        %v5136 = vpack.c.b16 %v4688, %v4680
        %v5137 = vpack.c.b16 %v4689, %v4681
        %v5138 = vpack.c.b16 %v4698, %v4690
        %v5139 = vpack.c.b16 %v4699, %v4691
        %v5140 = vpack.c.b16 %v4700, %v4692
        %v5141 = vpack.c.b16 %v4701, %v4693
        %v5142 = vpack.c.b16 %v4702, %v4694
        %v5143 = vpack.c.b16 %v4703, %v4695
        %v5144 = vpack.c.b16 %v4704, %v4696
        %v5145 = vpack.c.b16 %v4705, %v4697
        %v5146 = vpack.c.b16 %v4714, %v4706
        %v5147 = vpack.c.b16 %v4715, %v4707
        %v5148 = vpack.c.b16 %v4716, %v4708
        %v5149 = vpack.c.b16 %v4717, %v4709
        %v5150 = vpack.c.b16 %v4718, %v4710
        %v5151 = vpack.c.b16 %v4719, %v4711
        %v5152 = vpack.c.b16 %v4720, %v4712
        %v5153 = vpack.c.b16 %v4721, %v4713
        %v5154 = vpack.c.b16 %v4730, %v4722
        %v5155 = vpack.c.b16 %v4731, %v4723
        %v5156 = vpack.c.b16 %v4732, %v4724
        %v5157 = vpack.c.b16 %v4733, %v4725
        %v5158 = vpack.c.b16 %v4734, %v4726
        %v5159 = vpack.c.b16 %v4735, %v4727
        %v5160 = vpack.c.b16 %v4736, %v4728
        %v5161 = vpack.c.b16 %v4737, %v4729
        %v5162 = vpack.c.b16 %v4746, %v4738
        %v5163 = vpack.c.b16 %v4747, %v4739
        %v5164 = vpack.c.b16 %v4748, %v4740
        %v5165 = vpack.c.b16 %v4749, %v4741
        %v5166 = vpack.c.b16 %v4750, %v4742
        %v5167 = vpack.c.b16 %v4751, %v4743
        %v5168 = vpack.c.b16 %v4752, %v4744
        %v5169 = vpack.c.b16 %v4753, %v4745
        %v5170 = vpack.c.b16 %v4762, %v4754
        %v5171 = vpack.c.b16 %v4763, %v4755
        %v5172 = vpack.c.b16 %v4764, %v4756
        %v5173 = vpack.c.b16 %v4765, %v4757
        %v5174 = vpack.c.b16 %v4766, %v4758
        %v5175 = vpack.c.b16 %v4767, %v4759
        %v5176 = vpack.c.b16 %v4768, %v4760
        %v5177 = vpack.c.b16 %v4769, %v4761
        %v5178 = vpack.c.b16 %v4778, %v4770
        %v5179 = vpack.c.b16 %v4779, %v4771
        %v5180 = vpack.c.b16 %v4780, %v4772
        %v5181 = vpack.c.b16 %v4781, %v4773
        %v5182 = vpack.c.b16 %v4782, %v4774
        %v5183 = vpack.c.b16 %v4783, %v4775
        %v5184 = vpack.c.b16 %v4784, %v4776
        %v5185 = vpack.c.b16 %v4785, %v4777
        %v5186 = vpack.c.b16 %v4794, %v4786
        %v5187 = vpack.c.b16 %v4795, %v4787
        %v5188 = vpack.c.b16 %v4796, %v4788
        %v5189 = vpack.c.b16 %v4797, %v4789
        %v5190 = vpack.c.b16 %v4798, %v4790
        %v5191 = vpack.c.b16 %v4799, %v4791
        %v5192 = vpack.c.b16 %v4800, %v4792
        %v5193 = vpack.c.b16 %v4801, %v4793
        %v5194 = vpack.c.b16 %v4810, %v4802
        %v5195 = vpack.c.b16 %v4811, %v4803
        %v5196 = vpack.c.b16 %v4812, %v4804
        %v5197 = vpack.c.b16 %v4813, %v4805
        %v5198 = vpack.c.b16 %v4814, %v4806
        %v5199 = vpack.c.b16 %v4815, %v4807
        %v5200 = vpack.c.b16 %v4816, %v4808
        %v5201 = vpack.c.b16 %v4817, %v4809
        %v5202 = vpack.c.b16 %v4826, %v4818
        %v5203 = vpack.c.b16 %v4827, %v4819
        %v5204 = vpack.c.b16 %v4828, %v4820
        %v5205 = vpack.c.b16 %v4829, %v4821
        %v5206 = vpack.c.b16 %v4830, %v4822
        %v5207 = vpack.c.b16 %v4831, %v4823
        %v5208 = vpack.c.b16 %v4832, %v4824
        %v5209 = vpack.c.b16 %v4833, %v4825
        %v5210 = vpack.c.b16 %v4842, %v4834
        %v5211 = vpack.c.b16 %v4843, %v4835
        %v5212 = vpack.c.b16 %v4844, %v4836
        %v5213 = vpack.c.b16 %v4845, %v4837
        %v5214 = vpack.c.b16 %v4846, %v4838
        %v5215 = vpack.c.b16 %v4847, %v4839
        %v5216 = vpack.c.b16 %v4848, %v4840
        %v5217 = vpack.c.b16 %v4849, %v4841
        %v5218 = vpack.c.b16 %v4858, %v4850
        %v5219 = vpack.c.b16 %v4859, %v4851
        %v5220 = vpack.c.b16 %v4860, %v4852
        %v5221 = vpack.c.b16 %v4861, %v4853
        %v5222 = vpack.c.b16 %v4862, %v4854
        %v5223 = vpack.c.b16 %v4863, %v4855
        %v5224 = vpack.c.b16 %v4864, %v4856
        %v5225 = vpack.c.b16 %v4865, %v4857
        %v5226 = vpack.c.b16 %v4874, %v4866
        %v5227 = vpack.c.b16 %v4875, %v4867
        %v5228 = vpack.c.b16 %v4876, %v4868
        %v5229 = vpack.c.b16 %v4877, %v4869
        %v5230 = vpack.c.b16 %v4878, %v4870
        %v5231 = vpack.c.b16 %v4879, %v4871
        %v5232 = vpack.c.b16 %v4880, %v4872
        %v5233 = vpack.c.b16 %v4881, %v4873
        %v5234 = vpack.c.b16 %v4890, %v4882
        %v5235 = vpack.c.b16 %v4891, %v4883
        %v5236 = vpack.c.b16 %v4892, %v4884
        %v5237 = vpack.c.b16 %v4893, %v4885
        %v5238 = vpack.c.b16 %v4894, %v4886
        %v5239 = vpack.c.b16 %v4895, %v4887
        %v5240 = vpack.c.b16 %v4896, %v4888
        %v5241 = vpack.c.b16 %v4897, %v4889
        %v5242 = vpack.c.b16 %v4906, %v4898
        %v5243 = vpack.c.b16 %v4907, %v4899
        %v5244 = vpack.c.b16 %v4908, %v4900
        %v5245 = vpack.c.b16 %v4909, %v4901
        %v5246 = vpack.c.b16 %v4910, %v4902
        %v5247 = vpack.c.b16 %v4911, %v4903
        %v5248 = vpack.c.b16 %v4912, %v4904
        %v5249 = vpack.c.b16 %v4913, %v4905
        %v5250 = vpack.c.b16 %v4922, %v4914
        %v5251 = vpack.c.b16 %v4923, %v4915
        %v5252 = vpack.c.b16 %v4924, %v4916
        %v5253 = vpack.c.b16 %v4925, %v4917
        %v5254 = vpack.c.b16 %v4926, %v4918
        %v5255 = vpack.c.b16 %v4927, %v4919
        %v5256 = vpack.c.b16 %v4928, %v4920
        %v5257 = vpack.c.b16 %v4929, %v4921
        %v5258 = vpack.c.b16 %v4938, %v4930
        %v5259 = vpack.c.b16 %v4939, %v4931
        %v5260 = vpack.c.b16 %v4940, %v4932
        %v5261 = vpack.c.b16 %v4941, %v4933
        %v5262 = vpack.c.b16 %v4942, %v4934
        %v5263 = vpack.c.b16 %v4943, %v4935
        %v5264 = vpack.c.b16 %v4944, %v4936
        %v5265 = vpack.c.b16 %v4945, %v4937
        %v5266 = vpack.c.b16 %v4954, %v4946
        %v5267 = vpack.c.b16 %v4955, %v4947
        %v5268 = vpack.c.b16 %v4956, %v4948
        %v5269 = vpack.c.b16 %v4957, %v4949
        %v5270 = vpack.c.b16 %v4958, %v4950
        %v5271 = vpack.c.b16 %v4959, %v4951
        %v5272 = vpack.c.b16 %v4960, %v4952
        %v5273 = vpack.c.b16 %v4961, %v4953
        %v5274 = vpack.c.b16 %v4970, %v4962
        %v5275 = vpack.c.b16 %v4971, %v4963
        %v5276 = vpack.c.b16 %v4972, %v4964
        %v5277 = vpack.c.b16 %v4973, %v4965
        %v5278 = vpack.c.b16 %v4974, %v4966
        %v5279 = vpack.c.b16 %v4975, %v4967
        %v5280 = vpack.c.b16 %v4976, %v4968
        %v5281 = vpack.c.b16 %v4977, %v4969
        %v5282 = vpack.c.b16 %v4986, %v4978
        %v5283 = vpack.c.b16 %v4987, %v4979
        %v5284 = vpack.c.b16 %v4988, %v4980
        %v5285 = vpack.c.b16 %v4989, %v4981
        %v5286 = vpack.c.b16 %v4990, %v4982
        %v5287 = vpack.c.b16 %v4991, %v4983
        %v5288 = vpack.c.b16 %v4992, %v4984
        %v5289 = vpack.c.b16 %v4993, %v4985
        %v5290 = vpack.c.b16 %v5002, %v4994
        %v5291 = vpack.c.b16 %v5003, %v4995
        %v5292 = vpack.c.b16 %v5004, %v4996
        %v5293 = vpack.c.b16 %v5005, %v4997
        %v5294 = vpack.c.b16 %v5006, %v4998
        %v5295 = vpack.c.b16 %v5007, %v4999
        %v5296 = vpack.c.b16 %v5008, %v5000
        %v5297 = vpack.c.b16 %v5009, %v5001
        %v5298 = vpack.c.b16 %v5018, %v5010
        %v5299 = vpack.c.b16 %v5019, %v5011
        %v5300 = vpack.c.b16 %v5020, %v5012
        %v5301 = vpack.c.b16 %v5021, %v5013
        %v5302 = vpack.c.b16 %v5022, %v5014
        %v5303 = vpack.c.b16 %v5023, %v5015
        %v5304 = vpack.c.b16 %v5024, %v5016
        %v5305 = vpack.c.b16 %v5025, %v5017
        %v5306 = vpack.c.b16 %v5034, %v5026
        %v5307 = vpack.c.b16 %v5035, %v5027
        %v5308 = vpack.c.b16 %v5036, %v5028
        %v5309 = vpack.c.b16 %v5037, %v5029
        %v5310 = vpack.c.b16 %v5038, %v5030
        %v5311 = vpack.c.b16 %v5039, %v5031
        %v5312 = vpack.c.b16 %v5040, %v5032
        %v5313 = vpack.c.b16 %v5041, %v5033
        %v5314 = vpack.c.b16 %v5050, %v5042
        %v5315 = vpack.c.b16 %v5051, %v5043
        %v5316 = vpack.c.b16 %v5052, %v5044
        %v5317 = vpack.c.b16 %v5053, %v5045
        %v5318 = vpack.c.b16 %v5054, %v5046
        %v5319 = vpack.c.b16 %v5055, %v5047
        %v5320 = vpack.c.b16 %v5056, %v5048
        %v5321 = vpack.c.b16 %v5057, %v5049
        %v5322 = vpack.c.b16 %v5066, %v5058
        %v5323 = vpack.c.b16 %v5067, %v5059
        %v5324 = vpack.c.b16 %v5068, %v5060
        %v5325 = vpack.c.b16 %v5069, %v5061
        %v5326 = vpack.c.b16 %v5070, %v5062
        %v5327 = vpack.c.b16 %v5071, %v5063
        %v5328 = vpack.c.b16 %v5072, %v5064
        %v5329 = vpack.c.b16 %v5073, %v5065
        %5586 = vmatprep.subr.bf16.mxu0 0
        %5587 = vmatpush1.bf16.msra.mxu0 %v3929
        %5588 = vmatprep.subr.bf16.mxu0 0
        %5589 = vmatpush1.bf16.msra.mxu0 %v3928
        %5590 = vmatprep.subr.bf16.mxu0 0
        %5591 = vmatpush1.bf16.msra.mxu0 %v3927
        %5592 = vmatprep.subr.bf16.mxu0 0
        %5593 = vmatpush1.bf16.msra.mxu0 %v3926
        %5594 = vmatprep.subr.bf16.mxu0 0
        %5595 = vmatpush1.bf16.msra.mxu0 %v3925
        %5596 = vmatprep.subr.bf16.mxu0 0
        %5597 = vmatpush1.bf16.msra.mxu0 %v3924
        %5598 = vmatprep.subr.bf16.mxu0 0
        %5599 = vmatpush1.bf16.msra.mxu0 %v3923
        %5600 = vmatprep.subr.bf16.mxu0 0
        %5601 = vmatpush1.bf16.msra.mxu0 %v3922
        %5602 = vmatprep.subr.bf16.mxu0 0
        %5603 = vmatpush2.bf16.msra.mxu0 %v3937
        %5604 = vmatprep.subr.bf16.mxu0 0
        %5605 = vmatpush2.bf16.msra.mxu0 %v3936
        %5606 = vmatprep.subr.bf16.mxu0 0
        %5607 = vmatpush2.bf16.msra.mxu0 %v3935
        %5608 = vmatprep.subr.bf16.mxu0 0
        %5609 = vmatpush2.bf16.msra.mxu0 %v3934
        %5610 = vmatprep.subr.bf16.mxu0 0
        %5611 = vmatpush2.bf16.msra.mxu0 %v3933
        %5612 = vmatprep.subr.bf16.mxu0 0
        %5613 = vmatpush2.bf16.msra.mxu0 %v3932
        %5614 = vmatprep.subr.bf16.mxu0 0
        %5615 = vmatpush2.bf16.msra.mxu0 %v3931
        %5616 = vmatprep.subr.bf16.mxu0 0
        %5617 = vmatpush2.bf16.msra.mxu0 %v3930
        %5618 = vmatprep.mubr.bf16.mxu0 %v5075
        %5619 = vmatmul.mubr.bf16.gmra.mxu0 %v5074
        %v5620 = vpop.f32.mrf.mxu0
        %v5621 = vadd.f32 %v4242, %v5620
        %v5622 = vpop.f32.mrf.mxu0
        %v5623 = vpop.f32.mrf.mxu0
        %v5624 = vadd.f32 %v4243, %v5623
        %v5625 = vpop.f32.mrf.mxu0
        %5626 = vmatprep.mubr.bf16.mxu0 %v5083
        %5627 = vmatmul.mubr.bf16.gmra.mxu0 %v5082
        %v5628 = vpop.f32.mrf.mxu0
        %v5629 = vadd.f32 %v4244, %v5628
        %v5630 = vpop.f32.mrf.mxu0
        %v5631 = vpop.f32.mrf.mxu0
        %v5632 = vadd.f32 %v4245, %v5631
        %v5633 = vpop.f32.mrf.mxu0
        %5634 = vmatprep.mubr.bf16.mxu0 %v5091
        %5635 = vmatmul.mubr.bf16.gmra.mxu0 %v5090
        %v5636 = vpop.f32.mrf.mxu0
        %v5637 = vadd.f32 %v4246, %v5636
        %v5638 = vpop.f32.mrf.mxu0
        %v5639 = vpop.f32.mrf.mxu0
        %v5640 = vadd.f32 %v4247, %v5639
        %v5641 = vpop.f32.mrf.mxu0
        %5642 = vmatprep.mubr.bf16.mxu0 %v5099
        %5643 = vmatmul.mubr.bf16.gmra.mxu0 %v5098
        %v5644 = vpop.f32.mrf.mxu0
        %v5645 = vadd.f32 %v4248, %v5644
        %v5646 = vpop.f32.mrf.mxu0
        %v5647 = vpop.f32.mrf.mxu0
        %v5648 = vadd.f32 %v4249, %v5647
        %v5649 = vpop.f32.mrf.mxu0
        %5650 = vmatprep.mubr.bf16.mxu0 %v5107
        %5651 = vmatmul.mubr.bf16.gmra.mxu0 %v5106
        %v5652 = vpop.f32.mrf.mxu0
        %v5653 = vadd.f32 %v4250, %v5652
        %v5654 = vpop.f32.mrf.mxu0
        %v5655 = vpop.f32.mrf.mxu0
        %v5656 = vadd.f32 %v4251, %v5655
        %v5657 = vpop.f32.mrf.mxu0
        %5658 = vmatprep.mubr.bf16.mxu0 %v5115
        %5659 = vmatmul.mubr.bf16.gmra.mxu0 %v5114
        %v5660 = vpop.f32.mrf.mxu0
        %v5661 = vadd.f32 %v4252, %v5660
        %v5662 = vpop.f32.mrf.mxu0
        %v5663 = vpop.f32.mrf.mxu0
        %v5664 = vadd.f32 %v4253, %v5663
        %v5665 = vpop.f32.mrf.mxu0
        %5666 = vmatprep.mubr.bf16.mxu0 %v5123
        %5667 = vmatmul.mubr.bf16.gmra.mxu0 %v5122
        %v5668 = vpop.f32.mrf.mxu0
        %v5669 = vadd.f32 %v4254, %v5668
        %v5670 = vpop.f32.mrf.mxu0
        %v5671 = vpop.f32.mrf.mxu0
        %v5672 = vadd.f32 %v4255, %v5671
        %v5673 = vpop.f32.mrf.mxu0
        %5674 = vmatprep.mubr.bf16.mxu0 %v5131
        %5675 = vmatmul.mubr.bf16.gmra.mxu0 %v5130
        %v5676 = vpop.f32.mrf.mxu0
        %v5677 = vadd.f32 %v4256, %v5676
        %v5678 = vpop.f32.mrf.mxu0
        %v5679 = vpop.f32.mrf.mxu0
        %v5680 = vadd.f32 %v4257, %v5679
        %v5681 = vpop.f32.mrf.mxu0
        %5682 = vmatprep.mubr.bf16.mxu0 %v5139
        %5683 = vmatmul.mubr.bf16.gmra.mxu0 %v5138
        %v5684 = vpop.f32.mrf.mxu0
        %v5685 = vadd.f32 %v4258, %v5684
        %v5686 = vpop.f32.mrf.mxu0
        %v5687 = vpop.f32.mrf.mxu0
        %v5688 = vadd.f32 %v4259, %v5687
        %v5689 = vpop.f32.mrf.mxu0
        %5690 = vmatprep.mubr.bf16.mxu0 %v5147
        %5691 = vmatmul.mubr.bf16.gmra.mxu0 %v5146
        %v5692 = vpop.f32.mrf.mxu0
        %v5693 = vadd.f32 %v4260, %v5692
        %v5694 = vpop.f32.mrf.mxu0
        %v5695 = vpop.f32.mrf.mxu0
        %v5696 = vadd.f32 %v4261, %v5695
        %v5697 = vpop.f32.mrf.mxu0
        %5698 = vmatprep.mubr.bf16.mxu0 %v5155
        %5699 = vmatmul.mubr.bf16.gmra.mxu0 %v5154
        %v5700 = vpop.f32.mrf.mxu0
        %v5701 = vadd.f32 %v4262, %v5700
        %v5702 = vpop.f32.mrf.mxu0
        %v5703 = vpop.f32.mrf.mxu0
        %v5704 = vadd.f32 %v4263, %v5703
        %v5705 = vpop.f32.mrf.mxu0
        %5706 = vmatprep.mubr.bf16.mxu0 %v5163
        %5707 = vmatmul.mubr.bf16.gmra.mxu0 %v5162
        %v5708 = vpop.f32.mrf.mxu0
        %v5709 = vadd.f32 %v4264, %v5708
        %v5710 = vpop.f32.mrf.mxu0
        %v5711 = vpop.f32.mrf.mxu0
        %v5712 = vadd.f32 %v4265, %v5711
        %v5713 = vpop.f32.mrf.mxu0
        %5714 = vmatprep.mubr.bf16.mxu0 %v5171
        %5715 = vmatmul.mubr.bf16.gmra.mxu0 %v5170
        %v5716 = vpop.f32.mrf.mxu0
        %v5717 = vadd.f32 %v4266, %v5716
        %v5718 = vpop.f32.mrf.mxu0
        %v5719 = vpop.f32.mrf.mxu0
        %v5720 = vadd.f32 %v4267, %v5719
        %v5721 = vpop.f32.mrf.mxu0
        %5722 = vmatprep.mubr.bf16.mxu0 %v5179
        %5723 = vmatmul.mubr.bf16.gmra.mxu0 %v5178
        %v5724 = vpop.f32.mrf.mxu0
        %v5725 = vadd.f32 %v4268, %v5724
        %v5726 = vpop.f32.mrf.mxu0
        %v5727 = vpop.f32.mrf.mxu0
        %v5728 = vadd.f32 %v4269, %v5727
        %v5729 = vpop.f32.mrf.mxu0
        %5730 = vmatprep.mubr.bf16.mxu0 %v5187
        %5731 = vmatmul.mubr.bf16.gmra.mxu0 %v5186
        %v5732 = vpop.f32.mrf.mxu0
        %v5733 = vadd.f32 %v4270, %v5732
        %v5734 = vpop.f32.mrf.mxu0
        %v5735 = vpop.f32.mrf.mxu0
        %v5736 = vadd.f32 %v4271, %v5735
        %v5737 = vpop.f32.mrf.mxu0
        %5738 = vmatprep.mubr.bf16.mxu0 %v5195
        %5739 = vmatmul.mubr.bf16.gmra.mxu0 %v5194
        %v5740 = vpop.f32.mrf.mxu0
        %v5741 = vadd.f32 %v4272, %v5740
        %v5742 = vpop.f32.mrf.mxu0
        %v5743 = vpop.f32.mrf.mxu0
        %v5744 = vadd.f32 %v4273, %v5743
        %v5745 = vpop.f32.mrf.mxu0
        %5746 = vmatprep.mubr.bf16.mxu0 %v5203
        %5747 = vmatmul.mubr.bf16.gmra.mxu0 %v5202
        %v5748 = vpop.f32.mrf.mxu0
        %v5749 = vadd.f32 %v4274, %v5748
        %v5750 = vpop.f32.mrf.mxu0
        %v5751 = vpop.f32.mrf.mxu0
        %v5752 = vadd.f32 %v4275, %v5751
        %v5753 = vpop.f32.mrf.mxu0
        %5754 = vmatprep.mubr.bf16.mxu0 %v5211
        %5755 = vmatmul.mubr.bf16.gmra.mxu0 %v5210
        %v5756 = vpop.f32.mrf.mxu0
        %v5757 = vadd.f32 %v4276, %v5756
        %v5758 = vpop.f32.mrf.mxu0
        %v5759 = vpop.f32.mrf.mxu0
        %v5760 = vadd.f32 %v4277, %v5759
        %v5761 = vpop.f32.mrf.mxu0
        %5762 = vmatprep.mubr.bf16.mxu0 %v5219
        %5763 = vmatmul.mubr.bf16.gmra.mxu0 %v5218
        %v5764 = vpop.f32.mrf.mxu0
        %v5765 = vadd.f32 %v4278, %v5764
        %v5766 = vpop.f32.mrf.mxu0
        %v5767 = vpop.f32.mrf.mxu0
        %v5768 = vadd.f32 %v4279, %v5767
        %v5769 = vpop.f32.mrf.mxu0
        %5770 = vmatprep.mubr.bf16.mxu0 %v5227
        %5771 = vmatmul.mubr.bf16.gmra.mxu0 %v5226
        %v5772 = vpop.f32.mrf.mxu0
        %v5773 = vadd.f32 %v4280, %v5772
        %v5774 = vpop.f32.mrf.mxu0
        %v5775 = vpop.f32.mrf.mxu0
        %v5776 = vadd.f32 %v4281, %v5775
        %v5777 = vpop.f32.mrf.mxu0
        %5778 = vmatprep.mubr.bf16.mxu0 %v5235
        %5779 = vmatmul.mubr.bf16.gmra.mxu0 %v5234
        %v5780 = vpop.f32.mrf.mxu0
        %v5781 = vadd.f32 %v4282, %v5780
        %v5782 = vpop.f32.mrf.mxu0
        %v5783 = vpop.f32.mrf.mxu0
        %v5784 = vadd.f32 %v4283, %v5783
        %v5785 = vpop.f32.mrf.mxu0
        %5786 = vmatprep.mubr.bf16.mxu0 %v5243
        %5787 = vmatmul.mubr.bf16.gmra.mxu0 %v5242
        %v5788 = vpop.f32.mrf.mxu0
        %v5789 = vadd.f32 %v4284, %v5788
        %v5790 = vpop.f32.mrf.mxu0
        %v5791 = vpop.f32.mrf.mxu0
        %v5792 = vadd.f32 %v4285, %v5791
        %v5793 = vpop.f32.mrf.mxu0
        %5794 = vmatprep.mubr.bf16.mxu0 %v5251
        %5795 = vmatmul.mubr.bf16.gmra.mxu0 %v5250
        %v5796 = vpop.f32.mrf.mxu0
        %v5797 = vadd.f32 %v4286, %v5796
        %v5798 = vpop.f32.mrf.mxu0
        %v5799 = vpop.f32.mrf.mxu0
        %v5800 = vadd.f32 %v4287, %v5799
        %v5801 = vpop.f32.mrf.mxu0
        %5802 = vmatprep.mubr.bf16.mxu0 %v5259
        %5803 = vmatmul.mubr.bf16.gmra.mxu0 %v5258
        %v5804 = vpop.f32.mrf.mxu0
        %v5805 = vadd.f32 %v4288, %v5804
        %v5806 = vpop.f32.mrf.mxu0
        %v5807 = vpop.f32.mrf.mxu0
        %v5808 = vadd.f32 %v4289, %v5807
        %v5809 = vpop.f32.mrf.mxu0
        %5810 = vmatprep.mubr.bf16.mxu0 %v5267
        %5811 = vmatmul.mubr.bf16.gmra.mxu0 %v5266
        %v5812 = vpop.f32.mrf.mxu0
        %v5813 = vadd.f32 %v4290, %v5812
        %v5814 = vpop.f32.mrf.mxu0
        %v5815 = vpop.f32.mrf.mxu0
        %v5816 = vadd.f32 %v4291, %v5815
        %v5817 = vpop.f32.mrf.mxu0
        %5818 = vmatprep.mubr.bf16.mxu0 %v5275
        %5819 = vmatmul.mubr.bf16.gmra.mxu0 %v5274
        %v5820 = vpop.f32.mrf.mxu0
        %v5821 = vadd.f32 %v4292, %v5820
        %v5822 = vpop.f32.mrf.mxu0
        %v5823 = vpop.f32.mrf.mxu0
        %v5824 = vadd.f32 %v4293, %v5823
        %v5825 = vpop.f32.mrf.mxu0
        %5826 = vmatprep.mubr.bf16.mxu0 %v5283
        %5827 = vmatmul.mubr.bf16.gmra.mxu0 %v5282
        %v5828 = vpop.f32.mrf.mxu0
        %v5829 = vadd.f32 %v4294, %v5828
        %v5830 = vpop.f32.mrf.mxu0
        %v5831 = vpop.f32.mrf.mxu0
        %v5832 = vadd.f32 %v4295, %v5831
        %v5833 = vpop.f32.mrf.mxu0
        %5834 = vmatprep.mubr.bf16.mxu0 %v5291
        %5835 = vmatmul.mubr.bf16.gmra.mxu0 %v5290
        %v5836 = vpop.f32.mrf.mxu0
        %v5837 = vadd.f32 %v4296, %v5836
        %v5838 = vpop.f32.mrf.mxu0
        %v5839 = vpop.f32.mrf.mxu0
        %v5840 = vadd.f32 %v4297, %v5839
        %v5841 = vpop.f32.mrf.mxu0
        %5842 = vmatprep.mubr.bf16.mxu0 %v5299
        %5843 = vmatmul.mubr.bf16.gmra.mxu0 %v5298
        %v5844 = vpop.f32.mrf.mxu0
        %v5845 = vadd.f32 %v4298, %v5844
        %v5846 = vpop.f32.mrf.mxu0
        %v5847 = vpop.f32.mrf.mxu0
        %v5848 = vadd.f32 %v4299, %v5847
        %v5849 = vpop.f32.mrf.mxu0
        %5850 = vmatprep.mubr.bf16.mxu0 %v5307
        %5851 = vmatmul.mubr.bf16.gmra.mxu0 %v5306
        %v5852 = vpop.f32.mrf.mxu0
        %v5853 = vadd.f32 %v4300, %v5852
        %v5854 = vpop.f32.mrf.mxu0
        %v5855 = vpop.f32.mrf.mxu0
        %v5856 = vadd.f32 %v4301, %v5855
        %v5857 = vpop.f32.mrf.mxu0
        %5858 = vmatprep.mubr.bf16.mxu0 %v5315
        %5859 = vmatmul.mubr.bf16.gmra.mxu0 %v5314
        %v5860 = vpop.f32.mrf.mxu0
        %v5861 = vadd.f32 %v4302, %v5860
        %v5862 = vpop.f32.mrf.mxu0
        %v5863 = vpop.f32.mrf.mxu0
        %v5864 = vadd.f32 %v4303, %v5863
        %v5865 = vpop.f32.mrf.mxu0
        %5866 = vmatprep.mubr.bf16.mxu0 %v5323
        %5867 = vmatmul.mubr.bf16.gmra.mxu0 %v5322
        %v5868 = vpop.f32.mrf.mxu0
        %v5869 = vadd.f32 %v4304, %v5868
        %v5870 = vpop.f32.mrf.mxu0
        %v5871 = vpop.f32.mrf.mxu0
        %v5872 = vadd.f32 %v4305, %v5871
        %v5873 = vpop.f32.mrf.mxu0
        %5874 = vdwg.mxu0
        %5875 = vmatprep.subr.bf16.mxu0 0
        %5876 = vmatpush1.bf16.msra.mxu0 %v3945
        %5877 = vmatprep.subr.bf16.mxu0 0
        %5878 = vmatpush1.bf16.msra.mxu0 %v3944
        %5879 = vmatprep.subr.bf16.mxu0 0
        %5880 = vmatpush1.bf16.msra.mxu0 %v3943
        %5881 = vmatprep.subr.bf16.mxu0 0
        %5882 = vmatpush1.bf16.msra.mxu0 %v3942
        %5883 = vmatprep.subr.bf16.mxu0 0
        %5884 = vmatpush1.bf16.msra.mxu0 %v3941
        %5885 = vmatprep.subr.bf16.mxu0 0
        %5886 = vmatpush1.bf16.msra.mxu0 %v3940
        %5887 = vmatprep.subr.bf16.mxu0 0
        %5888 = vmatpush1.bf16.msra.mxu0 %v3939
        %5889 = vmatprep.subr.bf16.mxu0 0
        %5890 = vmatpush1.bf16.msra.mxu0 %v3938
        %5891 = vmatprep.subr.bf16.mxu0 0
        %5892 = vmatpush2.bf16.msra.mxu0 %v3953
        %5893 = vmatprep.subr.bf16.mxu0 0
        %5894 = vmatpush2.bf16.msra.mxu0 %v3952
        %5895 = vmatprep.subr.bf16.mxu0 0
        %5896 = vmatpush2.bf16.msra.mxu0 %v3951
        %5897 = vmatprep.subr.bf16.mxu0 0
        %5898 = vmatpush2.bf16.msra.mxu0 %v3950
        %5899 = vmatprep.subr.bf16.mxu0 0
        %5900 = vmatpush2.bf16.msra.mxu0 %v3949
        %5901 = vmatprep.subr.bf16.mxu0 0
        %5902 = vmatpush2.bf16.msra.mxu0 %v3948
        %5903 = vmatprep.subr.bf16.mxu0 0
        %5904 = vmatpush2.bf16.msra.mxu0 %v3947
        %5905 = vmatprep.subr.bf16.mxu0 0
        %5906 = vmatpush2.bf16.msra.mxu0 %v3946
        %5907 = vmatprep.mubr.bf16.mxu0 %v5077
        %5908 = vmatmul.mubr.bf16.gmra.mxu0 %v5076
        %v5909 = vpop.f32.mrf.mxu0
        %v5910 = vadd.f32 %v5621, %v5909
        %v5911 = vpop.f32.mrf.mxu0
        %v5912 = vpop.f32.mrf.mxu0
        %v5913 = vadd.f32 %v5624, %v5912
        %v5914 = vpop.f32.mrf.mxu0
        %5915 = vmatprep.mubr.bf16.mxu0 %v5085
        %5916 = vmatmul.mubr.bf16.gmra.mxu0 %v5084
        %v5917 = vpop.f32.mrf.mxu0
        %v5918 = vadd.f32 %v5629, %v5917
        %v5919 = vpop.f32.mrf.mxu0
        %v5920 = vpop.f32.mrf.mxu0
        %v5921 = vadd.f32 %v5632, %v5920
        %v5922 = vpop.f32.mrf.mxu0
        %5923 = vmatprep.mubr.bf16.mxu0 %v5093
        %5924 = vmatmul.mubr.bf16.gmra.mxu0 %v5092
        %v5925 = vpop.f32.mrf.mxu0
        %v5926 = vadd.f32 %v5637, %v5925
        %v5927 = vpop.f32.mrf.mxu0
        %v5928 = vpop.f32.mrf.mxu0
        %v5929 = vadd.f32 %v5640, %v5928
        %v5930 = vpop.f32.mrf.mxu0
        %5931 = vmatprep.mubr.bf16.mxu0 %v5101
        %5932 = vmatmul.mubr.bf16.gmra.mxu0 %v5100
        %v5933 = vpop.f32.mrf.mxu0
        %v5934 = vadd.f32 %v5645, %v5933
        %v5935 = vpop.f32.mrf.mxu0
        %v5936 = vpop.f32.mrf.mxu0
        %v5937 = vadd.f32 %v5648, %v5936
        %v5938 = vpop.f32.mrf.mxu0
        %5939 = vmatprep.mubr.bf16.mxu0 %v5109
        %5940 = vmatmul.mubr.bf16.gmra.mxu0 %v5108
        %v5941 = vpop.f32.mrf.mxu0
        %v5942 = vadd.f32 %v5653, %v5941
        %v5943 = vpop.f32.mrf.mxu0
        %v5944 = vpop.f32.mrf.mxu0
        %v5945 = vadd.f32 %v5656, %v5944
        %v5946 = vpop.f32.mrf.mxu0
        %5947 = vmatprep.mubr.bf16.mxu0 %v5117
        %5948 = vmatmul.mubr.bf16.gmra.mxu0 %v5116
        %v5949 = vpop.f32.mrf.mxu0
        %v5950 = vadd.f32 %v5661, %v5949
        %v5951 = vpop.f32.mrf.mxu0
        %v5952 = vpop.f32.mrf.mxu0
        %v5953 = vadd.f32 %v5664, %v5952
        %v5954 = vpop.f32.mrf.mxu0
        %5955 = vmatprep.mubr.bf16.mxu0 %v5125
        %5956 = vmatmul.mubr.bf16.gmra.mxu0 %v5124
        %v5957 = vpop.f32.mrf.mxu0
        %v5958 = vadd.f32 %v5669, %v5957
        %v5959 = vpop.f32.mrf.mxu0
        %v5960 = vpop.f32.mrf.mxu0
        %v5961 = vadd.f32 %v5672, %v5960
        %v5962 = vpop.f32.mrf.mxu0
        %5963 = vmatprep.mubr.bf16.mxu0 %v5133
        %5964 = vmatmul.mubr.bf16.gmra.mxu0 %v5132
        %v5965 = vpop.f32.mrf.mxu0
        %v5966 = vadd.f32 %v5677, %v5965
        %v5967 = vpop.f32.mrf.mxu0
        %v5968 = vpop.f32.mrf.mxu0
        %v5969 = vadd.f32 %v5680, %v5968
        %v5970 = vpop.f32.mrf.mxu0
        %5971 = vmatprep.mubr.bf16.mxu0 %v5141
        %5972 = vmatmul.mubr.bf16.gmra.mxu0 %v5140
        %v5973 = vpop.f32.mrf.mxu0
        %v5974 = vadd.f32 %v5685, %v5973
        %v5975 = vpop.f32.mrf.mxu0
        %v5976 = vpop.f32.mrf.mxu0
        %v5977 = vadd.f32 %v5688, %v5976
        %v5978 = vpop.f32.mrf.mxu0
        %5979 = vmatprep.mubr.bf16.mxu0 %v5149
        %5980 = vmatmul.mubr.bf16.gmra.mxu0 %v5148
        %v5981 = vpop.f32.mrf.mxu0
        %v5982 = vadd.f32 %v5693, %v5981
        %v5983 = vpop.f32.mrf.mxu0
        %v5984 = vpop.f32.mrf.mxu0
        %v5985 = vadd.f32 %v5696, %v5984
        %v5986 = vpop.f32.mrf.mxu0
        %5987 = vmatprep.mubr.bf16.mxu0 %v5157
        %5988 = vmatmul.mubr.bf16.gmra.mxu0 %v5156
        %v5989 = vpop.f32.mrf.mxu0
        %v5990 = vadd.f32 %v5701, %v5989
        %v5991 = vpop.f32.mrf.mxu0
        %v5992 = vpop.f32.mrf.mxu0
        %v5993 = vadd.f32 %v5704, %v5992
        %v5994 = vpop.f32.mrf.mxu0
        %5995 = vmatprep.mubr.bf16.mxu0 %v5165
        %5996 = vmatmul.mubr.bf16.gmra.mxu0 %v5164
        %v5997 = vpop.f32.mrf.mxu0
        %v5998 = vadd.f32 %v5709, %v5997
        %v5999 = vpop.f32.mrf.mxu0
        %v6000 = vpop.f32.mrf.mxu0
        %v6001 = vadd.f32 %v5712, %v6000
        %v6002 = vpop.f32.mrf.mxu0
        %6003 = vmatprep.mubr.bf16.mxu0 %v5173
        %6004 = vmatmul.mubr.bf16.gmra.mxu0 %v5172
        %v6005 = vpop.f32.mrf.mxu0
        %v6006 = vadd.f32 %v5717, %v6005
        %v6007 = vpop.f32.mrf.mxu0
        %v6008 = vpop.f32.mrf.mxu0
        %v6009 = vadd.f32 %v5720, %v6008
        %v6010 = vpop.f32.mrf.mxu0
        %6011 = vmatprep.mubr.bf16.mxu0 %v5181
        %6012 = vmatmul.mubr.bf16.gmra.mxu0 %v5180
        %v6013 = vpop.f32.mrf.mxu0
        %v6014 = vadd.f32 %v5725, %v6013
        %v6015 = vpop.f32.mrf.mxu0
        %v6016 = vpop.f32.mrf.mxu0
        %v6017 = vadd.f32 %v5728, %v6016
        %v6018 = vpop.f32.mrf.mxu0
        %6019 = vmatprep.mubr.bf16.mxu0 %v5189
        %6020 = vmatmul.mubr.bf16.gmra.mxu0 %v5188
        %v6021 = vpop.f32.mrf.mxu0
        %v6022 = vadd.f32 %v5733, %v6021
        %v6023 = vpop.f32.mrf.mxu0
        %v6024 = vpop.f32.mrf.mxu0
        %v6025 = vadd.f32 %v5736, %v6024
        %v6026 = vpop.f32.mrf.mxu0
        %6027 = vmatprep.mubr.bf16.mxu0 %v5197
        %6028 = vmatmul.mubr.bf16.gmra.mxu0 %v5196
        %v6029 = vpop.f32.mrf.mxu0
        %v6030 = vadd.f32 %v5741, %v6029
        %v6031 = vpop.f32.mrf.mxu0
        %v6032 = vpop.f32.mrf.mxu0
        %v6033 = vadd.f32 %v5744, %v6032
        %v6034 = vpop.f32.mrf.mxu0
        %6035 = vmatprep.mubr.bf16.mxu0 %v5205
        %6036 = vmatmul.mubr.bf16.gmra.mxu0 %v5204
        %v6037 = vpop.f32.mrf.mxu0
        %v6038 = vadd.f32 %v5749, %v6037
        %v6039 = vpop.f32.mrf.mxu0
        %v6040 = vpop.f32.mrf.mxu0
        %v6041 = vadd.f32 %v5752, %v6040
        %v6042 = vpop.f32.mrf.mxu0
        %6043 = vmatprep.mubr.bf16.mxu0 %v5213
        %6044 = vmatmul.mubr.bf16.gmra.mxu0 %v5212
        %v6045 = vpop.f32.mrf.mxu0
        %v6046 = vadd.f32 %v5757, %v6045
        %v6047 = vpop.f32.mrf.mxu0
        %v6048 = vpop.f32.mrf.mxu0
        %v6049 = vadd.f32 %v5760, %v6048
        %v6050 = vpop.f32.mrf.mxu0
        %6051 = vmatprep.mubr.bf16.mxu0 %v5221
        %6052 = vmatmul.mubr.bf16.gmra.mxu0 %v5220
        %v6053 = vpop.f32.mrf.mxu0
        %v6054 = vadd.f32 %v5765, %v6053
        %v6055 = vpop.f32.mrf.mxu0
        %v6056 = vpop.f32.mrf.mxu0
        %v6057 = vadd.f32 %v5768, %v6056
        %v6058 = vpop.f32.mrf.mxu0
        %6059 = vmatprep.mubr.bf16.mxu0 %v5229
        %6060 = vmatmul.mubr.bf16.gmra.mxu0 %v5228
        %v6061 = vpop.f32.mrf.mxu0
        %v6062 = vadd.f32 %v5773, %v6061
        %v6063 = vpop.f32.mrf.mxu0
        %v6064 = vpop.f32.mrf.mxu0
        %v6065 = vadd.f32 %v5776, %v6064
        %v6066 = vpop.f32.mrf.mxu0
        %6067 = vmatprep.mubr.bf16.mxu0 %v5237
        %6068 = vmatmul.mubr.bf16.gmra.mxu0 %v5236
        %v6069 = vpop.f32.mrf.mxu0
        %v6070 = vadd.f32 %v5781, %v6069
        %v6071 = vpop.f32.mrf.mxu0
        %v6072 = vpop.f32.mrf.mxu0
        %v6073 = vadd.f32 %v5784, %v6072
        %v6074 = vpop.f32.mrf.mxu0
        %6075 = vmatprep.mubr.bf16.mxu0 %v5245
        %6076 = vmatmul.mubr.bf16.gmra.mxu0 %v5244
        %v6077 = vpop.f32.mrf.mxu0
        %v6078 = vadd.f32 %v5789, %v6077
        %v6079 = vpop.f32.mrf.mxu0
        %v6080 = vpop.f32.mrf.mxu0
        %v6081 = vadd.f32 %v5792, %v6080
        %v6082 = vpop.f32.mrf.mxu0
        %6083 = vmatprep.mubr.bf16.mxu0 %v5253
        %6084 = vmatmul.mubr.bf16.gmra.mxu0 %v5252
        %v6085 = vpop.f32.mrf.mxu0
        %v6086 = vadd.f32 %v5797, %v6085
        %v6087 = vpop.f32.mrf.mxu0
        %v6088 = vpop.f32.mrf.mxu0
        %v6089 = vadd.f32 %v5800, %v6088
        %v6090 = vpop.f32.mrf.mxu0
        %6091 = vmatprep.mubr.bf16.mxu0 %v5261
        %6092 = vmatmul.mubr.bf16.gmra.mxu0 %v5260
        %v6093 = vpop.f32.mrf.mxu0
        %v6094 = vadd.f32 %v5805, %v6093
        %v6095 = vpop.f32.mrf.mxu0
        %v6096 = vpop.f32.mrf.mxu0
        %v6097 = vadd.f32 %v5808, %v6096
        %v6098 = vpop.f32.mrf.mxu0
        %6099 = vmatprep.mubr.bf16.mxu0 %v5269
        %6100 = vmatmul.mubr.bf16.gmra.mxu0 %v5268
        %v6101 = vpop.f32.mrf.mxu0
        %v6102 = vadd.f32 %v5813, %v6101
        %v6103 = vpop.f32.mrf.mxu0
        %v6104 = vpop.f32.mrf.mxu0
        %v6105 = vadd.f32 %v5816, %v6104
        %v6106 = vpop.f32.mrf.mxu0
        %6107 = vmatprep.mubr.bf16.mxu0 %v5277
        %6108 = vmatmul.mubr.bf16.gmra.mxu0 %v5276
        %v6109 = vpop.f32.mrf.mxu0
        %v6110 = vadd.f32 %v5821, %v6109
        %v6111 = vpop.f32.mrf.mxu0
        %v6112 = vpop.f32.mrf.mxu0
        %v6113 = vadd.f32 %v5824, %v6112
        %v6114 = vpop.f32.mrf.mxu0
        %6115 = vmatprep.mubr.bf16.mxu0 %v5285
        %6116 = vmatmul.mubr.bf16.gmra.mxu0 %v5284
        %v6117 = vpop.f32.mrf.mxu0
        %v6118 = vadd.f32 %v5829, %v6117
        %v6119 = vpop.f32.mrf.mxu0
        %v6120 = vpop.f32.mrf.mxu0
        %v6121 = vadd.f32 %v5832, %v6120
        %v6122 = vpop.f32.mrf.mxu0
        %6123 = vmatprep.mubr.bf16.mxu0 %v5293
        %6124 = vmatmul.mubr.bf16.gmra.mxu0 %v5292
        %v6125 = vpop.f32.mrf.mxu0
        %v6126 = vadd.f32 %v5837, %v6125
        %v6127 = vpop.f32.mrf.mxu0
        %v6128 = vpop.f32.mrf.mxu0
        %v6129 = vadd.f32 %v5840, %v6128
        %v6130 = vpop.f32.mrf.mxu0
        %6131 = vmatprep.mubr.bf16.mxu0 %v5301
        %6132 = vmatmul.mubr.bf16.gmra.mxu0 %v5300
        %v6133 = vpop.f32.mrf.mxu0
        %v6134 = vadd.f32 %v5845, %v6133
        %v6135 = vpop.f32.mrf.mxu0
        %v6136 = vpop.f32.mrf.mxu0
        %v6137 = vadd.f32 %v5848, %v6136
        %v6138 = vpop.f32.mrf.mxu0
        %6139 = vmatprep.mubr.bf16.mxu0 %v5309
        %6140 = vmatmul.mubr.bf16.gmra.mxu0 %v5308
        %v6141 = vpop.f32.mrf.mxu0
        %v6142 = vadd.f32 %v5853, %v6141
        %v6143 = vpop.f32.mrf.mxu0
        %v6144 = vpop.f32.mrf.mxu0
        %v6145 = vadd.f32 %v5856, %v6144
        %v6146 = vpop.f32.mrf.mxu0
        %6147 = vmatprep.mubr.bf16.mxu0 %v5317
        %6148 = vmatmul.mubr.bf16.gmra.mxu0 %v5316
        %v6149 = vpop.f32.mrf.mxu0
        %v6150 = vadd.f32 %v5861, %v6149
        %v6151 = vpop.f32.mrf.mxu0
        %v6152 = vpop.f32.mrf.mxu0
        %v6153 = vadd.f32 %v5864, %v6152
        %v6154 = vpop.f32.mrf.mxu0
        %6155 = vmatprep.mubr.bf16.mxu0 %v5325
        %6156 = vmatmul.mubr.bf16.gmra.mxu0 %v5324
        %v6157 = vpop.f32.mrf.mxu0
        %v6158 = vadd.f32 %v5869, %v6157
        %v6159 = vpop.f32.mrf.mxu0
        %v6160 = vpop.f32.mrf.mxu0
        %v6161 = vadd.f32 %v5872, %v6160
        %v6162 = vpop.f32.mrf.mxu0
        %6163 = vdwg.mxu0
        %6164 = vmatprep.subr.bf16.mxu0 0
        %6165 = vmatpush1.bf16.msra.mxu0 %v3961
        %6166 = vmatprep.subr.bf16.mxu0 0
        %6167 = vmatpush1.bf16.msra.mxu0 %v3960
        %6168 = vmatprep.subr.bf16.mxu0 0
        %6169 = vmatpush1.bf16.msra.mxu0 %v3959
        %6170 = vmatprep.subr.bf16.mxu0 0
        %6171 = vmatpush1.bf16.msra.mxu0 %v3958
        %6172 = vmatprep.subr.bf16.mxu0 0
        %6173 = vmatpush1.bf16.msra.mxu0 %v3957
        %6174 = vmatprep.subr.bf16.mxu0 0
        %6175 = vmatpush1.bf16.msra.mxu0 %v3956
        %6176 = vmatprep.subr.bf16.mxu0 0
        %6177 = vmatpush1.bf16.msra.mxu0 %v3955
        %6178 = vmatprep.subr.bf16.mxu0 0
        %6179 = vmatpush1.bf16.msra.mxu0 %v3954
        %6180 = vmatprep.subr.bf16.mxu0 0
        %6181 = vmatpush2.bf16.msra.mxu0 %v3969
        %6182 = vmatprep.subr.bf16.mxu0 0
        %6183 = vmatpush2.bf16.msra.mxu0 %v3968
        %6184 = vmatprep.subr.bf16.mxu0 0
        %6185 = vmatpush2.bf16.msra.mxu0 %v3967
        %6186 = vmatprep.subr.bf16.mxu0 0
        %6187 = vmatpush2.bf16.msra.mxu0 %v3966
        %6188 = vmatprep.subr.bf16.mxu0 0
        %6189 = vmatpush2.bf16.msra.mxu0 %v3965
        %6190 = vmatprep.subr.bf16.mxu0 0
        %6191 = vmatpush2.bf16.msra.mxu0 %v3964
        %6192 = vmatprep.subr.bf16.mxu0 0
        %6193 = vmatpush2.bf16.msra.mxu0 %v3963
        %6194 = vmatprep.subr.bf16.mxu0 0
        %6195 = vmatpush2.bf16.msra.mxu0 %v3962
        %6196 = vmatprep.mubr.bf16.mxu0 %v5079
        %6197 = vmatmul.mubr.bf16.gmra.mxu0 %v5078
        %v6198 = vpop.f32.mrf.mxu0
        %v6199 = vadd.f32 %v5910, %v6198
        %v6200 = vpop.f32.mrf.mxu0
        %v6201 = vpop.f32.mrf.mxu0
        %v6202 = vadd.f32 %v5913, %v6201
        %v6203 = vpop.f32.mrf.mxu0
        %6204 = vmatprep.mubr.bf16.mxu0 %v5087
        %6205 = vmatmul.mubr.bf16.gmra.mxu0 %v5086
        %v6206 = vpop.f32.mrf.mxu0
        %v6207 = vadd.f32 %v5918, %v6206
        %v6208 = vpop.f32.mrf.mxu0
        %v6209 = vpop.f32.mrf.mxu0
        %v6210 = vadd.f32 %v5921, %v6209
        %v6211 = vpop.f32.mrf.mxu0
        %6212 = vmatprep.mubr.bf16.mxu0 %v5095
        %6213 = vmatmul.mubr.bf16.gmra.mxu0 %v5094
        %v6214 = vpop.f32.mrf.mxu0
        %v6215 = vadd.f32 %v5926, %v6214
        %v6216 = vpop.f32.mrf.mxu0
        %v6217 = vpop.f32.mrf.mxu0
        %v6218 = vadd.f32 %v5929, %v6217
        %v6219 = vpop.f32.mrf.mxu0
        %6220 = vmatprep.mubr.bf16.mxu0 %v5103
        %6221 = vmatmul.mubr.bf16.gmra.mxu0 %v5102
        %v6222 = vpop.f32.mrf.mxu0
        %v6223 = vadd.f32 %v5934, %v6222
        %v6224 = vpop.f32.mrf.mxu0
        %v6225 = vpop.f32.mrf.mxu0
        %v6226 = vadd.f32 %v5937, %v6225
        %v6227 = vpop.f32.mrf.mxu0
        %6228 = vmatprep.mubr.bf16.mxu0 %v5111
        %6229 = vmatmul.mubr.bf16.gmra.mxu0 %v5110
        %v6230 = vpop.f32.mrf.mxu0
        %v6231 = vadd.f32 %v5942, %v6230
        %v6232 = vpop.f32.mrf.mxu0
        %v6233 = vpop.f32.mrf.mxu0
        %v6234 = vadd.f32 %v5945, %v6233
        %v6235 = vpop.f32.mrf.mxu0
        %6236 = vmatprep.mubr.bf16.mxu0 %v5119
        %6237 = vmatmul.mubr.bf16.gmra.mxu0 %v5118
        %v6238 = vpop.f32.mrf.mxu0
        %v6239 = vadd.f32 %v5950, %v6238
        %v6240 = vpop.f32.mrf.mxu0
        %v6241 = vpop.f32.mrf.mxu0
        %v6242 = vadd.f32 %v5953, %v6241
        %v6243 = vpop.f32.mrf.mxu0
        %6244 = vmatprep.mubr.bf16.mxu0 %v5127
        %6245 = vmatmul.mubr.bf16.gmra.mxu0 %v5126
        %v6246 = vpop.f32.mrf.mxu0
        %v6247 = vadd.f32 %v5958, %v6246
        %v6248 = vpop.f32.mrf.mxu0
        %v6249 = vpop.f32.mrf.mxu0
        %v6250 = vadd.f32 %v5961, %v6249
        %v6251 = vpop.f32.mrf.mxu0
        %6252 = vmatprep.mubr.bf16.mxu0 %v5135
        %6253 = vmatmul.mubr.bf16.gmra.mxu0 %v5134
        %v6254 = vpop.f32.mrf.mxu0
        %v6255 = vadd.f32 %v5966, %v6254
        %v6256 = vpop.f32.mrf.mxu0
        %v6257 = vpop.f32.mrf.mxu0
        %v6258 = vadd.f32 %v5969, %v6257
        %v6259 = vpop.f32.mrf.mxu0
        %6260 = vmatprep.mubr.bf16.mxu0 %v5143
        %6261 = vmatmul.mubr.bf16.gmra.mxu0 %v5142
        %v6262 = vpop.f32.mrf.mxu0
        %v6263 = vadd.f32 %v5974, %v6262
        %v6264 = vpop.f32.mrf.mxu0
        %v6265 = vpop.f32.mrf.mxu0
        %v6266 = vadd.f32 %v5977, %v6265
        %v6267 = vpop.f32.mrf.mxu0
        %6268 = vmatprep.mubr.bf16.mxu0 %v5151
        %6269 = vmatmul.mubr.bf16.gmra.mxu0 %v5150
        %v6270 = vpop.f32.mrf.mxu0
        %v6271 = vadd.f32 %v5982, %v6270
        %v6272 = vpop.f32.mrf.mxu0
        %v6273 = vpop.f32.mrf.mxu0
        %v6274 = vadd.f32 %v5985, %v6273
        %v6275 = vpop.f32.mrf.mxu0
        %6276 = vmatprep.mubr.bf16.mxu0 %v5159
        %6277 = vmatmul.mubr.bf16.gmra.mxu0 %v5158
        %v6278 = vpop.f32.mrf.mxu0
        %v6279 = vadd.f32 %v5990, %v6278
        %v6280 = vpop.f32.mrf.mxu0
        %v6281 = vpop.f32.mrf.mxu0
        %v6282 = vadd.f32 %v5993, %v6281
        %v6283 = vpop.f32.mrf.mxu0
        %6284 = vmatprep.mubr.bf16.mxu0 %v5167
        %6285 = vmatmul.mubr.bf16.gmra.mxu0 %v5166
        %v6286 = vpop.f32.mrf.mxu0
        %v6287 = vadd.f32 %v5998, %v6286
        %v6288 = vpop.f32.mrf.mxu0
        %v6289 = vpop.f32.mrf.mxu0
        %v6290 = vadd.f32 %v6001, %v6289
        %v6291 = vpop.f32.mrf.mxu0
        %6292 = vmatprep.mubr.bf16.mxu0 %v5175
        %6293 = vmatmul.mubr.bf16.gmra.mxu0 %v5174
        %v6294 = vpop.f32.mrf.mxu0
        %v6295 = vadd.f32 %v6006, %v6294
        %v6296 = vpop.f32.mrf.mxu0
        %v6297 = vpop.f32.mrf.mxu0
        %v6298 = vadd.f32 %v6009, %v6297
        %v6299 = vpop.f32.mrf.mxu0
        %6300 = vmatprep.mubr.bf16.mxu0 %v5183
        %6301 = vmatmul.mubr.bf16.gmra.mxu0 %v5182
        %v6302 = vpop.f32.mrf.mxu0
        %v6303 = vadd.f32 %v6014, %v6302
        %v6304 = vpop.f32.mrf.mxu0
        %v6305 = vpop.f32.mrf.mxu0
        %v6306 = vadd.f32 %v6017, %v6305
        %v6307 = vpop.f32.mrf.mxu0
        %6308 = vmatprep.mubr.bf16.mxu0 %v5191
        %6309 = vmatmul.mubr.bf16.gmra.mxu0 %v5190
        %v6310 = vpop.f32.mrf.mxu0
        %v6311 = vadd.f32 %v6022, %v6310
        %v6312 = vpop.f32.mrf.mxu0
        %v6313 = vpop.f32.mrf.mxu0
        %v6314 = vadd.f32 %v6025, %v6313
        %v6315 = vpop.f32.mrf.mxu0
        %6316 = vmatprep.mubr.bf16.mxu0 %v5199
        %6317 = vmatmul.mubr.bf16.gmra.mxu0 %v5198
        %v6318 = vpop.f32.mrf.mxu0
        %v6319 = vadd.f32 %v6030, %v6318
        %v6320 = vpop.f32.mrf.mxu0
        %v6321 = vpop.f32.mrf.mxu0
        %v6322 = vadd.f32 %v6033, %v6321
        %v6323 = vpop.f32.mrf.mxu0
        %6324 = vmatprep.mubr.bf16.mxu0 %v5207
        %6325 = vmatmul.mubr.bf16.gmra.mxu0 %v5206
        %v6326 = vpop.f32.mrf.mxu0
        %v6327 = vadd.f32 %v6038, %v6326
        %v6328 = vpop.f32.mrf.mxu0
        %v6329 = vpop.f32.mrf.mxu0
        %v6330 = vadd.f32 %v6041, %v6329
        %v6331 = vpop.f32.mrf.mxu0
        %6332 = vmatprep.mubr.bf16.mxu0 %v5215
        %6333 = vmatmul.mubr.bf16.gmra.mxu0 %v5214
        %v6334 = vpop.f32.mrf.mxu0
        %v6335 = vadd.f32 %v6046, %v6334
        %v6336 = vpop.f32.mrf.mxu0
        %v6337 = vpop.f32.mrf.mxu0
        %v6338 = vadd.f32 %v6049, %v6337
        %v6339 = vpop.f32.mrf.mxu0
        %6340 = vmatprep.mubr.bf16.mxu0 %v5223
        %6341 = vmatmul.mubr.bf16.gmra.mxu0 %v5222
        %v6342 = vpop.f32.mrf.mxu0
        %v6343 = vadd.f32 %v6054, %v6342
        %v6344 = vpop.f32.mrf.mxu0
        %v6345 = vpop.f32.mrf.mxu0
        %v6346 = vadd.f32 %v6057, %v6345
        %v6347 = vpop.f32.mrf.mxu0
        %6348 = vmatprep.mubr.bf16.mxu0 %v5231
        %6349 = vmatmul.mubr.bf16.gmra.mxu0 %v5230
        %v6350 = vpop.f32.mrf.mxu0
        %v6351 = vadd.f32 %v6062, %v6350
        %v6352 = vpop.f32.mrf.mxu0
        %v6353 = vpop.f32.mrf.mxu0
        %v6354 = vadd.f32 %v6065, %v6353
        %v6355 = vpop.f32.mrf.mxu0
        %6356 = vmatprep.mubr.bf16.mxu0 %v5239
        %6357 = vmatmul.mubr.bf16.gmra.mxu0 %v5238
        %v6358 = vpop.f32.mrf.mxu0
        %v6359 = vadd.f32 %v6070, %v6358
        %v6360 = vpop.f32.mrf.mxu0
        %v6361 = vpop.f32.mrf.mxu0
        %v6362 = vadd.f32 %v6073, %v6361
        %v6363 = vpop.f32.mrf.mxu0
        %6364 = vmatprep.mubr.bf16.mxu0 %v5247
        %6365 = vmatmul.mubr.bf16.gmra.mxu0 %v5246
        %v6366 = vpop.f32.mrf.mxu0
        %v6367 = vadd.f32 %v6078, %v6366
        %v6368 = vpop.f32.mrf.mxu0
        %v6369 = vpop.f32.mrf.mxu0
        %v6370 = vadd.f32 %v6081, %v6369
        %v6371 = vpop.f32.mrf.mxu0
        %6372 = vmatprep.mubr.bf16.mxu0 %v5255
        %6373 = vmatmul.mubr.bf16.gmra.mxu0 %v5254
        %v6374 = vpop.f32.mrf.mxu0
        %v6375 = vadd.f32 %v6086, %v6374
        %v6376 = vpop.f32.mrf.mxu0
        %v6377 = vpop.f32.mrf.mxu0
        %v6378 = vadd.f32 %v6089, %v6377
        %v6379 = vpop.f32.mrf.mxu0
        %6380 = vmatprep.mubr.bf16.mxu0 %v5263
        %6381 = vmatmul.mubr.bf16.gmra.mxu0 %v5262
        %v6382 = vpop.f32.mrf.mxu0
        %v6383 = vadd.f32 %v6094, %v6382
        %v6384 = vpop.f32.mrf.mxu0
        %v6385 = vpop.f32.mrf.mxu0
        %v6386 = vadd.f32 %v6097, %v6385
        %v6387 = vpop.f32.mrf.mxu0
        %6388 = vmatprep.mubr.bf16.mxu0 %v5271
        %6389 = vmatmul.mubr.bf16.gmra.mxu0 %v5270
        %v6390 = vpop.f32.mrf.mxu0
        %v6391 = vadd.f32 %v6102, %v6390
        %v6392 = vpop.f32.mrf.mxu0
        %v6393 = vpop.f32.mrf.mxu0
        %v6394 = vadd.f32 %v6105, %v6393
        %v6395 = vpop.f32.mrf.mxu0
        %6396 = vmatprep.mubr.bf16.mxu0 %v5279
        %6397 = vmatmul.mubr.bf16.gmra.mxu0 %v5278
        %v6398 = vpop.f32.mrf.mxu0
        %v6399 = vadd.f32 %v6110, %v6398
        %v6400 = vpop.f32.mrf.mxu0
        %v6401 = vpop.f32.mrf.mxu0
        %v6402 = vadd.f32 %v6113, %v6401
        %v6403 = vpop.f32.mrf.mxu0
        %6404 = vmatprep.mubr.bf16.mxu0 %v5287
        %6405 = vmatmul.mubr.bf16.gmra.mxu0 %v5286
        %v6406 = vpop.f32.mrf.mxu0
        %v6407 = vadd.f32 %v6118, %v6406
        %v6408 = vpop.f32.mrf.mxu0
        %v6409 = vpop.f32.mrf.mxu0
        %v6410 = vadd.f32 %v6121, %v6409
        %v6411 = vpop.f32.mrf.mxu0
        %6412 = vmatprep.mubr.bf16.mxu0 %v5295
        %6413 = vmatmul.mubr.bf16.gmra.mxu0 %v5294
        %v6414 = vpop.f32.mrf.mxu0
        %v6415 = vadd.f32 %v6126, %v6414
        %v6416 = vpop.f32.mrf.mxu0
        %v6417 = vpop.f32.mrf.mxu0
        %v6418 = vadd.f32 %v6129, %v6417
        %v6419 = vpop.f32.mrf.mxu0
        %6420 = vmatprep.mubr.bf16.mxu0 %v5303
        %6421 = vmatmul.mubr.bf16.gmra.mxu0 %v5302
        %v6422 = vpop.f32.mrf.mxu0
        %v6423 = vadd.f32 %v6134, %v6422
        %v6424 = vpop.f32.mrf.mxu0
        %v6425 = vpop.f32.mrf.mxu0
        %v6426 = vadd.f32 %v6137, %v6425
        %v6427 = vpop.f32.mrf.mxu0
        %6428 = vmatprep.mubr.bf16.mxu0 %v5311
        %6429 = vmatmul.mubr.bf16.gmra.mxu0 %v5310
        %v6430 = vpop.f32.mrf.mxu0
        %v6431 = vadd.f32 %v6142, %v6430
        %v6432 = vpop.f32.mrf.mxu0
        %v6433 = vpop.f32.mrf.mxu0
        %v6434 = vadd.f32 %v6145, %v6433
        %v6435 = vpop.f32.mrf.mxu0
        %6436 = vmatprep.mubr.bf16.mxu0 %v5319
        %6437 = vmatmul.mubr.bf16.gmra.mxu0 %v5318
        %v6438 = vpop.f32.mrf.mxu0
        %v6439 = vadd.f32 %v6150, %v6438
        %v6440 = vpop.f32.mrf.mxu0
        %v6441 = vpop.f32.mrf.mxu0
        %v6442 = vadd.f32 %v6153, %v6441
        %v6443 = vpop.f32.mrf.mxu0
        %6444 = vmatprep.mubr.bf16.mxu0 %v5327
        %6445 = vmatmul.mubr.bf16.gmra.mxu0 %v5326
        %v6446 = vpop.f32.mrf.mxu0
        %v6447 = vadd.f32 %v6158, %v6446
        %v6448 = vpop.f32.mrf.mxu0
        %v6449 = vpop.f32.mrf.mxu0
        %v6450 = vadd.f32 %v6161, %v6449
        %v6451 = vpop.f32.mrf.mxu0
        %6452 = vdwg.mxu0
        %6453 = vmatprep.subr.bf16.mxu0 0
        %6454 = vmatpush1.bf16.msra.mxu0 %v3977
        %6455 = vmatprep.subr.bf16.mxu0 0
        %6456 = vmatpush1.bf16.msra.mxu0 %v3976
        %6457 = vmatprep.subr.bf16.mxu0 0
        %6458 = vmatpush1.bf16.msra.mxu0 %v3975
        %6459 = vmatprep.subr.bf16.mxu0 0
        %6460 = vmatpush1.bf16.msra.mxu0 %v3974
        %6461 = vmatprep.subr.bf16.mxu0 0
        %6462 = vmatpush1.bf16.msra.mxu0 %v3973
        %6463 = vmatprep.subr.bf16.mxu0 0
        %6464 = vmatpush1.bf16.msra.mxu0 %v3972
        %6465 = vmatprep.subr.bf16.mxu0 0
        %6466 = vmatpush1.bf16.msra.mxu0 %v3971
        %6467 = vmatprep.subr.bf16.mxu0 0
        %6468 = vmatpush1.bf16.msra.mxu0 %v3970
        %6469 = vmatprep.subr.bf16.mxu0 0
        %6470 = vmatpush2.bf16.msra.mxu0 %v3985
        %6471 = vmatprep.subr.bf16.mxu0 0
        %6472 = vmatpush2.bf16.msra.mxu0 %v3984
        %6473 = vmatprep.subr.bf16.mxu0 0
        %6474 = vmatpush2.bf16.msra.mxu0 %v3983
        %6475 = vmatprep.subr.bf16.mxu0 0
        %6476 = vmatpush2.bf16.msra.mxu0 %v3982
        %6477 = vmatprep.subr.bf16.mxu0 0
        %6478 = vmatpush2.bf16.msra.mxu0 %v3981
        %6479 = vmatprep.subr.bf16.mxu0 0
        %6480 = vmatpush2.bf16.msra.mxu0 %v3980
        %6481 = vmatprep.subr.bf16.mxu0 0
        %6482 = vmatpush2.bf16.msra.mxu0 %v3979
        %6483 = vmatprep.subr.bf16.mxu0 0
        %6484 = vmatpush2.bf16.msra.mxu0 %v3978
        %6485 = vmatprep.mubr.bf16.mxu0 %v5081
        %6486 = vmatmul.mubr.bf16.gmra.mxu0 %v5080
        %v6487 = vpop.f32.mrf.mxu0
        %v6488 = vadd.f32 %v6199, %v6487
        %v6489 = vpop.f32.mrf.mxu0
        %v6490 = vpop.f32.mrf.mxu0
        %v6491 = vadd.f32 %v6202, %v6490
        %v6492 = vpop.f32.mrf.mxu0
        %6493 = vmatprep.mubr.bf16.mxu0 %v5089
        %6494 = vmatmul.mubr.bf16.gmra.mxu0 %v5088
        %v6495 = vpop.f32.mrf.mxu0
        %v6496 = vadd.f32 %v6207, %v6495
        %v6497 = vpop.f32.mrf.mxu0
        %v6498 = vpop.f32.mrf.mxu0
        %v6499 = vadd.f32 %v6210, %v6498
        %v6500 = vpop.f32.mrf.mxu0
        %6501 = vmatprep.mubr.bf16.mxu0 %v5097
        %6502 = vmatmul.mubr.bf16.gmra.mxu0 %v5096
        %v6503 = vpop.f32.mrf.mxu0
        %v6504 = vadd.f32 %v6215, %v6503
        %v6505 = vpop.f32.mrf.mxu0
        %v6506 = vpop.f32.mrf.mxu0
        %v6507 = vadd.f32 %v6218, %v6506
        %v6508 = vpop.f32.mrf.mxu0
        %6509 = vmatprep.mubr.bf16.mxu0 %v5105
        %6510 = vmatmul.mubr.bf16.gmra.mxu0 %v5104
        %v6511 = vpop.f32.mrf.mxu0
        %v6512 = vadd.f32 %v6223, %v6511
        %v6513 = vpop.f32.mrf.mxu0
        %v6514 = vpop.f32.mrf.mxu0
        %v6515 = vadd.f32 %v6226, %v6514
        %v6516 = vpop.f32.mrf.mxu0
        %6517 = vmatprep.mubr.bf16.mxu0 %v5113
        %6518 = vmatmul.mubr.bf16.gmra.mxu0 %v5112
        %v6519 = vpop.f32.mrf.mxu0
        %v6520 = vadd.f32 %v6231, %v6519
        %v6521 = vpop.f32.mrf.mxu0
        %v6522 = vpop.f32.mrf.mxu0
        %v6523 = vadd.f32 %v6234, %v6522
        %v6524 = vpop.f32.mrf.mxu0
        %6525 = vmatprep.mubr.bf16.mxu0 %v5121
        %6526 = vmatmul.mubr.bf16.gmra.mxu0 %v5120
        %v6527 = vpop.f32.mrf.mxu0
        %v6528 = vadd.f32 %v6239, %v6527
        %v6529 = vpop.f32.mrf.mxu0
        %v6530 = vpop.f32.mrf.mxu0
        %v6531 = vadd.f32 %v6242, %v6530
        %v6532 = vpop.f32.mrf.mxu0
        %6533 = vmatprep.mubr.bf16.mxu0 %v5129
        %6534 = vmatmul.mubr.bf16.gmra.mxu0 %v5128
        %v6535 = vpop.f32.mrf.mxu0
        %v6536 = vadd.f32 %v6247, %v6535
        %v6537 = vpop.f32.mrf.mxu0
        %v6538 = vpop.f32.mrf.mxu0
        %v6539 = vadd.f32 %v6250, %v6538
        %v6540 = vpop.f32.mrf.mxu0
        %6541 = vmatprep.mubr.bf16.mxu0 %v5137
        %6542 = vmatmul.mubr.bf16.gmra.mxu0 %v5136
        %v6543 = vpop.f32.mrf.mxu0
        %v6544 = vadd.f32 %v6255, %v6543
        %v6545 = vpop.f32.mrf.mxu0
        %v6546 = vpop.f32.mrf.mxu0
        %v6547 = vadd.f32 %v6258, %v6546
        %v6548 = vpop.f32.mrf.mxu0
        %6549 = vmatprep.mubr.bf16.mxu0 %v5145
        %6550 = vmatmul.mubr.bf16.gmra.mxu0 %v5144
        %v6551 = vpop.f32.mrf.mxu0
        %v6552 = vadd.f32 %v6263, %v6551
        %v6553 = vpop.f32.mrf.mxu0
        %v6554 = vpop.f32.mrf.mxu0
        %v6555 = vadd.f32 %v6266, %v6554
        %v6556 = vpop.f32.mrf.mxu0
        %6557 = vmatprep.mubr.bf16.mxu0 %v5153
        %6558 = vmatmul.mubr.bf16.gmra.mxu0 %v5152
        %v6559 = vpop.f32.mrf.mxu0
        %v6560 = vadd.f32 %v6271, %v6559
        %v6561 = vpop.f32.mrf.mxu0
        %v6562 = vpop.f32.mrf.mxu0
        %v6563 = vadd.f32 %v6274, %v6562
        %v6564 = vpop.f32.mrf.mxu0
        %6565 = vmatprep.mubr.bf16.mxu0 %v5161
        %6566 = vmatmul.mubr.bf16.gmra.mxu0 %v5160
        %v6567 = vpop.f32.mrf.mxu0
        %v6568 = vadd.f32 %v6279, %v6567
        %v6569 = vpop.f32.mrf.mxu0
        %v6570 = vpop.f32.mrf.mxu0
        %v6571 = vadd.f32 %v6282, %v6570
        %v6572 = vpop.f32.mrf.mxu0
        %6573 = vmatprep.mubr.bf16.mxu0 %v5169
        %6574 = vmatmul.mubr.bf16.gmra.mxu0 %v5168
        %v6575 = vpop.f32.mrf.mxu0
        %v6576 = vadd.f32 %v6287, %v6575
        %v6577 = vpop.f32.mrf.mxu0
        %v6578 = vpop.f32.mrf.mxu0
        %v6579 = vadd.f32 %v6290, %v6578
        %v6580 = vpop.f32.mrf.mxu0
        %6581 = vmatprep.mubr.bf16.mxu0 %v5177
        %6582 = vmatmul.mubr.bf16.gmra.mxu0 %v5176
        %v6583 = vpop.f32.mrf.mxu0
        %v6584 = vadd.f32 %v6295, %v6583
        %v6585 = vpop.f32.mrf.mxu0
        %v6586 = vpop.f32.mrf.mxu0
        %v6587 = vadd.f32 %v6298, %v6586
        %v6588 = vpop.f32.mrf.mxu0
        %6589 = vmatprep.mubr.bf16.mxu0 %v5185
        %6590 = vmatmul.mubr.bf16.gmra.mxu0 %v5184
        %v6591 = vpop.f32.mrf.mxu0
        %v6592 = vadd.f32 %v6303, %v6591
        %v6593 = vpop.f32.mrf.mxu0
        %v6594 = vpop.f32.mrf.mxu0
        %v6595 = vadd.f32 %v6306, %v6594
        %v6596 = vpop.f32.mrf.mxu0
        %6597 = vmatprep.mubr.bf16.mxu0 %v5193
        %6598 = vmatmul.mubr.bf16.gmra.mxu0 %v5192
        %v6599 = vpop.f32.mrf.mxu0
        %v6600 = vadd.f32 %v6311, %v6599
        %v6601 = vpop.f32.mrf.mxu0
        %v6602 = vpop.f32.mrf.mxu0
        %v6603 = vadd.f32 %v6314, %v6602
        %v6604 = vpop.f32.mrf.mxu0
        %6605 = vmatprep.mubr.bf16.mxu0 %v5201
        %6606 = vmatmul.mubr.bf16.gmra.mxu0 %v5200
        %v6607 = vpop.f32.mrf.mxu0
        %v6608 = vadd.f32 %v6319, %v6607
        %v6609 = vpop.f32.mrf.mxu0
        %v6610 = vpop.f32.mrf.mxu0
        %v6611 = vadd.f32 %v6322, %v6610
        %v6612 = vpop.f32.mrf.mxu0
        %6613 = vmatprep.mubr.bf16.mxu0 %v5209
        %6614 = vmatmul.mubr.bf16.gmra.mxu0 %v5208
        %v6615 = vpop.f32.mrf.mxu0
        %v6616 = vadd.f32 %v6327, %v6615
        %v6617 = vpop.f32.mrf.mxu0
        %v6618 = vpop.f32.mrf.mxu0
        %v6619 = vadd.f32 %v6330, %v6618
        %v6620 = vpop.f32.mrf.mxu0
        %6621 = vmatprep.mubr.bf16.mxu0 %v5217
        %6622 = vmatmul.mubr.bf16.gmra.mxu0 %v5216
        %v6623 = vpop.f32.mrf.mxu0
        %v6624 = vadd.f32 %v6335, %v6623
        %v6625 = vpop.f32.mrf.mxu0
        %v6626 = vpop.f32.mrf.mxu0
        %v6627 = vadd.f32 %v6338, %v6626
        %v6628 = vpop.f32.mrf.mxu0
        %6629 = vmatprep.mubr.bf16.mxu0 %v5225
        %6630 = vmatmul.mubr.bf16.gmra.mxu0 %v5224
        %v6631 = vpop.f32.mrf.mxu0
        %v6632 = vadd.f32 %v6343, %v6631
        %v6633 = vpop.f32.mrf.mxu0
        %v6634 = vpop.f32.mrf.mxu0
        %v6635 = vadd.f32 %v6346, %v6634
        %v6636 = vpop.f32.mrf.mxu0
        %6637 = vmatprep.mubr.bf16.mxu0 %v5233
        %6638 = vmatmul.mubr.bf16.gmra.mxu0 %v5232
        %v6639 = vpop.f32.mrf.mxu0
        %v6640 = vadd.f32 %v6351, %v6639
        %v6641 = vpop.f32.mrf.mxu0
        %v6642 = vpop.f32.mrf.mxu0
        %v6643 = vadd.f32 %v6354, %v6642
        %v6644 = vpop.f32.mrf.mxu0
        %6645 = vmatprep.mubr.bf16.mxu0 %v5241
        %6646 = vmatmul.mubr.bf16.gmra.mxu0 %v5240
        %v6647 = vpop.f32.mrf.mxu0
        %v6648 = vadd.f32 %v6359, %v6647
        %v6649 = vpop.f32.mrf.mxu0
        %v6650 = vpop.f32.mrf.mxu0
        %v6651 = vadd.f32 %v6362, %v6650
        %v6652 = vpop.f32.mrf.mxu0
        %6653 = vmatprep.mubr.bf16.mxu0 %v5249
        %6654 = vmatmul.mubr.bf16.gmra.mxu0 %v5248
        %v6655 = vpop.f32.mrf.mxu0
        %v6656 = vadd.f32 %v6367, %v6655
        %v6657 = vpop.f32.mrf.mxu0
        %v6658 = vpop.f32.mrf.mxu0
        %v6659 = vadd.f32 %v6370, %v6658
        %v6660 = vpop.f32.mrf.mxu0
        %6661 = vmatprep.mubr.bf16.mxu0 %v5257
        %6662 = vmatmul.mubr.bf16.gmra.mxu0 %v5256
        %v6663 = vpop.f32.mrf.mxu0
        %v6664 = vadd.f32 %v6375, %v6663
        %v6665 = vpop.f32.mrf.mxu0
        %v6666 = vpop.f32.mrf.mxu0
        %v6667 = vadd.f32 %v6378, %v6666
        %v6668 = vpop.f32.mrf.mxu0
        %6669 = vmatprep.mubr.bf16.mxu0 %v5265
        %6670 = vmatmul.mubr.bf16.gmra.mxu0 %v5264
        %v6671 = vpop.f32.mrf.mxu0
        %v6672 = vadd.f32 %v6383, %v6671
        %v6673 = vpop.f32.mrf.mxu0
        %v6674 = vpop.f32.mrf.mxu0
        %v6675 = vadd.f32 %v6386, %v6674
        %v6676 = vpop.f32.mrf.mxu0
        %6677 = vmatprep.mubr.bf16.mxu0 %v5273
        %6678 = vmatmul.mubr.bf16.gmra.mxu0 %v5272
        %v6679 = vpop.f32.mrf.mxu0
        %v6680 = vadd.f32 %v6391, %v6679
        %v6681 = vpop.f32.mrf.mxu0
        %v6682 = vpop.f32.mrf.mxu0
        %v6683 = vadd.f32 %v6394, %v6682
        %v6684 = vpop.f32.mrf.mxu0
        %6685 = vmatprep.mubr.bf16.mxu0 %v5281
        %6686 = vmatmul.mubr.bf16.gmra.mxu0 %v5280
        %v6687 = vpop.f32.mrf.mxu0
        %v6688 = vadd.f32 %v6399, %v6687
        %v6689 = vpop.f32.mrf.mxu0
        %v6690 = vpop.f32.mrf.mxu0
        %v6691 = vadd.f32 %v6402, %v6690
        %v6692 = vpop.f32.mrf.mxu0
        %6693 = vmatprep.mubr.bf16.mxu0 %v5289
        %6694 = vmatmul.mubr.bf16.gmra.mxu0 %v5288
        %v6695 = vpop.f32.mrf.mxu0
        %v6696 = vadd.f32 %v6407, %v6695
        %v6697 = vpop.f32.mrf.mxu0
        %v6698 = vpop.f32.mrf.mxu0
        %v6699 = vadd.f32 %v6410, %v6698
        %v6700 = vpop.f32.mrf.mxu0
        %6701 = vmatprep.mubr.bf16.mxu0 %v5297
        %6702 = vmatmul.mubr.bf16.gmra.mxu0 %v5296
        %v6703 = vpop.f32.mrf.mxu0
        %v6704 = vadd.f32 %v6415, %v6703
        %v6705 = vpop.f32.mrf.mxu0
        %v6706 = vpop.f32.mrf.mxu0
        %v6707 = vadd.f32 %v6418, %v6706
        %v6708 = vpop.f32.mrf.mxu0
        %6709 = vmatprep.mubr.bf16.mxu0 %v5305
        %6710 = vmatmul.mubr.bf16.gmra.mxu0 %v5304
        %v6711 = vpop.f32.mrf.mxu0
        %v6712 = vadd.f32 %v6423, %v6711
        %v6713 = vpop.f32.mrf.mxu0
        %v6714 = vpop.f32.mrf.mxu0
        %v6715 = vadd.f32 %v6426, %v6714
        %v6716 = vpop.f32.mrf.mxu0
        %6717 = vmatprep.mubr.bf16.mxu0 %v5313
        %6718 = vmatmul.mubr.bf16.gmra.mxu0 %v5312
        %v6719 = vpop.f32.mrf.mxu0
        %v6720 = vadd.f32 %v6431, %v6719
        %v6721 = vpop.f32.mrf.mxu0
        %v6722 = vpop.f32.mrf.mxu0
        %v6723 = vadd.f32 %v6434, %v6722
        %v6724 = vpop.f32.mrf.mxu0
        %6725 = vmatprep.mubr.bf16.mxu0 %v5321
        %6726 = vmatmul.mubr.bf16.gmra.mxu0 %v5320
        %v6727 = vpop.f32.mrf.mxu0
        %v6728 = vadd.f32 %v6439, %v6727
        %v6729 = vpop.f32.mrf.mxu0
        %v6730 = vpop.f32.mrf.mxu0
        %v6731 = vadd.f32 %v6442, %v6730
        %v6732 = vpop.f32.mrf.mxu0
        %6733 = vmatprep.mubr.bf16.mxu0 %v5329
        %6734 = vmatmul.mubr.bf16.gmra.mxu0 %v5328
        %v6735 = vpop.f32.mrf.mxu0
        %v6736 = vadd.f32 %v6447, %v6735
        %v6737 = vpop.f32.mrf.mxu0
        %v6738 = vpop.f32.mrf.mxu0
        %v6739 = vadd.f32 %v6450, %v6738
        %v6740 = vpop.f32.mrf.mxu0
        %6741 = vdwg.mxu0
        %v6742 = vmax.f32 %v6488, 0.0
        %v6743 = vmax.f32 %v6491, 0.0
        %v6744 = vmax.f32 %v6496, 0.0
        %v6745 = vmax.f32 %v6499, 0.0
        %v6746 = vmax.f32 %v6504, 0.0
        %v6747 = vmax.f32 %v6507, 0.0
        %v6748 = vmax.f32 %v6512, 0.0
        %v6749 = vmax.f32 %v6515, 0.0
        %v6750 = vmax.f32 %v6520, 0.0
        %v6751 = vmax.f32 %v6523, 0.0
        %v6752 = vmax.f32 %v6528, 0.0
        %v6753 = vmax.f32 %v6531, 0.0
        %v6754 = vmax.f32 %v6536, 0.0
        %v6755 = vmax.f32 %v6539, 0.0
        %v6756 = vmax.f32 %v6544, 0.0
        %v6757 = vmax.f32 %v6547, 0.0
        %v6758 = vmax.f32 %v6552, 0.0
        %v6759 = vmax.f32 %v6555, 0.0
        %v6760 = vmax.f32 %v6560, 0.0
        %v6761 = vmax.f32 %v6563, 0.0
        %v6762 = vmax.f32 %v6568, 0.0
        %v6763 = vmax.f32 %v6571, 0.0
        %v6764 = vmax.f32 %v6576, 0.0
        %v6765 = vmax.f32 %v6579, 0.0
        %v6766 = vmax.f32 %v6584, 0.0
        %v6767 = vmax.f32 %v6587, 0.0
        %v6768 = vmax.f32 %v6592, 0.0
        %v6769 = vmax.f32 %v6595, 0.0
        %v6770 = vmax.f32 %v6600, 0.0
        %v6771 = vmax.f32 %v6603, 0.0
        %v6772 = vmax.f32 %v6608, 0.0
        %v6773 = vmax.f32 %v6611, 0.0
        %v6774 = vmax.f32 %v6616, 0.0
        %v6775 = vmax.f32 %v6619, 0.0
        %v6776 = vmax.f32 %v6624, 0.0
        %v6777 = vmax.f32 %v6627, 0.0
        %v6778 = vmax.f32 %v6632, 0.0
        %v6779 = vmax.f32 %v6635, 0.0
        %v6780 = vmax.f32 %v6640, 0.0
        %v6781 = vmax.f32 %v6643, 0.0
        %v6782 = vmax.f32 %v6648, 0.0
        %v6783 = vmax.f32 %v6651, 0.0
        %v6784 = vmax.f32 %v6656, 0.0
        %v6785 = vmax.f32 %v6659, 0.0
        %v6786 = vmax.f32 %v6664, 0.0
        %v6787 = vmax.f32 %v6667, 0.0
        %v6788 = vmax.f32 %v6672, 0.0
        %v6789 = vmax.f32 %v6675, 0.0
        %v6790 = vmax.f32 %v6680, 0.0
        %v6791 = vmax.f32 %v6683, 0.0
        %v6792 = vmax.f32 %v6688, 0.0
        %v6793 = vmax.f32 %v6691, 0.0
        %v6794 = vmax.f32 %v6696, 0.0
        %v6795 = vmax.f32 %v6699, 0.0
        %v6796 = vmax.f32 %v6704, 0.0
        %v6797 = vmax.f32 %v6707, 0.0
        %v6798 = vmax.f32 %v6712, 0.0
        %v6799 = vmax.f32 %v6715, 0.0
        %v6800 = vmax.f32 %v6720, 0.0
        %v6801 = vmax.f32 %v6723, 0.0
        %v6802 = vmax.f32 %v6728, 0.0
        %v6803 = vmax.f32 %v6731, 0.0
        %v6804 = vmax.f32 %v6736, 0.0
        %v6805 = vmax.f32 %v6739, 0.0
        %v6806 = vld [vmem:[%s9] sm:$0xff]
        %v6807 = vld [vmem:[%s9 + $0x8] sm:$0xff]
        %v6808 = vld [vmem:[%s9 + $0x10] sm:$0xff]
        %v6809 = vld [vmem:[%s9 + $0x18] sm:$0xff]
        %v6810 = vld [vmem:[%s9 + $0x20] sm:$0xff]
        %v6811 = vld [vmem:[%s9 + $0x28] sm:$0xff]
        %v6812 = vld [vmem:[%s9 + $0x30] sm:$0xff]
        %v6813 = vld [vmem:[%s9 + $0x38] sm:$0xff]
        %v6814 = vld [vmem:[%s9 + $0x40] sm:$0xff]
        %v6815 = vld [vmem:[%s9 + $0x48] sm:$0xff]
        %v6816 = vld [vmem:[%s9 + $0x50] sm:$0xff]
        %v6817 = vld [vmem:[%s9 + $0x58] sm:$0xff]
        %v6818 = vld [vmem:[%s9 + $0x60] sm:$0xff]
        %v6819 = vld [vmem:[%s9 + $0x68] sm:$0xff]
        %v6820 = vld [vmem:[%s9 + $0x70] sm:$0xff]
        %v6821 = vld [vmem:[%s9 + $0x78] sm:$0xff]
        %v6822 = vld [vmem:[%s9 + $0x80] sm:$0xff]
        %v6823 = vld [vmem:[%s9 + $0x88] sm:$0xff]
        %v6824 = vld [vmem:[%s9 + $0x90] sm:$0xff]
        %v6825 = vld [vmem:[%s9 + $0x98] sm:$0xff]
        %v6826 = vld [vmem:[%s9 + $0xa0] sm:$0xff]
        %v6827 = vld [vmem:[%s9 + $0xa8] sm:$0xff]
        %v6828 = vld [vmem:[%s9 + $0xb0] sm:$0xff]
        %v6829 = vld [vmem:[%s9 + $0xb8] sm:$0xff]
        %v6830 = vld [vmem:[%s9 + $0xc0] sm:$0xff]
        %v6831 = vld [vmem:[%s9 + $0xc8] sm:$0xff]
        %v6832 = vld [vmem:[%s9 + $0xd0] sm:$0xff]
        %v6833 = vld [vmem:[%s9 + $0xd8] sm:$0xff]
        %v6834 = vld [vmem:[%s9 + $0xe0] sm:$0xff]
        %v6835 = vld [vmem:[%s9 + $0xe8] sm:$0xff]
        %v6836 = vld [vmem:[%s9 + $0xf0] sm:$0xff]
        %v6837 = vld [vmem:[%s9 + $0xf8] sm:$0xff]
        %v6838 = vld [vmem:[%s9 + $0x100] sm:$0xff]
        %v6839 = vld [vmem:[%s9 + $0x108] sm:$0xff]
        %v6840 = vld [vmem:[%s9 + $0x110] sm:$0xff]
        %v6841 = vld [vmem:[%s9 + $0x118] sm:$0xff]
        %v6842 = vld [vmem:[%s9 + $0x120] sm:$0xff]
        %v6843 = vld [vmem:[%s9 + $0x128] sm:$0xff]
        %v6844 = vld [vmem:[%s9 + $0x130] sm:$0xff]
        %v6845 = vld [vmem:[%s9 + $0x138] sm:$0xff]
        %v6846 = vld [vmem:[%s9 + $0x140] sm:$0xff]
        %v6847 = vld [vmem:[%s9 + $0x148] sm:$0xff]
        %v6848 = vld [vmem:[%s9 + $0x150] sm:$0xff]
        %v6849 = vld [vmem:[%s9 + $0x158] sm:$0xff]
        %v6850 = vld [vmem:[%s9 + $0x160] sm:$0xff]
        %v6851 = vld [vmem:[%s9 + $0x168] sm:$0xff]
        %v6852 = vld [vmem:[%s9 + $0x170] sm:$0xff]
        %v6853 = vld [vmem:[%s9 + $0x178] sm:$0xff]
        %v6854 = vld [vmem:[%s9 + $0x180] sm:$0xff]
        %v6855 = vld [vmem:[%s9 + $0x188] sm:$0xff]
        %v6856 = vld [vmem:[%s9 + $0x190] sm:$0xff]
        %v6857 = vld [vmem:[%s9 + $0x198] sm:$0xff]
        %v6858 = vld [vmem:[%s9 + $0x1a0] sm:$0xff]
        %v6859 = vld [vmem:[%s9 + $0x1a8] sm:$0xff]
        %v6860 = vld [vmem:[%s9 + $0x1b0] sm:$0xff]
        %v6861 = vld [vmem:[%s9 + $0x1b8] sm:$0xff]
        %v6862 = vld [vmem:[%s9 + $0x1c0] sm:$0xff]
        %v6863 = vld [vmem:[%s9 + $0x1c8] sm:$0xff]
        %v6864 = vld [vmem:[%s9 + $0x1d0] sm:$0xff]
        %v6865 = vld [vmem:[%s9 + $0x1d8] sm:$0xff]
        %v6866 = vld [vmem:[%s9 + $0x1e0] sm:$0xff]
        %v6867 = vld [vmem:[%s9 + $0x1e8] sm:$0xff]
        %v6868 = vld [vmem:[%s9 + $0x1f0] sm:$0xff]
        %v6869 = vld [vmem:[%s9 + $0x1f8] sm:$0xff]
        %v6870 = vpack.c.bf16 %v6743, %v6742
        %v6871 = vpack.c.bf16 %v6745, %v6744
        %v6872 = vpack.c.bf16 %v6747, %v6746
        %v6873 = vpack.c.bf16 %v6749, %v6748
        %v6874 = vpack.c.bf16 %v6751, %v6750
        %v6875 = vpack.c.bf16 %v6753, %v6752
        %v6876 = vpack.c.bf16 %v6755, %v6754
        %v6877 = vpack.c.bf16 %v6757, %v6756
        %v6878 = vpack.c.bf16 %v6759, %v6758
        %v6879 = vpack.c.bf16 %v6761, %v6760
        %v6880 = vpack.c.bf16 %v6763, %v6762
        %v6881 = vpack.c.bf16 %v6765, %v6764
        %v6882 = vpack.c.bf16 %v6767, %v6766
        %v6883 = vpack.c.bf16 %v6769, %v6768
        %v6884 = vpack.c.bf16 %v6771, %v6770
        %v6885 = vpack.c.bf16 %v6773, %v6772
        %v6886 = vpack.c.bf16 %v6775, %v6774
        %v6887 = vpack.c.bf16 %v6777, %v6776
        %v6888 = vpack.c.bf16 %v6779, %v6778
        %v6889 = vpack.c.bf16 %v6781, %v6780
        %v6890 = vpack.c.bf16 %v6783, %v6782
        %v6891 = vpack.c.bf16 %v6785, %v6784
        %v6892 = vpack.c.bf16 %v6787, %v6786
        %v6893 = vpack.c.bf16 %v6789, %v6788
        %v6894 = vpack.c.bf16 %v6791, %v6790
        %v6895 = vpack.c.bf16 %v6793, %v6792
        %v6896 = vpack.c.bf16 %v6795, %v6794
        %v6897 = vpack.c.bf16 %v6797, %v6796
        %v6898 = vpack.c.bf16 %v6799, %v6798
        %v6899 = vpack.c.bf16 %v6801, %v6800
        %v6900 = vpack.c.bf16 %v6803, %v6802
        %v6901 = vpack.c.bf16 %v6805, %v6804
        %v6902 = vld [vmem:[%s10] sm:$0xff]
        %v6903 = vld [vmem:[%s10 + $0x8] sm:$0xff]
        %v6904 = vld [vmem:[%s10 + $0x10] sm:$0xff]
        %v6905 = vld [vmem:[%s10 + $0x18] sm:$0xff]
        %v6906 = vld [vmem:[%s10 + $0x20] sm:$0xff]
        %v6907 = vld [vmem:[%s10 + $0x28] sm:$0xff]
        %v6908 = vld [vmem:[%s10 + $0x30] sm:$0xff]
        %v6909 = vld [vmem:[%s10 + $0x38] sm:$0xff]
        %v6910 = vld [vmem:[%s10 + $0x40] sm:$0xff]
        %v6911 = vld [vmem:[%s10 + $0x48] sm:$0xff]
        %v6912 = vld [vmem:[%s10 + $0x50] sm:$0xff]
        %v6913 = vld [vmem:[%s10 + $0x58] sm:$0xff]
        %v6914 = vld [vmem:[%s10 + $0x60] sm:$0xff]
        %v6915 = vld [vmem:[%s10 + $0x68] sm:$0xff]
        %v6916 = vld [vmem:[%s10 + $0x70] sm:$0xff]
        %v6917 = vld [vmem:[%s10 + $0x78] sm:$0xff]
        %v6918 = vld [vmem:[%s10 + $0x80] sm:$0xff]
        %v6919 = vld [vmem:[%s10 + $0x88] sm:$0xff]
        %v6920 = vld [vmem:[%s10 + $0x90] sm:$0xff]
        %v6921 = vld [vmem:[%s10 + $0x98] sm:$0xff]
        %v6922 = vld [vmem:[%s10 + $0xa0] sm:$0xff]
        %v6923 = vld [vmem:[%s10 + $0xa8] sm:$0xff]
        %v6924 = vld [vmem:[%s10 + $0xb0] sm:$0xff]
        %v6925 = vld [vmem:[%s10 + $0xb8] sm:$0xff]
        %v6926 = vld [vmem:[%s10 + $0xc0] sm:$0xff]
        %v6927 = vld [vmem:[%s10 + $0xc8] sm:$0xff]
        %v6928 = vld [vmem:[%s10 + $0xd0] sm:$0xff]
        %v6929 = vld [vmem:[%s10 + $0xd8] sm:$0xff]
        %v6930 = vld [vmem:[%s10 + $0xe0] sm:$0xff]
        %v6931 = vld [vmem:[%s10 + $0xe8] sm:$0xff]
        %v6932 = vld [vmem:[%s10 + $0xf0] sm:$0xff]
        %v6933 = vld [vmem:[%s10 + $0xf8] sm:$0xff]
        %v6998 = vunpack.c.l.b16 %v6806
        %v6999 = vunpack.c.h.b16 %v6806
        %v7000 = vunpack.c.l.b16 %v6807
        %v7001 = vunpack.c.h.b16 %v6807
        %v7002 = vunpack.c.l.b16 %v6808
        %v7003 = vunpack.c.h.b16 %v6808
        %v7004 = vunpack.c.l.b16 %v6809
        %v7005 = vunpack.c.h.b16 %v6809
        %v7006 = vunpack.c.l.b16 %v6810
        %v7007 = vunpack.c.h.b16 %v6810
        %v7008 = vunpack.c.l.b16 %v6811
        %v7009 = vunpack.c.h.b16 %v6811
        %v7010 = vunpack.c.l.b16 %v6812
        %v7011 = vunpack.c.h.b16 %v6812
        %v7012 = vunpack.c.l.b16 %v6813
        %v7013 = vunpack.c.h.b16 %v6813
        %v7014 = vunpack.c.l.b16 %v6814
        %v7015 = vunpack.c.h.b16 %v6814
        %v7016 = vunpack.c.l.b16 %v6815
        %v7017 = vunpack.c.h.b16 %v6815
        %v7018 = vunpack.c.l.b16 %v6816
        %v7019 = vunpack.c.h.b16 %v6816
        %v7020 = vunpack.c.l.b16 %v6817
        %v7021 = vunpack.c.h.b16 %v6817
        %v7022 = vunpack.c.l.b16 %v6818
        %v7023 = vunpack.c.h.b16 %v6818
        %v7024 = vunpack.c.l.b16 %v6819
        %v7025 = vunpack.c.h.b16 %v6819
        %v7026 = vunpack.c.l.b16 %v6820
        %v7027 = vunpack.c.h.b16 %v6820
        %v7028 = vunpack.c.l.b16 %v6821
        %v7029 = vunpack.c.h.b16 %v6821
        %v7030 = vunpack.c.l.b16 %v6822
        %v7031 = vunpack.c.h.b16 %v6822
        %v7032 = vunpack.c.l.b16 %v6823
        %v7033 = vunpack.c.h.b16 %v6823
        %v7034 = vunpack.c.l.b16 %v6824
        %v7035 = vunpack.c.h.b16 %v6824
        %v7036 = vunpack.c.l.b16 %v6825
        %v7037 = vunpack.c.h.b16 %v6825
        %v7038 = vunpack.c.l.b16 %v6826
        %v7039 = vunpack.c.h.b16 %v6826
        %v7040 = vunpack.c.l.b16 %v6827
        %v7041 = vunpack.c.h.b16 %v6827
        %v7042 = vunpack.c.l.b16 %v6828
        %v7043 = vunpack.c.h.b16 %v6828
        %v7044 = vunpack.c.l.b16 %v6829
        %v7045 = vunpack.c.h.b16 %v6829
        %v7046 = vunpack.c.l.b16 %v6830
        %v7047 = vunpack.c.h.b16 %v6830
        %v7048 = vunpack.c.l.b16 %v6831
        %v7049 = vunpack.c.h.b16 %v6831
        %v7050 = vunpack.c.l.b16 %v6832
        %v7051 = vunpack.c.h.b16 %v6832
        %v7052 = vunpack.c.l.b16 %v6833
        %v7053 = vunpack.c.h.b16 %v6833
        %v7054 = vunpack.c.l.b16 %v6834
        %v7055 = vunpack.c.h.b16 %v6834
        %v7056 = vunpack.c.l.b16 %v6835
        %v7057 = vunpack.c.h.b16 %v6835
        %v7058 = vunpack.c.l.b16 %v6836
        %v7059 = vunpack.c.h.b16 %v6836
        %v7060 = vunpack.c.l.b16 %v6837
        %v7061 = vunpack.c.h.b16 %v6837
        %v7062 = vunpack.c.l.b16 %v6838
        %v7063 = vunpack.c.h.b16 %v6838
        %v7064 = vunpack.c.l.b16 %v6839
        %v7065 = vunpack.c.h.b16 %v6839
        %v7066 = vunpack.c.l.b16 %v6840
        %v7067 = vunpack.c.h.b16 %v6840
        %v7068 = vunpack.c.l.b16 %v6841
        %v7069 = vunpack.c.h.b16 %v6841
        %v7070 = vunpack.c.l.b16 %v6842
        %v7071 = vunpack.c.h.b16 %v6842
        %v7072 = vunpack.c.l.b16 %v6843
        %v7073 = vunpack.c.h.b16 %v6843
        %v7074 = vunpack.c.l.b16 %v6844
        %v7075 = vunpack.c.h.b16 %v6844
        %v7076 = vunpack.c.l.b16 %v6845
        %v7077 = vunpack.c.h.b16 %v6845
        %v7078 = vunpack.c.l.b16 %v6846
        %v7079 = vunpack.c.h.b16 %v6846
        %v7080 = vunpack.c.l.b16 %v6847
        %v7081 = vunpack.c.h.b16 %v6847
        %v7082 = vunpack.c.l.b16 %v6848
        %v7083 = vunpack.c.h.b16 %v6848
        %v7084 = vunpack.c.l.b16 %v6849
        %v7085 = vunpack.c.h.b16 %v6849
        %v7086 = vunpack.c.l.b16 %v6850
        %v7087 = vunpack.c.h.b16 %v6850
        %v7088 = vunpack.c.l.b16 %v6851
        %v7089 = vunpack.c.h.b16 %v6851
        %v7090 = vunpack.c.l.b16 %v6852
        %v7091 = vunpack.c.h.b16 %v6852
        %v7092 = vunpack.c.l.b16 %v6853
        %v7093 = vunpack.c.h.b16 %v6853
        %v7094 = vunpack.c.l.b16 %v6854
        %v7095 = vunpack.c.h.b16 %v6854
        %v7096 = vunpack.c.l.b16 %v6855
        %v7097 = vunpack.c.h.b16 %v6855
        %v7098 = vunpack.c.l.b16 %v6856
        %v7099 = vunpack.c.h.b16 %v6856
        %v7100 = vunpack.c.l.b16 %v6857
        %v7101 = vunpack.c.h.b16 %v6857
        %v7102 = vunpack.c.l.b16 %v6858
        %v7103 = vunpack.c.h.b16 %v6858
        %v7104 = vunpack.c.l.b16 %v6859
        %v7105 = vunpack.c.h.b16 %v6859
        %v7106 = vunpack.c.l.b16 %v6860
        %v7107 = vunpack.c.h.b16 %v6860
        %v7108 = vunpack.c.l.b16 %v6861
        %v7109 = vunpack.c.h.b16 %v6861
        %v7110 = vunpack.c.l.b16 %v6862
        %v7111 = vunpack.c.h.b16 %v6862
        %v7112 = vunpack.c.l.b16 %v6863
        %v7113 = vunpack.c.h.b16 %v6863
        %v7114 = vunpack.c.l.b16 %v6864
        %v7115 = vunpack.c.h.b16 %v6864
        %v7116 = vunpack.c.l.b16 %v6865
        %v7117 = vunpack.c.h.b16 %v6865
        %v7118 = vunpack.c.l.b16 %v6866
        %v7119 = vunpack.c.h.b16 %v6866
        %v7120 = vunpack.c.l.b16 %v6867
        %v7121 = vunpack.c.h.b16 %v6867
        %v7122 = vunpack.c.l.b16 %v6868
        %v7123 = vunpack.c.h.b16 %v6868
        %v7124 = vunpack.c.l.b16 %v6869
        %v7125 = vunpack.c.h.b16 %v6869
        %v7126 = vpack.c.b16 %v7002, %v6998
        %v7127 = vpack.c.b16 %v7003, %v6999
        %v7128 = vpack.c.b16 %v7004, %v7000
        %v7129 = vpack.c.b16 %v7005, %v7001
        %v7130 = vpack.c.b16 %v7010, %v7006
        %v7131 = vpack.c.b16 %v7011, %v7007
        %v7132 = vpack.c.b16 %v7012, %v7008
        %v7133 = vpack.c.b16 %v7013, %v7009
        %v7134 = vpack.c.b16 %v7018, %v7014
        %v7135 = vpack.c.b16 %v7019, %v7015
        %v7136 = vpack.c.b16 %v7020, %v7016
        %v7137 = vpack.c.b16 %v7021, %v7017
        %v7138 = vpack.c.b16 %v7026, %v7022
        %v7139 = vpack.c.b16 %v7027, %v7023
        %v7140 = vpack.c.b16 %v7028, %v7024
        %v7141 = vpack.c.b16 %v7029, %v7025
        %v7142 = vpack.c.b16 %v7034, %v7030
        %v7143 = vpack.c.b16 %v7035, %v7031
        %v7144 = vpack.c.b16 %v7036, %v7032
        %v7145 = vpack.c.b16 %v7037, %v7033
        %v7146 = vpack.c.b16 %v7042, %v7038
        %v7147 = vpack.c.b16 %v7043, %v7039
        %v7148 = vpack.c.b16 %v7044, %v7040
        %v7149 = vpack.c.b16 %v7045, %v7041
        %v7150 = vpack.c.b16 %v7050, %v7046
        %v7151 = vpack.c.b16 %v7051, %v7047
        %v7152 = vpack.c.b16 %v7052, %v7048
        %v7153 = vpack.c.b16 %v7053, %v7049
        %v7154 = vpack.c.b16 %v7058, %v7054
        %v7155 = vpack.c.b16 %v7059, %v7055
        %v7156 = vpack.c.b16 %v7060, %v7056
        %v7157 = vpack.c.b16 %v7061, %v7057
        %v7158 = vpack.c.b16 %v7066, %v7062
        %v7159 = vpack.c.b16 %v7067, %v7063
        %v7160 = vpack.c.b16 %v7068, %v7064
        %v7161 = vpack.c.b16 %v7069, %v7065
        %v7162 = vpack.c.b16 %v7074, %v7070
        %v7163 = vpack.c.b16 %v7075, %v7071
        %v7164 = vpack.c.b16 %v7076, %v7072
        %v7165 = vpack.c.b16 %v7077, %v7073
        %v7166 = vpack.c.b16 %v7082, %v7078
        %v7167 = vpack.c.b16 %v7083, %v7079
        %v7168 = vpack.c.b16 %v7084, %v7080
        %v7169 = vpack.c.b16 %v7085, %v7081
        %v7170 = vpack.c.b16 %v7090, %v7086
        %v7171 = vpack.c.b16 %v7091, %v7087
        %v7172 = vpack.c.b16 %v7092, %v7088
        %v7173 = vpack.c.b16 %v7093, %v7089
        %v7174 = vpack.c.b16 %v7098, %v7094
        %v7175 = vpack.c.b16 %v7099, %v7095
        %v7176 = vpack.c.b16 %v7100, %v7096
        %v7177 = vpack.c.b16 %v7101, %v7097
        %v7178 = vpack.c.b16 %v7106, %v7102
        %v7179 = vpack.c.b16 %v7107, %v7103
        %v7180 = vpack.c.b16 %v7108, %v7104
        %v7181 = vpack.c.b16 %v7109, %v7105
        %v7182 = vpack.c.b16 %v7114, %v7110
        %v7183 = vpack.c.b16 %v7115, %v7111
        %v7184 = vpack.c.b16 %v7116, %v7112
        %v7185 = vpack.c.b16 %v7117, %v7113
        %v7186 = vpack.c.b16 %v7122, %v7118
        %v7187 = vpack.c.b16 %v7123, %v7119
        %v7188 = vpack.c.b16 %v7124, %v7120
        %v7189 = vpack.c.b16 %v7125, %v7121
        %7254 = vmatprep.subr.bf16.mxu0 0
        %7255 = vmatpush1.bf16.msra.mxu0 %v6877
        %7256 = vmatprep.subr.bf16.mxu0 0
        %7257 = vmatpush1.bf16.msra.mxu0 %v6876
        %7258 = vmatprep.subr.bf16.mxu0 0
        %7259 = vmatpush1.bf16.msra.mxu0 %v6875
        %7260 = vmatprep.subr.bf16.mxu0 0
        %7261 = vmatpush1.bf16.msra.mxu0 %v6874
        %7262 = vmatprep.subr.bf16.mxu0 0
        %7263 = vmatpush1.bf16.msra.mxu0 %v6873
        %7264 = vmatprep.subr.bf16.mxu0 0
        %7265 = vmatpush1.bf16.msra.mxu0 %v6872
        %7266 = vmatprep.subr.bf16.mxu0 0
        %7267 = vmatpush1.bf16.msra.mxu0 %v6871
        %7268 = vmatprep.subr.bf16.mxu0 0
        %7269 = vmatpush1.bf16.msra.mxu0 %v6870
        %7270 = vmatprep.subr.bf16.mxu0 0
        %7271 = vmatpush2.bf16.msra.mxu0 %v6885
        %7272 = vmatprep.subr.bf16.mxu0 0
        %7273 = vmatpush2.bf16.msra.mxu0 %v6884
        %7274 = vmatprep.subr.bf16.mxu0 0
        %7275 = vmatpush2.bf16.msra.mxu0 %v6883
        %7276 = vmatprep.subr.bf16.mxu0 0
        %7277 = vmatpush2.bf16.msra.mxu0 %v6882
        %7278 = vmatprep.subr.bf16.mxu0 0
        %7279 = vmatpush2.bf16.msra.mxu0 %v6881
        %7280 = vmatprep.subr.bf16.mxu0 0
        %7281 = vmatpush2.bf16.msra.mxu0 %v6880
        %7282 = vmatprep.subr.bf16.mxu0 0
        %7283 = vmatpush2.bf16.msra.mxu0 %v6879
        %7284 = vmatprep.subr.bf16.mxu0 0
        %7285 = vmatpush2.bf16.msra.mxu0 %v6878
        %7286 = vmatprep.mubr.bf16.mxu0 %v7127
        %7287 = vmatmul.mubr.bf16.gmra.mxu0 %v7126
        %v7288 = vpop.f32.mrf.mxu0
        %v7289 = vadd.f32 %v6902, %v7288
        %v7290 = vpop.f32.mrf.mxu0
        %v7291 = vpop.f32.mrf.mxu0
        %v7292 = vadd.f32 %v6903, %v7291
        %v7293 = vpop.f32.mrf.mxu0
        %7294 = vmatprep.mubr.bf16.mxu0 %v7131
        %7295 = vmatmul.mubr.bf16.gmra.mxu0 %v7130
        %v7296 = vpop.f32.mrf.mxu0
        %v7297 = vadd.f32 %v6904, %v7296
        %v7298 = vpop.f32.mrf.mxu0
        %v7299 = vpop.f32.mrf.mxu0
        %v7300 = vadd.f32 %v6905, %v7299
        %v7301 = vpop.f32.mrf.mxu0
        %7302 = vmatprep.mubr.bf16.mxu0 %v7135
        %7303 = vmatmul.mubr.bf16.gmra.mxu0 %v7134
        %v7304 = vpop.f32.mrf.mxu0
        %v7305 = vadd.f32 %v6906, %v7304
        %v7306 = vpop.f32.mrf.mxu0
        %v7307 = vpop.f32.mrf.mxu0
        %v7308 = vadd.f32 %v6907, %v7307
        %v7309 = vpop.f32.mrf.mxu0
        %7310 = vmatprep.mubr.bf16.mxu0 %v7139
        %7311 = vmatmul.mubr.bf16.gmra.mxu0 %v7138
        %v7312 = vpop.f32.mrf.mxu0
        %v7313 = vadd.f32 %v6908, %v7312
        %v7314 = vpop.f32.mrf.mxu0
        %v7315 = vpop.f32.mrf.mxu0
        %v7316 = vadd.f32 %v6909, %v7315
        %v7317 = vpop.f32.mrf.mxu0
        %7318 = vmatprep.mubr.bf16.mxu0 %v7143
        %7319 = vmatmul.mubr.bf16.gmra.mxu0 %v7142
        %v7320 = vpop.f32.mrf.mxu0
        %v7321 = vadd.f32 %v6910, %v7320
        %v7322 = vpop.f32.mrf.mxu0
        %v7323 = vpop.f32.mrf.mxu0
        %v7324 = vadd.f32 %v6911, %v7323
        %v7325 = vpop.f32.mrf.mxu0
        %7326 = vmatprep.mubr.bf16.mxu0 %v7147
        %7327 = vmatmul.mubr.bf16.gmra.mxu0 %v7146
        %v7328 = vpop.f32.mrf.mxu0
        %v7329 = vadd.f32 %v6912, %v7328
        %v7330 = vpop.f32.mrf.mxu0
        %v7331 = vpop.f32.mrf.mxu0
        %v7332 = vadd.f32 %v6913, %v7331
        %v7333 = vpop.f32.mrf.mxu0
        %7334 = vmatprep.mubr.bf16.mxu0 %v7151
        %7335 = vmatmul.mubr.bf16.gmra.mxu0 %v7150
        %v7336 = vpop.f32.mrf.mxu0
        %v7337 = vadd.f32 %v6914, %v7336
        %v7338 = vpop.f32.mrf.mxu0
        %v7339 = vpop.f32.mrf.mxu0
        %v7340 = vadd.f32 %v6915, %v7339
        %v7341 = vpop.f32.mrf.mxu0
        %7342 = vmatprep.mubr.bf16.mxu0 %v7155
        %7343 = vmatmul.mubr.bf16.gmra.mxu0 %v7154
        %v7344 = vpop.f32.mrf.mxu0
        %v7345 = vadd.f32 %v6916, %v7344
        %v7346 = vpop.f32.mrf.mxu0
        %v7347 = vpop.f32.mrf.mxu0
        %v7348 = vadd.f32 %v6917, %v7347
        %v7349 = vpop.f32.mrf.mxu0
        %7350 = vmatprep.mubr.bf16.mxu0 %v7159
        %7351 = vmatmul.mubr.bf16.gmra.mxu0 %v7158
        %v7352 = vpop.f32.mrf.mxu0
        %v7353 = vadd.f32 %v6918, %v7352
        %v7354 = vpop.f32.mrf.mxu0
        %v7355 = vpop.f32.mrf.mxu0
        %v7356 = vadd.f32 %v6919, %v7355
        %v7357 = vpop.f32.mrf.mxu0
        %7358 = vmatprep.mubr.bf16.mxu0 %v7163
        %7359 = vmatmul.mubr.bf16.gmra.mxu0 %v7162
        %v7360 = vpop.f32.mrf.mxu0
        %v7361 = vadd.f32 %v6920, %v7360
        %v7362 = vpop.f32.mrf.mxu0
        %v7363 = vpop.f32.mrf.mxu0
        %v7364 = vadd.f32 %v6921, %v7363
        %v7365 = vpop.f32.mrf.mxu0
        %7366 = vmatprep.mubr.bf16.mxu0 %v7167
        %7367 = vmatmul.mubr.bf16.gmra.mxu0 %v7166
        %v7368 = vpop.f32.mrf.mxu0
        %v7369 = vadd.f32 %v6922, %v7368
        %v7370 = vpop.f32.mrf.mxu0
        %v7371 = vpop.f32.mrf.mxu0
        %v7372 = vadd.f32 %v6923, %v7371
        %v7373 = vpop.f32.mrf.mxu0
        %7374 = vmatprep.mubr.bf16.mxu0 %v7171
        %7375 = vmatmul.mubr.bf16.gmra.mxu0 %v7170
        %v7376 = vpop.f32.mrf.mxu0
        %v7377 = vadd.f32 %v6924, %v7376
        %v7378 = vpop.f32.mrf.mxu0
        %v7379 = vpop.f32.mrf.mxu0
        %v7380 = vadd.f32 %v6925, %v7379
        %v7381 = vpop.f32.mrf.mxu0
        %7382 = vmatprep.mubr.bf16.mxu0 %v7175
        %7383 = vmatmul.mubr.bf16.gmra.mxu0 %v7174
        %v7384 = vpop.f32.mrf.mxu0
        %v7385 = vadd.f32 %v6926, %v7384
        %v7386 = vpop.f32.mrf.mxu0
        %v7387 = vpop.f32.mrf.mxu0
        %v7388 = vadd.f32 %v6927, %v7387
        %v7389 = vpop.f32.mrf.mxu0
        %7390 = vmatprep.mubr.bf16.mxu0 %v7179
        %7391 = vmatmul.mubr.bf16.gmra.mxu0 %v7178
        %v7392 = vpop.f32.mrf.mxu0
        %v7393 = vadd.f32 %v6928, %v7392
        %v7394 = vpop.f32.mrf.mxu0
        %v7395 = vpop.f32.mrf.mxu0
        %v7396 = vadd.f32 %v6929, %v7395
        %v7397 = vpop.f32.mrf.mxu0
        %7398 = vmatprep.mubr.bf16.mxu0 %v7183
        %7399 = vmatmul.mubr.bf16.gmra.mxu0 %v7182
        %v7400 = vpop.f32.mrf.mxu0
        %v7401 = vadd.f32 %v6930, %v7400
        %v7402 = vpop.f32.mrf.mxu0
        %v7403 = vpop.f32.mrf.mxu0
        %v7404 = vadd.f32 %v6931, %v7403
        %v7405 = vpop.f32.mrf.mxu0
        %7406 = vmatprep.mubr.bf16.mxu0 %v7187
        %7407 = vmatmul.mubr.bf16.gmra.mxu0 %v7186
        %v7408 = vpop.f32.mrf.mxu0
        %v7409 = vadd.f32 %v6932, %v7408
        %v7410 = vpop.f32.mrf.mxu0
        %v7411 = vpop.f32.mrf.mxu0
        %v7412 = vadd.f32 %v6933, %v7411
        %v7413 = vpop.f32.mrf.mxu0
        %7414 = vdwg.mxu0
        %7415 = vmatprep.subr.bf16.mxu0 0
        %7416 = vmatpush1.bf16.msra.mxu0 %v6893
        %7417 = vmatprep.subr.bf16.mxu0 0
        %7418 = vmatpush1.bf16.msra.mxu0 %v6892
        %7419 = vmatprep.subr.bf16.mxu0 0
        %7420 = vmatpush1.bf16.msra.mxu0 %v6891
        %7421 = vmatprep.subr.bf16.mxu0 0
        %7422 = vmatpush1.bf16.msra.mxu0 %v6890
        %7423 = vmatprep.subr.bf16.mxu0 0
        %7424 = vmatpush1.bf16.msra.mxu0 %v6889
        %7425 = vmatprep.subr.bf16.mxu0 0
        %7426 = vmatpush1.bf16.msra.mxu0 %v6888
        %7427 = vmatprep.subr.bf16.mxu0 0
        %7428 = vmatpush1.bf16.msra.mxu0 %v6887
        %7429 = vmatprep.subr.bf16.mxu0 0
        %7430 = vmatpush1.bf16.msra.mxu0 %v6886
        %7431 = vmatprep.subr.bf16.mxu0 0
        %7432 = vmatpush2.bf16.msra.mxu0 %v6901
        %7433 = vmatprep.subr.bf16.mxu0 0
        %7434 = vmatpush2.bf16.msra.mxu0 %v6900
        %7435 = vmatprep.subr.bf16.mxu0 0
        %7436 = vmatpush2.bf16.msra.mxu0 %v6899
        %7437 = vmatprep.subr.bf16.mxu0 0
        %7438 = vmatpush2.bf16.msra.mxu0 %v6898
        %7439 = vmatprep.subr.bf16.mxu0 0
        %7440 = vmatpush2.bf16.msra.mxu0 %v6897
        %7441 = vmatprep.subr.bf16.mxu0 0
        %7442 = vmatpush2.bf16.msra.mxu0 %v6896
        %7443 = vmatprep.subr.bf16.mxu0 0
        %7444 = vmatpush2.bf16.msra.mxu0 %v6895
        %7445 = vmatprep.subr.bf16.mxu0 0
        %7446 = vmatpush2.bf16.msra.mxu0 %v6894
        %7447 = vmatprep.mubr.bf16.mxu0 %v7129
        %7448 = vmatmul.mubr.bf16.gmra.mxu0 %v7128
        %v7449 = vpop.f32.mrf.mxu0
        %v7450 = vadd.f32 %v7289, %v7449
        %v7451 = vpop.f32.mrf.mxu0
        %v7452 = vpop.f32.mrf.mxu0
        %v7453 = vadd.f32 %v7292, %v7452
        %v7454 = vpop.f32.mrf.mxu0
        %7455 = vmatprep.mubr.bf16.mxu0 %v7133
        %7456 = vmatmul.mubr.bf16.gmra.mxu0 %v7132
        %v7457 = vpop.f32.mrf.mxu0
        %v7458 = vadd.f32 %v7297, %v7457
        %v7459 = vpop.f32.mrf.mxu0
        %v7460 = vpop.f32.mrf.mxu0
        %v7461 = vadd.f32 %v7300, %v7460
        %v7462 = vpop.f32.mrf.mxu0
        %7463 = vmatprep.mubr.bf16.mxu0 %v7137
        %7464 = vmatmul.mubr.bf16.gmra.mxu0 %v7136
        %v7465 = vpop.f32.mrf.mxu0
        %v7466 = vadd.f32 %v7305, %v7465
        %v7467 = vpop.f32.mrf.mxu0
        %v7468 = vpop.f32.mrf.mxu0
        %v7469 = vadd.f32 %v7308, %v7468
        %v7470 = vpop.f32.mrf.mxu0
        %7471 = vmatprep.mubr.bf16.mxu0 %v7141
        %7472 = vmatmul.mubr.bf16.gmra.mxu0 %v7140
        %v7473 = vpop.f32.mrf.mxu0
        %v7474 = vadd.f32 %v7313, %v7473
        %v7475 = vpop.f32.mrf.mxu0
        %v7476 = vpop.f32.mrf.mxu0
        %v7477 = vadd.f32 %v7316, %v7476
        %v7478 = vpop.f32.mrf.mxu0
        %7479 = vmatprep.mubr.bf16.mxu0 %v7145
        %7480 = vmatmul.mubr.bf16.gmra.mxu0 %v7144
        %v7481 = vpop.f32.mrf.mxu0
        %v7482 = vadd.f32 %v7321, %v7481
        %v7483 = vpop.f32.mrf.mxu0
        %v7484 = vpop.f32.mrf.mxu0
        %v7485 = vadd.f32 %v7324, %v7484
        %v7486 = vpop.f32.mrf.mxu0
        %7487 = vmatprep.mubr.bf16.mxu0 %v7149
        %7488 = vmatmul.mubr.bf16.gmra.mxu0 %v7148
        %v7489 = vpop.f32.mrf.mxu0
        %v7490 = vadd.f32 %v7329, %v7489
        %v7491 = vpop.f32.mrf.mxu0
        %v7492 = vpop.f32.mrf.mxu0
        %v7493 = vadd.f32 %v7332, %v7492
        %v7494 = vpop.f32.mrf.mxu0
        %7495 = vmatprep.mubr.bf16.mxu0 %v7153
        %7496 = vmatmul.mubr.bf16.gmra.mxu0 %v7152
        %v7497 = vpop.f32.mrf.mxu0
        %v7498 = vadd.f32 %v7337, %v7497
        %v7499 = vpop.f32.mrf.mxu0
        %v7500 = vpop.f32.mrf.mxu0
        %v7501 = vadd.f32 %v7340, %v7500
        %v7502 = vpop.f32.mrf.mxu0
        %7503 = vmatprep.mubr.bf16.mxu0 %v7157
        %7504 = vmatmul.mubr.bf16.gmra.mxu0 %v7156
        %v7505 = vpop.f32.mrf.mxu0
        %v7506 = vadd.f32 %v7345, %v7505
        %v7507 = vpop.f32.mrf.mxu0
        %v7508 = vpop.f32.mrf.mxu0
        %v7509 = vadd.f32 %v7348, %v7508
        %v7510 = vpop.f32.mrf.mxu0
        %7511 = vmatprep.mubr.bf16.mxu0 %v7161
        %7512 = vmatmul.mubr.bf16.gmra.mxu0 %v7160
        %v7513 = vpop.f32.mrf.mxu0
        %v7514 = vadd.f32 %v7353, %v7513
        %v7515 = vpop.f32.mrf.mxu0
        %v7516 = vpop.f32.mrf.mxu0
        %v7517 = vadd.f32 %v7356, %v7516
        %v7518 = vpop.f32.mrf.mxu0
        %7519 = vmatprep.mubr.bf16.mxu0 %v7165
        %7520 = vmatmul.mubr.bf16.gmra.mxu0 %v7164
        %v7521 = vpop.f32.mrf.mxu0
        %v7522 = vadd.f32 %v7361, %v7521
        %v7523 = vpop.f32.mrf.mxu0
        %v7524 = vpop.f32.mrf.mxu0
        %v7525 = vadd.f32 %v7364, %v7524
        %v7526 = vpop.f32.mrf.mxu0
        %7527 = vmatprep.mubr.bf16.mxu0 %v7169
        %7528 = vmatmul.mubr.bf16.gmra.mxu0 %v7168
        %v7529 = vpop.f32.mrf.mxu0
        %v7530 = vadd.f32 %v7369, %v7529
        %v7531 = vpop.f32.mrf.mxu0
        %v7532 = vpop.f32.mrf.mxu0
        %v7533 = vadd.f32 %v7372, %v7532
        %v7534 = vpop.f32.mrf.mxu0
        %7535 = vmatprep.mubr.bf16.mxu0 %v7173
        %7536 = vmatmul.mubr.bf16.gmra.mxu0 %v7172
        %v7537 = vpop.f32.mrf.mxu0
        %v7538 = vadd.f32 %v7377, %v7537
        %v7539 = vpop.f32.mrf.mxu0
        %v7540 = vpop.f32.mrf.mxu0
        %v7541 = vadd.f32 %v7380, %v7540
        %v7542 = vpop.f32.mrf.mxu0
        %7543 = vmatprep.mubr.bf16.mxu0 %v7177
        %7544 = vmatmul.mubr.bf16.gmra.mxu0 %v7176
        %v7545 = vpop.f32.mrf.mxu0
        %v7546 = vadd.f32 %v7385, %v7545
        %v7547 = vpop.f32.mrf.mxu0
        %v7548 = vpop.f32.mrf.mxu0
        %v7549 = vadd.f32 %v7388, %v7548
        %v7550 = vpop.f32.mrf.mxu0
        %7551 = vmatprep.mubr.bf16.mxu0 %v7181
        %7552 = vmatmul.mubr.bf16.gmra.mxu0 %v7180
        %v7553 = vpop.f32.mrf.mxu0
        %v7554 = vadd.f32 %v7393, %v7553
        %v7555 = vpop.f32.mrf.mxu0
        %v7556 = vpop.f32.mrf.mxu0
        %v7557 = vadd.f32 %v7396, %v7556
        %v7558 = vpop.f32.mrf.mxu0
        %7559 = vmatprep.mubr.bf16.mxu0 %v7185
        %7560 = vmatmul.mubr.bf16.gmra.mxu0 %v7184
        %v7561 = vpop.f32.mrf.mxu0
        %v7562 = vadd.f32 %v7401, %v7561
        %v7563 = vpop.f32.mrf.mxu0
        %v7564 = vpop.f32.mrf.mxu0
        %v7565 = vadd.f32 %v7404, %v7564
        %v7566 = vpop.f32.mrf.mxu0
        %7567 = vmatprep.mubr.bf16.mxu0 %v7189
        %7568 = vmatmul.mubr.bf16.gmra.mxu0 %v7188
        %v7569 = vpop.f32.mrf.mxu0
        %v7570 = vadd.f32 %v7409, %v7569
        %v7571 = vpop.f32.mrf.mxu0
        %v7572 = vpop.f32.mrf.mxu0
        %v7573 = vadd.f32 %v7412, %v7572
        %v7574 = vpop.f32.mrf.mxu0
        %7575 = vdwg.mxu0
        %v7576 = vmax.f32 %v7450, 0.0
        %v7577 = vmax.f32 %v7453, 0.0
        %v7578 = vmax.f32 %v7458, 0.0
        %v7579 = vmax.f32 %v7461, 0.0
        %v7580 = vmax.f32 %v7466, 0.0
        %v7581 = vmax.f32 %v7469, 0.0
        %v7582 = vmax.f32 %v7474, 0.0
        %v7583 = vmax.f32 %v7477, 0.0
        %v7584 = vmax.f32 %v7482, 0.0
        %v7585 = vmax.f32 %v7485, 0.0
        %v7586 = vmax.f32 %v7490, 0.0
        %v7587 = vmax.f32 %v7493, 0.0
        %v7588 = vmax.f32 %v7498, 0.0
        %v7589 = vmax.f32 %v7501, 0.0
        %v7590 = vmax.f32 %v7506, 0.0
        %v7591 = vmax.f32 %v7509, 0.0
        %v7592 = vmax.f32 %v7514, 0.0
        %v7593 = vmax.f32 %v7517, 0.0
        %v7594 = vmax.f32 %v7522, 0.0
        %v7595 = vmax.f32 %v7525, 0.0
        %v7596 = vmax.f32 %v7530, 0.0
        %v7597 = vmax.f32 %v7533, 0.0
        %v7598 = vmax.f32 %v7538, 0.0
        %v7599 = vmax.f32 %v7541, 0.0
        %v7600 = vmax.f32 %v7546, 0.0
        %v7601 = vmax.f32 %v7549, 0.0
        %v7602 = vmax.f32 %v7554, 0.0
        %v7603 = vmax.f32 %v7557, 0.0
        %v7604 = vmax.f32 %v7562, 0.0
        %v7605 = vmax.f32 %v7565, 0.0
        %v7606 = vmax.f32 %v7570, 0.0
        %v7607 = vmax.f32 %v7573, 0.0
        %v7608 = vld [vmem:[%s11] sm:$0xff]
        %v7609 = vld [vmem:[%s11 + $0x8] sm:$0x11]
        %v7610 = vpack.c.bf16 %v7577, %v7576
        %v7611 = vpack.c.bf16 %v7579, %v7578
        %v7612 = vpack.c.bf16 %v7581, %v7580
        %v7613 = vpack.c.bf16 %v7583, %v7582
        %v7614 = vpack.c.bf16 %v7585, %v7584
        %v7615 = vpack.c.bf16 %v7587, %v7586
        %v7616 = vpack.c.bf16 %v7589, %v7588
        %v7617 = vpack.c.bf16 %v7591, %v7590
        %v7618 = vpack.c.bf16 %v7593, %v7592
        %v7619 = vpack.c.bf16 %v7595, %v7594
        %v7620 = vpack.c.bf16 %v7597, %v7596
        %v7621 = vpack.c.bf16 %v7599, %v7598
        %v7622 = vpack.c.bf16 %v7601, %v7600
        %v7623 = vpack.c.bf16 %v7603, %v7602
        %v7624 = vpack.c.bf16 %v7605, %v7604
        %v7625 = vpack.c.bf16 %v7607, %v7606
        %v7626 = vld [vmem:[%s12] sm:$0xff]
        %v7627 = vld [vmem:[%s12 + $0x8] sm:$0x1]
        %v7630 = vunpack.c.l.b16 %v7608
        %v7631 = vunpack.c.h.b16 %v7608
        %v7632 = vunpack.c.l.b16 %v7609
        %v7633 = vunpack.c.h.b16 %v7609
        %v7634 = vpack.c.b16 %v7632, %v7630
        %v7635 = vpack.c.b16 %v7633, %v7631
        %7638 = vmatprep.subr.bf16.mxu0 0
        %7639 = vmatpush1.bf16.msra.mxu0 %v7617
        %7640 = vmatprep.subr.bf16.mxu0 0
        %7641 = vmatpush1.bf16.msra.mxu0 %v7616
        %7642 = vmatprep.subr.bf16.mxu0 0
        %7643 = vmatpush1.bf16.msra.mxu0 %v7615
        %7644 = vmatprep.subr.bf16.mxu0 0
        %7645 = vmatpush1.bf16.msra.mxu0 %v7614
        %7646 = vmatprep.subr.bf16.mxu0 0
        %7647 = vmatpush1.bf16.msra.mxu0 %v7613
        %7648 = vmatprep.subr.bf16.mxu0 0
        %7649 = vmatpush1.bf16.msra.mxu0 %v7612
        %7650 = vmatprep.subr.bf16.mxu0 0
        %7651 = vmatpush1.bf16.msra.mxu0 %v7611
        %7652 = vmatprep.subr.bf16.mxu0 0
        %7653 = vmatpush1.bf16.msra.mxu0 %v7610
        %7654 = vmatprep.subr.bf16.mxu0 0
        %7655 = vmatpush2.bf16.msra.mxu0 %v7625
        %7656 = vmatprep.subr.bf16.mxu0 0
        %7657 = vmatpush2.bf16.msra.mxu0 %v7624
        %7658 = vmatprep.subr.bf16.mxu0 0
        %7659 = vmatpush2.bf16.msra.mxu0 %v7623
        %7660 = vmatprep.subr.bf16.mxu0 0
        %7661 = vmatpush2.bf16.msra.mxu0 %v7622
        %7662 = vmatprep.subr.bf16.mxu0 0
        %7663 = vmatpush2.bf16.msra.mxu0 %v7621
        %7664 = vmatprep.subr.bf16.mxu0 0
        %7665 = vmatpush2.bf16.msra.mxu0 %v7620
        %7666 = vmatprep.subr.bf16.mxu0 0
        %7667 = vmatpush2.bf16.msra.mxu0 %v7619
        %7668 = vmatprep.subr.bf16.mxu0 0
        %7669 = vmatpush2.bf16.msra.mxu0 %v7618
        %7670 = vmatprep.mubr.bf16.mxu0 %v7635
        %7671 = vmatmul.mubr.bf16.gmra.mxu0 %v7634
        %v7672 = vpop.f32.mrf.mxu0
        %v7673 = vadd.f32 %v7626, %v7672
        %v7674 = vpop.f32.mrf.mxu0
        %v7675 = vpop.f32.mrf.mxu0
        %v7676 = vadd.f32 %v7627, %v7675
        %v7677 = vpop.f32.mrf.mxu0
        %7678 = vdwg.mxu0
        %7679 = vst.msk [vmem:[%s460] sm:$0xff] %vm3534, %v7673
        %vm7680 = vcmask 0
        %7681 = vst.msk [vmem:[%s460 + $0x8] sm:$0x1] %vm7680, %v7676
      $region80: #{tnet3d_forward.1} parent=71 // pred_fallthru
        _
      %p7682 = scmp.lt.s32.totalorder %s28, 1
      %s7683 = scalar_select %p7682, %s28, 1
      %s7684 = smul.addr %s7683, 2
      %s7685 = smul.addr %s7684, 8
      %s7686 = scalar_lea.vmem %s13, %s7685
      // Predicated region
      $region81: #{tnet3d_forward.1} parent=71 // pred_check
        %p7687 = pneg %p334
      $region82: #{tnet3d_forward.1} parent=71 // pred_check_branch
        %7689 = sbr.rel (%p7687) target = $region84
      $region83: #{tnet3d_forward.1} parent=71 // pred_region
        _
      $region84: #{tnet3d_forward.1} parent=71 // pred_fallthru
        _
    $region72: #{tnet3d_forward.1} parent=5 // pred_fallthru
      _
    %p7690 = scmp.le.s32.totalorder 2, %s19
    // Predicated region
    $region85: #{tnet3d_forward.1} parent=5 // pred_check
      %p7691 = pneg %p7690
    $region86: #{tnet3d_forward.1} parent=5 // pred_check_branch
      %7693 = sbr.rel (%p7691) target = $region88
    $region87: #{tnet3d_forward.1} parent=5 // pred_region
      %s7694 = ssub.s32 %s19, 2
      // Predicated region
      $region89: #{tnet3d_forward.1} parent=87 // pred_check
        %p7695 = pneg %p340
      $region90: #{tnet3d_forward.1} parent=87 // pred_check_branch
        %7697 = sbr.rel (%p7695) target = $region92
      $region91: #{tnet3d_forward.1} parent=87 // pred_region
        %p7698 = scmp.lt.s32.totalorder %s30, 1
        %s7699 = scalar_select %p7698, %s30, 1
        %s7700 = smul.addr %s7699, 2
        %s7701 = smul.addr %s7700, 8
        %s7702 = scalar_lea.vmem %s13, %s7701
      $region92: #{tnet3d_forward.1} parent=87 // pred_fallthru
        _
    $region88: #{tnet3d_forward.1} parent=5 // pred_fallthru
      _
  $region6: #{tnet3d_forward.1} parent=0 // loop_footer
    %s23 = sadd.s32 1, %s19
  $region7: #{tnet3d_forward.1} parent=0 // loop_footer_branch
    %18 = sbr.rel target = $region3
  $region8: #{tnet3d_forward.1} parent=0 // loop_exit
    _

</llo_original>
